<compile_context>
chip_gen: v6e
topology: v6e:2x2x1
jax: 0.10.0
libtpu: 0.0.40
codegen_flags: <defaults>
</compile_context>

<pallas_src>
import functools

import jax
import jax.numpy as jnp
from jax.experimental import pallas as pl
from jax.experimental.pallas import tpu as pltpu

LEAKY_SLOPE = 0.1
BN_EPS = 1e-5


# ---------------------------------------------------------------------------
# Pallas kernels
# ---------------------------------------------------------------------------
def _conv_block_res_kernel(a_ref, w_ref, b_ref, rw_ref, rb_ref, o_ref, *, cin, center):
    """ConvolutionBlock with 1x1-conv residual, fully fused.

    out = leaky(A @ W + b) + (x_center @ RW + rb)
    where x_center = A[:, center*cin:(center+1)*cin] is the centre tap of the
    3x3 im2col patches (i.e. x itself), W/RW already have the BN scale folded.
    """
    a = a_ref[...]
    y = jnp.dot(a, w_ref[...], preferred_element_type=jnp.float32) + b_ref[...]
    y = jnp.maximum(y, LEAKY_SLOPE * y)
    xc = a[:, center * cin:(center + 1) * cin]
    if cin == 1:
        r = xc.astype(jnp.float32) * rw_ref[...] + rb_ref[...]
    else:
        r = jnp.dot(xc, rw_ref[...], preferred_element_type=jnp.float32) + rb_ref[...]
    o_ref[...] = y + r


def _conv_block_id_kernel(a_ref, w_ref, b_ref, o_ref, *, cin, center):
    """ConvolutionBlock with identity residual (cin == cout)."""
    a = a_ref[...]
    y = jnp.dot(a, w_ref[...], preferred_element_type=jnp.float32) + b_ref[...]
    y = jnp.maximum(y, LEAKY_SLOPE * y)
    o_ref[...] = y + a[:, center * cin:(center + 1) * cin].astype(jnp.float32)


def _deconv_phase_kernel(a_ref, w_ref, b_ref, s_ref, t_ref, o_ref):
    """One sub-pixel phase of ConvTranspose2d: BN(leaky(A @ W + bias))."""
    y = jnp.dot(a_ref[...], w_ref[...], preferred_element_type=jnp.float32) + b_ref[...]
    y = jnp.maximum(y, LEAKY_SLOPE * y)
    o_ref[...] = y * s_ref[...] + t_ref[...]


def _final_conv_kernel(a_ref, w_ref, b_ref, o_ref):
    """Final Conv2d with bias, no activation."""
    o_ref[...] = jnp.dot(a_ref[...], w_ref[...], preferred_element_type=jnp.float32) + b_ref[...]


def _correlation_kernel(f1_ref, f2p_ref, o_ref, *, md, H, W):
    """corr[h, w, d] = sum_c f1[h, w, c] * f2_padded[h+dy, w+dx, c] (f32)."""
    C = f1_ref.shape[-1]
    n_d = 2 * md + 1
    f1 = f1_ref[0].reshape(H * W, C)
    f2p = f2p_ref[0]                                   # (H+2md, W+2md, C)
    cols = []
    for dy in range(n_d):                              # static unroll (small D)
        for dx in range(n_d):
            f2s = f2p[dy:dy + H, dx:dx + W, :].reshape(H * W, C)
            cols.append(jnp.sum(f1 * f2s, axis=-1, keepdims=True))
    o_ref[...] = jnp.concatenate(cols, axis=-1).reshape(1, H, W, n_d * n_d)


# ---------------------------------------------------------------------------
# Pallas wrappers
# ---------------------------------------------------------------------------
def _pick_tm(M):
    for tm in (512, 256, 128):
        if M >= 2 * tm:
            return tm
    return 128


def _fused_matmul(kernel, a, w, extras, n_out):
    """Tile over rows of `a`; bf16 MXU inputs, f32 accumulation.

    a: (M, K) patches, w: (K, n_out) weights (BN scale pre-folded), extras:
    small broadcast operands (biases / affines / residual weights).
    """
    M, K = a.shape
    tm = _pick_tm(M)
    Mp = pl.cdiv(M, tm) * tm
    if Mp != M:                                        # pad rows only (cheap zeros)
        a = jnp.pad(a, ((0, Mp - M), (0, 0)))
    a = a.astype(jnp.bfloat16)
    w = w.astype(jnp.bfloat16)
    in_specs = [pl.BlockSpec((tm, K), lambda i: (i, 0)),
                pl.BlockSpec((K, n_out), lambda i: (0, 0))]
    for _ in extras:
        in_specs.append(pl.BlockSpec(None, lambda i: (0, 0)))  # placeholder, replaced below
    in_specs = in_specs[:2] + [pl.BlockSpec(e.shape, lambda i: (0, 0)) for e in extras]
    out = pl.pallas_call(
        kernel,
        out_shape=jax.ShapeDtypeStruct((Mp, n_out), jnp.float32),
        grid=(Mp // tm,),
        in_specs=in_specs,
        out_specs=pl.BlockSpec((tm, n_out), lambda i: (i, 0)),
        compiler_params=pltpu.CompilerParams(dimension_semantics=("parallel",)),
    )(a, w, *extras)
    return out[:M]


def correlation(f1, f2, max_displacement):
    """Correlation volume, gridded over batch; f2 is padded once (no D-x stack)."""
    N, H, W, C = f1.shape
    md = max_displacement
    D = (2 * md + 1) ** 2
    f2p = jnp.pad(f2, ((0, 0), (md, md), (md, md), (0, 0)))
    Hp, Wp = H + 2 * md, W + 2 * md
    # TODO(synk): add a row-block grid axis for large resolutions (whole-image
    # per-batch blocks are fine at these sizes but scale with image area).
    kernel = functools.partial(_correlation_kernel, md=md, H=H, W=W)
    return pl.pallas_call(
        kernel,
        out_shape=jax.ShapeDtypeStruct((N, H, W, D), jnp.float32),
        grid=(N,),
        in_specs=[
            pl.BlockSpec((1, H, W, C), lambda n: (n, 0, 0, 0)),
            pl.BlockSpec((1, Hp, Wp, C), lambda n: (n, 0, 0, 0)),
        ],
        out_specs=pl.BlockSpec((1, H, W, D), lambda n: (n, 0, 0, 0)),
        compiler_params=pltpu.CompilerParams(dimension_semantics=("parallel",)),
    )(f1.astype(jnp.float32), f2p.astype(jnp.float32))


# ---------------------------------------------------------------------------
# JAX glue: tap gather (im2col), pooling, blocks
# ---------------------------------------------------------------------------
def _gather_taps(xp, offsets, H_out, W_out):
    """xp: padded NHWC.  Returns tap-major patches (N*H_out*W_out, T*C)."""
    N, _, _, C = xp.shape
    slabs = [xp[:, di:di + H_out, dj:dj + W_out, :] for (di, dj) in offsets]
    patches = jnp.stack(slabs, axis=3)                 # (N, H, W, T, C)
    return patches.reshape(N * H_out * W_out, len(offsets) * C)


def maxpool2(x):
    # TODO(synk): 2x2 max-pool kept in plain JAX glue (tiny reduction vs the convs).
    N, H, W, C = x.shape
    return x.reshape(N, H // 2, 2, W // 2, 2, C).max(axis=(2, 4))


def bn_affine(bn):
    scale = bn["gamma"] / jnp.sqrt(bn["var"] + BN_EPS)
    shift = bn["beta"] - bn["mean"] * scale
    return scale, shift


def conv_block(x, p):
    """ConvolutionBlock: LeakyReLU(BN(conv3x3(x))) + residual, fused in one kernel."""
    N, H, W, Cin = x.shape
    w = p["w"]                                         # (Cout, Cin, 3, 3) torch layout
    Cout, _, k, _ = w.shape
    xp = jnp.pad(x, ((0, 0), (1, 1), (1, 1), (0, 0)))
    offsets = [(i, j) for i in range(k) for j in range(k)]
    patches = _gather_taps(xp, offsets, H, W)          # (M, k*k*Cin), tap-major
    s1, b1 = bn_affine(p["bn"])
    wm = w.transpose(2, 3, 1, 0).reshape(k * k * Cin, Cout) * s1[None, :]   # fold BN scale
    center = (k // 2) * k + (k // 2)
    if "rw" in p:
        rs, rb = bn_affine(p["rbn"])
        rw = p["rw"].reshape(Cout, Cin).T * rs[None, :]                     # fold BN scale
        kernel = functools.partial(_conv_block_res_kernel, cin=Cin, center=center)
        extras = [b1.reshape(1, Cout).astype(jnp.float32),
                  rw.astype(jnp.bfloat16),
                  rb.reshape(1, Cout).astype(jnp.float32)]
    else:
        kernel = functools.partial(_conv_block_id_kernel, cin=Cin, center=center)
        extras = [b1.reshape(1, Cout).astype(jnp.float32)]
    out = _fused_matmul(kernel, patches, wm, extras, Cout)
    return out.reshape(N, H, W, Cout)


def conv_transpose_block(x, p):
    """ConvTranspose2d(k=4,s=2,p=1)+bias -> LeakyReLU(0.1) -> BatchNorm.

    4-phase sub-pixel decomposition: each output parity (py, px) is a 2x2 conv
    over the input with a 2x2 sub-filter of the 4x4 transposed kernel.
    """
    N, H, W, Cin = x.shape
    wt = p["w"]                                        # (Cin, Cout, 4, 4) torch layout
    Cout = wt.shape[1]
    xp = jnp.pad(x, ((0, 0), (1, 1), (1, 1), (0, 0)))
    s, t = bn_affine(p["bn"])
    extras = [p["b"].reshape(1, Cout).astype(jnp.float32),
              s.reshape(1, Cout).astype(jnp.float32),
              t.reshape(1, Cout).astype(jnp.float32)]
    phases = {}
    for py in (0, 1):
        for px in (0, 1):
            offsets = [(py + a, px + b) for a in (0, 1) for b in (0, 1)]
            patches = _gather_taps(xp, offsets, H, W)  # (M, 4*Cin)
            rows = [3 - py, 1 - py]                    # kernel rows for taps a=0,1
            cols = [3 - px, 1 - px]                    # kernel cols for taps b=0,1
            wsub = jnp.stack(
                [jnp.stack([wt[:, :, r, c] for c in cols], axis=-1) for r in rows],
                axis=-2)                               # (Cin, Cout, 2, 2) indexed [.., a, b]
            wmat = wsub.transpose(2, 3, 0, 1).reshape(4 * Cin, Cout)
            y = _fused_matmul(_deconv_phase_kernel, patches, wmat, extras, Cout)
            phases[(py, px)] = y.reshape(N, H, W, Cout)
    row0 = jnp.stack([phases[(0, 0)], phases[(0, 1)]], axis=3)   # (N,H,W,2,C), px
    row1 = jnp.stack([phases[(1, 0)], phases[(1, 1)]], axis=3)
    Y = jnp.stack([row0, row1], axis=2)                          # (N,H,2,W,2,C)
    return Y.reshape(N, 2 * H, 2 * W, Cout)


def conv2d_final(x, p):
    """Final Conv2d(32 -> 2, k=3, p=1) with bias, no activation."""
    N, H, W, Cin = x.shape
    w = p["w"]
    Cout = w.shape[0]
    xp = jnp.pad(x, ((0, 0), (1, 1), (1, 1), (0, 0)))
    offsets = [(i, j) for i in range(3) for j in range(3)]
    patches = _gather_taps(xp, offsets, H, W)
    wm = w.transpose(2, 3, 1, 0).reshape(9 * Cin, Cout)
    extras = [p["b"].reshape(1, Cout).astype(jnp.float32)]
    out = _fused_matmul(_final_conv_kernel, patches, wm, extras, Cout)
    return out.reshape(N, H, W, Cout)


# ---------------------------------------------------------------------------
# Parameters (deterministic, synthetic)
# ---------------------------------------------------------------------------
def _conv_w(key, o, c, k):
    fan_in = c * k * k
    return jax.random.normal(key, (o, c, k, k), jnp.float32) / jnp.sqrt(fan_in)


def _bn(key, c):
    k1, k2, k3, k4 = jax.random.split(key, 4)
    return {
        "gamma": 1.0 + 0.1 * jax.random.normal(k1, (c,), jnp.float32),
        "beta": 0.1 * jax.random.normal(k2, (c,), jnp.float32),
        "mean": 0.1 * jax.random.normal(k3, (c,), jnp.float32),
        "var": 1.0 + 0.1 * jnp.abs(jax.random.normal(k4, (c,), jnp.float32)),
    }


def _conv_block_params(key, cin, cout, k=3):
    k1, k2, k3, k4 = jax.random.split(key, 4)
    p = {"w": _conv_w(k1, cout, cin, k), "bn": _bn(k2, cout)}
    if cin != cout:
        p["rw"] = _conv_w(k3, cout, cin, 1)
        p["rbn"] = _bn(k4, cout)
    return p


def init_params(key, max_displacement):
    D = (2 * max_displacement + 1) ** 2
    ks = jax.random.split(key, 13)
    return {
        "cb1": _conv_block_params(ks[0], 1, 32),
        "cb2": _conv_block_params(ks[1], 32, 64),
        "cb3": _conv_block_params(ks[2], 64, 128),
        "cb4": _conv_block_params(ks[3], 128 + D, 128),
        "cb5": _conv_block_params(ks[4], 128, 128),
        "ct1": {"w": 0.1 * jax.random.normal(ks[5], (128, 64, 4, 4), jnp.float32),
                "b": 0.1 * jax.random.normal(ks[6], (64,), jnp.float32),
                "bn": _bn(ks[7], 64)},
        "ct2": {"w": 0.1 * jax.random.normal(ks[8], (64, 32, 4, 4), jnp.float32),
                "b": 0.1 * jax.random.normal(ks[9], (32,), jnp.float32),
                "bn": _bn(ks[10], 32)},
        "final": {"w": _conv_w(ks[11], 2, 32, 3),
                  "b": 0.1 * jax.random.normal(ks[12], (2,), jnp.float32)},
    }


# ---------------------------------------------------------------------------
# Full forward pass
# ---------------------------------------------------------------------------
def motion_vector_regression_forward(params, x_nchw, max_displacement):
    x = jnp.transpose(x_nchw, (0, 2, 3, 1)).astype(jnp.float32)   # NCHW -> NHWC
    img1 = x[..., 0:1]
    img2 = x[..., 1:2]

    def features(img):
        h = conv_block(img, params["cb1"])
        h = maxpool2(h)
        h = conv_block(h, params["cb2"])
        h = maxpool2(h)
        h = conv_block(h, params["cb3"])
        return h

    f1 = features(img1)
    f2 = features(img2)
    corr = correlation(f1, f2, max_displacement)                  # (N, H/4, W/4, D)
    combined = jnp.concatenate([f1, corr], axis=-1)               # channels: feats then corr
    h = conv_block(combined, params["cb4"])
    h = conv_block(h, params["cb5"])
    h = conv_transpose_block(h, params["ct1"])
    h = conv_transpose_block(h, params["ct2"])
    out = conv2d_final(h, params["final"])
    return jnp.transpose(out, (0, 3, 1, 2))                       # back to NCHW


if __name__ == "__main__":
    N, H, W = 2, 16, 16
    MAX_DISP = 2   # small displacement for the synthetic test -> (2*2+1)^2 = 25 corr channels

    params = init_params(jax.random.PRNGKey(42), MAX_DISP)
    x = jax.random.normal(jax.random.PRNGKey(0), (N, 2, H, W), jnp.float32)

    fwd = jax.jit(lambda p, inp: motion_vector_regression_forward(p, inp, MAX_DISP))
    out = fwd(params, x)
    out = jax.block_until_ready(out)

    assert out.shape == (N, 2, H, W), out.shape
    assert out.dtype == jnp.float32
    assert bool(jnp.all(jnp.isfinite(out)))
    print("KERNEL_OK")
</pallas_src>

<mosaic_0001>
module attributes {stable_mosaic.version = 11 : i64} {
  func.func @_conv_block_res_kernel(%arg0: i32, %arg1: memref<256x9xbf16, #tpu.memory_space<vmem>>, %arg2: memref<9x32xbf16, #tpu.memory_space<vmem>>, %arg3: memref<1x32xf32, #tpu.memory_space<vmem>>, %arg4: memref<1x32xbf16, #tpu.memory_space<vmem>>, %arg5: memref<1x32xf32, #tpu.memory_space<vmem>>, %arg6: memref<256x32xf32, #tpu.memory_space<vmem>>) attributes {dimension_semantics = [#tpu.dimension_semantics<parallel>], iteration_bounds = array<i64: 2>, scalar_prefetch = 0 : i64, scratch_operands = 0 : i64, tpu.core_type = #tpu.core_type<tc>, window_params = [{transform_indices = @transform_0, window_bounds = array<i64: 256, 9>}, {pipeline_mode = #tpu.pipeline_mode<synchronous>, transform_indices = @transform_1, window_bounds = array<i64: 9, 32>}, {pipeline_mode = #tpu.pipeline_mode<synchronous>, transform_indices = @transform_2, window_bounds = array<i64: 1, 32>}, {pipeline_mode = #tpu.pipeline_mode<synchronous>, transform_indices = @transform_3, window_bounds = array<i64: 1, 32>}, {pipeline_mode = #tpu.pipeline_mode<synchronous>, transform_indices = @transform_4, window_bounds = array<i64: 1, 32>}, {transform_indices = @transform_5, window_bounds = array<i64: 256, 32>}]} {
    %c0 = arith.constant 0 : index
    %c0_0 = arith.constant 0 : index
    %0 = vector.load %arg1[%c0, %c0_0] : memref<256x9xbf16, #tpu.memory_space<vmem>>, vector<256x9xbf16>
    %c0_1 = arith.constant 0 : index
    %c0_2 = arith.constant 0 : index
    %1 = vector.load %arg2[%c0_1, %c0_2] : memref<9x32xbf16, #tpu.memory_space<vmem>>, vector<9x32xbf16>
    %cst = arith.constant dense<0.000000e+00> : vector<256x32xf32>
    %2 = tpu.matmul %0, %1, %cst {dimension_numbers = #tpu.dot_dimension_numbers<[1], [0], [0], [1], [0, 0, 1, 1], [], []>} : vector<256x9xbf16>, vector<9x32xbf16>, vector<256x32xf32> -> vector<256x32xf32>
    %c0_3 = arith.constant 0 : index
    %c0_4 = arith.constant 0 : index
    %3 = vector.load %arg3[%c0_3, %c0_4] : memref<1x32xf32, #tpu.memory_space<vmem>>, vector<1x32xf32>
    %4 = vector.broadcast %3 : vector<1x32xf32> to vector<256x32xf32>
    %5 = arith.addf %2, %4 : vector<256x32xf32>
    %cst_5 = arith.constant 1.000000e-01 : f32
    %6 = vector.broadcast %cst_5 : f32 to vector<256x32xf32>
    %7 = arith.mulf %6, %5 : vector<256x32xf32>
    %8 = arith.maximumf %5, %7 : vector<256x32xf32>
    %9 = vector.extract_strided_slice %0 {offsets = [0, 4], sizes = [256, 1], strides = [1, 1]} : vector<256x9xbf16> to vector<256x1xbf16>
    %10 = arith.extf %9 : vector<256x1xbf16> to vector<256x1xf32>
    %c0_6 = arith.constant 0 : index
    %c0_7 = arith.constant 0 : index
    %11 = vector.load %arg4[%c0_6, %c0_7] : memref<1x32xbf16, #tpu.memory_space<vmem>>, vector<1x32xbf16>
    %12 = arith.extf %11 : vector<1x32xbf16> to vector<1x32xf32>
    %13 = vector.broadcast %10 : vector<256x1xf32> to vector<256x32xf32>
    %14 = vector.broadcast %12 : vector<1x32xf32> to vector<256x32xf32>
    %15 = arith.mulf %13, %14 : vector<256x32xf32>
    %c0_8 = arith.constant 0 : index
    %c0_9 = arith.constant 0 : index
    %16 = vector.load %arg5[%c0_8, %c0_9] : memref<1x32xf32, #tpu.memory_space<vmem>>, vector<1x32xf32>
    %17 = vector.broadcast %16 : vector<1x32xf32> to vector<256x32xf32>
    %18 = arith.addf %15, %17 : vector<256x32xf32>
    %19 = arith.addf %8, %18 : vector<256x32xf32>
    %c0_10 = arith.constant 0 : index
    %c0_11 = arith.constant 0 : index
    %20 = vector.load %arg6[%c0_10, %c0_11] : memref<256x32xf32, #tpu.memory_space<vmem>>, vector<256x32xf32>
    tpu.vector_store %arg6[%c0_10, %c0_11], %19 {strides = array<i32>} : memref<256x32xf32, #tpu.memory_space<vmem>>, vector<256x32xf32>,
    return
  }
  func.func @transform_0(%arg0: i32) -> (i32, i32) {
    %c0_i32 = arith.constant 0 : i32
    %c0_i32_0 = arith.constant 0 : i32
    return %arg0, %c0_i32 : i32, i32
  }
  func.func @transform_1(%arg0: i32) -> (i32, i32) {
    %c0_i32 = arith.constant 0 : i32
    %c0_i32_0 = arith.constant 0 : i32
    %c0_i32_1 = arith.constant 0 : i32
    return %c0_i32, %c0_i32_0 : i32, i32
  }
  func.func @transform_2(%arg0: i32) -> (i32, i32) {
    %c0_i32 = arith.constant 0 : i32
    %c0_i32_0 = arith.constant 0 : i32
    %c0_i32_1 = arith.constant 0 : i32
    return %c0_i32, %c0_i32_0 : i32, i32
  }
  func.func @transform_3(%arg0: i32) -> (i32, i32) {
    %c0_i32 = arith.constant 0 : i32
    %c0_i32_0 = arith.constant 0 : i32
    %c0_i32_1 = arith.constant 0 : i32
    return %c0_i32, %c0_i32_0 : i32, i32
  }
  func.func @transform_4(%arg0: i32) -> (i32, i32) {
    %c0_i32 = arith.constant 0 : i32
    %c0_i32_0 = arith.constant 0 : i32
    %c0_i32_1 = arith.constant 0 : i32
    return %c0_i32, %c0_i32_0 : i32, i32
  }
  func.func @transform_5(%arg0: i32) -> (i32, i32) {
    %c0_i32 = arith.constant 0 : i32
    %c0_i32_0 = arith.constant 0 : i32
    return %arg0, %c0_i32 : i32, i32
  }
}

module attributes {stable_mosaic.version = 11 : i64} {
  func.func @_conv_block_res_kernel(%arg0: i32, %arg1: memref<128x288xbf16, #tpu.memory_space<vmem>>, %arg2: memref<288x64xbf16, #tpu.memory_space<vmem>>, %arg3: memref<1x64xf32, #tpu.memory_space<vmem>>, %arg4: memref<32x64xbf16, #tpu.memory_space<vmem>>, %arg5: memref<1x64xf32, #tpu.memory_space<vmem>>, %arg6: memref<128x64xf32, #tpu.memory_space<vmem>>) attributes {dimension_semantics = [#tpu.dimension_semantics<parallel>], iteration_bounds = array<i64: 1>, scalar_prefetch = 0 : i64, scratch_operands = 0 : i64, tpu.core_type = #tpu.core_type<tc>, window_params = [{transform_indices = @transform_0, window_bounds = array<i64: 128, 288>}, {pipeline_mode = #tpu.pipeline_mode<synchronous>, transform_indices = @transform_1, window_bounds = array<i64: 288, 64>}, {pipeline_mode = #tpu.pipeline_mode<synchronous>, transform_indices = @transform_2, window_bounds = array<i64: 1, 64>}, {pipeline_mode = #tpu.pipeline_mode<synchronous>, transform_indices = @transform_3, window_bounds = array<i64: 32, 64>}, {pipeline_mode = #tpu.pipeline_mode<synchronous>, transform_indices = @transform_4, window_bounds = array<i64: 1, 64>}, {transform_indices = @transform_5, window_bounds = array<i64: 128, 64>}]} {
    %c0 = arith.constant 0 : index
    %c0_0 = arith.constant 0 : index
    %0 = vector.load %arg1[%c0, %c0_0] : memref<128x288xbf16, #tpu.memory_space<vmem>>, vector<128x288xbf16>
    %c0_1 = arith.constant 0 : index
    %c0_2 = arith.constant 0 : index
    %1 = vector.load %arg2[%c0_1, %c0_2] : memref<288x64xbf16, #tpu.memory_space<vmem>>, vector<288x64xbf16>
    %cst = arith.constant dense<0.000000e+00> : vector<128x64xf32>
    %2 = tpu.matmul %0, %1, %cst {dimension_numbers = #tpu.dot_dimension_numbers<[1], [0], [0], [1], [0, 0, 1, 1], [], []>} : vector<128x288xbf16>, vector<288x64xbf16>, vector<128x64xf32> -> vector<128x64xf32>
    %c0_3 = arith.constant 0 : index
    %c0_4 = arith.constant 0 : index
    %3 = vector.load %arg3[%c0_3, %c0_4] : memref<1x64xf32, #tpu.memory_space<vmem>>, vector<1x64xf32>
    %4 = vector.broadcast %3 : vector<1x64xf32> to vector<128x64xf32>
    %5 = arith.addf %2, %4 : vector<128x64xf32>
    %cst_5 = arith.constant 1.000000e-01 : f32
    %6 = vector.broadcast %cst_5 : f32 to vector<128x64xf32>
    %7 = arith.mulf %6, %5 : vector<128x64xf32>
    %8 = arith.maximumf %5, %7 : vector<128x64xf32>
    %9 = vector.extract_strided_slice %0 {offsets = [0, 128], sizes = [128, 32], strides = [1, 1]} : vector<128x288xbf16> to vector<128x32xbf16>
    %c0_6 = arith.constant 0 : index
    %c0_7 = arith.constant 0 : index
    %10 = vector.load %arg4[%c0_6, %c0_7] : memref<32x64xbf16, #tpu.memory_space<vmem>>, vector<32x64xbf16>
    %cst_8 = arith.constant dense<0.000000e+00> : vector<128x64xf32>
    %11 = tpu.matmul %9, %10, %cst_8 {dimension_numbers = #tpu.dot_dimension_numbers<[1], [0], [0], [1], [0, 0, 1, 1], [], []>} : vector<128x32xbf16>, vector<32x64xbf16>, vector<128x64xf32> -> vector<128x64xf32>
    %c0_9 = arith.constant 0 : index
    %c0_10 = arith.constant 0 : index
    %12 = vector.load %arg5[%c0_9, %c0_10] : memref<1x64xf32, #tpu.memory_space<vmem>>, vector<1x64xf32>
    %13 = vector.broadcast %12 : vector<1x64xf32> to vector<128x64xf32>
    %14 = arith.addf %11, %13 : vector<128x64xf32>
    %15 = arith.addf %8, %14 : vector<128x64xf32>
    %c0_11 = arith.constant 0 : index
    %c0_12 = arith.constant 0 : index
    %16 = vector.load %arg6[%c0_11, %c0_12] : memref<128x64xf32, #tpu.memory_space<vmem>>, vector<128x64xf32>
    tpu.vector_store %arg6[%c0_11, %c0_12], %15 {strides = array<i32>} : memref<128x64xf32, #tpu.memory_space<vmem>>, vector<128x64xf32>,
    return
  }
  func.func @transform_0(%arg0: i32) -> (i32, i32) {
    %c0_i32 = arith.constant 0 : i32
    %c0_i32_0 = arith.constant 0 : i32
    return %arg0, %c0_i32 : i32, i32
  }
  func.func @transform_1(%arg0: i32) -> (i32, i32) {
    %c0_i32 = arith.constant 0 : i32
    %c0_i32_0 = arith.constant 0 : i32
    %c0_i32_1 = arith.constant 0 : i32
    return %c0_i32, %c0_i32_0 : i32, i32
  }
  func.func @transform_2(%arg0: i32) -> (i32, i32) {
    %c0_i32 = arith.constant 0 : i32
    %c0_i32_0 = arith.constant 0 : i32
    %c0_i32_1 = arith.constant 0 : i32
    return %c0_i32, %c0_i32_0 : i32, i32
  }
  func.func @transform_3(%arg0: i32) -> (i32, i32) {
    %c0_i32 = arith.constant 0 : i32
    %c0_i32_0 = arith.constant 0 : i32
    %c0_i32_1 = arith.constant 0 : i32
    return %c0_i32, %c0_i32_0 : i32, i32
  }
  func.func @transform_4(%arg0: i32) -> (i32, i32) {
    %c0_i32 = arith.constant 0 : i32
    %c0_i32_0 = arith.constant 0 : i32
    %c0_i32_1 = arith.constant 0 : i32
    return %c0_i32, %c0_i32_0 : i32, i32
  }
  func.func @transform_5(%arg0: i32) -> (i32, i32) {
    %c0_i32 = arith.constant 0 : i32
    %c0_i32_0 = arith.constant 0 : i32
    return %arg0, %c0_i32 : i32, i32
  }
}

module attributes {stable_mosaic.version = 11 : i64} {
  func.func @_conv_block_res_kernel(%arg0: i32, %arg1: memref<128x576xbf16, #tpu.memory_space<vmem>>, %arg2: memref<576x128xbf16, #tpu.memory_space<vmem>>, %arg3: memref<1x128xf32, #tpu.memory_space<vmem>>, %arg4: memref<64x128xbf16, #tpu.memory_space<vmem>>, %arg5: memref<1x128xf32, #tpu.memory_space<vmem>>, %arg6: memref<128x128xf32, #tpu.memory_space<vmem>>) attributes {dimension_semantics = [#tpu.dimension_semantics<parallel>], iteration_bounds = array<i64: 1>, scalar_prefetch = 0 : i64, scratch_operands = 0 : i64, tpu.core_type = #tpu.core_type<tc>, window_params = [{transform_indices = @transform_0, window_bounds = array<i64: 128, 576>}, {pipeline_mode = #tpu.pipeline_mode<synchronous>, transform_indices = @transform_1, window_bounds = array<i64: 576, 128>}, {pipeline_mode = #tpu.pipeline_mode<synchronous>, transform_indices = @transform_2, window_bounds = array<i64: 1, 128>}, {pipeline_mode = #tpu.pipeline_mode<synchronous>, transform_indices = @transform_3, window_bounds = array<i64: 64, 128>}, {pipeline_mode = #tpu.pipeline_mode<synchronous>, transform_indices = @transform_4, window_bounds = array<i64: 1, 128>}, {transform_indices = @transform_5, window_bounds = array<i64: 128, 128>}]} {
    %c0 = arith.constant 0 : index
    %c0_0 = arith.constant 0 : index
    %0 = vector.load %arg1[%c0, %c0_0] : memref<128x576xbf16, #tpu.memory_space<vmem>>, vector<128x576xbf16>
    %c0_1 = arith.constant 0 : index
    %c0_2 = arith.constant 0 : index
    %1 = vector.load %arg2[%c0_1, %c0_2] : memref<576x128xbf16, #tpu.memory_space<vmem>>, vector<576x128xbf16>
    %cst = arith.constant dense<0.000000e+00> : vector<128x128xf32>
    %2 = tpu.matmul %0, %1, %cst {dimension_numbers = #tpu.dot_dimension_numbers<[1], [0], [0], [1], [0, 0, 1, 1], [], []>} : vector<128x576xbf16>, vector<576x128xbf16>, vector<128x128xf32> -> vector<128x128xf32>
    %c0_3 = arith.constant 0 : index
    %c0_4 = arith.constant 0 : index
    %3 = vector.load %arg3[%c0_3, %c0_4] : memref<1x128xf32, #tpu.memory_space<vmem>>, vector<1x128xf32>
    %4 = vector.broadcast %3 : vector<1x128xf32> to vector<128x128xf32>
    %5 = arith.addf %2, %4 : vector<128x128xf32>
    %cst_5 = arith.constant 1.000000e-01 : f32
    %6 = vector.broadcast %cst_5 : f32 to vector<128x128xf32>
    %7 = arith.mulf %6, %5 : vector<128x128xf32>
    %8 = arith.maximumf %5, %7 : vector<128x128xf32>
    %9 = vector.extract_strided_slice %0 {offsets = [0, 256], sizes = [128, 64], strides = [1, 1]} : vector<128x576xbf16> to vector<128x64xbf16>
    %c0_6 = arith.constant 0 : index
    %c0_7 = arith.constant 0 : index
    %10 = vector.load %arg4[%c0_6, %c0_7] : memref<64x128xbf16, #tpu.memory_space<vmem>>, vector<64x128xbf16>
    %cst_8 = arith.constant dense<0.000000e+00> : vector<128x128xf32>
    %11 = tpu.matmul %9, %10, %cst_8 {dimension_numbers = #tpu.dot_dimension_numbers<[1], [0], [0], [1], [0, 0, 1, 1], [], []>} : vector<128x64xbf16>, vector<64x128xbf16>, vector<128x128xf32> -> vector<128x128xf32>
    %c0_9 = arith.constant 0 : index
    %c0_10 = arith.constant 0 : index
    %12 = vector.load %arg5[%c0_9, %c0_10] : memref<1x128xf32, #tpu.memory_space<vmem>>, vector<1x128xf32>
    %13 = vector.broadcast %12 : vector<1x128xf32> to vector<128x128xf32>
    %14 = arith.addf %11, %13 : vector<128x128xf32>
    %15 = arith.addf %8, %14 : vector<128x128xf32>
    %c0_11 = arith.constant 0 : index
    %c0_12 = arith.constant 0 : index
    %16 = vector.load %arg6[%c0_11, %c0_12] : memref<128x128xf32, #tpu.memory_space<vmem>>, vector<128x128xf32>
    tpu.vector_store %arg6[%c0_11, %c0_12], %15 {strides = array<i32>} : memref<128x128xf32, #tpu.memory_space<vmem>>, vector<128x128xf32>,
    return
  }
  func.func @transform_0(%arg0: i32) -> (i32, i32) {
    %c0_i32 = arith.constant 0 : i32
    %c0_i32_0 = arith.constant 0 : i32
    return %arg0, %c0_i32 : i32, i32
  }
  func.func @transform_1(%arg0: i32) -> (i32, i32) {
    %c0_i32 = arith.constant 0 : i32
    %c0_i32_0 = arith.constant 0 : i32
    %c0_i32_1 = arith.constant 0 : i32
    return %c0_i32, %c0_i32_0 : i32, i32
  }
  func.func @transform_2(%arg0: i32) -> (i32, i32) {
    %c0_i32 = arith.constant 0 : i32
    %c0_i32_0 = arith.constant 0 : i32
    %c0_i32_1 = arith.constant 0 : i32
    return %c0_i32, %c0_i32_0 : i32, i32
  }
  func.func @transform_3(%arg0: i32) -> (i32, i32) {
    %c0_i32 = arith.constant 0 : i32
    %c0_i32_0 = arith.constant 0 : i32
    %c0_i32_1 = arith.constant 0 : i32
    return %c0_i32, %c0_i32_0 : i32, i32
  }
  func.func @transform_4(%arg0: i32) -> (i32, i32) {
    %c0_i32 = arith.constant 0 : i32
    %c0_i32_0 = arith.constant 0 : i32
    %c0_i32_1 = arith.constant 0 : i32
    return %c0_i32, %c0_i32_0 : i32, i32
  }
  func.func @transform_5(%arg0: i32) -> (i32, i32) {
    %c0_i32 = arith.constant 0 : i32
    %c0_i32_0 = arith.constant 0 : i32
    return %arg0, %c0_i32 : i32, i32
  }
}

module attributes {stable_mosaic.version = 11 : i64} {
  func.func @_correlation_kernel(%arg0: i32, %arg1: memref<1x4x4x128xf32, #tpu.memory_space<vmem>>, %arg2: memref<1x8x8x128xf32, #tpu.memory_space<vmem>>, %arg3: memref<1x4x4x25xf32, #tpu.memory_space<vmem>>) attributes {dimension_semantics = [#tpu.dimension_semantics<parallel>], iteration_bounds = array<i64: 2>, scalar_prefetch = 0 : i64, scratch_operands = 0 : i64, tpu.core_type = #tpu.core_type<tc>, window_params = [{transform_indices = @transform_0, window_bounds = array<i64: 1, 4, 4, 128>}, {transform_indices = @transform_1, window_bounds = array<i64: 1, 8, 8, 128>}, {transform_indices = @transform_2, window_bounds = array<i64: 1, 4, 4, 25>}]} {
    %c0 = arith.constant 0 : index
    %c0_0 = arith.constant 0 : index
    %c0_1 = arith.constant 0 : index
    %c0_2 = arith.constant 0 : index
    %0 = vector.load %arg1[%c0, %c0_0, %c0_1, %c0_2] : memref<1x4x4x128xf32, #tpu.memory_space<vmem>>, vector<1x4x4x128xf32>
    %1 = vector.shape_cast %0 : vector<1x4x4x128xf32> to vector<4x4x128xf32>
    %2 = vector.shape_cast %1 : vector<4x4x128xf32> to vector<16x128xf32>
    %c0_3 = arith.constant 0 : index
    %c0_4 = arith.constant 0 : index
    %c0_5 = arith.constant 0 : index
    %c0_6 = arith.constant 0 : index
    %3 = vector.load %arg2[%c0_3, %c0_4, %c0_5, %c0_6] : memref<1x8x8x128xf32, #tpu.memory_space<vmem>>, vector<1x8x8x128xf32>
    %4 = vector.shape_cast %3 : vector<1x8x8x128xf32> to vector<8x8x128xf32>
    %5 = vector.extract_strided_slice %4 {offsets = [0, 0, 0], sizes = [4, 4, 128], strides = [1, 1, 1]} : vector<8x8x128xf32> to vector<4x4x128xf32>
    %6 = vector.shape_cast %5 : vector<4x4x128xf32> to vector<16x128xf32>
    %7 = arith.mulf %2, %6 : vector<16x128xf32>
    %cst = arith.constant dense<0.000000e+00> : vector<16xf32>
    %8 = vector.multi_reduction <add>, %7, %cst [1] : vector<16x128xf32> to vector<16xf32>
    %9 = vector.shape_cast %8 : vector<16xf32> to vector<16x1xf32>
    %10 = vector.extract_strided_slice %4 {offsets = [0, 1, 0], sizes = [4, 4, 128], strides = [1, 1, 1]} : vector<8x8x128xf32> to vector<4x4x128xf32>
    %11 = vector.shape_cast %10 : vector<4x4x128xf32> to vector<16x128xf32>
    %12 = arith.mulf %2, %11 : vector<16x128xf32>
    %cst_7 = arith.constant dense<0.000000e+00> : vector<16xf32>
    %13 = vector.multi_reduction <add>, %12, %cst_7 [1] : vector<16x128xf32> to vector<16xf32>
    %14 = vector.shape_cast %13 : vector<16xf32> to vector<16x1xf32>
    %15 = vector.extract_strided_slice %4 {offsets = [0, 2, 0], sizes = [4, 4, 128], strides = [1, 1, 1]} : vector<8x8x128xf32> to vector<4x4x128xf32>
    %16 = vector.shape_cast %15 : vector<4x4x128xf32> to vector<16x128xf32>
    %17 = arith.mulf %2, %16 : vector<16x128xf32>
    %cst_8 = arith.constant dense<0.000000e+00> : vector<16xf32>
    %18 = vector.multi_reduction <add>, %17, %cst_8 [1] : vector<16x128xf32> to vector<16xf32>
    %19 = vector.shape_cast %18 : vector<16xf32> to vector<16x1xf32>
    %20 = vector.extract_strided_slice %4 {offsets = [0, 3, 0], sizes = [4, 4, 128], strides = [1, 1, 1]} : vector<8x8x128xf32> to vector<4x4x128xf32>
    %21 = vector.shape_cast %20 : vector<4x4x128xf32> to vector<16x128xf32>
    %22 = arith.mulf %2, %21 : vector<16x128xf32>
    %cst_9 = arith.constant dense<0.000000e+00> : vector<16xf32>
    %23 = vector.multi_reduction <add>, %22, %cst_9 [1] : vector<16x128xf32> to vector<16xf32>
    %24 = vector.shape_cast %23 : vector<16xf32> to vector<16x1xf32>
    %25 = vector.extract_strided_slice %4 {offsets = [0, 4, 0], sizes = [4, 4, 128], strides = [1, 1, 1]} : vector<8x8x128xf32> to vector<4x4x128xf32>
    %26 = vector.shape_cast %25 : vector<4x4x128xf32> to vector<16x128xf32>
    %27 = arith.mulf %2, %26 : vector<16x128xf32>
    %cst_10 = arith.constant dense<0.000000e+00> : vector<16xf32>
    %28 = vector.multi_reduction <add>, %27, %cst_10 [1] : vector<16x128xf32> to vector<16xf32>
    %29 = vector.shape_cast %28 : vector<16xf32> to vector<16x1xf32>
    %30 = vector.extract_strided_slice %4 {offsets = [1, 0, 0], sizes = [4, 4, 128], strides = [1, 1, 1]} : vector<8x8x128xf32> to vector<4x4x128xf32>
    %31 = vector.shape_cast %30 : vector<4x4x128xf32> to vector<16x128xf32>
    %32 = arith.mulf %2, %31 : vector<16x128xf32>
    %cst_11 = arith.constant dense<0.000000e+00> : vector<16xf32>
    %33 = vector.multi_reduction <add>, %32, %cst_11 [1] : vector<16x128xf32> to vector<16xf32>
    %34 = vector.shape_cast %33 : vector<16xf32> to vector<16x1xf32>
    %35 = vector.extract_strided_slice %4 {offsets = [1, 1, 0], sizes = [4, 4, 128], strides = [1, 1, 1]} : vector<8x8x128xf32> to vector<4x4x128xf32>
    %36 = vector.shape_cast %35 : vector<4x4x128xf32> to vector<16x128xf32>
    %37 = arith.mulf %2, %36 : vector<16x128xf32>
    %cst_12 = arith.constant dense<0.000000e+00> : vector<16xf32>
    %38 = vector.multi_reduction <add>, %37, %cst_12 [1] : vector<16x128xf32> to vector<16xf32>
    %39 = vector.shape_cast %38 : vector<16xf32> to vector<16x1xf32>
    %40 = vector.extract_strided_slice %4 {offsets = [1, 2, 0], sizes = [4, 4, 128], strides = [1, 1, 1]} : vector<8x8x128xf32> to vector<4x4x128xf32>
    %41 = vector.shape_cast %40 : vector<4x4x128xf32> to vector<16x128xf32>
    %42 = arith.mulf %2, %41 : vector<16x128xf32>
    %cst_13 = arith.constant dense<0.000000e+00> : vector<16xf32>
    %43 = vector.multi_reduction <add>, %42, %cst_13 [1] : vector<16x128xf32> to vector<16xf32>
    %44 = vector.shape_cast %43 : vector<16xf32> to vector<16x1xf32>
    %45 = vector.extract_strided_slice %4 {offsets = [1, 3, 0], sizes = [4, 4, 128], strides = [1, 1, 1]} : vector<8x8x128xf32> to vector<4x4x128xf32>
    %46 = vector.shape_cast %45 : vector<4x4x128xf32> to vector<16x128xf32>
    %47 = arith.mulf %2, %46 : vector<16x128xf32>
    %cst_14 = arith.constant dense<0.000000e+00> : vector<16xf32>
    %48 = vector.multi_reduction <add>, %47, %cst_14 [1] : vector<16x128xf32> to vector<16xf32>
    %49 = vector.shape_cast %48 : vector<16xf32> to vector<16x1xf32>
    %50 = vector.extract_strided_slice %4 {offsets = [1, 4, 0], sizes = [4, 4, 128], strides = [1, 1, 1]} : vector<8x8x128xf32> to vector<4x4x128xf32>
    %51 = vector.shape_cast %50 : vector<4x4x128xf32> to vector<16x128xf32>
    %52 = arith.mulf %2, %51 : vector<16x128xf32>
    %cst_15 = arith.constant dense<0.000000e+00> : vector<16xf32>
    %53 = vector.multi_reduction <add>, %52, %cst_15 [1] : vector<16x128xf32> to vector<16xf32>
    %54 = vector.shape_cast %53 : vector<16xf32> to vector<16x1xf32>
    %55 = vector.extract_strided_slice %4 {offsets = [2, 0, 0], sizes = [4, 4, 128], strides = [1, 1, 1]} : vector<8x8x128xf32> to vector<4x4x128xf32>
    %56 = vector.shape_cast %55 : vector<4x4x128xf32> to vector<16x128xf32>
    %57 = arith.mulf %2, %56 : vector<16x128xf32>
    %cst_16 = arith.constant dense<0.000000e+00> : vector<16xf32>
    %58 = vector.multi_reduction <add>, %57, %cst_16 [1] : vector<16x128xf32> to vector<16xf32>
    %59 = vector.shape_cast %58 : vector<16xf32> to vector<16x1xf32>
    %60 = vector.extract_strided_slice %4 {offsets = [2, 1, 0], sizes = [4, 4, 128], strides = [1, 1, 1]} : vector<8x8x128xf32> to vector<4x4x128xf32>
    %61 = vector.shape_cast %60 : vector<4x4x128xf32> to vector<16x128xf32>
    %62 = arith.mulf %2, %61 : vector<16x128xf32>
    %cst_17 = arith.constant dense<0.000000e+00> : vector<16xf32>
    %63 = vector.multi_reduction <add>, %62, %cst_17 [1] : vector<16x128xf32> to vector<16xf32>
    %64 = vector.shape_cast %63 : vector<16xf32> to vector<16x1xf32>
    %65 = vector.extract_strided_slice %4 {offsets = [2, 2, 0], sizes = [4, 4, 128], strides = [1, 1, 1]} : vector<8x8x128xf32> to vector<4x4x128xf32>
    %66 = vector.shape_cast %65 : vector<4x4x128xf32> to vector<16x128xf32>
    %67 = arith.mulf %2, %66 : vector<16x128xf32>
    %cst_18 = arith.constant dense<0.000000e+00> : vector<16xf32>
    %68 = vector.multi_reduction <add>, %67, %cst_18 [1] : vector<16x128xf32> to vector<16xf32>
    %69 = vector.shape_cast %68 : vector<16xf32> to vector<16x1xf32>
    %70 = vector.extract_strided_slice %4 {offsets = [2, 3, 0], sizes = [4, 4, 128], strides = [1, 1, 1]} : vector<8x8x128xf32> to vector<4x4x128xf32>
    %71 = vector.shape_cast %70 : vector<4x4x128xf32> to vector<16x128xf32>
    %72 = arith.mulf %2, %71 : vector<16x128xf32>
    %cst_19 = arith.constant dense<0.000000e+00> : vector<16xf32>
    %73 = vector.multi_reduction <add>, %72, %cst_19 [1] : vector<16x128xf32> to vector<16xf32>
    %74 = vector.shape_cast %73 : vector<16xf32> to vector<16x1xf32>
    %75 = vector.extract_strided_slice %4 {offsets = [2, 4, 0], sizes = [4, 4, 128], strides = [1, 1, 1]} : vector<8x8x128xf32> to vector<4x4x128xf32>
    %76 = vector.shape_cast %75 : vector<4x4x128xf32> to vector<16x128xf32>
    %77 = arith.mulf %2, %76 : vector<16x128xf32>
    %cst_20 = arith.constant dense<0.000000e+00> : vector<16xf32>
    %78 = vector.multi_reduction <add>, %77, %cst_20 [1] : vector<16x128xf32> to vector<16xf32>
    %79 = vector.shape_cast %78 : vector<16xf32> to vector<16x1xf32>
    %80 = vector.extract_strided_slice %4 {offsets = [3, 0, 0], sizes = [4, 4, 128], strides = [1, 1, 1]} : vector<8x8x128xf32> to vector<4x4x128xf32>
    %81 = vector.shape_cast %80 : vector<4x4x128xf32> to vector<16x128xf32>
    %82 = arith.mulf %2, %81 : vector<16x128xf32>
    %cst_21 = arith.constant dense<0.000000e+00> : vector<16xf32>
    %83 = vector.multi_reduction <add>, %82, %cst_21 [1] : vector<16x128xf32> to vector<16xf32>
    %84 = vector.shape_cast %83 : vector<16xf32> to vector<16x1xf32>
    %85 = vector.extract_strided_slice %4 {offsets = [3, 1, 0], sizes = [4, 4, 128], strides = [1, 1, 1]} : vector<8x8x128xf32> to vector<4x4x128xf32>
    %86 = vector.shape_cast %85 : vector<4x4x128xf32> to vector<16x128xf32>
    %87 = arith.mulf %2, %86 : vector<16x128xf32>
    %cst_22 = arith.constant dense<0.000000e+00> : vector<16xf32>
    %88 = vector.multi_reduction <add>, %87, %cst_22 [1] : vector<16x128xf32> to vector<16xf32>
    %89 = vector.shape_cast %88 : vector<16xf32> to vector<16x1xf32>
    %90 = vector.extract_strided_slice %4 {offsets = [3, 2, 0], sizes = [4, 4, 128], strides = [1, 1, 1]} : vector<8x8x128xf32> to vector<4x4x128xf32>
    %91 = vector.shape_cast %90 : vector<4x4x128xf32> to vector<16x128xf32>
    %92 = arith.mulf %2, %91 : vector<16x128xf32>
    %cst_23 = arith.constant dense<0.000000e+00> : vector<16xf32>
    %93 = vector.multi_reduction <add>, %92, %cst_23 [1] : vector<16x128xf32> to vector<16xf32>
    %94 = vector.shape_cast %93 : vector<16xf32> to vector<16x1xf32>
    %95 = vector.extract_strided_slice %4 {offsets = [3, 3, 0], sizes = [4, 4, 128], strides = [1, 1, 1]} : vector<8x8x128xf32> to vector<4x4x128xf32>
    %96 = vector.shape_cast %95 : vector<4x4x128xf32> to vector<16x128xf32>
    %97 = arith.mulf %2, %96 : vector<16x128xf32>
    %cst_24 = arith.constant dense<0.000000e+00> : vector<16xf32>
    %98 = vector.multi_reduction <add>, %97, %cst_24 [1] : vector<16x128xf32> to vector<16xf32>
    %99 = vector.shape_cast %98 : vector<16xf32> to vector<16x1xf32>
    %100 = vector.extract_strided_slice %4 {offsets = [3, 4, 0], sizes = [4, 4, 128], strides = [1, 1, 1]} : vector<8x8x128xf32> to vector<4x4x128xf32>
    %101 = vector.shape_cast %100 : vector<4x4x128xf32> to vector<16x128xf32>
    %102 = arith.mulf %2, %101 : vector<16x128xf32>
    %cst_25 = arith.constant dense<0.000000e+00> : vector<16xf32>
    %103 = vector.multi_reduction <add>, %102, %cst_25 [1] : vector<16x128xf32> to vector<16xf32>
    %104 = vector.shape_cast %103 : vector<16xf32> to vector<16x1xf32>
    %105 = vector.extract_strided_slice %4 {offsets = [4, 0, 0], sizes = [4, 4, 128], strides = [1, 1, 1]} : vector<8x8x128xf32> to vector<4x4x128xf32>
    %106 = vector.shape_cast %105 : vector<4x4x128xf32> to vector<16x128xf32>
    %107 = arith.mulf %2, %106 : vector<16x128xf32>
    %cst_26 = arith.constant dense<0.000000e+00> : vector<16xf32>
    %108 = vector.multi_reduction <add>, %107, %cst_26 [1] : vector<16x128xf32> to vector<16xf32>
    %109 = vector.shape_cast %108 : vector<16xf32> to vector<16x1xf32>
    %110 = vector.extract_strided_slice %4 {offsets = [4, 1, 0], sizes = [4, 4, 128], strides = [1, 1, 1]} : vector<8x8x128xf32> to vector<4x4x128xf32>
    %111 = vector.shape_cast %110 : vector<4x4x128xf32> to vector<16x128xf32>
    %112 = arith.mulf %2, %111 : vector<16x128xf32>
    %cst_27 = arith.constant dense<0.000000e+00> : vector<16xf32>
    %113 = vector.multi_reduction <add>, %112, %cst_27 [1] : vector<16x128xf32> to vector<16xf32>
    %114 = vector.shape_cast %113 : vector<16xf32> to vector<16x1xf32>
    %115 = vector.extract_strided_slice %4 {offsets = [4, 2, 0], sizes = [4, 4, 128], strides = [1, 1, 1]} : vector<8x8x128xf32> to vector<4x4x128xf32>
    %116 = vector.shape_cast %115 : vector<4x4x128xf32> to vector<16x128xf32>
    %117 = arith.mulf %2, %116 : vector<16x128xf32>
    %cst_28 = arith.constant dense<0.000000e+00> : vector<16xf32>
    %118 = vector.multi_reduction <add>, %117, %cst_28 [1] : vector<16x128xf32> to vector<16xf32>
    %119 = vector.shape_cast %118 : vector<16xf32> to vector<16x1xf32>
    %120 = vector.extract_strided_slice %4 {offsets = [4, 3, 0], sizes = [4, 4, 128], strides = [1, 1, 1]} : vector<8x8x128xf32> to vector<4x4x128xf32>
    %121 = vector.shape_cast %120 : vector<4x4x128xf32> to vector<16x128xf32>
    %122 = arith.mulf %2, %121 : vector<16x128xf32>
    %cst_29 = arith.constant dense<0.000000e+00> : vector<16xf32>
    %123 = vector.multi_reduction <add>, %122, %cst_29 [1] : vector<16x128xf32> to vector<16xf32>
    %124 = vector.shape_cast %123 : vector<16xf32> to vector<16x1xf32>
    %125 = vector.extract_strided_slice %4 {offsets = [4, 4, 0], sizes = [4, 4, 128], strides = [1, 1, 1]} : vector<8x8x128xf32> to vector<4x4x128xf32>
    %126 = vector.shape_cast %125 : vector<4x4x128xf32> to vector<16x128xf32>
    %127 = arith.mulf %2, %126 : vector<16x128xf32>
    %cst_30 = arith.constant dense<0.000000e+00> : vector<16xf32>
    %128 = vector.multi_reduction <add>, %127, %cst_30 [1] : vector<16x128xf32> to vector<16xf32>
    %129 = vector.shape_cast %128 : vector<16xf32> to vector<16x1xf32>
    %130 = tpu.concatenate %9, %14, %19, %24, %29, %34, %39, %44, %49, %54, %59, %64, %69, %74, %79, %84 in 1 : vector<16x1xf32>, vector<16x1xf32>, vector<16x1xf32>, vector<16x1xf32>, vector<16x1xf32>, vector<16x1xf32>, vector<16x1xf32>, vector<16x1xf32>, vector<16x1xf32>, vector<16x1xf32>, vector<16x1xf32>, vector<16x1xf32>, vector<16x1xf32>, vector<16x1xf32>, vector<16x1xf32>, vector<16x1xf32> -> vector<16x16xf32>
    %131 = tpu.concatenate %89, %94, %99, %104, %109, %114, %119, %124, %129 in 1 : vector<16x1xf32>, vector<16x1xf32>, vector<16x1xf32>, vector<16x1xf32>, vector<16x1xf32>, vector<16x1xf32>, vector<16x1xf32>, vector<16x1xf32>, vector<16x1xf32> -> vector<16x9xf32>
    %132 = tpu.concatenate %130, %131 in 1 : vector<16x16xf32>, vector<16x9xf32> -> vector<16x25xf32>
    %133 = vector.shape_cast %132 : vector<16x25xf32> to vector<1x4x4x25xf32>
    %c0_31 = arith.constant 0 : index
    %c0_32 = arith.constant 0 : index
    %c0_33 = arith.constant 0 : index
    %c0_34 = arith.constant 0 : index
    %134 = vector.load %arg3[%c0_31, %c0_32, %c0_33, %c0_34] : memref<1x4x4x25xf32, #tpu.memory_space<vmem>>, vector<1x4x4x25xf32>
    tpu.vector_store %arg3[%c0_31, %c0_32, %c0_33, %c0_34], %133 {strides = array<i32>} : memref<1x4x4x25xf32, #tpu.memory_space<vmem>>, vector<1x4x4x25xf32>,
    return
  }
  func.func @transform_0(%arg0: i32) -> (i32, i32, i32, i32) {
    %c0_i32 = arith.constant 0 : i32
    %c0_i32_0 = arith.constant 0 : i32
    %c0_i32_1 = arith.constant 0 : i32
    %c0_i32_2 = arith.constant 0 : i32
    return %arg0, %c0_i32, %c0_i32_0, %c0_i32_1 : i32, i32, i32, i32
  }
  func.func @transform_1(%arg0: i32) -> (i32, i32, i32, i32) {
    %c0_i32 = arith.constant 0 : i32
    %c0_i32_0 = arith.constant 0 : i32
    %c0_i32_1 = arith.constant 0 : i32
    %c0_i32_2 = arith.constant 0 : i32
    return %arg0, %c0_i32, %c0_i32_0, %c0_i32_1 : i32, i32, i32, i32
  }
  func.func @transform_2(%arg0: i32) -> (i32, i32, i32, i32) {
    %c0_i32 = arith.constant 0 : i32
    %c0_i32_0 = arith.constant 0 : i32
    %c0_i32_1 = arith.constant 0 : i32
    %c0_i32_2 = arith.constant 0 : i32
    return %arg0, %c0_i32, %c0_i32_0, %c0_i32_1 : i32, i32, i32, i32
  }
}

module attributes {stable_mosaic.version = 11 : i64} {
  func.func @_conv_block_res_kernel(%arg0: i32, %arg1: memref<128x1377xbf16, #tpu.memory_space<vmem>>, %arg2: memref<1377x128xbf16, #tpu.memory_space<vmem>>, %arg3: memref<1x128xf32, #tpu.memory_space<vmem>>, %arg4: memref<153x128xbf16, #tpu.memory_space<vmem>>, %arg5: memref<1x128xf32, #tpu.memory_space<vmem>>, %arg6: memref<128x128xf32, #tpu.memory_space<vmem>>) attributes {dimension_semantics = [#tpu.dimension_semantics<parallel>], iteration_bounds = array<i64: 1>, scalar_prefetch = 0 : i64, scratch_operands = 0 : i64, tpu.core_type = #tpu.core_type<tc>, window_params = [{transform_indices = @transform_0, window_bounds = array<i64: 128, 1377>}, {pipeline_mode = #tpu.pipeline_mode<synchronous>, transform_indices = @transform_1, window_bounds = array<i64: 1377, 128>}, {pipeline_mode = #tpu.pipeline_mode<synchronous>, transform_indices = @transform_2, window_bounds = array<i64: 1, 128>}, {pipeline_mode = #tpu.pipeline_mode<synchronous>, transform_indices = @transform_3, window_bounds = array<i64: 153, 128>}, {pipeline_mode = #tpu.pipeline_mode<synchronous>, transform_indices = @transform_4, window_bounds = array<i64: 1, 128>}, {transform_indices = @transform_5, window_bounds = array<i64: 128, 128>}]} {
    %c0 = arith.constant 0 : index
    %c0_0 = arith.constant 0 : index
    %0 = vector.load %arg1[%c0, %c0_0] : memref<128x1377xbf16, #tpu.memory_space<vmem>>, vector<128x1377xbf16>
    %c0_1 = arith.constant 0 : index
    %c0_2 = arith.constant 0 : index
    %1 = vector.load %arg2[%c0_1, %c0_2] : memref<1377x128xbf16, #tpu.memory_space<vmem>>, vector<1377x128xbf16>
    %cst = arith.constant dense<0.000000e+00> : vector<128x128xf32>
    %2 = tpu.matmul %0, %1, %cst {dimension_numbers = #tpu.dot_dimension_numbers<[1], [0], [0], [1], [0, 0, 1, 1], [], []>} : vector<128x1377xbf16>, vector<1377x128xbf16>, vector<128x128xf32> -> vector<128x128xf32>
    %c0_3 = arith.constant 0 : index
    %c0_4 = arith.constant 0 : index
    %3 = vector.load %arg3[%c0_3, %c0_4] : memref<1x128xf32, #tpu.memory_space<vmem>>, vector<1x128xf32>
    %4 = vector.broadcast %3 : vector<1x128xf32> to vector<128x128xf32>
    %5 = arith.addf %2, %4 : vector<128x128xf32>
    %cst_5 = arith.constant 1.000000e-01 : f32
    %6 = vector.broadcast %cst_5 : f32 to vector<128x128xf32>
    %7 = arith.mulf %6, %5 : vector<128x128xf32>
    %8 = arith.maximumf %5, %7 : vector<128x128xf32>
    %9 = vector.extract_strided_slice %0 {offsets = [0, 612], sizes = [128, 153], strides = [1, 1]} : vector<128x1377xbf16> to vector<128x153xbf16>
    %c0_6 = arith.constant 0 : index
    %c0_7 = arith.constant 0 : index
    %10 = vector.load %arg4[%c0_6, %c0_7] : memref<153x128xbf16, #tpu.memory_space<vmem>>, vector<153x128xbf16>
    %cst_8 = arith.constant dense<0.000000e+00> : vector<128x128xf32>
    %11 = tpu.matmul %9, %10, %cst_8 {dimension_numbers = #tpu.dot_dimension_numbers<[1], [0], [0], [1], [0, 0, 1, 1], [], []>} : vector<128x153xbf16>, vector<153x128xbf16>, vector<128x128xf32> -> vector<128x128xf32>
    %c0_9 = arith.constant 0 : index
    %c0_10 = arith.constant 0 : index
    %12 = vector.load %arg5[%c0_9, %c0_10] : memref<1x128xf32, #tpu.memory_space<vmem>>, vector<1x128xf32>
    %13 = vector.broadcast %12 : vector<1x128xf32> to vector<128x128xf32>
    %14 = arith.addf %11, %13 : vector<128x128xf32>
    %15 = arith.addf %8, %14 : vector<128x128xf32>
    %c0_11 = arith.constant 0 : index
    %c0_12 = arith.constant 0 : index
    %16 = vector.load %arg6[%c0_11, %c0_12] : memref<128x128xf32, #tpu.memory_space<vmem>>, vector<128x128xf32>
    tpu.vector_store %arg6[%c0_11, %c0_12], %15 {strides = array<i32>} : memref<128x128xf32, #tpu.memory_space<vmem>>, vector<128x128xf32>,
    return
  }
  func.func @transform_0(%arg0: i32) -> (i32, i32) {
    %c0_i32 = arith.constant 0 : i32
    %c0_i32_0 = arith.constant 0 : i32
    return %arg0, %c0_i32 : i32, i32
  }
  func.func @transform_1(%arg0: i32) -> (i32, i32) {
    %c0_i32 = arith.constant 0 : i32
    %c0_i32_0 = arith.constant 0 : i32
    %c0_i32_1 = arith.constant 0 : i32
    return %c0_i32, %c0_i32_0 : i32, i32
  }
  func.func @transform_2(%arg0: i32) -> (i32, i32) {
    %c0_i32 = arith.constant 0 : i32
    %c0_i32_0 = arith.constant 0 : i32
    %c0_i32_1 = arith.constant 0 : i32
    return %c0_i32, %c0_i32_0 : i32, i32
  }
  func.func @transform_3(%arg0: i32) -> (i32, i32) {
    %c0_i32 = arith.constant 0 : i32
    %c0_i32_0 = arith.constant 0 : i32
    %c0_i32_1 = arith.constant 0 : i32
    return %c0_i32, %c0_i32_0 : i32, i32
  }
  func.func @transform_4(%arg0: i32) -> (i32, i32) {
    %c0_i32 = arith.constant 0 : i32
    %c0_i32_0 = arith.constant 0 : i32
    %c0_i32_1 = arith.constant 0 : i32
    return %c0_i32, %c0_i32_0 : i32, i32
  }
  func.func @transform_5(%arg0: i32) -> (i32, i32) {
    %c0_i32 = arith.constant 0 : i32
    %c0_i32_0 = arith.constant 0 : i32
    return %arg0, %c0_i32 : i32, i32
  }
}

module attributes {stable_mosaic.version = 11 : i64} {
  func.func @_conv_block_id_kernel(%arg0: i32, %arg1: memref<128x1152xbf16, #tpu.memory_space<vmem>>, %arg2: memref<1152x128xbf16, #tpu.memory_space<vmem>>, %arg3: memref<1x128xf32, #tpu.memory_space<vmem>>, %arg4: memref<128x128xf32, #tpu.memory_space<vmem>>) attributes {dimension_semantics = [#tpu.dimension_semantics<parallel>], iteration_bounds = array<i64: 1>, scalar_prefetch = 0 : i64, scratch_operands = 0 : i64, tpu.core_type = #tpu.core_type<tc>, window_params = [{transform_indices = @transform_0, window_bounds = array<i64: 128, 1152>}, {pipeline_mode = #tpu.pipeline_mode<synchronous>, transform_indices = @transform_1, window_bounds = array<i64: 1152, 128>}, {pipeline_mode = #tpu.pipeline_mode<synchronous>, transform_indices = @transform_2, window_bounds = array<i64: 1, 128>}, {transform_indices = @transform_3, window_bounds = array<i64: 128, 128>}]} {
    %c0 = arith.constant 0 : index
    %c0_0 = arith.constant 0 : index
    %0 = vector.load %arg1[%c0, %c0_0] : memref<128x1152xbf16, #tpu.memory_space<vmem>>, vector<128x1152xbf16>
    %c0_1 = arith.constant 0 : index
    %c0_2 = arith.constant 0 : index
    %1 = vector.load %arg2[%c0_1, %c0_2] : memref<1152x128xbf16, #tpu.memory_space<vmem>>, vector<1152x128xbf16>
    %cst = arith.constant dense<0.000000e+00> : vector<128x128xf32>
    %2 = tpu.matmul %0, %1, %cst {dimension_numbers = #tpu.dot_dimension_numbers<[1], [0], [0], [1], [0, 0, 1, 1], [], []>} : vector<128x1152xbf16>, vector<1152x128xbf16>, vector<128x128xf32> -> vector<128x128xf32>
    %c0_3 = arith.constant 0 : index
    %c0_4 = arith.constant 0 : index
    %3 = vector.load %arg3[%c0_3, %c0_4] : memref<1x128xf32, #tpu.memory_space<vmem>>, vector<1x128xf32>
    %4 = vector.broadcast %3 : vector<1x128xf32> to vector<128x128xf32>
    %5 = arith.addf %2, %4 : vector<128x128xf32>
    %cst_5 = arith.constant 1.000000e-01 : f32
    %6 = vector.broadcast %cst_5 : f32 to vector<128x128xf32>
    %7 = arith.mulf %6, %5 : vector<128x128xf32>
    %8 = arith.maximumf %5, %7 : vector<128x128xf32>
    %9 = vector.extract_strided_slice %0 {offsets = [0, 512], sizes = [128, 128], strides = [1, 1]} : vector<128x1152xbf16> to vector<128x128xbf16>
    %10 = arith.extf %9 : vector<128x128xbf16> to vector<128x128xf32>
    %11 = arith.addf %8, %10 : vector<128x128xf32>
    %c0_6 = arith.constant 0 : index
    %c0_7 = arith.constant 0 : index
    %12 = vector.load %arg4[%c0_6, %c0_7] : memref<128x128xf32, #tpu.memory_space<vmem>>, vector<128x128xf32>
    tpu.vector_store %arg4[%c0_6, %c0_7], %11 {strides = array<i32>} : memref<128x128xf32, #tpu.memory_space<vmem>>, vector<128x128xf32>,
    return
  }
  func.func @transform_0(%arg0: i32) -> (i32, i32) {
    %c0_i32 = arith.constant 0 : i32
    %c0_i32_0 = arith.constant 0 : i32
    return %arg0, %c0_i32 : i32, i32
  }
  func.func @transform_1(%arg0: i32) -> (i32, i32) {
    %c0_i32 = arith.constant 0 : i32
    %c0_i32_0 = arith.constant 0 : i32
    %c0_i32_1 = arith.constant 0 : i32
    return %c0_i32, %c0_i32_0 : i32, i32
  }
  func.func @transform_2(%arg0: i32) -> (i32, i32) {
    %c0_i32 = arith.constant 0 : i32
    %c0_i32_0 = arith.constant 0 : i32
    %c0_i32_1 = arith.constant 0 : i32
    return %c0_i32, %c0_i32_0 : i32, i32
  }
  func.func @transform_3(%arg0: i32) -> (i32, i32) {
    %c0_i32 = arith.constant 0 : i32
    %c0_i32_0 = arith.constant 0 : i32
    return %arg0, %c0_i32 : i32, i32
  }
}

module attributes {stable_mosaic.version = 11 : i64} {
  func.func @_deconv_phase_kernel(%arg0: i32, %arg1: memref<128x512xbf16, #tpu.memory_space<vmem>>, %arg2: memref<512x64xbf16, #tpu.memory_space<vmem>>, %arg3: memref<1x64xf32, #tpu.memory_space<vmem>>, %arg4: memref<1x64xf32, #tpu.memory_space<vmem>>, %arg5: memref<1x64xf32, #tpu.memory_space<vmem>>, %arg6: memref<128x64xf32, #tpu.memory_space<vmem>>) attributes {dimension_semantics = [#tpu.dimension_semantics<parallel>], iteration_bounds = array<i64: 1>, scalar_prefetch = 0 : i64, scratch_operands = 0 : i64, tpu.core_type = #tpu.core_type<tc>, window_params = [{transform_indices = @transform_0, window_bounds = array<i64: 128, 512>}, {pipeline_mode = #tpu.pipeline_mode<synchronous>, transform_indices = @transform_1, window_bounds = array<i64: 512, 64>}, {pipeline_mode = #tpu.pipeline_mode<synchronous>, transform_indices = @transform_2, window_bounds = array<i64: 1, 64>}, {pipeline_mode = #tpu.pipeline_mode<synchronous>, transform_indices = @transform_3, window_bounds = array<i64: 1, 64>}, {pipeline_mode = #tpu.pipeline_mode<synchronous>, transform_indices = @transform_4, window_bounds = array<i64: 1, 64>}, {transform_indices = @transform_5, window_bounds = array<i64: 128, 64>}]} {
    %c0 = arith.constant 0 : index
    %c0_0 = arith.constant 0 : index
    %0 = vector.load %arg1[%c0, %c0_0] : memref<128x512xbf16, #tpu.memory_space<vmem>>, vector<128x512xbf16>
    %c0_1 = arith.constant 0 : index
    %c0_2 = arith.constant 0 : index
    %1 = vector.load %arg2[%c0_1, %c0_2] : memref<512x64xbf16, #tpu.memory_space<vmem>>, vector<512x64xbf16>
    %cst = arith.constant dense<0.000000e+00> : vector<128x64xf32>
    %2 = tpu.matmul %0, %1, %cst {dimension_numbers = #tpu.dot_dimension_numbers<[1], [0], [0], [1], [0, 0, 1, 1], [], []>} : vector<128x512xbf16>, vector<512x64xbf16>, vector<128x64xf32> -> vector<128x64xf32>
    %c0_3 = arith.constant 0 : index
    %c0_4 = arith.constant 0 : index
    %3 = vector.load %arg3[%c0_3, %c0_4] : memref<1x64xf32, #tpu.memory_space<vmem>>, vector<1x64xf32>
    %4 = vector.broadcast %3 : vector<1x64xf32> to vector<128x64xf32>
    %5 = arith.addf %2, %4 : vector<128x64xf32>
    %cst_5 = arith.constant 1.000000e-01 : f32
    %6 = vector.broadcast %cst_5 : f32 to vector<128x64xf32>
    %7 = arith.mulf %6, %5 : vector<128x64xf32>
    %8 = arith.maximumf %5, %7 : vector<128x64xf32>
    %c0_6 = arith.constant 0 : index
    %c0_7 = arith.constant 0 : index
    %9 = vector.load %arg4[%c0_6, %c0_7] : memref<1x64xf32, #tpu.memory_space<vmem>>, vector<1x64xf32>
    %10 = vector.broadcast %9 : vector<1x64xf32> to vector<128x64xf32>
    %11 = arith.mulf %8, %10 : vector<128x64xf32>
    %c0_8 = arith.constant 0 : index
    %c0_9 = arith.constant 0 : index
    %12 = vector.load %arg5[%c0_8, %c0_9] : memref<1x64xf32, #tpu.memory_space<vmem>>, vector<1x64xf32>
    %13 = vector.broadcast %12 : vector<1x64xf32> to vector<128x64xf32>
    %14 = arith.addf %11, %13 : vector<128x64xf32>
    %c0_10 = arith.constant 0 : index
    %c0_11 = arith.constant 0 : index
    %15 = vector.load %arg6[%c0_10, %c0_11] : memref<128x64xf32, #tpu.memory_space<vmem>>, vector<128x64xf32>
    tpu.vector_store %arg6[%c0_10, %c0_11], %14 {strides = array<i32>} : memref<128x64xf32, #tpu.memory_space<vmem>>, vector<128x64xf32>,
    return
  }
  func.func @transform_0(%arg0: i32) -> (i32, i32) {
    %c0_i32 = arith.constant 0 : i32
    %c0_i32_0 = arith.constant 0 : i32
    return %arg0, %c0_i32 : i32, i32
  }
  func.func @transform_1(%arg0: i32) -> (i32, i32) {
    %c0_i32 = arith.constant 0 : i32
    %c0_i32_0 = arith.constant 0 : i32
    %c0_i32_1 = arith.constant 0 : i32
    return %c0_i32, %c0_i32_0 : i32, i32
  }
  func.func @transform_2(%arg0: i32) -> (i32, i32) {
    %c0_i32 = arith.constant 0 : i32
    %c0_i32_0 = arith.constant 0 : i32
    %c0_i32_1 = arith.constant 0 : i32
    return %c0_i32, %c0_i32_0 : i32, i32
  }
  func.func @transform_3(%arg0: i32) -> (i32, i32) {
    %c0_i32 = arith.constant 0 : i32
    %c0_i32_0 = arith.constant 0 : i32
    %c0_i32_1 = arith.constant 0 : i32
    return %c0_i32, %c0_i32_0 : i32, i32
  }
  func.func @transform_4(%arg0: i32) -> (i32, i32) {
    %c0_i32 = arith.constant 0 : i32
    %c0_i32_0 = arith.constant 0 : i32
    %c0_i32_1 = arith.constant 0 : i32
    return %c0_i32, %c0_i32_0 : i32, i32
  }
  func.func @transform_5(%arg0: i32) -> (i32, i32) {
    %c0_i32 = arith.constant 0 : i32
    %c0_i32_0 = arith.constant 0 : i32
    return %arg0, %c0_i32 : i32, i32
  }
}

module attributes {stable_mosaic.version = 11 : i64} {
  func.func @_deconv_phase_kernel(%arg0: i32, %arg1: memref<128x256xbf16, #tpu.memory_space<vmem>>, %arg2: memref<256x32xbf16, #tpu.memory_space<vmem>>, %arg3: memref<1x32xf32, #tpu.memory_space<vmem>>, %arg4: memref<1x32xf32, #tpu.memory_space<vmem>>, %arg5: memref<1x32xf32, #tpu.memory_space<vmem>>, %arg6: memref<128x32xf32, #tpu.memory_space<vmem>>) attributes {dimension_semantics = [#tpu.dimension_semantics<parallel>], iteration_bounds = array<i64: 1>, scalar_prefetch = 0 : i64, scratch_operands = 0 : i64, tpu.core_type = #tpu.core_type<tc>, window_params = [{transform_indices = @transform_0, window_bounds = array<i64: 128, 256>}, {pipeline_mode = #tpu.pipeline_mode<synchronous>, transform_indices = @transform_1, window_bounds = array<i64: 256, 32>}, {pipeline_mode = #tpu.pipeline_mode<synchronous>, transform_indices = @transform_2, window_bounds = array<i64: 1, 32>}, {pipeline_mode = #tpu.pipeline_mode<synchronous>, transform_indices = @transform_3, window_bounds = array<i64: 1, 32>}, {pipeline_mode = #tpu.pipeline_mode<synchronous>, transform_indices = @transform_4, window_bounds = array<i64: 1, 32>}, {transform_indices = @transform_5, window_bounds = array<i64: 128, 32>}]} {
    %c0 = arith.constant 0 : index
    %c0_0 = arith.constant 0 : index
    %0 = vector.load %arg1[%c0, %c0_0] : memref<128x256xbf16, #tpu.memory_space<vmem>>, vector<128x256xbf16>
    %c0_1 = arith.constant 0 : index
    %c0_2 = arith.constant 0 : index
    %1 = vector.load %arg2[%c0_1, %c0_2] : memref<256x32xbf16, #tpu.memory_space<vmem>>, vector<256x32xbf16>
    %cst = arith.constant dense<0.000000e+00> : vector<128x32xf32>
    %2 = tpu.matmul %0, %1, %cst {dimension_numbers = #tpu.dot_dimension_numbers<[1], [0], [0], [1], [0, 0, 1, 1], [], []>} : vector<128x256xbf16>, vector<256x32xbf16>, vector<128x32xf32> -> vector<128x32xf32>
    %c0_3 = arith.constant 0 : index
    %c0_4 = arith.constant 0 : index
    %3 = vector.load %arg3[%c0_3, %c0_4] : memref<1x32xf32, #tpu.memory_space<vmem>>, vector<1x32xf32>
    %4 = vector.broadcast %3 : vector<1x32xf32> to vector<128x32xf32>
    %5 = arith.addf %2, %4 : vector<128x32xf32>
    %cst_5 = arith.constant 1.000000e-01 : f32
    %6 = vector.broadcast %cst_5 : f32 to vector<128x32xf32>
    %7 = arith.mulf %6, %5 : vector<128x32xf32>
    %8 = arith.maximumf %5, %7 : vector<128x32xf32>
    %c0_6 = arith.constant 0 : index
    %c0_7 = arith.constant 0 : index
    %9 = vector.load %arg4[%c0_6, %c0_7] : memref<1x32xf32, #tpu.memory_space<vmem>>, vector<1x32xf32>
    %10 = vector.broadcast %9 : vector<1x32xf32> to vector<128x32xf32>
    %11 = arith.mulf %8, %10 : vector<128x32xf32>
    %c0_8 = arith.constant 0 : index
    %c0_9 = arith.constant 0 : index
    %12 = vector.load %arg5[%c0_8, %c0_9] : memref<1x32xf32, #tpu.memory_space<vmem>>, vector<1x32xf32>
    %13 = vector.broadcast %12 : vector<1x32xf32> to vector<128x32xf32>
    %14 = arith.addf %11, %13 : vector<128x32xf32>
    %c0_10 = arith.constant 0 : index
    %c0_11 = arith.constant 0 : index
    %15 = vector.load %arg6[%c0_10, %c0_11] : memref<128x32xf32, #tpu.memory_space<vmem>>, vector<128x32xf32>
    tpu.vector_store %arg6[%c0_10, %c0_11], %14 {strides = array<i32>} : memref<128x32xf32, #tpu.memory_space<vmem>>, vector<128x32xf32>,
    return
  }
  func.func @transform_0(%arg0: i32) -> (i32, i32) {
    %c0_i32 = arith.constant 0 : i32
    %c0_i32_0 = arith.constant 0 : i32
    return %arg0, %c0_i32 : i32, i32
  }
  func.func @transform_1(%arg0: i32) -> (i32, i32) {
    %c0_i32 = arith.constant 0 : i32
    %c0_i32_0 = arith.constant 0 : i32
    %c0_i32_1 = arith.constant 0 : i32
    return %c0_i32, %c0_i32_0 : i32, i32
  }
  func.func @transform_2(%arg0: i32) -> (i32, i32) {
    %c0_i32 = arith.constant 0 : i32
    %c0_i32_0 = arith.constant 0 : i32
    %c0_i32_1 = arith.constant 0 : i32
    return %c0_i32, %c0_i32_0 : i32, i32
  }
  func.func @transform_3(%arg0: i32) -> (i32, i32) {
    %c0_i32 = arith.constant 0 : i32
    %c0_i32_0 = arith.constant 0 : i32
    %c0_i32_1 = arith.constant 0 : i32
    return %c0_i32, %c0_i32_0 : i32, i32
  }
  func.func @transform_4(%arg0: i32) -> (i32, i32) {
    %c0_i32 = arith.constant 0 : i32
    %c0_i32_0 = arith.constant 0 : i32
    %c0_i32_1 = arith.constant 0 : i32
    return %c0_i32, %c0_i32_0 : i32, i32
  }
  func.func @transform_5(%arg0: i32) -> (i32, i32) {
    %c0_i32 = arith.constant 0 : i32
    %c0_i32_0 = arith.constant 0 : i32
    return %arg0, %c0_i32 : i32, i32
  }
}

module attributes {stable_mosaic.version = 11 : i64} {
  func.func @_final_conv_kernel(%arg0: i32, %arg1: memref<256x288xbf16, #tpu.memory_space<vmem>>, %arg2: memref<288x2xbf16, #tpu.memory_space<vmem>>, %arg3: memref<1x2xf32, #tpu.memory_space<vmem>>, %arg4: memref<256x2xf32, #tpu.memory_space<vmem>>) attributes {dimension_semantics = [#tpu.dimension_semantics<parallel>], iteration_bounds = array<i64: 2>, scalar_prefetch = 0 : i64, scratch_operands = 0 : i64, tpu.core_type = #tpu.core_type<tc>, window_params = [{transform_indices = @transform_0, window_bounds = array<i64: 256, 288>}, {pipeline_mode = #tpu.pipeline_mode<synchronous>, transform_indices = @transform_1, window_bounds = array<i64: 288, 2>}, {pipeline_mode = #tpu.pipeline_mode<synchronous>, transform_indices = @transform_2, window_bounds = array<i64: 1, 2>}, {transform_indices = @transform_3, window_bounds = array<i64: 256, 2>}]} {
    %c0 = arith.constant 0 : index
    %c0_0 = arith.constant 0 : index
    %0 = vector.load %arg1[%c0, %c0_0] : memref<256x288xbf16, #tpu.memory_space<vmem>>, vector<256x288xbf16>
    %c0_1 = arith.constant 0 : index
    %c0_2 = arith.constant 0 : index
    %1 = vector.load %arg2[%c0_1, %c0_2] : memref<288x2xbf16, #tpu.memory_space<vmem>>, vector<288x2xbf16>
    %cst = arith.constant dense<0.000000e+00> : vector<256x2xf32>
    %2 = tpu.matmul %0, %1, %cst {dimension_numbers = #tpu.dot_dimension_numbers<[1], [0], [0], [1], [0, 0, 1, 1], [], []>} : vector<256x288xbf16>, vector<288x2xbf16>, vector<256x2xf32> -> vector<256x2xf32>
    %c0_3 = arith.constant 0 : index
    %c0_4 = arith.constant 0 : index
    %3 = vector.load %arg3[%c0_3, %c0_4] : memref<1x2xf32, #tpu.memory_space<vmem>>, vector<1x2xf32>
    %4 = vector.broadcast %3 : vector<1x2xf32> to vector<256x2xf32>
    %5 = arith.addf %2, %4 : vector<256x2xf32>
    %c0_5 = arith.constant 0 : index
    %c0_6 = arith.constant 0 : index
    %6 = vector.load %arg4[%c0_5, %c0_6] : memref<256x2xf32, #tpu.memory_space<vmem>>, vector<256x2xf32>
    tpu.vector_store %arg4[%c0_5, %c0_6], %5 {strides = array<i32>} : memref<256x2xf32, #tpu.memory_space<vmem>>, vector<256x2xf32>,
    return
  }
  func.func @transform_0(%arg0: i32) -> (i32, i32) {
    %c0_i32 = arith.constant 0 : i32
    %c0_i32_0 = arith.constant 0 : i32
    return %arg0, %c0_i32 : i32, i32
  }
  func.func @transform_1(%arg0: i32) -> (i32, i32) {
    %c0_i32 = arith.constant 0 : i32
    %c0_i32_0 = arith.constant 0 : i32
    %c0_i32_1 = arith.constant 0 : i32
    return %c0_i32, %c0_i32_0 : i32, i32
  }
  func.func @transform_2(%arg0: i32) -> (i32, i32) {
    %c0_i32 = arith.constant 0 : i32
    %c0_i32_0 = arith.constant 0 : i32
    %c0_i32_1 = arith.constant 0 : i32
    return %c0_i32, %c0_i32_0 : i32, i32
  }
  func.func @transform_3(%arg0: i32) -> (i32, i32) {
    %c0_i32 = arith.constant 0 : i32
    %c0_i32_0 = arith.constant 0 : i32
    return %arg0, %c0_i32 : i32, i32
  }
}

</mosaic_0001>

<llo_original>
// kernel: _lambda_.21
$region0: #{_lambda_.21}
  #allocation0 [shape = 'u32[]', space=smem, size = 0x4, offset = 0x4, fixed_abs, tag = 'smem constant byte address 0x4 - core index']
  #allocation1 [shape = 'u32[144,128]{1,0:T(1,128)}', space=vmem, size = 0x12000, scoped, tag = 'internal scratch']
  %s0 = inlined_call_operand.vmem [shape: bf16[512,9], index: 0, kind: input, shape index: {}]
  %s1 = inlined_call_operand.vmem [shape: bf16[9,32], index: 1, kind: input, shape index: {}]
  %s2 = inlined_call_operand.vmem [shape: f32[1,32], index: 2, kind: input, shape index: {}]
  %s3 = inlined_call_operand.vmem [shape: bf16[1,32], index: 3, kind: input, shape index: {}]
  %s4 = inlined_call_operand.vmem [shape: f32[1,32], index: 4, kind: input, shape index: {}]
  %s5 = inlined_call_operand.vmem [shape: f32[512,32], index: 5, kind: output, shape index: {}]
  %s6 = sld [smem:[#allocation0]]
  $region53: #{_lambda_.21} parent=0
    _
  %s8 = ssub.s32 1, %s6
  %s9 = scalar_select 0, %s8, %s6
  loop: start=0, step=1, limit=4
  $region2: #{_lambda_.21} parent=0 // loop_pre_header
    _
  $region3: #{_lambda_.21} parent=0 // loop_header
    %s11 = sphi 0, %s15
    %p12 = scmp.ge.s32.totalorder %s11, 4
    %s21 = sphi 0, %s23
    %s24 = sphi 0, %s21
    %s25 = sphi 0, %s24
    %s41 = sphi 0, %s25
    %s45 = sphi 0, %s45
    %s47 = sphi 0, %s45
    %s48 = sphi 0, %s47
    %s62 = sphi 0, %s48
    %s66 = sphi 0, %s66
    %s68 = sphi 0, %s66
    %s69 = sphi 0, %s68
    %s83 = sphi 0, %s69
    %s87 = sphi 0, %s87
    %s89 = sphi 0, %s87
    %s90 = sphi 0, %s89
    %s104 = sphi 0, %s90
    %s108 = sphi 0, %s108
    %s110 = sphi 0, %s108
    %s111 = sphi 0, %s110
    %s125 = sphi 0, %s111
    %s131 = sphi 0, %s133
    %s134 = sphi 0, %s131
    %s135 = sphi 0, %s134
    %s151 = sphi 0, %s135
  $region4: #{_lambda_.21} parent=0 // loop_header_branch
    %14 = sbr.rel (%p12) target = $region8
  $region5: #{_lambda_.21} parent=0 // loop_body
    %s16 = ssub.s32 %s11, 1
    %s17 = ssub.s32 %s11, 2
    %s18 = sadd.s32 %s11, 1
    %s19 = ssub.s32 %s11, %s18
    %p20 = scmp.eq.s32.totalorder %s19, 0
    %s22 = sadd.s32 %s21, 1
    %s23 = scalar_select %p20, %s21, %s22
    %p26 = pneg %p20
    %p27 = scmp.eq.s32.totalorder %s11, 1
    %p28 = por %p26, %p27
    %p29 = scmp.ne.s32.totalorder %s21, %s24
    %p30 = scmp.eq.s32.totalorder %s11, 0
    %p31 = por %p29, %p30
    %p32 = scmp.ne.s32.totalorder %s21, %s24
    %p33 = scmp.eq.s32.totalorder %s16, 1
    %p34 = por %p32, %p33
    %p35 = scmp.ne.s32.totalorder %s24, %s25
    %p36 = scmp.eq.s32.totalorder %s16, 0
    %p37 = por %p35, %p36
    %p38 = scmp.ne.s32.totalorder %s24, %s25
    %p39 = scmp.eq.s32.totalorder %s17, 1
    %p40 = por %p38, %p39
    %p42 = scmp.ne.s32.totalorder %s25, %s41
    %p43 = scmp.eq.s32.totalorder %s17, 0
    %p44 = por %p42, %p43
    %s46 = sadd.s32 %s45, 1
    %p49 = scmp.eq.s32.totalorder %s11, 1
    %p50 = scmp.ne.s32.totalorder %s45, %s47
    %p51 = scmp.eq.s32.totalorder %s11, 0
    %p52 = por %p50, %p51
    %p53 = scmp.ne.s32.totalorder %s45, %s47
    %p54 = scmp.eq.s32.totalorder %s16, 1
    %p55 = por %p53, %p54
    %p56 = scmp.ne.s32.totalorder %s47, %s48
    %p57 = scmp.eq.s32.totalorder %s16, 0
    %p58 = por %p56, %p57
    %p59 = scmp.ne.s32.totalorder %s47, %s48
    %p60 = scmp.eq.s32.totalorder %s17, 1
    %p61 = por %p59, %p60
    %p63 = scmp.ne.s32.totalorder %s48, %s62
    %p64 = scmp.eq.s32.totalorder %s17, 0
    %p65 = por %p63, %p64
    %s67 = sadd.s32 %s66, 1
    %p70 = scmp.eq.s32.totalorder %s11, 1
    %p71 = scmp.ne.s32.totalorder %s66, %s68
    %p72 = scmp.eq.s32.totalorder %s11, 0
    %p73 = por %p71, %p72
    %p74 = scmp.ne.s32.totalorder %s66, %s68
    %p75 = scmp.eq.s32.totalorder %s16, 1
    %p76 = por %p74, %p75
    %p77 = scmp.ne.s32.totalorder %s68, %s69
    %p78 = scmp.eq.s32.totalorder %s16, 0
    %p79 = por %p77, %p78
    %p80 = scmp.ne.s32.totalorder %s68, %s69
    %p81 = scmp.eq.s32.totalorder %s17, 1
    %p82 = por %p80, %p81
    %p84 = scmp.ne.s32.totalorder %s69, %s83
    %p85 = scmp.eq.s32.totalorder %s17, 0
    %p86 = por %p84, %p85
    %s88 = sadd.s32 %s87, 1
    %p91 = scmp.eq.s32.totalorder %s11, 1
    %p92 = scmp.ne.s32.totalorder %s87, %s89
    %p93 = scmp.eq.s32.totalorder %s11, 0
    %p94 = por %p92, %p93
    %p95 = scmp.ne.s32.totalorder %s87, %s89
    %p96 = scmp.eq.s32.totalorder %s16, 1
    %p97 = por %p95, %p96
    %p98 = scmp.ne.s32.totalorder %s89, %s90
    %p99 = scmp.eq.s32.totalorder %s16, 0
    %p100 = por %p98, %p99
    %p101 = scmp.ne.s32.totalorder %s89, %s90
    %p102 = scmp.eq.s32.totalorder %s17, 1
    %p103 = por %p101, %p102
    %p105 = scmp.ne.s32.totalorder %s90, %s104
    %p106 = scmp.eq.s32.totalorder %s17, 0
    %p107 = por %p105, %p106
    %s109 = sadd.s32 %s108, 1
    %p112 = scmp.eq.s32.totalorder %s11, 1
    %p113 = scmp.ne.s32.totalorder %s108, %s110
    %p114 = scmp.eq.s32.totalorder %s11, 0
    %p115 = por %p113, %p114
    %p116 = scmp.ne.s32.totalorder %s108, %s110
    %p117 = scmp.eq.s32.totalorder %s16, 1
    %p118 = por %p116, %p117
    %p119 = scmp.ne.s32.totalorder %s110, %s111
    %p120 = scmp.eq.s32.totalorder %s16, 0
    %p121 = por %p119, %p120
    %p122 = scmp.ne.s32.totalorder %s110, %s111
    %p123 = scmp.eq.s32.totalorder %s17, 1
    %p124 = por %p122, %p123
    %p126 = scmp.ne.s32.totalorder %s111, %s125
    %p127 = scmp.eq.s32.totalorder %s17, 0
    %p128 = por %p126, %p127
    %s129 = ssub.s32 %s11, %s18
    %p130 = scmp.eq.s32.totalorder %s129, 0
    %s132 = sadd.s32 %s131, 1
    %s133 = scalar_select %p130, %s131, %s132
    %p136 = pneg %p130
    %p137 = scmp.eq.s32.totalorder %s11, 1
    %p138 = por %p136, %p137
    %p139 = scmp.ne.s32.totalorder %s131, %s134
    %p140 = scmp.eq.s32.totalorder %s11, 0
    %p141 = por %p139, %p140
    %p142 = scmp.ne.s32.totalorder %s131, %s134
    %p143 = scmp.eq.s32.totalorder %s16, 1
    %p144 = por %p142, %p143
    %p145 = scmp.ne.s32.totalorder %s134, %s135
    %p146 = scmp.eq.s32.totalorder %s16, 0
    %p147 = por %p145, %p146
    %p148 = scmp.ne.s32.totalorder %s134, %s135
    %p149 = scmp.eq.s32.totalorder %s17, 1
    %p150 = por %p148, %p149
    %p152 = scmp.ne.s32.totalorder %s135, %s151
    %p153 = scmp.eq.s32.totalorder %s17, 0
    %p154 = por %p152, %p153
    %p155 = scmp.le.s32.totalorder 1, %s11
    %p156 = scmp.lt.s32.totalorder %s11, 3
    %p157 = pnand %p155, %p156
    %p158 = pneg %p157
    // Predicated region
    $region9: #{_lambda_.21} parent=5 // pred_check
      _
    $region10: #{_lambda_.21} parent=5 // pred_check_branch
      %160 = sbr.rel (%p157) target = $region12
    $region11: #{_lambda_.21} parent=5 // pred_region
      %s161 = ssub.s32 %s11, 1
      // Predicated region
      $region13: #{_lambda_.21} parent=11 // pred_check
        %p162 = pneg %p58
      $region14: #{_lambda_.21} parent=11 // pred_check_branch
        %164 = sbr.rel (%p162) target = $region16
      $region15: #{_lambda_.21} parent=11 // pred_region
        _
      $region16: #{_lambda_.21} parent=11 // pred_fallthru
        _
      // Predicated region
      $region17: #{_lambda_.21} parent=11 // pred_check
        %p165 = pneg %p79
      $region18: #{_lambda_.21} parent=11 // pred_check_branch
        %167 = sbr.rel (%p165) target = $region20
      $region19: #{_lambda_.21} parent=11 // pred_region
        _
      $region20: #{_lambda_.21} parent=11 // pred_fallthru
        _
      // Predicated region
      $region21: #{_lambda_.21} parent=11 // pred_check
        %p168 = pneg %p100
      $region22: #{_lambda_.21} parent=11 // pred_check_branch
        %170 = sbr.rel (%p168) target = $region24
      $region23: #{_lambda_.21} parent=11 // pred_region
        _
      $region24: #{_lambda_.21} parent=11 // pred_fallthru
        _
      // Predicated region
      $region25: #{_lambda_.21} parent=11 // pred_check
        %p171 = pneg %p121
      $region26: #{_lambda_.21} parent=11 // pred_check_branch
        %173 = sbr.rel (%p171) target = $region28
      $region27: #{_lambda_.21} parent=11 // pred_region
        _
      $region28: #{_lambda_.21} parent=11 // pred_fallthru
        _
    $region12: #{_lambda_.21} parent=5 // pred_fallthru
      _
    %p174 = scmp.lt.s32.totalorder %s11, 2
    // Predicated region
    $region29: #{_lambda_.21} parent=5 // pred_check
      %p175 = pneg %p174
    $region30: #{_lambda_.21} parent=5 // pred_check_branch
      %177 = sbr.rel (%p175) target = $region32
    $region31: #{_lambda_.21} parent=5 // pred_region
      // Predicated region
      $region33: #{_lambda_.21} parent=31 // pred_check
        %p178 = pneg %p31
      $region34: #{_lambda_.21} parent=31 // pred_check_branch
        %180 = sbr.rel (%p178) target = $region36
      $region35: #{_lambda_.21} parent=31 // pred_region
        %s181 = smul.u32 32, %s11
        %p182 = scmp.lt.s32.totalorder %s181, 63
        %s183 = scalar_select %p182, %s181, 63
        %s184 = smul.addr %s183, 4
        %s185 = scalar_lea.vmem %s0, %s184
        %s186 = smul.u32 32, %s11
      $region36: #{_lambda_.21} parent=31 // pred_fallthru
        _
    $region32: #{_lambda_.21} parent=5 // pred_fallthru
      _
    %p187 = scmp.le.s32.totalorder 1, %s11
    %p188 = scmp.lt.s32.totalorder %s11, 3
    %p189 = pnand %p187, %p188
    %p190 = pneg %p189
    // Predicated region
    $region37: #{_lambda_.21} parent=5 // pred_check
      _
    $region38: #{_lambda_.21} parent=5 // pred_check_branch
      %192 = sbr.rel (%p189) target = $region40
    $region39: #{_lambda_.21} parent=5 // pred_region
      %s193 = ssub.s32 %s11, 1
      %s194 = smul.u32 32, %s16
      %p195 = scmp.lt.s32.totalorder %s194, 63
      %s196 = scalar_select %p195, %s194, 63
      %s197 = smul.addr %s196, 4
      %s198 = scalar_lea.vmem %s0, %s197
      %p199 = pneg %p37
      %p200 = pneg %p34
      %p201 = pneg %p58
      %p202 = pneg %p55
      %p203 = pneg %p79
      %p204 = pneg %p76
      %p205 = pneg %p100
      %p206 = pneg %p97
      %p207 = pneg %p121
      %p208 = pneg %p118
      %p209 = pneg %p147
      %p210 = pneg %p144
      %s211 = smul.u32 32, %s16
      %p212 = scmp.lt.s32.totalorder %s211, 63
      %s213 = scalar_select %p212, %s211, 63
      %s214 = smul.addr %s213, 8
      %s215 = scalar_lea.vmem %s5, %s214
      %s216 = smul.u32 32, %s16
      %p217 = scmp.lt.s32.totalorder %s216, 63
      %s218 = scalar_select %p217, %s216, 63
      %s219 = smul.addr %s218, 4
      %s220 = scalar_lea.vmem %s0, %s219
      %s221 = smul.u32 32, %s16
      %s222 = smul.u32 32, %s16
      %p223 = scmp.lt.s32.totalorder %s222, 63
      %s224 = scalar_select %p223, %s222, 63
      %s225 = smul.addr %s224, 8
      %s226 = scalar_lea.vmem %s5, %s225
      %s227 = smul.u32 32, %s16
      %v229 = vld [vmem:[%s220] sm:$0xf]
      %v230 = vld [vmem:[%s220 + $0x4] sm:$0xf]
      %v231 = vld [vmem:[%s220 + $0x8] sm:$0xf]
      %v232 = vld [vmem:[%s220 + $0xc] sm:$0xf]
      %v233 = vld [vmem:[%s220 + $0x10] sm:$0xf]
      %v234 = vld [vmem:[%s220 + $0x14] sm:$0xf]
      %v235 = vld [vmem:[%s220 + $0x18] sm:$0xf]
      %v236 = vld [vmem:[%s220 + $0x1c] sm:$0xf]
      %v237 = vld [vmem:[%s220 + $0x20] sm:$0xf]
      %v238 = vld [vmem:[%s220 + $0x24] sm:$0xf]
      %v239 = vld [vmem:[%s220 + $0x28] sm:$0xf]
      %v240 = vld [vmem:[%s220 + $0x2c] sm:$0xf]
      %v241 = vld [vmem:[%s220 + $0x30] sm:$0xf]
      %v242 = vld [vmem:[%s220 + $0x34] sm:$0xf]
      %v243 = vld [vmem:[%s220 + $0x38] sm:$0xf]
      %v244 = vld [vmem:[%s220 + $0x3c] sm:$0xf]
      %v245 = vld [vmem:[%s220 + $0x40] sm:$0xf]
      %v246 = vld [vmem:[%s220 + $0x44] sm:$0xf]
      %v247 = vld [vmem:[%s220 + $0x48] sm:$0xf]
      %v248 = vld [vmem:[%s220 + $0x4c] sm:$0xf]
      %v249 = vld [vmem:[%s220 + $0x50] sm:$0xf]
      %v250 = vld [vmem:[%s220 + $0x54] sm:$0xf]
      %v251 = vld [vmem:[%s220 + $0x58] sm:$0xf]
      %v252 = vld [vmem:[%s220 + $0x5c] sm:$0xf]
      %v253 = vld [vmem:[%s220 + $0x60] sm:$0xf]
      %v254 = vld [vmem:[%s220 + $0x64] sm:$0xf]
      %v255 = vld [vmem:[%s220 + $0x68] sm:$0xf]
      %v256 = vld [vmem:[%s220 + $0x6c] sm:$0xf]
      %v257 = vld [vmem:[%s220 + $0x70] sm:$0xf]
      %v258 = vld [vmem:[%s220 + $0x74] sm:$0xf]
      %v259 = vld [vmem:[%s220 + $0x78] sm:$0xf]
      %v260 = vld [vmem:[%s220 + $0x7c] sm:$0xf]
      %v261 = vld [vmem:[%s1] sm:$0xf]
      %v262 = vld [vmem:[%s1 + $0x4] sm:$0x1]
      %v263 = vld [vmem:[%s2] sm:$0x1]
      %v265 = vlaneseq
      %v266 = vshrl.u32 %v265, 7
      %v267 = vsub.s32 0, %v266
      %v268 = vrot.slane %v263, %v267
      %v302 = vunpack.c.l.b16 %v229
      %v303 = vunpack.c.l.b16 %v230
      %v304 = vunpack.c.l.b16 %v231
      %v305 = vunpack.c.l.b16 %v232
      %v306 = vunpack.c.l.b16 %v233
      %v307 = vunpack.c.l.b16 %v234
      %v308 = vunpack.c.l.b16 %v235
      %v309 = vunpack.c.l.b16 %v236
      %v310 = vunpack.c.l.b16 %v237
      %v311 = vunpack.c.l.b16 %v238
      %v312 = vunpack.c.l.b16 %v239
      %v313 = vunpack.c.l.b16 %v240
      %v314 = vunpack.c.l.b16 %v241
      %v315 = vunpack.c.l.b16 %v242
      %v316 = vunpack.c.l.b16 %v243
      %v317 = vunpack.c.l.b16 %v244
      %v318 = vunpack.c.l.b16 %v245
      %v319 = vunpack.c.l.b16 %v246
      %v320 = vunpack.c.l.b16 %v247
      %v321 = vunpack.c.l.b16 %v248
      %v322 = vunpack.c.l.b16 %v249
      %v323 = vunpack.c.l.b16 %v250
      %v324 = vunpack.c.l.b16 %v251
      %v325 = vunpack.c.l.b16 %v252
      %v326 = vunpack.c.l.b16 %v253
      %v327 = vunpack.c.l.b16 %v254
      %v328 = vunpack.c.l.b16 %v255
      %v329 = vunpack.c.l.b16 %v256
      %v330 = vunpack.c.l.b16 %v257
      %v331 = vunpack.c.l.b16 %v258
      %v332 = vunpack.c.l.b16 %v259
      %v333 = vunpack.c.l.b16 %v260
      %v334 = vpack.c.b16 %v303, %v302
      %v335 = vpack.c.b16 %v305, %v304
      %v336 = vpack.c.b16 %v307, %v306
      %v337 = vpack.c.b16 %v309, %v308
      %v338 = vpack.c.b16 %v311, %v310
      %v339 = vpack.c.b16 %v313, %v312
      %v340 = vpack.c.b16 %v315, %v314
      %v341 = vpack.c.b16 %v317, %v316
      %v342 = vpack.c.b16 %v319, %v318
      %v343 = vpack.c.b16 %v321, %v320
      %v344 = vpack.c.b16 %v323, %v322
      %v345 = vpack.c.b16 %v325, %v324
      %v346 = vpack.c.b16 %v327, %v326
      %v347 = vpack.c.b16 %v329, %v328
      %v348 = vpack.c.b16 %v331, %v330
      %v349 = vpack.c.b16 %v333, %v332
      %v352 = vunpack.c.l.b16 %v261
      %v353 = vunpack.c.l.b16 %v262
      %v354 = vpack.c.b16 %v353, %v352
      %vm355 = vcmask 72704
      %v357 = vsel %vm355, %v334, 0
      %v360 = vsel %vm355, %v335, 0
      %v363 = vsel %vm355, %v336, 0
      %v366 = vsel %vm355, %v337, 0
      %v369 = vsel %vm355, %v338, 0
      %v372 = vsel %vm355, %v339, 0
      %v375 = vsel %vm355, %v340, 0
      %v378 = vsel %vm355, %v341, 0
      %v381 = vsel %vm355, %v342, 0
      %v384 = vsel %vm355, %v343, 0
      %v387 = vsel %vm355, %v344, 0
      %v390 = vsel %vm355, %v345, 0
      %v393 = vsel %vm355, %v346, 0
      %v396 = vsel %vm355, %v347, 0
      %v399 = vsel %vm355, %v348, 0
      %v402 = vsel %vm355, %v349, 0
      %vm404 = vcmask 1043456
      %vm405 = vcmask 1044480
      %v406 = vsel %vm404, 4294967295, 65535
      %v407 = vsel %vm405, %v406, 0
      %v409 = vand.u32 %v354, %v407
      %411 = vmatprep.subr.bf16.mxu0 0
      %412 = vmatpush1.bf16.msra.mxu0 0
      %413 = vmatprep.subr.bf16.mxu0 0
      %414 = vmatpush1.bf16.msra.mxu0 0
      %415 = vmatprep.subr.bf16.mxu0 0
      %416 = vmatpush1.bf16.msra.mxu0 0
      %417 = vmatprep.subr.bf16.mxu0 0
      %418 = vmatpush1.bf16.msra.mxu0 0
      %419 = vmatprep.subr.bf16.mxu0 0
      %420 = vmatpush1.bf16.msra.mxu0 0
      %421 = vmatprep.subr.bf16.mxu0 0
      %422 = vmatpush1.bf16.msra.mxu0 0
      %423 = vmatprep.subr.bf16.mxu0 0
      %424 = vmatpush1.bf16.msra.mxu0 0
      %425 = vmatprep.subr.bf16.mxu0 0
      %426 = vmatpush1.bf16.msra.mxu0 %v409
      %427 = vmatprep.subr.bf16.mxu0 0
      %428 = vmatpush2.bf16.msra.mxu0 0
      %429 = vmatprep.subr.bf16.mxu0 0
      %430 = vmatpush2.bf16.msra.mxu0 0
      %431 = vmatprep.subr.bf16.mxu0 0
      %432 = vmatpush2.bf16.msra.mxu0 0
      %433 = vmatprep.subr.bf16.mxu0 0
      %434 = vmatpush2.bf16.msra.mxu0 0
      %435 = vmatprep.subr.bf16.mxu0 0
      %436 = vmatpush2.bf16.msra.mxu0 0
      %437 = vmatprep.subr.bf16.mxu0 0
      %438 = vmatpush2.bf16.msra.mxu0 0
      %439 = vmatprep.subr.bf16.mxu0 0
      %440 = vmatpush2.bf16.msra.mxu0 0
      %441 = vmatprep.subr.bf16.mxu0 0
      %442 = vmatpush2.bf16.msra.mxu0 0
      %443 = vmatprep.mubr.bf16.mxu0 0
      %444 = vmatmul.mubr.bf16.gmra.mxu0 %v357
      %v445 = vpop.f32.mrf.mxu0
      %v446 = vadd.f32 %v268, %v445
      %v447 = vpop.f32.mrf.mxu0
      %v448 = vpop.f32.mrf.mxu0
      %v449 = vadd.f32 %v268, %v448
      %v450 = vpop.f32.mrf.mxu0
      %451 = vmatprep.mubr.bf16.mxu0 0
      %452 = vmatmul.mubr.bf16.gmra.mxu0 %v360
      %v453 = vpop.f32.mrf.mxu0
      %v454 = vadd.f32 %v268, %v453
      %v455 = vpop.f32.mrf.mxu0
      %v456 = vpop.f32.mrf.mxu0
      %v457 = vadd.f32 %v268, %v456
      %v458 = vpop.f32.mrf.mxu0
      %459 = vmatprep.mubr.bf16.mxu0 0
      %460 = vmatmul.mubr.bf16.gmra.mxu0 %v363
      %v461 = vpop.f32.mrf.mxu0
      %v462 = vadd.f32 %v268, %v461
      %v463 = vpop.f32.mrf.mxu0
      %v464 = vpop.f32.mrf.mxu0
      %v465 = vadd.f32 %v268, %v464
      %v466 = vpop.f32.mrf.mxu0
      %467 = vmatprep.mubr.bf16.mxu0 0
      %468 = vmatmul.mubr.bf16.gmra.mxu0 %v366
      %v469 = vpop.f32.mrf.mxu0
      %v470 = vadd.f32 %v268, %v469
      %v471 = vpop.f32.mrf.mxu0
      %v472 = vpop.f32.mrf.mxu0
      %v473 = vadd.f32 %v268, %v472
      %v474 = vpop.f32.mrf.mxu0
      %475 = vmatprep.mubr.bf16.mxu0 0
      %476 = vmatmul.mubr.bf16.gmra.mxu0 %v369
      %v477 = vpop.f32.mrf.mxu0
      %v478 = vadd.f32 %v268, %v477
      %v479 = vpop.f32.mrf.mxu0
      %v480 = vpop.f32.mrf.mxu0
      %v481 = vadd.f32 %v268, %v480
      %v482 = vpop.f32.mrf.mxu0
      %483 = vmatprep.mubr.bf16.mxu0 0
      %484 = vmatmul.mubr.bf16.gmra.mxu0 %v372
      %v485 = vpop.f32.mrf.mxu0
      %v486 = vadd.f32 %v268, %v485
      %v487 = vpop.f32.mrf.mxu0
      %v488 = vpop.f32.mrf.mxu0
      %v489 = vadd.f32 %v268, %v488
      %v490 = vpop.f32.mrf.mxu0
      %491 = vmatprep.mubr.bf16.mxu0 0
      %492 = vmatmul.mubr.bf16.gmra.mxu0 %v375
      %v493 = vpop.f32.mrf.mxu0
      %v494 = vadd.f32 %v268, %v493
      %v495 = vpop.f32.mrf.mxu0
      %v496 = vpop.f32.mrf.mxu0
      %v497 = vadd.f32 %v268, %v496
      %v498 = vpop.f32.mrf.mxu0
      %499 = vmatprep.mubr.bf16.mxu0 0
      %500 = vmatmul.mubr.bf16.gmra.mxu0 %v378
      %v501 = vpop.f32.mrf.mxu0
      %v502 = vadd.f32 %v268, %v501
      %v503 = vpop.f32.mrf.mxu0
      %v504 = vpop.f32.mrf.mxu0
      %v505 = vadd.f32 %v268, %v504
      %v506 = vpop.f32.mrf.mxu0
      %507 = vmatprep.mubr.bf16.mxu0 0
      %508 = vmatmul.mubr.bf16.gmra.mxu0 %v381
      %v509 = vpop.f32.mrf.mxu0
      %v510 = vadd.f32 %v268, %v509
      %v511 = vpop.f32.mrf.mxu0
      %v512 = vpop.f32.mrf.mxu0
      %v513 = vadd.f32 %v268, %v512
      %v514 = vpop.f32.mrf.mxu0
      %515 = vmatprep.mubr.bf16.mxu0 0
      %516 = vmatmul.mubr.bf16.gmra.mxu0 %v384
      %v517 = vpop.f32.mrf.mxu0
      %v518 = vadd.f32 %v268, %v517
      %v519 = vpop.f32.mrf.mxu0
      %v520 = vpop.f32.mrf.mxu0
      %v521 = vadd.f32 %v268, %v520
      %v522 = vpop.f32.mrf.mxu0
      %523 = vmatprep.mubr.bf16.mxu0 0
      %524 = vmatmul.mubr.bf16.gmra.mxu0 %v387
      %v525 = vpop.f32.mrf.mxu0
      %v526 = vadd.f32 %v268, %v525
      %v527 = vpop.f32.mrf.mxu0
      %v528 = vpop.f32.mrf.mxu0
      %v529 = vadd.f32 %v268, %v528
      %v530 = vpop.f32.mrf.mxu0
      %531 = vmatprep.mubr.bf16.mxu0 0
      %532 = vmatmul.mubr.bf16.gmra.mxu0 %v390
      %v533 = vpop.f32.mrf.mxu0
      %v534 = vadd.f32 %v268, %v533
      %v535 = vpop.f32.mrf.mxu0
      %v536 = vpop.f32.mrf.mxu0
      %v537 = vadd.f32 %v268, %v536
      %v538 = vpop.f32.mrf.mxu0
      %539 = vmatprep.mubr.bf16.mxu0 0
      %540 = vmatmul.mubr.bf16.gmra.mxu0 %v393
      %v541 = vpop.f32.mrf.mxu0
      %v542 = vadd.f32 %v268, %v541
      %v543 = vpop.f32.mrf.mxu0
      %v544 = vpop.f32.mrf.mxu0
      %v545 = vadd.f32 %v268, %v544
      %v546 = vpop.f32.mrf.mxu0
      %547 = vmatprep.mubr.bf16.mxu0 0
      %548 = vmatmul.mubr.bf16.gmra.mxu0 %v396
      %v549 = vpop.f32.mrf.mxu0
      %v550 = vadd.f32 %v268, %v549
      %v551 = vpop.f32.mrf.mxu0
      %v552 = vpop.f32.mrf.mxu0
      %v553 = vadd.f32 %v268, %v552
      %v554 = vpop.f32.mrf.mxu0
      %555 = vmatprep.mubr.bf16.mxu0 0
      %556 = vmatmul.mubr.bf16.gmra.mxu0 %v399
      %v557 = vpop.f32.mrf.mxu0
      %v558 = vadd.f32 %v268, %v557
      %v559 = vpop.f32.mrf.mxu0
      %v560 = vpop.f32.mrf.mxu0
      %v561 = vadd.f32 %v268, %v560
      %v562 = vpop.f32.mrf.mxu0
      %563 = vmatprep.mubr.bf16.mxu0 0
      %564 = vmatmul.mubr.bf16.gmra.mxu0 %v402
      %v565 = vpop.f32.mrf.mxu0
      %v566 = vadd.f32 %v268, %v565
      %v567 = vpop.f32.mrf.mxu0
      %v568 = vpop.f32.mrf.mxu0
      %v569 = vadd.f32 %v268, %v568
      %v570 = vpop.f32.mrf.mxu0
      %571 = vdwg.mxu0
      %v572 = vmul.f32 %v446, 0.1
      %v573 = vmul.f32 %v449, 0.1
      %v574 = vmul.f32 %v454, 0.1
      %v575 = vmul.f32 %v457, 0.1
      %v576 = vmul.f32 %v462, 0.1
      %v577 = vmul.f32 %v465, 0.1
      %v578 = vmul.f32 %v470, 0.1
      %v579 = vmul.f32 %v473, 0.1
      %v580 = vmul.f32 %v478, 0.1
      %v581 = vmul.f32 %v481, 0.1
      %v582 = vmul.f32 %v486, 0.1
      %v583 = vmul.f32 %v489, 0.1
      %v584 = vmul.f32 %v494, 0.1
      %v585 = vmul.f32 %v497, 0.1
      %v586 = vmul.f32 %v502, 0.1
      %v587 = vmul.f32 %v505, 0.1
      %v588 = vmul.f32 %v510, 0.1
      %v589 = vmul.f32 %v513, 0.1
      %v590 = vmul.f32 %v518, 0.1
      %v591 = vmul.f32 %v521, 0.1
      %v592 = vmul.f32 %v526, 0.1
      %v593 = vmul.f32 %v529, 0.1
      %v594 = vmul.f32 %v534, 0.1
      %v595 = vmul.f32 %v537, 0.1
      %v596 = vmul.f32 %v542, 0.1
      %v597 = vmul.f32 %v545, 0.1
      %v598 = vmul.f32 %v550, 0.1
      %v599 = vmul.f32 %v553, 0.1
      %v600 = vmul.f32 %v558, 0.1
      %v601 = vmul.f32 %v561, 0.1
      %v602 = vmul.f32 %v566, 0.1
      %v603 = vmul.f32 %v569, 0.1
      %v604 = vmax.f32 %v446, %v572
      %v605 = vmax.f32 %v449, %v573
      %v606 = vmax.f32 %v454, %v574
      %v607 = vmax.f32 %v457, %v575
      %v608 = vmax.f32 %v462, %v576
      %v609 = vmax.f32 %v465, %v577
      %v610 = vmax.f32 %v470, %v578
      %v611 = vmax.f32 %v473, %v579
      %v612 = vmax.f32 %v478, %v580
      %v613 = vmax.f32 %v481, %v581
      %v614 = vmax.f32 %v486, %v582
      %v615 = vmax.f32 %v489, %v583
      %v616 = vmax.f32 %v494, %v584
      %v617 = vmax.f32 %v497, %v585
      %v618 = vmax.f32 %v502, %v586
      %v619 = vmax.f32 %v505, %v587
      %v620 = vmax.f32 %v510, %v588
      %v621 = vmax.f32 %v513, %v589
      %v622 = vmax.f32 %v518, %v590
      %v623 = vmax.f32 %v521, %v591
      %v624 = vmax.f32 %v526, %v592
      %v625 = vmax.f32 %v529, %v593
      %v626 = vmax.f32 %v534, %v594
      %v627 = vmax.f32 %v537, %v595
      %v628 = vmax.f32 %v542, %v596
      %v629 = vmax.f32 %v545, %v597
      %v630 = vmax.f32 %v550, %v598
      %v631 = vmax.f32 %v553, %v599
      %v632 = vmax.f32 %v558, %v600
      %v633 = vmax.f32 %v561, %v601
      %v634 = vmax.f32 %v566, %v602
      %v635 = vmax.f32 %v569, %v603
      %v636 = vunpack.c.l.bf16 %v229
      %v637 = vunpack.c.l.bf16 %v230
      %v638 = vunpack.c.l.bf16 %v231
      %v639 = vunpack.c.l.bf16 %v232
      %v640 = vunpack.c.l.bf16 %v233
      %v641 = vunpack.c.l.bf16 %v234
      %v642 = vunpack.c.l.bf16 %v235
      %v643 = vunpack.c.l.bf16 %v236
      %v644 = vunpack.c.l.bf16 %v237
      %v645 = vunpack.c.l.bf16 %v238
      %v646 = vunpack.c.l.bf16 %v239
      %v647 = vunpack.c.l.bf16 %v240
      %v648 = vunpack.c.l.bf16 %v241
      %v649 = vunpack.c.l.bf16 %v242
      %v650 = vunpack.c.l.bf16 %v243
      %v651 = vunpack.c.l.bf16 %v244
      %v652 = vunpack.c.l.bf16 %v245
      %v653 = vunpack.c.l.bf16 %v246
      %v654 = vunpack.c.l.bf16 %v247
      %v655 = vunpack.c.l.bf16 %v248
      %v656 = vunpack.c.l.bf16 %v249
      %v657 = vunpack.c.l.bf16 %v250
      %v658 = vunpack.c.l.bf16 %v251
      %v659 = vunpack.c.l.bf16 %v252
      %v660 = vunpack.c.l.bf16 %v253
      %v661 = vunpack.c.l.bf16 %v254
      %v662 = vunpack.c.l.bf16 %v255
      %v663 = vunpack.c.l.bf16 %v256
      %v664 = vunpack.c.l.bf16 %v257
      %v665 = vunpack.c.l.bf16 %v258
      %v666 = vunpack.c.l.bf16 %v259
      %v667 = vunpack.c.l.bf16 %v260
      %v668 = vld [vmem:[%s3] sm:$0x1]
      %v669 = vunpack.c.l.bf16 %v668
      %671 = vset.pattern.permute.xlu0 4
      %672 = vperm.xlu0 %671, %v636
      %v673 = vpop.permute.xlu0 %672
      %676 = vset.pattern.permute.xlu0 4
      %677 = vperm.xlu0 %676, %v637
      %v678 = vpop.permute.xlu0 %677
      %681 = vset.pattern.permute.xlu0 4
      %682 = vperm.xlu0 %681, %v638
      %v683 = vpop.permute.xlu0 %682
      %686 = vset.pattern.permute.xlu0 4
      %687 = vperm.xlu0 %686, %v639
      %v688 = vpop.permute.xlu0 %687
      %691 = vset.pattern.permute.xlu0 4
      %692 = vperm.xlu0 %691, %v640
      %v693 = vpop.permute.xlu0 %692
      %696 = vset.pattern.permute.xlu0 4
      %697 = vperm.xlu0 %696, %v641
      %v698 = vpop.permute.xlu0 %697
      %701 = vset.pattern.permute.xlu0 4
      %702 = vperm.xlu0 %701, %v642
      %v703 = vpop.permute.xlu0 %702
      %706 = vset.pattern.permute.xlu0 4
      %707 = vperm.xlu0 %706, %v643
      %v708 = vpop.permute.xlu0 %707
      %711 = vset.pattern.permute.xlu0 4
      %712 = vperm.xlu0 %711, %v644
      %v713 = vpop.permute.xlu0 %712
      %716 = vset.pattern.permute.xlu0 4
      %717 = vperm.xlu0 %716, %v645
      %v718 = vpop.permute.xlu0 %717
      %721 = vset.pattern.permute.xlu0 4
      %722 = vperm.xlu0 %721, %v646
      %v723 = vpop.permute.xlu0 %722
      %726 = vset.pattern.permute.xlu0 4
      %727 = vperm.xlu0 %726, %v647
      %v728 = vpop.permute.xlu0 %727
      %731 = vset.pattern.permute.xlu0 4
      %732 = vperm.xlu0 %731, %v648
      %v733 = vpop.permute.xlu0 %732
      %736 = vset.pattern.permute.xlu0 4
      %737 = vperm.xlu0 %736, %v649
      %v738 = vpop.permute.xlu0 %737
      %741 = vset.pattern.permute.xlu0 4
      %742 = vperm.xlu0 %741, %v650
      %v743 = vpop.permute.xlu0 %742
      %746 = vset.pattern.permute.xlu0 4
      %747 = vperm.xlu0 %746, %v651
      %v748 = vpop.permute.xlu0 %747
      %751 = vset.pattern.permute.xlu0 4
      %752 = vperm.xlu0 %751, %v652
      %v753 = vpop.permute.xlu0 %752
      %756 = vset.pattern.permute.xlu0 4
      %757 = vperm.xlu0 %756, %v653
      %v758 = vpop.permute.xlu0 %757
      %761 = vset.pattern.permute.xlu0 4
      %762 = vperm.xlu0 %761, %v654
      %v763 = vpop.permute.xlu0 %762
      %766 = vset.pattern.permute.xlu0 4
      %767 = vperm.xlu0 %766, %v655
      %v768 = vpop.permute.xlu0 %767
      %771 = vset.pattern.permute.xlu0 4
      %772 = vperm.xlu0 %771, %v656
      %v773 = vpop.permute.xlu0 %772
      %776 = vset.pattern.permute.xlu0 4
      %777 = vperm.xlu0 %776, %v657
      %v778 = vpop.permute.xlu0 %777
      %781 = vset.pattern.permute.xlu0 4
      %782 = vperm.xlu0 %781, %v658
      %v783 = vpop.permute.xlu0 %782
      %786 = vset.pattern.permute.xlu0 4
      %787 = vperm.xlu0 %786, %v659
      %v788 = vpop.permute.xlu0 %787
      %791 = vset.pattern.permute.xlu0 4
      %792 = vperm.xlu0 %791, %v660
      %v793 = vpop.permute.xlu0 %792
      %796 = vset.pattern.permute.xlu0 4
      %797 = vperm.xlu0 %796, %v661
      %v798 = vpop.permute.xlu0 %797
      %801 = vset.pattern.permute.xlu0 4
      %802 = vperm.xlu0 %801, %v662
      %v803 = vpop.permute.xlu0 %802
      %806 = vset.pattern.permute.xlu0 4
      %807 = vperm.xlu0 %806, %v663
      %v808 = vpop.permute.xlu0 %807
      %811 = vset.pattern.permute.xlu0 4
      %812 = vperm.xlu0 %811, %v664
      %v813 = vpop.permute.xlu0 %812
      %816 = vset.pattern.permute.xlu0 4
      %817 = vperm.xlu0 %816, %v665
      %v818 = vpop.permute.xlu0 %817
      %821 = vset.pattern.permute.xlu0 4
      %822 = vperm.xlu0 %821, %v666
      %v823 = vpop.permute.xlu0 %822
      %826 = vset.pattern.permute.xlu0 4
      %827 = vperm.xlu0 %826, %v667
      %v828 = vpop.permute.xlu0 %827
      %v830 = vlaneseq
      %v831 = vshrl.u32 %v830, 7
      %v832 = vsub.s32 0, %v831
      %v833 = vrot.slane %v669, %v832
      %v834 = vmul.f32 %v673, %v833
      %v835 = vmul.f32 %v678, %v833
      %v836 = vmul.f32 %v683, %v833
      %v837 = vmul.f32 %v688, %v833
      %v838 = vmul.f32 %v693, %v833
      %v839 = vmul.f32 %v698, %v833
      %v840 = vmul.f32 %v703, %v833
      %v841 = vmul.f32 %v708, %v833
      %v842 = vmul.f32 %v713, %v833
      %v843 = vmul.f32 %v718, %v833
      %v844 = vmul.f32 %v723, %v833
      %v845 = vmul.f32 %v728, %v833
      %v846 = vmul.f32 %v733, %v833
      %v847 = vmul.f32 %v738, %v833
      %v848 = vmul.f32 %v743, %v833
      %v849 = vmul.f32 %v748, %v833
      %v850 = vmul.f32 %v753, %v833
      %v851 = vmul.f32 %v758, %v833
      %v852 = vmul.f32 %v763, %v833
      %v853 = vmul.f32 %v768, %v833
      %v854 = vmul.f32 %v773, %v833
      %v855 = vmul.f32 %v778, %v833
      %v856 = vmul.f32 %v783, %v833
      %v857 = vmul.f32 %v788, %v833
      %v858 = vmul.f32 %v793, %v833
      %v859 = vmul.f32 %v798, %v833
      %v860 = vmul.f32 %v803, %v833
      %v861 = vmul.f32 %v808, %v833
      %v862 = vmul.f32 %v813, %v833
      %v863 = vmul.f32 %v818, %v833
      %v864 = vmul.f32 %v823, %v833
      %v865 = vmul.f32 %v828, %v833
      %v866 = vld [vmem:[%s4] sm:$0x1]
      %v868 = vlaneseq
      %v869 = vshrl.u32 %v868, 7
      %v870 = vsub.s32 0, %v869
      %v871 = vrot.slane %v866, %v870
      %v873 = vadd.f32 %v834, %v871
      %v874 = vadd.f32 %v835, %v871
      %v875 = vadd.f32 %v836, %v871
      %v876 = vadd.f32 %v837, %v871
      %v877 = vadd.f32 %v838, %v871
      %v878 = vadd.f32 %v839, %v871
      %v879 = vadd.f32 %v840, %v871
      %v880 = vadd.f32 %v841, %v871
      %v881 = vadd.f32 %v842, %v871
      %v882 = vadd.f32 %v843, %v871
      %v883 = vadd.f32 %v844, %v871
      %v884 = vadd.f32 %v845, %v871
      %v885 = vadd.f32 %v846, %v871
      %v886 = vadd.f32 %v847, %v871
      %v887 = vadd.f32 %v848, %v871
      %v888 = vadd.f32 %v849, %v871
      %v889 = vadd.f32 %v850, %v871
      %v890 = vadd.f32 %v851, %v871
      %v891 = vadd.f32 %v852, %v871
      %v892 = vadd.f32 %v853, %v871
      %v893 = vadd.f32 %v854, %v871
      %v894 = vadd.f32 %v855, %v871
      %v895 = vadd.f32 %v856, %v871
      %v896 = vadd.f32 %v857, %v871
      %v897 = vadd.f32 %v858, %v871
      %v898 = vadd.f32 %v859, %v871
      %v899 = vadd.f32 %v860, %v871
      %v900 = vadd.f32 %v861, %v871
      %v901 = vadd.f32 %v862, %v871
      %v902 = vadd.f32 %v863, %v871
      %v903 = vadd.f32 %v864, %v871
      %v904 = vadd.f32 %v865, %v871
      %v905 = vadd.f32 %v604, %v873
      %v906 = vadd.f32 %v605, %v874
      %v907 = vadd.f32 %v606, %v875
      %v908 = vadd.f32 %v607, %v876
      %v909 = vadd.f32 %v608, %v877
      %v910 = vadd.f32 %v609, %v878
      %v911 = vadd.f32 %v610, %v879
      %v912 = vadd.f32 %v611, %v880
      %v913 = vadd.f32 %v612, %v881
      %v914 = vadd.f32 %v613, %v882
      %v915 = vadd.f32 %v614, %v883
      %v916 = vadd.f32 %v615, %v884
      %v917 = vadd.f32 %v616, %v885
      %v918 = vadd.f32 %v617, %v886
      %v919 = vadd.f32 %v618, %v887
      %v920 = vadd.f32 %v619, %v888
      %v921 = vadd.f32 %v620, %v889
      %v922 = vadd.f32 %v621, %v890
      %v923 = vadd.f32 %v622, %v891
      %v924 = vadd.f32 %v623, %v892
      %v925 = vadd.f32 %v624, %v893
      %v926 = vadd.f32 %v625, %v894
      %v927 = vadd.f32 %v626, %v895
      %v928 = vadd.f32 %v627, %v896
      %v929 = vadd.f32 %v628, %v897
      %v930 = vadd.f32 %v629, %v898
      %v931 = vadd.f32 %v630, %v899
      %v932 = vadd.f32 %v631, %v900
      %v933 = vadd.f32 %v632, %v901
      %v934 = vadd.f32 %v633, %v902
      %v935 = vadd.f32 %v634, %v903
      %v936 = vadd.f32 %v635, %v904
      %vm937 = vcmask 261120
      %938 = vst.msk [vmem:[%s226] sm:$0xff] %vm937, %v905
      %939 = vst.msk [vmem:[%s226 + $0x8] sm:$0xff] %vm937, %v906
      %940 = vst.msk [vmem:[%s226 + $0x10] sm:$0xff] %vm937, %v907
      %941 = vst.msk [vmem:[%s226 + $0x18] sm:$0xff] %vm937, %v908
      %942 = vst.msk [vmem:[%s226 + $0x20] sm:$0xff] %vm937, %v909
      %943 = vst.msk [vmem:[%s226 + $0x28] sm:$0xff] %vm937, %v910
      %944 = vst.msk [vmem:[%s226 + $0x30] sm:$0xff] %vm937, %v911
      %945 = vst.msk [vmem:[%s226 + $0x38] sm:$0xff] %vm937, %v912
      %946 = vst.msk [vmem:[%s226 + $0x40] sm:$0xff] %vm937, %v913
      %947 = vst.msk [vmem:[%s226 + $0x48] sm:$0xff] %vm937, %v914
      %948 = vst.msk [vmem:[%s226 + $0x50] sm:$0xff] %vm937, %v915
      %949 = vst.msk [vmem:[%s226 + $0x58] sm:$0xff] %vm937, %v916
      %950 = vst.msk [vmem:[%s226 + $0x60] sm:$0xff] %vm937, %v917
      %951 = vst.msk [vmem:[%s226 + $0x68] sm:$0xff] %vm937, %v918
      %952 = vst.msk [vmem:[%s226 + $0x70] sm:$0xff] %vm937, %v919
      %953 = vst.msk [vmem:[%s226 + $0x78] sm:$0xff] %vm937, %v920
      %954 = vst.msk [vmem:[%s226 + $0x80] sm:$0xff] %vm937, %v921
      %955 = vst.msk [vmem:[%s226 + $0x88] sm:$0xff] %vm937, %v922
      %956 = vst.msk [vmem:[%s226 + $0x90] sm:$0xff] %vm937, %v923
      %957 = vst.msk [vmem:[%s226 + $0x98] sm:$0xff] %vm937, %v924
      %958 = vst.msk [vmem:[%s226 + $0xa0] sm:$0xff] %vm937, %v925
      %959 = vst.msk [vmem:[%s226 + $0xa8] sm:$0xff] %vm937, %v926
      %960 = vst.msk [vmem:[%s226 + $0xb0] sm:$0xff] %vm937, %v927
      %961 = vst.msk [vmem:[%s226 + $0xb8] sm:$0xff] %vm937, %v928
      %962 = vst.msk [vmem:[%s226 + $0xc0] sm:$0xff] %vm937, %v929
      %963 = vst.msk [vmem:[%s226 + $0xc8] sm:$0xff] %vm937, %v930
      %964 = vst.msk [vmem:[%s226 + $0xd0] sm:$0xff] %vm937, %v931
      %965 = vst.msk [vmem:[%s226 + $0xd8] sm:$0xff] %vm937, %v932
      %966 = vst.msk [vmem:[%s226 + $0xe0] sm:$0xff] %vm937, %v933
      %967 = vst.msk [vmem:[%s226 + $0xe8] sm:$0xff] %vm937, %v934
      %968 = vst.msk [vmem:[%s226 + $0xf0] sm:$0xff] %vm937, %v935
      %969 = vst.msk [vmem:[%s226 + $0xf8] sm:$0xff] %vm937, %v936
      %s970 = smul.u32 32, %s16
      %p971 = scmp.lt.s32.totalorder %s970, 63
      %s972 = scalar_select %p971, %s970, 63
      %s973 = smul.addr %s972, 8
      %s974 = scalar_lea.vmem %s5, %s973
      // Predicated region
      $region41: #{_lambda_.21} parent=39 // pred_check
        %p975 = pneg %p144
      $region42: #{_lambda_.21} parent=39 // pred_check_branch
        %977 = sbr.rel (%p975) target = $region44
      $region43: #{_lambda_.21} parent=39 // pred_region
        %s978 = smul.u32 32, %s16
      $region44: #{_lambda_.21} parent=39 // pred_fallthru
        _
    $region40: #{_lambda_.21} parent=5 // pred_fallthru
      _
    %p979 = scmp.le.s32.totalorder 2, %s11
    // Predicated region
    $region45: #{_lambda_.21} parent=5 // pred_check
      %p980 = pneg %p979
    $region46: #{_lambda_.21} parent=5 // pred_check_branch
      %982 = sbr.rel (%p980) target = $region48
    $region47: #{_lambda_.21} parent=5 // pred_region
      %s983 = ssub.s32 %s11, 2
      // Predicated region
      $region49: #{_lambda_.21} parent=47 // pred_check
        %p984 = pneg %p150
      $region50: #{_lambda_.21} parent=47 // pred_check_branch
        %986 = sbr.rel (%p984) target = $region52
      $region51: #{_lambda_.21} parent=47 // pred_region
        %s987 = smul.u32 32, %s17
        %p988 = scmp.lt.s32.totalorder %s987, 63
        %s989 = scalar_select %p988, %s987, 63
        %s990 = smul.addr %s989, 8
        %s991 = scalar_lea.vmem %s5, %s990
      $region52: #{_lambda_.21} parent=47 // pred_fallthru
        _
    $region48: #{_lambda_.21} parent=5 // pred_fallthru
      _
  $region6: #{_lambda_.21} parent=0 // loop_footer
    %s15 = sadd.s32 1, %s11
  $region7: #{_lambda_.21} parent=0 // loop_footer_branch
    %10 = sbr.rel target = $region3
  $region8: #{_lambda_.21} parent=0 // loop_exit
    _

// kernel: _lambda_.22
$region0: #{_lambda_.22}
  #allocation0 [shape = 'u32[]', space=smem, size = 0x4, offset = 0x4, fixed_abs, tag = 'smem constant byte address 0x4 - core index']
  #allocation1 [shape = 'u32[144,128]{1,0:T(1,128)}', space=vmem, size = 0x12000, scoped, tag = 'internal scratch']
  %s0 = inlined_call_operand.vmem [shape: bf16[128,288], index: 0, kind: input, shape index: {}]
  %s1 = inlined_call_operand.vmem [shape: bf16[288,64], index: 1, kind: input, shape index: {}]
  %s2 = inlined_call_operand.vmem [shape: f32[1,64], index: 2, kind: input, shape index: {}]
  %s3 = inlined_call_operand.vmem [shape: bf16[32,64], index: 3, kind: input, shape index: {}]
  %s4 = inlined_call_operand.vmem [shape: f32[1,64], index: 4, kind: input, shape index: {}]
  %s5 = inlined_call_operand.vmem [shape: f32[128,64], index: 5, kind: output, shape index: {}]
  %s6 = sld [smem:[#allocation0]]
  $region30: #{_lambda_.22} parent=0
    _
  %s8 = ssub.s32 1, %s6
  %s9 = scalar_select 0, %s8, %s6
  // Predicated region
  $region2: #{_lambda_.22} parent=0 // pred_check
    _
  $region3: #{_lambda_.22} parent=0 // pred_check_branch
    %11 = sbr.rel (0) target = $region5
  $region4: #{_lambda_.22} parent=0 // pred_region
    _
  $region5: #{_lambda_.22} parent=0 // pred_fallthru
    _
  // Predicated region
  $region6: #{_lambda_.22} parent=0 // pred_check
    _
  $region7: #{_lambda_.22} parent=0 // pred_check_branch
    %13 = sbr.rel (0) target = $region9
  $region8: #{_lambda_.22} parent=0 // pred_region
    _
  $region9: #{_lambda_.22} parent=0 // pred_fallthru
    _
  // Predicated region
  $region10: #{_lambda_.22} parent=0 // pred_check
    _
  $region11: #{_lambda_.22} parent=0 // pred_check_branch
    %15 = sbr.rel (0) target = $region13
  $region12: #{_lambda_.22} parent=0 // pred_region
    _
  $region13: #{_lambda_.22} parent=0 // pred_fallthru
    _
  // Predicated region
  $region14: #{_lambda_.22} parent=0 // pred_check
    _
  $region15: #{_lambda_.22} parent=0 // pred_check_branch
    %17 = sbr.rel (0) target = $region17
  $region16: #{_lambda_.22} parent=0 // pred_region
    _
  $region17: #{_lambda_.22} parent=0 // pred_fallthru
    _
  // Predicated region
  $region18: #{_lambda_.22} parent=0 // pred_check
    _
  $region19: #{_lambda_.22} parent=0 // pred_check_branch
    %19 = sbr.rel (0) target = $region21
  $region20: #{_lambda_.22} parent=0 // pred_region
    _
  $region21: #{_lambda_.22} parent=0 // pred_fallthru
    _
  %v21 = vld [vmem:[%s0] sm:$0xff]
  %v22 = vld [vmem:[%s0 + $0x8] sm:$0xf]
  %v23 = vld [vmem:[%s0 + $0xc] sm:$0xff]
  %v24 = vld [vmem:[%s0 + $0x14] sm:$0xf]
  %v25 = vld [vmem:[%s0 + $0x18] sm:$0xff]
  %v26 = vld [vmem:[%s0 + $0x20] sm:$0xf]
  %v27 = vld [vmem:[%s0 + $0x24] sm:$0xff]
  %v28 = vld [vmem:[%s0 + $0x2c] sm:$0xf]
  %v29 = vld [vmem:[%s0 + $0x30] sm:$0xff]
  %v30 = vld [vmem:[%s0 + $0x38] sm:$0xf]
  %v31 = vld [vmem:[%s0 + $0x3c] sm:$0xff]
  %v32 = vld [vmem:[%s0 + $0x44] sm:$0xf]
  %v33 = vld [vmem:[%s0 + $0x48] sm:$0xff]
  %v34 = vld [vmem:[%s0 + $0x50] sm:$0xf]
  %v35 = vld [vmem:[%s0 + $0x54] sm:$0xff]
  %v36 = vld [vmem:[%s0 + $0x5c] sm:$0xf]
  %v37 = vld [vmem:[%s0 + $0x60] sm:$0xff]
  %v38 = vld [vmem:[%s0 + $0x68] sm:$0xf]
  %v39 = vld [vmem:[%s0 + $0x6c] sm:$0xff]
  %v40 = vld [vmem:[%s0 + $0x74] sm:$0xf]
  %v41 = vld [vmem:[%s0 + $0x78] sm:$0xff]
  %v42 = vld [vmem:[%s0 + $0x80] sm:$0xf]
  %v43 = vld [vmem:[%s0 + $0x84] sm:$0xff]
  %v44 = vld [vmem:[%s0 + $0x8c] sm:$0xf]
  %v45 = vld [vmem:[%s0 + $0x90] sm:$0xff]
  %v46 = vld [vmem:[%s0 + $0x98] sm:$0xf]
  %v47 = vld [vmem:[%s0 + $0x9c] sm:$0xff]
  %v48 = vld [vmem:[%s0 + $0xa4] sm:$0xf]
  %v49 = vld [vmem:[%s0 + $0xa8] sm:$0xff]
  %v50 = vld [vmem:[%s0 + $0xb0] sm:$0xf]
  %v51 = vld [vmem:[%s0 + $0xb4] sm:$0xff]
  %v52 = vld [vmem:[%s0 + $0xbc] sm:$0xf]
  %v53 = vld [vmem:[%s1] sm:$0xf]
  %v54 = vld [vmem:[%s1 + $0x4] sm:$0xf]
  %v55 = vld [vmem:[%s1 + $0x8] sm:$0xf]
  %v56 = vld [vmem:[%s1 + $0xc] sm:$0xf]
  %v57 = vld [vmem:[%s1 + $0x10] sm:$0xf]
  %v58 = vld [vmem:[%s1 + $0x14] sm:$0xf]
  %v59 = vld [vmem:[%s1 + $0x18] sm:$0xf]
  %v60 = vld [vmem:[%s1 + $0x1c] sm:$0xf]
  %v61 = vld [vmem:[%s1 + $0x20] sm:$0xf]
  %v62 = vld [vmem:[%s1 + $0x24] sm:$0xf]
  %v63 = vld [vmem:[%s1 + $0x28] sm:$0xf]
  %v64 = vld [vmem:[%s1 + $0x2c] sm:$0xf]
  %v65 = vld [vmem:[%s1 + $0x30] sm:$0xf]
  %v66 = vld [vmem:[%s1 + $0x34] sm:$0xf]
  %v67 = vld [vmem:[%s1 + $0x38] sm:$0xf]
  %v68 = vld [vmem:[%s1 + $0x3c] sm:$0xf]
  %v69 = vld [vmem:[%s1 + $0x40] sm:$0xf]
  %v70 = vld [vmem:[%s1 + $0x44] sm:$0xf]
  %v71 = vld [vmem:[%s1 + $0x48] sm:$0xf]
  %v72 = vld [vmem:[%s1 + $0x4c] sm:$0xf]
  %v73 = vld [vmem:[%s1 + $0x50] sm:$0xf]
  %v74 = vld [vmem:[%s1 + $0x54] sm:$0xf]
  %v75 = vld [vmem:[%s1 + $0x58] sm:$0xf]
  %v76 = vld [vmem:[%s1 + $0x5c] sm:$0xf]
  %v77 = vld [vmem:[%s1 + $0x60] sm:$0xf]
  %v78 = vld [vmem:[%s1 + $0x64] sm:$0xf]
  %v79 = vld [vmem:[%s1 + $0x68] sm:$0xf]
  %v80 = vld [vmem:[%s1 + $0x6c] sm:$0xf]
  %v81 = vld [vmem:[%s1 + $0x70] sm:$0xf]
  %v82 = vld [vmem:[%s1 + $0x74] sm:$0xf]
  %v83 = vld [vmem:[%s1 + $0x78] sm:$0xf]
  %v84 = vld [vmem:[%s1 + $0x7c] sm:$0xf]
  %v85 = vld [vmem:[%s1 + $0x80] sm:$0xf]
  %v86 = vld [vmem:[%s1 + $0x84] sm:$0xf]
  %v87 = vld [vmem:[%s1 + $0x88] sm:$0xf]
  %v88 = vld [vmem:[%s1 + $0x8c] sm:$0xf]
  %v89 = vld [vmem:[%s2] sm:$0x1]
  %v91 = vlaneseq
  %v92 = vshrl.u32 %v91, 7
  %v93 = vsub.s32 0, %v92
  %v94 = vrot.slane %v89, %v93
  %v128 = vunpack.c.l.b16 %v21
  %v129 = vunpack.c.h.b16 %v21
  %v130 = vunpack.c.l.b16 %v22
  %v131 = vunpack.c.l.b16 %v23
  %v132 = vunpack.c.h.b16 %v23
  %v133 = vunpack.c.l.b16 %v24
  %v134 = vunpack.c.l.b16 %v25
  %v135 = vunpack.c.h.b16 %v25
  %v136 = vunpack.c.l.b16 %v26
  %v137 = vunpack.c.l.b16 %v27
  %v138 = vunpack.c.h.b16 %v27
  %v139 = vunpack.c.l.b16 %v28
  %v140 = vunpack.c.l.b16 %v29
  %v141 = vunpack.c.h.b16 %v29
  %v142 = vunpack.c.l.b16 %v30
  %v143 = vunpack.c.l.b16 %v31
  %v144 = vunpack.c.h.b16 %v31
  %v145 = vunpack.c.l.b16 %v32
  %v146 = vunpack.c.l.b16 %v33
  %v147 = vunpack.c.h.b16 %v33
  %v148 = vunpack.c.l.b16 %v34
  %v149 = vunpack.c.l.b16 %v35
  %v150 = vunpack.c.h.b16 %v35
  %v151 = vunpack.c.l.b16 %v36
  %v152 = vunpack.c.l.b16 %v37
  %v153 = vunpack.c.h.b16 %v37
  %v154 = vunpack.c.l.b16 %v38
  %v155 = vunpack.c.l.b16 %v39
  %v156 = vunpack.c.h.b16 %v39
  %v157 = vunpack.c.l.b16 %v40
  %v158 = vunpack.c.l.b16 %v41
  %v159 = vunpack.c.h.b16 %v41
  %v160 = vunpack.c.l.b16 %v42
  %v161 = vunpack.c.l.b16 %v43
  %v162 = vunpack.c.h.b16 %v43
  %v163 = vunpack.c.l.b16 %v44
  %v164 = vunpack.c.l.b16 %v45
  %v165 = vunpack.c.h.b16 %v45
  %v166 = vunpack.c.l.b16 %v46
  %v167 = vunpack.c.l.b16 %v47
  %v168 = vunpack.c.h.b16 %v47
  %v169 = vunpack.c.l.b16 %v48
  %v170 = vunpack.c.l.b16 %v49
  %v171 = vunpack.c.h.b16 %v49
  %v172 = vunpack.c.l.b16 %v50
  %v173 = vunpack.c.l.b16 %v51
  %v174 = vunpack.c.h.b16 %v51
  %v175 = vunpack.c.l.b16 %v52
  %v176 = vpack.c.b16 %v131, %v128
  %v177 = vpack.c.b16 %v132, %v129
  %v178 = vpack.c.b16 %v133, %v130
  %v179 = vpack.c.b16 %v137, %v134
  %v180 = vpack.c.b16 %v138, %v135
  %v181 = vpack.c.b16 %v139, %v136
  %v182 = vpack.c.b16 %v143, %v140
  %v183 = vpack.c.b16 %v144, %v141
  %v184 = vpack.c.b16 %v145, %v142
  %v185 = vpack.c.b16 %v149, %v146
  %v186 = vpack.c.b16 %v150, %v147
  %v187 = vpack.c.b16 %v151, %v148
  %v188 = vpack.c.b16 %v155, %v152
  %v189 = vpack.c.b16 %v156, %v153
  %v190 = vpack.c.b16 %v157, %v154
  %v191 = vpack.c.b16 %v161, %v158
  %v192 = vpack.c.b16 %v162, %v159
  %v193 = vpack.c.b16 %v163, %v160
  %v194 = vpack.c.b16 %v167, %v164
  %v195 = vpack.c.b16 %v168, %v165
  %v196 = vpack.c.b16 %v169, %v166
  %v197 = vpack.c.b16 %v173, %v170
  %v198 = vpack.c.b16 %v174, %v171
  %v199 = vpack.c.b16 %v175, %v172
  %v252 = vunpack.c.l.b16 %v53
  %v253 = vunpack.c.l.b16 %v54
  %v254 = vunpack.c.l.b16 %v55
  %v255 = vunpack.c.l.b16 %v56
  %v256 = vunpack.c.l.b16 %v57
  %v257 = vunpack.c.l.b16 %v58
  %v258 = vunpack.c.l.b16 %v59
  %v259 = vunpack.c.l.b16 %v60
  %v260 = vunpack.c.l.b16 %v61
  %v261 = vunpack.c.l.b16 %v62
  %v262 = vunpack.c.l.b16 %v63
  %v263 = vunpack.c.l.b16 %v64
  %v264 = vunpack.c.l.b16 %v65
  %v265 = vunpack.c.l.b16 %v66
  %v266 = vunpack.c.l.b16 %v67
  %v267 = vunpack.c.l.b16 %v68
  %v268 = vunpack.c.l.b16 %v69
  %v269 = vunpack.c.l.b16 %v70
  %v270 = vunpack.c.l.b16 %v71
  %v271 = vunpack.c.l.b16 %v72
  %v272 = vunpack.c.l.b16 %v73
  %v273 = vunpack.c.l.b16 %v74
  %v274 = vunpack.c.l.b16 %v75
  %v275 = vunpack.c.l.b16 %v76
  %v276 = vunpack.c.l.b16 %v77
  %v277 = vunpack.c.l.b16 %v78
  %v278 = vunpack.c.l.b16 %v79
  %v279 = vunpack.c.l.b16 %v80
  %v280 = vunpack.c.l.b16 %v81
  %v281 = vunpack.c.l.b16 %v82
  %v282 = vunpack.c.l.b16 %v83
  %v283 = vunpack.c.l.b16 %v84
  %v284 = vunpack.c.l.b16 %v85
  %v285 = vunpack.c.l.b16 %v86
  %v286 = vunpack.c.l.b16 %v87
  %v287 = vunpack.c.l.b16 %v88
  %v288 = vpack.c.b16 %v253, %v252
  %v289 = vpack.c.b16 %v255, %v254
  %v290 = vpack.c.b16 %v257, %v256
  %v291 = vpack.c.b16 %v259, %v258
  %v292 = vpack.c.b16 %v261, %v260
  %v293 = vpack.c.b16 %v263, %v262
  %v294 = vpack.c.b16 %v265, %v264
  %v295 = vpack.c.b16 %v267, %v266
  %v296 = vpack.c.b16 %v269, %v268
  %v297 = vpack.c.b16 %v271, %v270
  %v298 = vpack.c.b16 %v273, %v272
  %v299 = vpack.c.b16 %v275, %v274
  %v300 = vpack.c.b16 %v277, %v276
  %v301 = vpack.c.b16 %v279, %v278
  %v302 = vpack.c.b16 %v281, %v280
  %v303 = vpack.c.b16 %v283, %v282
  %v304 = vpack.c.b16 %v285, %v284
  %v305 = vpack.c.b16 %v287, %v286
  %vm324 = vcmask 261120
  %v326 = vsel %vm324, %v178, 0
  %v329 = vsel %vm324, %v181, 0
  %v332 = vsel %vm324, %v184, 0
  %v335 = vsel %vm324, %v187, 0
  %v338 = vsel %vm324, %v190, 0
  %v341 = vsel %vm324, %v193, 0
  %v344 = vsel %vm324, %v196, 0
  %v347 = vsel %vm324, %v199, 0
  %349 = vmatprep.subr.bf16.mxu0 0
  %350 = vmatpush1.bf16.msra.mxu0 %v295
  %351 = vmatprep.subr.bf16.mxu0 0
  %352 = vmatpush1.bf16.msra.mxu0 %v294
  %353 = vmatprep.subr.bf16.mxu0 0
  %354 = vmatpush1.bf16.msra.mxu0 %v293
  %355 = vmatprep.subr.bf16.mxu0 0
  %356 = vmatpush1.bf16.msra.mxu0 %v292
  %357 = vmatprep.subr.bf16.mxu0 0
  %358 = vmatpush1.bf16.msra.mxu0 %v291
  %359 = vmatprep.subr.bf16.mxu0 0
  %360 = vmatpush1.bf16.msra.mxu0 %v290
  %361 = vmatprep.subr.bf16.mxu0 0
  %362 = vmatpush1.bf16.msra.mxu0 %v289
  %363 = vmatprep.subr.bf16.mxu0 0
  %364 = vmatpush1.bf16.msra.mxu0 %v288
  %365 = vmatprep.subr.bf16.mxu0 0
  %366 = vmatpush2.bf16.msra.mxu0 %v303
  %367 = vmatprep.subr.bf16.mxu0 0
  %368 = vmatpush2.bf16.msra.mxu0 %v302
  %369 = vmatprep.subr.bf16.mxu0 0
  %370 = vmatpush2.bf16.msra.mxu0 %v301
  %371 = vmatprep.subr.bf16.mxu0 0
  %372 = vmatpush2.bf16.msra.mxu0 %v300
  %373 = vmatprep.subr.bf16.mxu0 0
  %374 = vmatpush2.bf16.msra.mxu0 %v299
  %375 = vmatprep.subr.bf16.mxu0 0
  %376 = vmatpush2.bf16.msra.mxu0 %v298
  %377 = vmatprep.subr.bf16.mxu0 0
  %378 = vmatpush2.bf16.msra.mxu0 %v297
  %379 = vmatprep.subr.bf16.mxu0 0
  %380 = vmatpush2.bf16.msra.mxu0 %v296
  %381 = vmatprep.mubr.bf16.mxu0 %v177
  %382 = vmatmul.mubr.bf16.gmra.mxu0 %v176
  %v383 = vpop.f32.mrf.mxu0
  %v384 = vadd.f32 %v94, %v383
  %v385 = vpop.f32.mrf.mxu0
  %v386 = vpop.f32.mrf.mxu0
  %v387 = vadd.f32 %v94, %v386
  %v388 = vpop.f32.mrf.mxu0
  %389 = vmatprep.mubr.bf16.mxu0 %v180
  %390 = vmatmul.mubr.bf16.gmra.mxu0 %v179
  %v391 = vpop.f32.mrf.mxu0
  %v392 = vadd.f32 %v94, %v391
  %v393 = vpop.f32.mrf.mxu0
  %v394 = vpop.f32.mrf.mxu0
  %v395 = vadd.f32 %v94, %v394
  %v396 = vpop.f32.mrf.mxu0
  %397 = vmatprep.mubr.bf16.mxu0 %v183
  %398 = vmatmul.mubr.bf16.gmra.mxu0 %v182
  %v399 = vpop.f32.mrf.mxu0
  %v400 = vadd.f32 %v94, %v399
  %v401 = vpop.f32.mrf.mxu0
  %v402 = vpop.f32.mrf.mxu0
  %v403 = vadd.f32 %v94, %v402
  %v404 = vpop.f32.mrf.mxu0
  %405 = vmatprep.mubr.bf16.mxu0 %v186
  %406 = vmatmul.mubr.bf16.gmra.mxu0 %v185
  %v407 = vpop.f32.mrf.mxu0
  %v408 = vadd.f32 %v94, %v407
  %v409 = vpop.f32.mrf.mxu0
  %v410 = vpop.f32.mrf.mxu0
  %v411 = vadd.f32 %v94, %v410
  %v412 = vpop.f32.mrf.mxu0
  %413 = vmatprep.mubr.bf16.mxu0 %v189
  %414 = vmatmul.mubr.bf16.gmra.mxu0 %v188
  %v415 = vpop.f32.mrf.mxu0
  %v416 = vadd.f32 %v94, %v415
  %v417 = vpop.f32.mrf.mxu0
  %v418 = vpop.f32.mrf.mxu0
  %v419 = vadd.f32 %v94, %v418
  %v420 = vpop.f32.mrf.mxu0
  %421 = vmatprep.mubr.bf16.mxu0 %v192
  %422 = vmatmul.mubr.bf16.gmra.mxu0 %v191
  %v423 = vpop.f32.mrf.mxu0
  %v424 = vadd.f32 %v94, %v423
  %v425 = vpop.f32.mrf.mxu0
  %v426 = vpop.f32.mrf.mxu0
  %v427 = vadd.f32 %v94, %v426
  %v428 = vpop.f32.mrf.mxu0
  %429 = vmatprep.mubr.bf16.mxu0 %v195
  %430 = vmatmul.mubr.bf16.gmra.mxu0 %v194
  %v431 = vpop.f32.mrf.mxu0
  %v432 = vadd.f32 %v94, %v431
  %v433 = vpop.f32.mrf.mxu0
  %v434 = vpop.f32.mrf.mxu0
  %v435 = vadd.f32 %v94, %v434
  %v436 = vpop.f32.mrf.mxu0
  %437 = vmatprep.mubr.bf16.mxu0 %v198
  %438 = vmatmul.mubr.bf16.gmra.mxu0 %v197
  %v439 = vpop.f32.mrf.mxu0
  %v440 = vadd.f32 %v94, %v439
  %v441 = vpop.f32.mrf.mxu0
  %v442 = vpop.f32.mrf.mxu0
  %v443 = vadd.f32 %v94, %v442
  %v444 = vpop.f32.mrf.mxu0
  %445 = vdwg.mxu0
  %446 = vmatprep.subr.bf16.mxu0 0
  %447 = vmatpush1.bf16.msra.mxu0 0
  %448 = vmatprep.subr.bf16.mxu0 0
  %449 = vmatpush1.bf16.msra.mxu0 0
  %450 = vmatprep.subr.bf16.mxu0 0
  %451 = vmatpush1.bf16.msra.mxu0 0
  %452 = vmatprep.subr.bf16.mxu0 0
  %453 = vmatpush1.bf16.msra.mxu0 0
  %454 = vmatprep.subr.bf16.mxu0 0
  %455 = vmatpush1.bf16.msra.mxu0 0
  %456 = vmatprep.subr.bf16.mxu0 0
  %457 = vmatpush1.bf16.msra.mxu0 0
  %458 = vmatprep.subr.bf16.mxu0 0
  %459 = vmatpush1.bf16.msra.mxu0 %v305
  %460 = vmatprep.subr.bf16.mxu0 0
  %461 = vmatpush1.bf16.msra.mxu0 %v304
  %462 = vmatprep.subr.bf16.mxu0 0
  %463 = vmatpush2.bf16.msra.mxu0 0
  %464 = vmatprep.subr.bf16.mxu0 0
  %465 = vmatpush2.bf16.msra.mxu0 0
  %466 = vmatprep.subr.bf16.mxu0 0
  %467 = vmatpush2.bf16.msra.mxu0 0
  %468 = vmatprep.subr.bf16.mxu0 0
  %469 = vmatpush2.bf16.msra.mxu0 0
  %470 = vmatprep.subr.bf16.mxu0 0
  %471 = vmatpush2.bf16.msra.mxu0 0
  %472 = vmatprep.subr.bf16.mxu0 0
  %473 = vmatpush2.bf16.msra.mxu0 0
  %474 = vmatprep.subr.bf16.mxu0 0
  %475 = vmatpush2.bf16.msra.mxu0 0
  %476 = vmatprep.subr.bf16.mxu0 0
  %477 = vmatpush2.bf16.msra.mxu0 0
  %478 = vmatprep.mubr.bf16.mxu0 0
  %479 = vmatmul.mubr.bf16.gmra.mxu0 %v326
  %v480 = vpop.f32.mrf.mxu0
  %v481 = vadd.f32 %v384, %v480
  %v482 = vpop.f32.mrf.mxu0
  %v483 = vpop.f32.mrf.mxu0
  %v484 = vadd.f32 %v387, %v483
  %v485 = vpop.f32.mrf.mxu0
  %486 = vmatprep.mubr.bf16.mxu0 0
  %487 = vmatmul.mubr.bf16.gmra.mxu0 %v329
  %v488 = vpop.f32.mrf.mxu0
  %v489 = vadd.f32 %v392, %v488
  %v490 = vpop.f32.mrf.mxu0
  %v491 = vpop.f32.mrf.mxu0
  %v492 = vadd.f32 %v395, %v491
  %v493 = vpop.f32.mrf.mxu0
  %494 = vmatprep.mubr.bf16.mxu0 0
  %495 = vmatmul.mubr.bf16.gmra.mxu0 %v332
  %v496 = vpop.f32.mrf.mxu0
  %v497 = vadd.f32 %v400, %v496
  %v498 = vpop.f32.mrf.mxu0
  %v499 = vpop.f32.mrf.mxu0
  %v500 = vadd.f32 %v403, %v499
  %v501 = vpop.f32.mrf.mxu0
  %502 = vmatprep.mubr.bf16.mxu0 0
  %503 = vmatmul.mubr.bf16.gmra.mxu0 %v335
  %v504 = vpop.f32.mrf.mxu0
  %v505 = vadd.f32 %v408, %v504
  %v506 = vpop.f32.mrf.mxu0
  %v507 = vpop.f32.mrf.mxu0
  %v508 = vadd.f32 %v411, %v507
  %v509 = vpop.f32.mrf.mxu0
  %510 = vmatprep.mubr.bf16.mxu0 0
  %511 = vmatmul.mubr.bf16.gmra.mxu0 %v338
  %v512 = vpop.f32.mrf.mxu0
  %v513 = vadd.f32 %v416, %v512
  %v514 = vpop.f32.mrf.mxu0
  %v515 = vpop.f32.mrf.mxu0
  %v516 = vadd.f32 %v419, %v515
  %v517 = vpop.f32.mrf.mxu0
  %518 = vmatprep.mubr.bf16.mxu0 0
  %519 = vmatmul.mubr.bf16.gmra.mxu0 %v341
  %v520 = vpop.f32.mrf.mxu0
  %v521 = vadd.f32 %v424, %v520
  %v522 = vpop.f32.mrf.mxu0
  %v523 = vpop.f32.mrf.mxu0
  %v524 = vadd.f32 %v427, %v523
  %v525 = vpop.f32.mrf.mxu0
  %526 = vmatprep.mubr.bf16.mxu0 0
  %527 = vmatmul.mubr.bf16.gmra.mxu0 %v344
  %v528 = vpop.f32.mrf.mxu0
  %v529 = vadd.f32 %v432, %v528
  %v530 = vpop.f32.mrf.mxu0
  %v531 = vpop.f32.mrf.mxu0
  %v532 = vadd.f32 %v435, %v531
  %v533 = vpop.f32.mrf.mxu0
  %534 = vmatprep.mubr.bf16.mxu0 0
  %535 = vmatmul.mubr.bf16.gmra.mxu0 %v347
  %v536 = vpop.f32.mrf.mxu0
  %v537 = vadd.f32 %v440, %v536
  %v538 = vpop.f32.mrf.mxu0
  %v539 = vpop.f32.mrf.mxu0
  %v540 = vadd.f32 %v443, %v539
  %v541 = vpop.f32.mrf.mxu0
  %542 = vdwg.mxu0
  %v543 = vmul.f32 %v481, 0.1
  %v544 = vmul.f32 %v484, 0.1
  %v545 = vmul.f32 %v489, 0.1
  %v546 = vmul.f32 %v492, 0.1
  %v547 = vmul.f32 %v497, 0.1
  %v548 = vmul.f32 %v500, 0.1
  %v549 = vmul.f32 %v505, 0.1
  %v550 = vmul.f32 %v508, 0.1
  %v551 = vmul.f32 %v513, 0.1
  %v552 = vmul.f32 %v516, 0.1
  %v553 = vmul.f32 %v521, 0.1
  %v554 = vmul.f32 %v524, 0.1
  %v555 = vmul.f32 %v529, 0.1
  %v556 = vmul.f32 %v532, 0.1
  %v557 = vmul.f32 %v537, 0.1
  %v558 = vmul.f32 %v540, 0.1
  %v559 = vmax.f32 %v481, %v543
  %v560 = vmax.f32 %v484, %v544
  %v561 = vmax.f32 %v489, %v545
  %v562 = vmax.f32 %v492, %v546
  %v563 = vmax.f32 %v497, %v547
  %v564 = vmax.f32 %v500, %v548
  %v565 = vmax.f32 %v505, %v549
  %v566 = vmax.f32 %v508, %v550
  %v567 = vmax.f32 %v513, %v551
  %v568 = vmax.f32 %v516, %v552
  %v569 = vmax.f32 %v521, %v553
  %v570 = vmax.f32 %v524, %v554
  %v571 = vmax.f32 %v529, %v555
  %v572 = vmax.f32 %v532, %v556
  %v573 = vmax.f32 %v537, %v557
  %v574 = vmax.f32 %v540, %v558
  %v575 = vld [vmem:[%s3] sm:$0xf]
  %v576 = vld [vmem:[%s3 + $0x4] sm:$0xf]
  %v577 = vld [vmem:[%s3 + $0x8] sm:$0xf]
  %v578 = vld [vmem:[%s3 + $0xc] sm:$0xf]
  %v579 = vld [vmem:[%s4] sm:$0x1]
  %v581 = vlaneseq
  %v582 = vshrl.u32 %v581, 7
  %v583 = vsub.s32 0, %v582
  %v584 = vrot.slane %v579, %v583
  %v590 = vunpack.c.l.b16 %v575
  %v591 = vunpack.c.l.b16 %v576
  %v592 = vunpack.c.l.b16 %v577
  %v593 = vunpack.c.l.b16 %v578
  %v594 = vpack.c.b16 %v591, %v590
  %v595 = vpack.c.b16 %v593, %v592
  %v599 = vsel %vm324, %v177, 0
  %v602 = vsel %vm324, %v180, 0
  %v605 = vsel %vm324, %v183, 0
  %v608 = vsel %vm324, %v186, 0
  %v611 = vsel %vm324, %v189, 0
  %v614 = vsel %vm324, %v192, 0
  %v617 = vsel %vm324, %v195, 0
  %v620 = vsel %vm324, %v198, 0
  %622 = vmatprep.subr.bf16.mxu0 0
  %623 = vmatpush1.bf16.msra.mxu0 0
  %624 = vmatprep.subr.bf16.mxu0 0
  %625 = vmatpush1.bf16.msra.mxu0 0
  %626 = vmatprep.subr.bf16.mxu0 0
  %627 = vmatpush1.bf16.msra.mxu0 0
  %628 = vmatprep.subr.bf16.mxu0 0
  %629 = vmatpush1.bf16.msra.mxu0 0
  %630 = vmatprep.subr.bf16.mxu0 0
  %631 = vmatpush1.bf16.msra.mxu0 0
  %632 = vmatprep.subr.bf16.mxu0 0
  %633 = vmatpush1.bf16.msra.mxu0 0
  %634 = vmatprep.subr.bf16.mxu0 0
  %635 = vmatpush1.bf16.msra.mxu0 %v595
  %636 = vmatprep.subr.bf16.mxu0 0
  %637 = vmatpush1.bf16.msra.mxu0 %v594
  %638 = vmatprep.subr.bf16.mxu0 0
  %639 = vmatpush2.bf16.msra.mxu0 0
  %640 = vmatprep.subr.bf16.mxu0 0
  %641 = vmatpush2.bf16.msra.mxu0 0
  %642 = vmatprep.subr.bf16.mxu0 0
  %643 = vmatpush2.bf16.msra.mxu0 0
  %644 = vmatprep.subr.bf16.mxu0 0
  %645 = vmatpush2.bf16.msra.mxu0 0
  %646 = vmatprep.subr.bf16.mxu0 0
  %647 = vmatpush2.bf16.msra.mxu0 0
  %648 = vmatprep.subr.bf16.mxu0 0
  %649 = vmatpush2.bf16.msra.mxu0 0
  %650 = vmatprep.subr.bf16.mxu0 0
  %651 = vmatpush2.bf16.msra.mxu0 0
  %652 = vmatprep.subr.bf16.mxu0 0
  %653 = vmatpush2.bf16.msra.mxu0 0
  %654 = vmatprep.mubr.bf16.mxu0 0
  %655 = vmatmul.mubr.bf16.gmra.mxu0 %v599
  %v656 = vpop.f32.mrf.mxu0
  %v657 = vadd.f32 %v584, %v656
  %v658 = vpop.f32.mrf.mxu0
  %v659 = vpop.f32.mrf.mxu0
  %v660 = vadd.f32 %v584, %v659
  %v661 = vpop.f32.mrf.mxu0
  %662 = vmatprep.mubr.bf16.mxu0 0
  %663 = vmatmul.mubr.bf16.gmra.mxu0 %v602
  %v664 = vpop.f32.mrf.mxu0
  %v665 = vadd.f32 %v584, %v664
  %v666 = vpop.f32.mrf.mxu0
  %v667 = vpop.f32.mrf.mxu0
  %v668 = vadd.f32 %v584, %v667
  %v669 = vpop.f32.mrf.mxu0
  %670 = vmatprep.mubr.bf16.mxu0 0
  %671 = vmatmul.mubr.bf16.gmra.mxu0 %v605
  %v672 = vpop.f32.mrf.mxu0
  %v673 = vadd.f32 %v584, %v672
  %v674 = vpop.f32.mrf.mxu0
  %v675 = vpop.f32.mrf.mxu0
  %v676 = vadd.f32 %v584, %v675
  %v677 = vpop.f32.mrf.mxu0
  %678 = vmatprep.mubr.bf16.mxu0 0
  %679 = vmatmul.mubr.bf16.gmra.mxu0 %v608
  %v680 = vpop.f32.mrf.mxu0
  %v681 = vadd.f32 %v584, %v680
  %v682 = vpop.f32.mrf.mxu0
  %v683 = vpop.f32.mrf.mxu0
  %v684 = vadd.f32 %v584, %v683
  %v685 = vpop.f32.mrf.mxu0
  %686 = vmatprep.mubr.bf16.mxu0 0
  %687 = vmatmul.mubr.bf16.gmra.mxu0 %v611
  %v688 = vpop.f32.mrf.mxu0
  %v689 = vadd.f32 %v584, %v688
  %v690 = vpop.f32.mrf.mxu0
  %v691 = vpop.f32.mrf.mxu0
  %v692 = vadd.f32 %v584, %v691
  %v693 = vpop.f32.mrf.mxu0
  %694 = vmatprep.mubr.bf16.mxu0 0
  %695 = vmatmul.mubr.bf16.gmra.mxu0 %v614
  %v696 = vpop.f32.mrf.mxu0
  %v697 = vadd.f32 %v584, %v696
  %v698 = vpop.f32.mrf.mxu0
  %v699 = vpop.f32.mrf.mxu0
  %v700 = vadd.f32 %v584, %v699
  %v701 = vpop.f32.mrf.mxu0
  %702 = vmatprep.mubr.bf16.mxu0 0
  %703 = vmatmul.mubr.bf16.gmra.mxu0 %v617
  %v704 = vpop.f32.mrf.mxu0
  %v705 = vadd.f32 %v584, %v704
  %v706 = vpop.f32.mrf.mxu0
  %v707 = vpop.f32.mrf.mxu0
  %v708 = vadd.f32 %v584, %v707
  %v709 = vpop.f32.mrf.mxu0
  %710 = vmatprep.mubr.bf16.mxu0 0
  %711 = vmatmul.mubr.bf16.gmra.mxu0 %v620
  %v712 = vpop.f32.mrf.mxu0
  %v713 = vadd.f32 %v584, %v712
  %v714 = vpop.f32.mrf.mxu0
  %v715 = vpop.f32.mrf.mxu0
  %v716 = vadd.f32 %v584, %v715
  %v717 = vpop.f32.mrf.mxu0
  %718 = vdwg.mxu0
  %v719 = vadd.f32 %v559, %v657
  %v720 = vadd.f32 %v560, %v660
  %v721 = vadd.f32 %v561, %v665
  %v722 = vadd.f32 %v562, %v668
  %v723 = vadd.f32 %v563, %v673
  %v724 = vadd.f32 %v564, %v676
  %v725 = vadd.f32 %v565, %v681
  %v726 = vadd.f32 %v566, %v684
  %v727 = vadd.f32 %v567, %v689
  %v728 = vadd.f32 %v568, %v692
  %v729 = vadd.f32 %v569, %v697
  %v730 = vadd.f32 %v570, %v700
  %v731 = vadd.f32 %v571, %v705
  %v732 = vadd.f32 %v572, %v708
  %v733 = vadd.f32 %v573, %v713
  %v734 = vadd.f32 %v574, %v716
  %vm735 = vcmask 523264
  %736 = vst.msk [vmem:[%s5] sm:$0xff] %vm735, %v719
  %737 = vst.msk [vmem:[%s5 + $0x8] sm:$0xff] %vm735, %v720
  %738 = vst.msk [vmem:[%s5 + $0x10] sm:$0xff] %vm735, %v721
  %739 = vst.msk [vmem:[%s5 + $0x18] sm:$0xff] %vm735, %v722
  %740 = vst.msk [vmem:[%s5 + $0x20] sm:$0xff] %vm735, %v723
  %741 = vst.msk [vmem:[%s5 + $0x28] sm:$0xff] %vm735, %v724
  %742 = vst.msk [vmem:[%s5 + $0x30] sm:$0xff] %vm735, %v725
  %743 = vst.msk [vmem:[%s5 + $0x38] sm:$0xff] %vm735, %v726
  %744 = vst.msk [vmem:[%s5 + $0x40] sm:$0xff] %vm735, %v727
  %745 = vst.msk [vmem:[%s5 + $0x48] sm:$0xff] %vm735, %v728
  %746 = vst.msk [vmem:[%s5 + $0x50] sm:$0xff] %vm735, %v729
  %747 = vst.msk [vmem:[%s5 + $0x58] sm:$0xff] %vm735, %v730
  %748 = vst.msk [vmem:[%s5 + $0x60] sm:$0xff] %vm735, %v731
  %749 = vst.msk [vmem:[%s5 + $0x68] sm:$0xff] %vm735, %v732
  %750 = vst.msk [vmem:[%s5 + $0x70] sm:$0xff] %vm735, %v733
  %751 = vst.msk [vmem:[%s5 + $0x78] sm:$0xff] %vm735, %v734
  // Predicated region
  $region22: #{_lambda_.22} parent=0 // pred_check
    _
  $region23: #{_lambda_.22} parent=0 // pred_check_branch
    %753 = sbr.rel (0) target = $region25
  $region24: #{_lambda_.22} parent=0 // pred_region
    _
  $region25: #{_lambda_.22} parent=0 // pred_fallthru
    _
  // Predicated region
  $region26: #{_lambda_.22} parent=0 // pred_check
    _
  $region27: #{_lambda_.22} parent=0 // pred_check_branch
    %755 = sbr.rel (0) target = $region29
  $region28: #{_lambda_.22} parent=0 // pred_region
    _
  $region29: #{_lambda_.22} parent=0 // pred_fallthru
    _

// kernel: _lambda_.24
$region0: #{_lambda_.24}
  #allocation0 [shape = 'u32[]', space=smem, size = 0x4, offset = 0x4, fixed_abs, tag = 'smem constant byte address 0x4 - core index']
  #allocation1 [shape = 'u32[144,128]{1,0:T(1,128)}', space=vmem, size = 0x12000, scoped, tag = 'internal scratch']
  %s0 = inlined_call_operand.vmem [shape: f32[2,4,4,128], index: 0, kind: input, shape index: {}]
  %s1 = inlined_call_operand.vmem [shape: f32[2,8,8,128], index: 1, kind: input, shape index: {}]
  %s2 = inlined_call_operand.vmem [shape: f32[2,4,4,25], index: 2, kind: output, shape index: {}]
  %s3 = sld [smem:[#allocation0]]
  $region41: #{_lambda_.24} parent=0
    _
  %s5 = ssub.s32 1, %s3
  %s6 = scalar_select 0, %s5, %s3
  loop: start=0, step=1, limit=4
  $region2: #{_lambda_.24} parent=0 // loop_pre_header
    _
  $region3: #{_lambda_.24} parent=0 // loop_header
    %s8 = sphi 0, %s12
    %p9 = scmp.ge.s32.totalorder %s8, 4
    %s18 = sphi 0, %s20
    %s21 = sphi 0, %s18
    %s22 = sphi 0, %s21
    %s38 = sphi 0, %s22
    %s44 = sphi 0, %s46
    %s47 = sphi 0, %s44
    %s48 = sphi 0, %s47
    %s64 = sphi 0, %s48
    %s70 = sphi 0, %s72
    %s73 = sphi 0, %s70
    %s74 = sphi 0, %s73
    %s90 = sphi 0, %s74
  $region4: #{_lambda_.24} parent=0 // loop_header_branch
    %11 = sbr.rel (%p9) target = $region8
  $region5: #{_lambda_.24} parent=0 // loop_body
    %s13 = ssub.s32 %s8, 1
    %s14 = ssub.s32 %s8, 2
    %s15 = sadd.s32 %s8, 1
    %s16 = ssub.s32 %s8, %s15
    %p17 = scmp.eq.s32.totalorder %s16, 0
    %s19 = sadd.s32 %s18, 1
    %s20 = scalar_select %p17, %s18, %s19
    %p23 = pneg %p17
    %p24 = scmp.eq.s32.totalorder %s8, 1
    %p25 = por %p23, %p24
    %p26 = scmp.ne.s32.totalorder %s18, %s21
    %p27 = scmp.eq.s32.totalorder %s8, 0
    %p28 = por %p26, %p27
    %p29 = scmp.ne.s32.totalorder %s18, %s21
    %p30 = scmp.eq.s32.totalorder %s13, 1
    %p31 = por %p29, %p30
    %p32 = scmp.ne.s32.totalorder %s21, %s22
    %p33 = scmp.eq.s32.totalorder %s13, 0
    %p34 = por %p32, %p33
    %p35 = scmp.ne.s32.totalorder %s21, %s22
    %p36 = scmp.eq.s32.totalorder %s14, 1
    %p37 = por %p35, %p36
    %p39 = scmp.ne.s32.totalorder %s22, %s38
    %p40 = scmp.eq.s32.totalorder %s14, 0
    %p41 = por %p39, %p40
    %s42 = ssub.s32 %s8, %s15
    %p43 = scmp.eq.s32.totalorder %s42, 0
    %s45 = sadd.s32 %s44, 1
    %s46 = scalar_select %p43, %s44, %s45
    %p49 = pneg %p43
    %p50 = scmp.eq.s32.totalorder %s8, 1
    %p51 = por %p49, %p50
    %p52 = scmp.ne.s32.totalorder %s44, %s47
    %p53 = scmp.eq.s32.totalorder %s8, 0
    %p54 = por %p52, %p53
    %p55 = scmp.ne.s32.totalorder %s44, %s47
    %p56 = scmp.eq.s32.totalorder %s13, 1
    %p57 = por %p55, %p56
    %p58 = scmp.ne.s32.totalorder %s47, %s48
    %p59 = scmp.eq.s32.totalorder %s13, 0
    %p60 = por %p58, %p59
    %p61 = scmp.ne.s32.totalorder %s47, %s48
    %p62 = scmp.eq.s32.totalorder %s14, 1
    %p63 = por %p61, %p62
    %p65 = scmp.ne.s32.totalorder %s48, %s64
    %p66 = scmp.eq.s32.totalorder %s14, 0
    %p67 = por %p65, %p66
    %s68 = ssub.s32 %s8, %s15
    %p69 = scmp.eq.s32.totalorder %s68, 0
    %s71 = sadd.s32 %s70, 1
    %s72 = scalar_select %p69, %s70, %s71
    %p75 = pneg %p69
    %p76 = scmp.eq.s32.totalorder %s8, 1
    %p77 = por %p75, %p76
    %p78 = scmp.ne.s32.totalorder %s70, %s73
    %p79 = scmp.eq.s32.totalorder %s8, 0
    %p80 = por %p78, %p79
    %p81 = scmp.ne.s32.totalorder %s70, %s73
    %p82 = scmp.eq.s32.totalorder %s13, 1
    %p83 = por %p81, %p82
    %p84 = scmp.ne.s32.totalorder %s73, %s74
    %p85 = scmp.eq.s32.totalorder %s13, 0
    %p86 = por %p84, %p85
    %p87 = scmp.ne.s32.totalorder %s73, %s74
    %p88 = scmp.eq.s32.totalorder %s14, 1
    %p89 = por %p87, %p88
    %p91 = scmp.ne.s32.totalorder %s74, %s90
    %p92 = scmp.eq.s32.totalorder %s14, 0
    %p93 = por %p91, %p92
    %p94 = scmp.le.s32.totalorder 1, %s8
    %p95 = scmp.lt.s32.totalorder %s8, 3
    %p96 = pnand %p94, %p95
    %p97 = pneg %p96
    // Predicated region
    $region9: #{_lambda_.24} parent=5 // pred_check
      _
    $region10: #{_lambda_.24} parent=5 // pred_check_branch
      %99 = sbr.rel (%p96) target = $region12
    $region11: #{_lambda_.24} parent=5 // pred_region
      %s100 = ssub.s32 %s8, 1
    $region12: #{_lambda_.24} parent=5 // pred_fallthru
      _
    %p101 = scmp.lt.s32.totalorder %s8, 2
    // Predicated region
    $region13: #{_lambda_.24} parent=5 // pred_check
      %p102 = pneg %p101
    $region14: #{_lambda_.24} parent=5 // pred_check_branch
      %104 = sbr.rel (%p102) target = $region16
    $region15: #{_lambda_.24} parent=5 // pred_region
      // Predicated region
      $region17: #{_lambda_.24} parent=15 // pred_check
        %p105 = pneg %p28
      $region18: #{_lambda_.24} parent=15 // pred_check_branch
        %107 = sbr.rel (%p105) target = $region20
      $region19: #{_lambda_.24} parent=15 // pred_region
        %p108 = scmp.lt.s32.totalorder %s8, 1
        %s109 = scalar_select %p108, %s8, 1
        %s110 = smul.addr %s109, 4
        %s111 = smul.addr %s110, 4
        %s112 = scalar_lea.vmem %s0, %s111
      $region20: #{_lambda_.24} parent=15 // pred_fallthru
        _
      // Predicated region
      $region21: #{_lambda_.24} parent=15 // pred_check
        %p113 = pneg %p54
      $region22: #{_lambda_.24} parent=15 // pred_check_branch
        %115 = sbr.rel (%p113) target = $region24
      $region23: #{_lambda_.24} parent=15 // pred_region
        %p116 = scmp.lt.s32.totalorder %s8, 1
        %s117 = scalar_select %p116, %s8, 1
        %s118 = smul.addr %s117, 8
        %s119 = smul.addr %s118, 8
        %s120 = scalar_lea.vmem %s1, %s119
      $region24: #{_lambda_.24} parent=15 // pred_fallthru
        _
    $region16: #{_lambda_.24} parent=5 // pred_fallthru
      _
    %p121 = scmp.le.s32.totalorder 1, %s8
    %p122 = scmp.lt.s32.totalorder %s8, 3
    %p123 = pnand %p121, %p122
    %p124 = pneg %p123
    // Predicated region
    $region25: #{_lambda_.24} parent=5 // pred_check
      _
    $region26: #{_lambda_.24} parent=5 // pred_check_branch
      %126 = sbr.rel (%p123) target = $region28
    $region27: #{_lambda_.24} parent=5 // pred_region
      %s127 = ssub.s32 %s8, 1
      %p128 = scmp.lt.s32.totalorder %s13, 1
      %s129 = scalar_select %p128, %s13, 1
      %s130 = smul.addr %s129, 4
      %s131 = smul.addr %s130, 4
      %s132 = scalar_lea.vmem %s0, %s131
      %p133 = pneg %p34
      %p134 = pneg %p31
      %p135 = scmp.lt.s32.totalorder %s13, 1
      %s136 = scalar_select %p135, %s13, 1
      %s137 = smul.addr %s136, 8
      %s138 = smul.addr %s137, 8
      %s139 = scalar_lea.vmem %s1, %s138
      %p140 = pneg %p60
      %p141 = pneg %p57
      %p142 = pneg %p86
      %p143 = pneg %p83
      %p144 = scmp.lt.s32.totalorder %s13, 1
      %s145 = scalar_select %p144, %s13, 1
      %s146 = smul.addr %s145, 4
      %s147 = smul.addr %s146, 4
      %s148 = scalar_lea.vmem %s2, %s147
      %p149 = scmp.lt.s32.totalorder %s13, 1
      %s150 = scalar_select %p149, %s13, 1
      %s151 = smul.addr %s150, 4
      %s152 = smul.addr %s151, 4
      %s153 = scalar_lea.vmem %s0, %s152
      %p154 = scmp.lt.s32.totalorder %s13, 1
      %s155 = scalar_select %p154, %s13, 1
      %s156 = smul.addr %s155, 8
      %s157 = smul.addr %s156, 8
      %s158 = scalar_lea.vmem %s1, %s157
      %p159 = scmp.lt.s32.totalorder %s13, 1
      %s160 = scalar_select %p159, %s13, 1
      %s161 = smul.addr %s160, 4
      %s162 = smul.addr %s161, 4
      %s163 = scalar_lea.vmem %s2, %s162
      %v164 = vld [vmem:[%s153] sm:$0xf]
      %v165 = vld [vmem:[%s153 + $0x4] sm:$0xf]
      %v166 = vld [vmem:[%s153 + $0x8] sm:$0xf]
      %v167 = vld [vmem:[%s153 + $0xc] sm:$0xf]
      %v168 = vld [vmem:[%s158] sm:$0xff]
      %v169 = vld [vmem:[%s158 + $0x8] sm:$0xff]
      %v170 = vld [vmem:[%s158 + $0x10] sm:$0xff]
      %v171 = vld [vmem:[%s158 + $0x18] sm:$0xff]
      %v172 = vld [vmem:[%s158 + $0x20] sm:$0xff]
      %v173 = vld [vmem:[%s158 + $0x28] sm:$0xff]
      %v174 = vld [vmem:[%s158 + $0x30] sm:$0xff]
      %v175 = vld [vmem:[%s158 + $0x38] sm:$0xff]
      %v176 = vmul.f32 %v164, %v168
      %v177 = vmul.f32 %v165, %v169
      %v178 = vmul.f32 %v166, %v170
      %v179 = vmul.f32 %v167, %v171
      %v184 = vcombine.low %v176, %v177
      %v185 = vcombine.low %v178, %v179
      %188 = vadd.xlane.f32.xlu0 %v184
      %v189 = vpop.xlane.xlu0 %188
      %190 = vadd.xlane.f32.xlu0 %v185
      %v191 = vpop.xlane.xlu0 %190
      %v196 = vcombine.high %v168, %v168
      %v197 = vcombine.high %v169, %v169
      %v198 = vcombine.high %v170, %v170
      %v199 = vcombine.high %v171, %v171
      %vm200 = vcmask 1042432
      %vm201 = vcmask 1046532
      %vm202 = vmor %vm200, %vm201
      %v203 = vrot.slane %v168, 5
      %v204 = vrot.slane %v203, 4
      %v205 = vrot.slane %v196, 5
      %v206 = vsel %vm202, %v204, %v205
      %v207 = vrot.slane %v169, 5
      %v208 = vrot.slane %v207, 4
      %v209 = vrot.slane %v197, 5
      %v210 = vsel %vm202, %v208, %v209
      %v211 = vrot.slane %v170, 5
      %v212 = vrot.slane %v211, 4
      %v213 = vrot.slane %v198, 5
      %v214 = vsel %vm202, %v212, %v213
      %v215 = vrot.slane %v171, 5
      %v216 = vrot.slane %v215, 4
      %v217 = vrot.slane %v199, 5
      %v218 = vsel %vm202, %v216, %v217
      %v223 = vmul.f32 %v164, %v206
      %v224 = vmul.f32 %v165, %v210
      %v225 = vmul.f32 %v166, %v214
      %v226 = vmul.f32 %v167, %v218
      %v231 = vcombine.low %v223, %v224
      %v232 = vcombine.low %v225, %v226
      %235 = vadd.xlane.f32.xlu0 %v231
      %v236 = vpop.xlane.xlu0 %235
      %237 = vadd.xlane.f32.xlu0 %v232
      %v238 = vpop.xlane.xlu0 %237
      %vm239 = vcmask 1041408
      %vm240 = vcmask 1045508
      %vm241 = vmor %vm239, %vm240
      %v242 = vrot.slane %v168, 6
      %v243 = vrot.slane %v242, 4
      %v244 = vrot.slane %v196, 6
      %v245 = vsel %vm241, %v243, %v244
      %v246 = vrot.slane %v169, 6
      %v247 = vrot.slane %v246, 4
      %v248 = vrot.slane %v197, 6
      %v249 = vsel %vm241, %v247, %v248
      %v250 = vrot.slane %v170, 6
      %v251 = vrot.slane %v250, 4
      %v252 = vrot.slane %v198, 6
      %v253 = vsel %vm241, %v251, %v252
      %v254 = vrot.slane %v171, 6
      %v255 = vrot.slane %v254, 4
      %v256 = vrot.slane %v199, 6
      %v257 = vsel %vm241, %v255, %v256
      %v262 = vmul.f32 %v164, %v245
      %v263 = vmul.f32 %v165, %v249
      %v264 = vmul.f32 %v166, %v253
      %v265 = vmul.f32 %v167, %v257
      %v270 = vcombine.low %v262, %v263
      %v271 = vcombine.low %v264, %v265
      %274 = vadd.xlane.f32.xlu0 %v270
      %v275 = vpop.xlane.xlu0 %274
      %276 = vadd.xlane.f32.xlu0 %v271
      %v277 = vpop.xlane.xlu0 %276
      %vm278 = vcmask 1040384
      %vm279 = vcmask 1044484
      %vm280 = vmor %vm278, %vm279
      %v281 = vrot.slane %v168, 7
      %v282 = vrot.slane %v281, 4
      %v283 = vrot.slane %v196, 7
      %v284 = vsel %vm280, %v282, %v283
      %v285 = vrot.slane %v169, 7
      %v286 = vrot.slane %v285, 4
      %v287 = vrot.slane %v197, 7
      %v288 = vsel %vm280, %v286, %v287
      %v289 = vrot.slane %v170, 7
      %v290 = vrot.slane %v289, 4
      %v291 = vrot.slane %v198, 7
      %v292 = vsel %vm280, %v290, %v291
      %v293 = vrot.slane %v171, 7
      %v294 = vrot.slane %v293, 4
      %v295 = vrot.slane %v199, 7
      %v296 = vsel %vm280, %v294, %v295
      %v301 = vmul.f32 %v164, %v284
      %v302 = vmul.f32 %v165, %v288
      %v303 = vmul.f32 %v166, %v292
      %v304 = vmul.f32 %v167, %v296
      %v309 = vcombine.low %v301, %v302
      %v310 = vcombine.low %v303, %v304
      %313 = vadd.xlane.f32.xlu0 %v309
      %v314 = vpop.xlane.xlu0 %313
      %315 = vadd.xlane.f32.xlu0 %v310
      %v316 = vpop.xlane.xlu0 %315
      %v321 = vmul.f32 %v164, %v196
      %v322 = vmul.f32 %v165, %v197
      %v323 = vmul.f32 %v166, %v198
      %v324 = vmul.f32 %v167, %v199
      %v329 = vcombine.low %v321, %v322
      %v330 = vcombine.low %v323, %v324
      %333 = vadd.xlane.f32.xlu0 %v329
      %v334 = vpop.xlane.xlu0 %333
      %335 = vadd.xlane.f32.xlu0 %v330
      %v336 = vpop.xlane.xlu0 %335
      %v337 = vmul.f32 %v164, %v169
      %v338 = vmul.f32 %v165, %v170
      %v339 = vmul.f32 %v166, %v171
      %v340 = vmul.f32 %v167, %v172
      %v345 = vcombine.low %v337, %v338
      %v346 = vcombine.low %v339, %v340
      %349 = vadd.xlane.f32.xlu0 %v345
      %v350 = vpop.xlane.xlu0 %349
      %351 = vadd.xlane.f32.xlu0 %v346
      %v352 = vpop.xlane.xlu0 %351
      %v354 = vcombine.high %v172, %v172
      %v355 = vrot.slane %v172, 5
      %v356 = vrot.slane %v355, 4
      %v357 = vrot.slane %v354, 5
      %v358 = vsel %vm202, %v356, %v357
      %v360 = vmul.f32 %v164, %v210
      %v361 = vmul.f32 %v165, %v214
      %v362 = vmul.f32 %v166, %v218
      %v363 = vmul.f32 %v167, %v358
      %v368 = vcombine.low %v360, %v361
      %v369 = vcombine.low %v362, %v363
      %372 = vadd.xlane.f32.xlu0 %v368
      %v373 = vpop.xlane.xlu0 %372
      %374 = vadd.xlane.f32.xlu0 %v369
      %v375 = vpop.xlane.xlu0 %374
      %v376 = vrot.slane %v172, 6
      %v377 = vrot.slane %v376, 4
      %v378 = vrot.slane %v354, 6
      %v379 = vsel %vm241, %v377, %v378
      %v381 = vmul.f32 %v164, %v249
      %v382 = vmul.f32 %v165, %v253
      %v383 = vmul.f32 %v166, %v257
      %v384 = vmul.f32 %v167, %v379
      %v389 = vcombine.low %v381, %v382
      %v390 = vcombine.low %v383, %v384
      %393 = vadd.xlane.f32.xlu0 %v389
      %v394 = vpop.xlane.xlu0 %393
      %395 = vadd.xlane.f32.xlu0 %v390
      %v396 = vpop.xlane.xlu0 %395
      %v397 = vrot.slane %v172, 7
      %v398 = vrot.slane %v397, 4
      %v399 = vrot.slane %v354, 7
      %v400 = vsel %vm280, %v398, %v399
      %v402 = vmul.f32 %v164, %v288
      %v403 = vmul.f32 %v165, %v292
      %v404 = vmul.f32 %v166, %v296
      %v405 = vmul.f32 %v167, %v400
      %v410 = vcombine.low %v402, %v403
      %v411 = vcombine.low %v404, %v405
      %414 = vadd.xlane.f32.xlu0 %v410
      %v415 = vpop.xlane.xlu0 %414
      %416 = vadd.xlane.f32.xlu0 %v411
      %v417 = vpop.xlane.xlu0 %416
      %v419 = vmul.f32 %v164, %v197
      %v420 = vmul.f32 %v165, %v198
      %v421 = vmul.f32 %v166, %v199
      %v422 = vmul.f32 %v167, %v354
      %v427 = vcombine.low %v419, %v420
      %v428 = vcombine.low %v421, %v422
      %431 = vadd.xlane.f32.xlu0 %v427
      %v432 = vpop.xlane.xlu0 %431
      %433 = vadd.xlane.f32.xlu0 %v428
      %v434 = vpop.xlane.xlu0 %433
      %v435 = vmul.f32 %v164, %v170
      %v436 = vmul.f32 %v165, %v171
      %v437 = vmul.f32 %v166, %v172
      %v438 = vmul.f32 %v167, %v173
      %v443 = vcombine.low %v435, %v436
      %v444 = vcombine.low %v437, %v438
      %447 = vadd.xlane.f32.xlu0 %v443
      %v448 = vpop.xlane.xlu0 %447
      %449 = vadd.xlane.f32.xlu0 %v444
      %v450 = vpop.xlane.xlu0 %449
      %v452 = vcombine.high %v173, %v173
      %v453 = vrot.slane %v173, 5
      %v454 = vrot.slane %v453, 4
      %v455 = vrot.slane %v452, 5
      %v456 = vsel %vm202, %v454, %v455
      %v458 = vmul.f32 %v164, %v214
      %v459 = vmul.f32 %v165, %v218
      %v460 = vmul.f32 %v166, %v358
      %v461 = vmul.f32 %v167, %v456
      %v466 = vcombine.low %v458, %v459
      %v467 = vcombine.low %v460, %v461
      %470 = vadd.xlane.f32.xlu0 %v466
      %v471 = vpop.xlane.xlu0 %470
      %472 = vadd.xlane.f32.xlu0 %v467
      %v473 = vpop.xlane.xlu0 %472
      %v474 = vrot.slane %v173, 6
      %v475 = vrot.slane %v474, 4
      %v476 = vrot.slane %v452, 6
      %v477 = vsel %vm241, %v475, %v476
      %v479 = vmul.f32 %v164, %v253
      %v480 = vmul.f32 %v165, %v257
      %v481 = vmul.f32 %v166, %v379
      %v482 = vmul.f32 %v167, %v477
      %v487 = vcombine.low %v479, %v480
      %v488 = vcombine.low %v481, %v482
      %491 = vadd.xlane.f32.xlu0 %v487
      %v492 = vpop.xlane.xlu0 %491
      %493 = vadd.xlane.f32.xlu0 %v488
      %v494 = vpop.xlane.xlu0 %493
      %v495 = vrot.slane %v173, 7
      %v496 = vrot.slane %v495, 4
      %v497 = vrot.slane %v452, 7
      %v498 = vsel %vm280, %v496, %v497
      %v500 = vmul.f32 %v164, %v292
      %v501 = vmul.f32 %v165, %v296
      %v502 = vmul.f32 %v166, %v400
      %v503 = vmul.f32 %v167, %v498
      %v508 = vcombine.low %v500, %v501
      %v509 = vcombine.low %v502, %v503
      %512 = vadd.xlane.f32.xlu0 %v508
      %v513 = vpop.xlane.xlu0 %512
      %514 = vadd.xlane.f32.xlu0 %v509
      %v515 = vpop.xlane.xlu0 %514
      %v517 = vmul.f32 %v164, %v198
      %v518 = vmul.f32 %v165, %v199
      %v519 = vmul.f32 %v166, %v354
      %v520 = vmul.f32 %v167, %v452
      %v525 = vcombine.low %v517, %v518
      %v526 = vcombine.low %v519, %v520
      %529 = vadd.xlane.f32.xlu0 %v525
      %v530 = vpop.xlane.xlu0 %529
      %531 = vadd.xlane.f32.xlu0 %v526
      %v532 = vpop.xlane.xlu0 %531
      %v533 = vmul.f32 %v164, %v171
      %v534 = vmul.f32 %v165, %v172
      %v535 = vmul.f32 %v166, %v173
      %v536 = vmul.f32 %v167, %v174
      %v541 = vcombine.low %v533, %v534
      %v542 = vcombine.low %v535, %v536
      %545 = vadd.xlane.f32.xlu0 %v541
      %v546 = vpop.xlane.xlu0 %545
      %547 = vadd.xlane.f32.xlu0 %v542
      %v548 = vpop.xlane.xlu0 %547
      %v550 = vcombine.high %v174, %v174
      %v551 = vrot.slane %v174, 5
      %v552 = vrot.slane %v551, 4
      %v553 = vrot.slane %v550, 5
      %v554 = vsel %vm202, %v552, %v553
      %v556 = vmul.f32 %v164, %v218
      %v557 = vmul.f32 %v165, %v358
      %v558 = vmul.f32 %v166, %v456
      %v559 = vmul.f32 %v167, %v554
      %v564 = vcombine.low %v556, %v557
      %v565 = vcombine.low %v558, %v559
      %568 = vadd.xlane.f32.xlu0 %v564
      %v569 = vpop.xlane.xlu0 %568
      %570 = vadd.xlane.f32.xlu0 %v565
      %v571 = vpop.xlane.xlu0 %570
      %v572 = vrot.slane %v174, 6
      %v573 = vrot.slane %v572, 4
      %v574 = vrot.slane %v550, 6
      %v575 = vsel %vm241, %v573, %v574
      %v577 = vmul.f32 %v164, %v257
      %v578 = vmul.f32 %v165, %v379
      %v579 = vmul.f32 %v166, %v477
      %v580 = vmul.f32 %v167, %v575
      %v585 = vcombine.low %v577, %v578
      %v586 = vcombine.low %v579, %v580
      %589 = vadd.xlane.f32.xlu0 %v585
      %v590 = vpop.xlane.xlu0 %589
      %591 = vadd.xlane.f32.xlu0 %v586
      %v592 = vpop.xlane.xlu0 %591
      %v593 = vrot.slane %v174, 7
      %v594 = vrot.slane %v593, 4
      %v595 = vrot.slane %v550, 7
      %v596 = vsel %vm280, %v594, %v595
      %v598 = vmul.f32 %v164, %v296
      %v599 = vmul.f32 %v165, %v400
      %v600 = vmul.f32 %v166, %v498
      %v601 = vmul.f32 %v167, %v596
      %v606 = vcombine.low %v598, %v599
      %v607 = vcombine.low %v600, %v601
      %610 = vadd.xlane.f32.xlu0 %v606
      %v611 = vpop.xlane.xlu0 %610
      %612 = vadd.xlane.f32.xlu0 %v607
      %v613 = vpop.xlane.xlu0 %612
      %v615 = vmul.f32 %v164, %v199
      %v616 = vmul.f32 %v165, %v354
      %v617 = vmul.f32 %v166, %v452
      %v618 = vmul.f32 %v167, %v550
      %v623 = vcombine.low %v615, %v616
      %v624 = vcombine.low %v617, %v618
      %627 = vadd.xlane.f32.xlu0 %v623
      %v628 = vpop.xlane.xlu0 %627
      %629 = vadd.xlane.f32.xlu0 %v624
      %v630 = vpop.xlane.xlu0 %629
      %v631 = vmul.f32 %v164, %v172
      %v632 = vmul.f32 %v165, %v173
      %v633 = vmul.f32 %v166, %v174
      %v634 = vmul.f32 %v167, %v175
      %v639 = vcombine.low %v631, %v632
      %v640 = vcombine.low %v633, %v634
      %643 = vadd.xlane.f32.xlu0 %v639
      %v644 = vpop.xlane.xlu0 %643
      %645 = vadd.xlane.f32.xlu0 %v640
      %v646 = vpop.xlane.xlu0 %645
      %v648 = vcombine.high %v175, %v175
      %v649 = vrot.slane %v175, 5
      %v650 = vrot.slane %v649, 4
      %v651 = vrot.slane %v648, 5
      %v652 = vsel %vm202, %v650, %v651
      %v654 = vmul.f32 %v164, %v358
      %v655 = vmul.f32 %v165, %v456
      %v656 = vmul.f32 %v166, %v554
      %v657 = vmul.f32 %v167, %v652
      %v662 = vcombine.low %v654, %v655
      %v663 = vcombine.low %v656, %v657
      %666 = vadd.xlane.f32.xlu0 %v662
      %v667 = vpop.xlane.xlu0 %666
      %668 = vadd.xlane.f32.xlu0 %v663
      %v669 = vpop.xlane.xlu0 %668
      %v670 = vrot.slane %v175, 6
      %v671 = vrot.slane %v670, 4
      %v672 = vrot.slane %v648, 6
      %v673 = vsel %vm241, %v671, %v672
      %v675 = vmul.f32 %v164, %v379
      %v676 = vmul.f32 %v165, %v477
      %v677 = vmul.f32 %v166, %v575
      %v678 = vmul.f32 %v167, %v673
      %v683 = vcombine.low %v675, %v676
      %v684 = vcombine.low %v677, %v678
      %687 = vadd.xlane.f32.xlu0 %v683
      %v688 = vpop.xlane.xlu0 %687
      %689 = vadd.xlane.f32.xlu0 %v684
      %v690 = vpop.xlane.xlu0 %689
      %v691 = vrot.slane %v175, 7
      %v692 = vrot.slane %v691, 4
      %v693 = vrot.slane %v648, 7
      %v694 = vsel %vm280, %v692, %v693
      %v696 = vmul.f32 %v164, %v400
      %v697 = vmul.f32 %v165, %v498
      %v698 = vmul.f32 %v166, %v596
      %v699 = vmul.f32 %v167, %v694
      %v704 = vcombine.low %v696, %v697
      %v705 = vcombine.low %v698, %v699
      %708 = vadd.xlane.f32.xlu0 %v704
      %v709 = vpop.xlane.xlu0 %708
      %710 = vadd.xlane.f32.xlu0 %v705
      %v711 = vpop.xlane.xlu0 %710
      %v713 = vmul.f32 %v164, %v354
      %v714 = vmul.f32 %v165, %v452
      %v715 = vmul.f32 %v166, %v550
      %v716 = vmul.f32 %v167, %v648
      %v721 = vcombine.low %v713, %v714
      %v722 = vcombine.low %v715, %v716
      %725 = vadd.xlane.f32.xlu0 %v721
      %v726 = vpop.xlane.xlu0 %725
      %727 = vadd.xlane.f32.xlu0 %v722
      %v728 = vpop.xlane.xlu0 %727
      %vm729 = vcmask 7168
      %v730 = vsel %vm729, %v189, %v236
      %v731 = vsel %vm729, %v191, %v238
      %vm732 = vcmask 15360
      %v733 = vsel %vm732, %v730, %v275
      %v734 = vsel %vm732, %v731, %v277
      %vm735 = vcmask 23552
      %v736 = vsel %vm735, %v733, %v314
      %v737 = vsel %vm735, %v734, %v316
      %vm738 = vcmask 31744
      %v739 = vsel %vm738, %v736, %v334
      %v740 = vsel %vm738, %v737, %v336
      %vm741 = vcmask 39936
      %v742 = vsel %vm741, %v739, %v350
      %v743 = vsel %vm741, %v740, %v352
      %vm744 = vcmask 48128
      %v745 = vsel %vm744, %v742, %v373
      %v746 = vsel %vm744, %v743, %v375
      %vm747 = vcmask 56320
      %v748 = vsel %vm747, %v745, %v394
      %v749 = vsel %vm747, %v746, %v396
      %vm750 = vcmask 64512
      %v751 = vsel %vm750, %v748, %v415
      %v752 = vsel %vm750, %v749, %v417
      %vm753 = vcmask 72704
      %v754 = vsel %vm753, %v751, %v432
      %v755 = vsel %vm753, %v752, %v434
      %vm756 = vcmask 80896
      %v757 = vsel %vm756, %v754, %v448
      %v758 = vsel %vm756, %v755, %v450
      %vm759 = vcmask 89088
      %v760 = vsel %vm759, %v757, %v471
      %v761 = vsel %vm759, %v758, %v473
      %vm762 = vcmask 97280
      %v763 = vsel %vm762, %v760, %v492
      %v764 = vsel %vm762, %v761, %v494
      %vm765 = vcmask 105472
      %v766 = vsel %vm765, %v763, %v513
      %v767 = vsel %vm765, %v764, %v515
      %vm768 = vcmask 113664
      %v769 = vsel %vm768, %v766, %v530
      %v770 = vsel %vm768, %v767, %v532
      %vm771 = vcmask 121856
      %v772 = vsel %vm771, %v769, %v546
      %v773 = vsel %vm771, %v770, %v548
      %v774 = vsel %vm729, %v569, %v590
      %v775 = vsel %vm729, %v571, %v592
      %v776 = vsel %vm732, %v774, %v611
      %v777 = vsel %vm732, %v775, %v613
      %v778 = vsel %vm735, %v776, %v628
      %v779 = vsel %vm735, %v777, %v630
      %v780 = vsel %vm738, %v778, %v644
      %v781 = vsel %vm738, %v779, %v646
      %v782 = vsel %vm741, %v780, %v667
      %v783 = vsel %vm741, %v781, %v669
      %v784 = vsel %vm744, %v782, %v688
      %v785 = vsel %vm744, %v783, %v690
      %v786 = vsel %vm747, %v784, %v709
      %v787 = vsel %vm747, %v785, %v711
      %v788 = vsel %vm750, %v786, %v726
      %v789 = vsel %vm750, %v787, %v728
      %792 = vrot.lane.b32.xlu0 %v788, 16
      %v793 = vpop.permute.xlu0 %792
      %794 = vrot.lane.b32.xlu0 %v789, 16
      %v795 = vpop.permute.xlu0 %794
      %vm798 = vcmask 130048
      %v799 = vsel %vm798, %v772, %v793
      %v800 = vsel %vm798, %v773, %v795
      %v803 = vcombine.high %v799, %v799
      %v804 = vcombine.high %v800, %v800
      %vm807 = vcmask 199680
      %808 = vst.msk [vmem:[%s163] sm:$0xf] %vm807, %v799
      %809 = vst.msk [vmem:[%s163 + $0x4] sm:$0xf] %vm807, %v803
      %810 = vst.msk [vmem:[%s163 + $0x8] sm:$0xf] %vm807, %v800
      %811 = vst.msk [vmem:[%s163 + $0xc] sm:$0xf] %vm807, %v804
      %p812 = scmp.lt.s32.totalorder %s13, 1
      %s813 = scalar_select %p812, %s13, 1
      %s814 = smul.addr %s813, 4
      %s815 = smul.addr %s814, 4
      %s816 = scalar_lea.vmem %s2, %s815
      // Predicated region
      $region29: #{_lambda_.24} parent=27 // pred_check
        %p817 = pneg %p83
      $region30: #{_lambda_.24} parent=27 // pred_check_branch
        %819 = sbr.rel (%p817) target = $region32
      $region31: #{_lambda_.24} parent=27 // pred_region
        _
      $region32: #{_lambda_.24} parent=27 // pred_fallthru
        _
    $region28: #{_lambda_.24} parent=5 // pred_fallthru
      _
    %p820 = scmp.le.s32.totalorder 2, %s8
    // Predicated region
    $region33: #{_lambda_.24} parent=5 // pred_check
      %p821 = pneg %p820
    $region34: #{_lambda_.24} parent=5 // pred_check_branch
      %823 = sbr.rel (%p821) target = $region36
    $region35: #{_lambda_.24} parent=5 // pred_region
      %s824 = ssub.s32 %s8, 2
      // Predicated region
      $region37: #{_lambda_.24} parent=35 // pred_check
        %p825 = pneg %p89
      $region38: #{_lambda_.24} parent=35 // pred_check_branch
        %827 = sbr.rel (%p825) target = $region40
      $region39: #{_lambda_.24} parent=35 // pred_region
        %p828 = scmp.lt.s32.totalorder %s14, 1
        %s829 = scalar_select %p828, %s14, 1
        %s830 = smul.addr %s829, 4
        %s831 = smul.addr %s830, 4
        %s832 = scalar_lea.vmem %s2, %s831
      $region40: #{_lambda_.24} parent=35 // pred_fallthru
        _
    $region36: #{_lambda_.24} parent=5 // pred_fallthru
      _
  $region6: #{_lambda_.24} parent=0 // loop_footer
    %s12 = sadd.s32 1, %s8
  $region7: #{_lambda_.24} parent=0 // loop_footer_branch
    %7 = sbr.rel target = $region3
  $region8: #{_lambda_.24} parent=0 // loop_exit
    _

// kernel: _lambda_.23
$region0: #{_lambda_.23}
  #allocation0 [shape = 'u32[]', space=smem, size = 0x4, offset = 0x4, fixed_abs, tag = 'smem constant byte address 0x4 - core index']
  #allocation1 [shape = 'u32[144,128]{1,0:T(1,128)}', space=vmem, size = 0x12000, scoped, tag = 'internal scratch']
  %s0 = inlined_call_operand.vmem [shape: bf16[128,576], index: 0, kind: input, shape index: {}]
  %s1 = inlined_call_operand.vmem [shape: bf16[576,128], index: 1, kind: input, shape index: {}]
  %s2 = inlined_call_operand.vmem [shape: f32[1,128], index: 2, kind: input, shape index: {}]
  %s3 = inlined_call_operand.vmem [shape: bf16[64,128], index: 3, kind: input, shape index: {}]
  %s4 = inlined_call_operand.vmem [shape: f32[1,128], index: 4, kind: input, shape index: {}]
  %s5 = inlined_call_operand.vmem [shape: f32[128,128], index: 5, kind: output, shape index: {}]
  %s6 = sld [smem:[#allocation0]]
  $region30: #{_lambda_.23} parent=0
    _
  %s8 = ssub.s32 1, %s6
  %s9 = scalar_select 0, %s8, %s6
  // Predicated region
  $region2: #{_lambda_.23} parent=0 // pred_check
    _
  $region3: #{_lambda_.23} parent=0 // pred_check_branch
    %11 = sbr.rel (0) target = $region5
  $region4: #{_lambda_.23} parent=0 // pred_region
    _
  $region5: #{_lambda_.23} parent=0 // pred_fallthru
    _
  // Predicated region
  $region6: #{_lambda_.23} parent=0 // pred_check
    _
  $region7: #{_lambda_.23} parent=0 // pred_check_branch
    %13 = sbr.rel (0) target = $region9
  $region8: #{_lambda_.23} parent=0 // pred_region
    _
  $region9: #{_lambda_.23} parent=0 // pred_fallthru
    _
  // Predicated region
  $region10: #{_lambda_.23} parent=0 // pred_check
    _
  $region11: #{_lambda_.23} parent=0 // pred_check_branch
    %15 = sbr.rel (0) target = $region13
  $region12: #{_lambda_.23} parent=0 // pred_region
    _
  $region13: #{_lambda_.23} parent=0 // pred_fallthru
    _
  // Predicated region
  $region14: #{_lambda_.23} parent=0 // pred_check
    _
  $region15: #{_lambda_.23} parent=0 // pred_check_branch
    %17 = sbr.rel (0) target = $region17
  $region16: #{_lambda_.23} parent=0 // pred_region
    _
  $region17: #{_lambda_.23} parent=0 // pred_fallthru
    _
  // Predicated region
  $region18: #{_lambda_.23} parent=0 // pred_check
    _
  $region19: #{_lambda_.23} parent=0 // pred_check_branch
    %19 = sbr.rel (0) target = $region21
  $region20: #{_lambda_.23} parent=0 // pred_region
    _
  $region21: #{_lambda_.23} parent=0 // pred_fallthru
    _
  %v21 = vld [vmem:[%s0] sm:$0xff]
  %v22 = vld [vmem:[%s0 + $0x8] sm:$0xff]
  %v23 = vld [vmem:[%s0 + $0x10] sm:$0xf]
  %v24 = vld [vmem:[%s0 + $0x14] sm:$0xff]
  %v25 = vld [vmem:[%s0 + $0x1c] sm:$0xff]
  %v26 = vld [vmem:[%s0 + $0x24] sm:$0xf]
  %v27 = vld [vmem:[%s0 + $0x28] sm:$0xff]
  %v28 = vld [vmem:[%s0 + $0x30] sm:$0xff]
  %v29 = vld [vmem:[%s0 + $0x38] sm:$0xf]
  %v30 = vld [vmem:[%s0 + $0x3c] sm:$0xff]
  %v31 = vld [vmem:[%s0 + $0x44] sm:$0xff]
  %v32 = vld [vmem:[%s0 + $0x4c] sm:$0xf]
  %v33 = vld [vmem:[%s0 + $0x50] sm:$0xff]
  %v34 = vld [vmem:[%s0 + $0x58] sm:$0xff]
  %v35 = vld [vmem:[%s0 + $0x60] sm:$0xf]
  %v36 = vld [vmem:[%s0 + $0x64] sm:$0xff]
  %v37 = vld [vmem:[%s0 + $0x6c] sm:$0xff]
  %v38 = vld [vmem:[%s0 + $0x74] sm:$0xf]
  %v39 = vld [vmem:[%s0 + $0x78] sm:$0xff]
  %v40 = vld [vmem:[%s0 + $0x80] sm:$0xff]
  %v41 = vld [vmem:[%s0 + $0x88] sm:$0xf]
  %v42 = vld [vmem:[%s0 + $0x8c] sm:$0xff]
  %v43 = vld [vmem:[%s0 + $0x94] sm:$0xff]
  %v44 = vld [vmem:[%s0 + $0x9c] sm:$0xf]
  %v45 = vld [vmem:[%s0 + $0xa0] sm:$0xff]
  %v46 = vld [vmem:[%s0 + $0xa8] sm:$0xff]
  %v47 = vld [vmem:[%s0 + $0xb0] sm:$0xf]
  %v48 = vld [vmem:[%s0 + $0xb4] sm:$0xff]
  %v49 = vld [vmem:[%s0 + $0xbc] sm:$0xff]
  %v50 = vld [vmem:[%s0 + $0xc4] sm:$0xf]
  %v51 = vld [vmem:[%s0 + $0xc8] sm:$0xff]
  %v52 = vld [vmem:[%s0 + $0xd0] sm:$0xff]
  %v53 = vld [vmem:[%s0 + $0xd8] sm:$0xf]
  %v54 = vld [vmem:[%s0 + $0xdc] sm:$0xff]
  %v55 = vld [vmem:[%s0 + $0xe4] sm:$0xff]
  %v56 = vld [vmem:[%s0 + $0xec] sm:$0xf]
  %v57 = vld [vmem:[%s0 + $0xf0] sm:$0xff]
  %v58 = vld [vmem:[%s0 + $0xf8] sm:$0xff]
  %v59 = vld [vmem:[%s0 + $0x100] sm:$0xf]
  %v60 = vld [vmem:[%s0 + $0x104] sm:$0xff]
  %v61 = vld [vmem:[%s0 + $0x10c] sm:$0xff]
  %v62 = vld [vmem:[%s0 + $0x114] sm:$0xf]
  %v63 = vld [vmem:[%s0 + $0x118] sm:$0xff]
  %v64 = vld [vmem:[%s0 + $0x120] sm:$0xff]
  %v65 = vld [vmem:[%s0 + $0x128] sm:$0xf]
  %v66 = vld [vmem:[%s0 + $0x12c] sm:$0xff]
  %v67 = vld [vmem:[%s0 + $0x134] sm:$0xff]
  %v68 = vld [vmem:[%s0 + $0x13c] sm:$0xf]
  %v69 = vld [vmem:[%s1] sm:$0xf]
  %v70 = vld [vmem:[%s1 + $0x4] sm:$0xf]
  %v71 = vld [vmem:[%s1 + $0x8] sm:$0xf]
  %v72 = vld [vmem:[%s1 + $0xc] sm:$0xf]
  %v73 = vld [vmem:[%s1 + $0x10] sm:$0xf]
  %v74 = vld [vmem:[%s1 + $0x14] sm:$0xf]
  %v75 = vld [vmem:[%s1 + $0x18] sm:$0xf]
  %v76 = vld [vmem:[%s1 + $0x1c] sm:$0xf]
  %v77 = vld [vmem:[%s1 + $0x20] sm:$0xf]
  %v78 = vld [vmem:[%s1 + $0x24] sm:$0xf]
  %v79 = vld [vmem:[%s1 + $0x28] sm:$0xf]
  %v80 = vld [vmem:[%s1 + $0x2c] sm:$0xf]
  %v81 = vld [vmem:[%s1 + $0x30] sm:$0xf]
  %v82 = vld [vmem:[%s1 + $0x34] sm:$0xf]
  %v83 = vld [vmem:[%s1 + $0x38] sm:$0xf]
  %v84 = vld [vmem:[%s1 + $0x3c] sm:$0xf]
  %v85 = vld [vmem:[%s1 + $0x40] sm:$0xf]
  %v86 = vld [vmem:[%s1 + $0x44] sm:$0xf]
  %v87 = vld [vmem:[%s1 + $0x48] sm:$0xf]
  %v88 = vld [vmem:[%s1 + $0x4c] sm:$0xf]
  %v89 = vld [vmem:[%s1 + $0x50] sm:$0xf]
  %v90 = vld [vmem:[%s1 + $0x54] sm:$0xf]
  %v91 = vld [vmem:[%s1 + $0x58] sm:$0xf]
  %v92 = vld [vmem:[%s1 + $0x5c] sm:$0xf]
  %v93 = vld [vmem:[%s1 + $0x60] sm:$0xf]
  %v94 = vld [vmem:[%s1 + $0x64] sm:$0xf]
  %v95 = vld [vmem:[%s1 + $0x68] sm:$0xf]
  %v96 = vld [vmem:[%s1 + $0x6c] sm:$0xf]
  %v97 = vld [vmem:[%s1 + $0x70] sm:$0xf]
  %v98 = vld [vmem:[%s1 + $0x74] sm:$0xf]
  %v99 = vld [vmem:[%s1 + $0x78] sm:$0xf]
  %v100 = vld [vmem:[%s1 + $0x7c] sm:$0xf]
  %v101 = vld [vmem:[%s1 + $0x80] sm:$0xf]
  %v102 = vld [vmem:[%s1 + $0x84] sm:$0xf]
  %v103 = vld [vmem:[%s1 + $0x88] sm:$0xf]
  %v104 = vld [vmem:[%s1 + $0x8c] sm:$0xf]
  %v105 = vld [vmem:[%s1 + $0x90] sm:$0xf]
  %v106 = vld [vmem:[%s1 + $0x94] sm:$0xf]
  %v107 = vld [vmem:[%s1 + $0x98] sm:$0xf]
  %v108 = vld [vmem:[%s1 + $0x9c] sm:$0xf]
  %v109 = vld [vmem:[%s1 + $0xa0] sm:$0xf]
  %v110 = vld [vmem:[%s1 + $0xa4] sm:$0xf]
  %v111 = vld [vmem:[%s1 + $0xa8] sm:$0xf]
  %v112 = vld [vmem:[%s1 + $0xac] sm:$0xf]
  %v113 = vld [vmem:[%s1 + $0xb0] sm:$0xf]
  %v114 = vld [vmem:[%s1 + $0xb4] sm:$0xf]
  %v115 = vld [vmem:[%s1 + $0xb8] sm:$0xf]
  %v116 = vld [vmem:[%s1 + $0xbc] sm:$0xf]
  %v117 = vld [vmem:[%s1 + $0xc0] sm:$0xf]
  %v118 = vld [vmem:[%s1 + $0xc4] sm:$0xf]
  %v119 = vld [vmem:[%s1 + $0xc8] sm:$0xf]
  %v120 = vld [vmem:[%s1 + $0xcc] sm:$0xf]
  %v121 = vld [vmem:[%s1 + $0xd0] sm:$0xf]
  %v122 = vld [vmem:[%s1 + $0xd4] sm:$0xf]
  %v123 = vld [vmem:[%s1 + $0xd8] sm:$0xf]
  %v124 = vld [vmem:[%s1 + $0xdc] sm:$0xf]
  %v125 = vld [vmem:[%s1 + $0xe0] sm:$0xf]
  %v126 = vld [vmem:[%s1 + $0xe4] sm:$0xf]
  %v127 = vld [vmem:[%s1 + $0xe8] sm:$0xf]
  %v128 = vld [vmem:[%s1 + $0xec] sm:$0xf]
  %v129 = vld [vmem:[%s1 + $0xf0] sm:$0xf]
  %v130 = vld [vmem:[%s1 + $0xf4] sm:$0xf]
  %v131 = vld [vmem:[%s1 + $0xf8] sm:$0xf]
  %v132 = vld [vmem:[%s1 + $0xfc] sm:$0xf]
  %v133 = vld [vmem:[%s1 + $0x100] sm:$0xf]
  %v134 = vld [vmem:[%s1 + $0x104] sm:$0xf]
  %v135 = vld [vmem:[%s1 + $0x108] sm:$0xf]
  %v136 = vld [vmem:[%s1 + $0x10c] sm:$0xf]
  %v137 = vld [vmem:[%s1 + $0x110] sm:$0xf]
  %v138 = vld [vmem:[%s1 + $0x114] sm:$0xf]
  %v139 = vld [vmem:[%s1 + $0x118] sm:$0xf]
  %v140 = vld [vmem:[%s1 + $0x11c] sm:$0xf]
  %v141 = vld [vmem:[%s2] sm:$0x1]
  %v143 = vlaneseq
  %v144 = vshrl.u32 %v143, 7
  %v145 = vsub.s32 0, %v144
  %v146 = vrot.slane %v141, %v145
  %v196 = vunpack.c.l.b16 %v21
  %v197 = vunpack.c.h.b16 %v21
  %v198 = vunpack.c.l.b16 %v22
  %v199 = vunpack.c.h.b16 %v22
  %v200 = vunpack.c.l.b16 %v23
  %v201 = vunpack.c.l.b16 %v24
  %v202 = vunpack.c.h.b16 %v24
  %v203 = vunpack.c.l.b16 %v25
  %v204 = vunpack.c.h.b16 %v25
  %v205 = vunpack.c.l.b16 %v26
  %v206 = vunpack.c.l.b16 %v27
  %v207 = vunpack.c.h.b16 %v27
  %v208 = vunpack.c.l.b16 %v28
  %v209 = vunpack.c.h.b16 %v28
  %v210 = vunpack.c.l.b16 %v29
  %v211 = vunpack.c.l.b16 %v30
  %v212 = vunpack.c.h.b16 %v30
  %v213 = vunpack.c.l.b16 %v31
  %v214 = vunpack.c.h.b16 %v31
  %v215 = vunpack.c.l.b16 %v32
  %v216 = vunpack.c.l.b16 %v33
  %v217 = vunpack.c.h.b16 %v33
  %v218 = vunpack.c.l.b16 %v34
  %v219 = vunpack.c.h.b16 %v34
  %v220 = vunpack.c.l.b16 %v35
  %v221 = vunpack.c.l.b16 %v36
  %v222 = vunpack.c.h.b16 %v36
  %v223 = vunpack.c.l.b16 %v37
  %v224 = vunpack.c.h.b16 %v37
  %v225 = vunpack.c.l.b16 %v38
  %v226 = vunpack.c.l.b16 %v39
  %v227 = vunpack.c.h.b16 %v39
  %v228 = vunpack.c.l.b16 %v40
  %v229 = vunpack.c.h.b16 %v40
  %v230 = vunpack.c.l.b16 %v41
  %v231 = vunpack.c.l.b16 %v42
  %v232 = vunpack.c.h.b16 %v42
  %v233 = vunpack.c.l.b16 %v43
  %v234 = vunpack.c.h.b16 %v43
  %v235 = vunpack.c.l.b16 %v44
  %v236 = vunpack.c.l.b16 %v45
  %v237 = vunpack.c.h.b16 %v45
  %v238 = vunpack.c.l.b16 %v46
  %v239 = vunpack.c.h.b16 %v46
  %v240 = vunpack.c.l.b16 %v47
  %v241 = vunpack.c.l.b16 %v48
  %v242 = vunpack.c.h.b16 %v48
  %v243 = vunpack.c.l.b16 %v49
  %v244 = vunpack.c.h.b16 %v49
  %v245 = vunpack.c.l.b16 %v50
  %v246 = vunpack.c.l.b16 %v51
  %v247 = vunpack.c.h.b16 %v51
  %v248 = vunpack.c.l.b16 %v52
  %v249 = vunpack.c.h.b16 %v52
  %v250 = vunpack.c.l.b16 %v53
  %v251 = vunpack.c.l.b16 %v54
  %v252 = vunpack.c.h.b16 %v54
  %v253 = vunpack.c.l.b16 %v55
  %v254 = vunpack.c.h.b16 %v55
  %v255 = vunpack.c.l.b16 %v56
  %v256 = vunpack.c.l.b16 %v57
  %v257 = vunpack.c.h.b16 %v57
  %v258 = vunpack.c.l.b16 %v58
  %v259 = vunpack.c.h.b16 %v58
  %v260 = vunpack.c.l.b16 %v59
  %v261 = vunpack.c.l.b16 %v60
  %v262 = vunpack.c.h.b16 %v60
  %v263 = vunpack.c.l.b16 %v61
  %v264 = vunpack.c.h.b16 %v61
  %v265 = vunpack.c.l.b16 %v62
  %v266 = vunpack.c.l.b16 %v63
  %v267 = vunpack.c.h.b16 %v63
  %v268 = vunpack.c.l.b16 %v64
  %v269 = vunpack.c.h.b16 %v64
  %v270 = vunpack.c.l.b16 %v65
  %v271 = vunpack.c.l.b16 %v66
  %v272 = vunpack.c.h.b16 %v66
  %v273 = vunpack.c.l.b16 %v67
  %v274 = vunpack.c.h.b16 %v67
  %v275 = vunpack.c.l.b16 %v68
  %v276 = vpack.c.b16 %v201, %v196
  %v277 = vpack.c.b16 %v202, %v197
  %v278 = vpack.c.b16 %v203, %v198
  %v279 = vpack.c.b16 %v204, %v199
  %v280 = vpack.c.b16 %v205, %v200
  %v281 = vpack.c.b16 %v211, %v206
  %v282 = vpack.c.b16 %v212, %v207
  %v283 = vpack.c.b16 %v213, %v208
  %v284 = vpack.c.b16 %v214, %v209
  %v285 = vpack.c.b16 %v215, %v210
  %v286 = vpack.c.b16 %v221, %v216
  %v287 = vpack.c.b16 %v222, %v217
  %v288 = vpack.c.b16 %v223, %v218
  %v289 = vpack.c.b16 %v224, %v219
  %v290 = vpack.c.b16 %v225, %v220
  %v291 = vpack.c.b16 %v231, %v226
  %v292 = vpack.c.b16 %v232, %v227
  %v293 = vpack.c.b16 %v233, %v228
  %v294 = vpack.c.b16 %v234, %v229
  %v295 = vpack.c.b16 %v235, %v230
  %v296 = vpack.c.b16 %v241, %v236
  %v297 = vpack.c.b16 %v242, %v237
  %v298 = vpack.c.b16 %v243, %v238
  %v299 = vpack.c.b16 %v244, %v239
  %v300 = vpack.c.b16 %v245, %v240
  %v301 = vpack.c.b16 %v251, %v246
  %v302 = vpack.c.b16 %v252, %v247
  %v303 = vpack.c.b16 %v253, %v248
  %v304 = vpack.c.b16 %v254, %v249
  %v305 = vpack.c.b16 %v255, %v250
  %v306 = vpack.c.b16 %v261, %v256
  %v307 = vpack.c.b16 %v262, %v257
  %v308 = vpack.c.b16 %v263, %v258
  %v309 = vpack.c.b16 %v264, %v259
  %v310 = vpack.c.b16 %v265, %v260
  %v311 = vpack.c.b16 %v271, %v266
  %v312 = vpack.c.b16 %v272, %v267
  %v313 = vpack.c.b16 %v273, %v268
  %v314 = vpack.c.b16 %v274, %v269
  %v315 = vpack.c.b16 %v275, %v270
  %v420 = vunpack.c.l.b16 %v69
  %v421 = vunpack.c.l.b16 %v70
  %v422 = vunpack.c.l.b16 %v71
  %v423 = vunpack.c.l.b16 %v72
  %v424 = vunpack.c.l.b16 %v73
  %v425 = vunpack.c.l.b16 %v74
  %v426 = vunpack.c.l.b16 %v75
  %v427 = vunpack.c.l.b16 %v76
  %v428 = vunpack.c.l.b16 %v77
  %v429 = vunpack.c.l.b16 %v78
  %v430 = vunpack.c.l.b16 %v79
  %v431 = vunpack.c.l.b16 %v80
  %v432 = vunpack.c.l.b16 %v81
  %v433 = vunpack.c.l.b16 %v82
  %v434 = vunpack.c.l.b16 %v83
  %v435 = vunpack.c.l.b16 %v84
  %v436 = vunpack.c.l.b16 %v85
  %v437 = vunpack.c.l.b16 %v86
  %v438 = vunpack.c.l.b16 %v87
  %v439 = vunpack.c.l.b16 %v88
  %v440 = vunpack.c.l.b16 %v89
  %v441 = vunpack.c.l.b16 %v90
  %v442 = vunpack.c.l.b16 %v91
  %v443 = vunpack.c.l.b16 %v92
  %v444 = vunpack.c.l.b16 %v93
  %v445 = vunpack.c.l.b16 %v94
  %v446 = vunpack.c.l.b16 %v95
  %v447 = vunpack.c.l.b16 %v96
  %v448 = vunpack.c.l.b16 %v97
  %v449 = vunpack.c.l.b16 %v98
  %v450 = vunpack.c.l.b16 %v99
  %v451 = vunpack.c.l.b16 %v100
  %v452 = vunpack.c.l.b16 %v101
  %v453 = vunpack.c.l.b16 %v102
  %v454 = vunpack.c.l.b16 %v103
  %v455 = vunpack.c.l.b16 %v104
  %v456 = vunpack.c.l.b16 %v105
  %v457 = vunpack.c.l.b16 %v106
  %v458 = vunpack.c.l.b16 %v107
  %v459 = vunpack.c.l.b16 %v108
  %v460 = vunpack.c.l.b16 %v109
  %v461 = vunpack.c.l.b16 %v110
  %v462 = vunpack.c.l.b16 %v111
  %v463 = vunpack.c.l.b16 %v112
  %v464 = vunpack.c.l.b16 %v113
  %v465 = vunpack.c.l.b16 %v114
  %v466 = vunpack.c.l.b16 %v115
  %v467 = vunpack.c.l.b16 %v116
  %v468 = vunpack.c.l.b16 %v117
  %v469 = vunpack.c.l.b16 %v118
  %v470 = vunpack.c.l.b16 %v119
  %v471 = vunpack.c.l.b16 %v120
  %v472 = vunpack.c.l.b16 %v121
  %v473 = vunpack.c.l.b16 %v122
  %v474 = vunpack.c.l.b16 %v123
  %v475 = vunpack.c.l.b16 %v124
  %v476 = vunpack.c.l.b16 %v125
  %v477 = vunpack.c.l.b16 %v126
  %v478 = vunpack.c.l.b16 %v127
  %v479 = vunpack.c.l.b16 %v128
  %v480 = vunpack.c.l.b16 %v129
  %v481 = vunpack.c.l.b16 %v130
  %v482 = vunpack.c.l.b16 %v131
  %v483 = vunpack.c.l.b16 %v132
  %v484 = vunpack.c.l.b16 %v133
  %v485 = vunpack.c.l.b16 %v134
  %v486 = vunpack.c.l.b16 %v135
  %v487 = vunpack.c.l.b16 %v136
  %v488 = vunpack.c.l.b16 %v137
  %v489 = vunpack.c.l.b16 %v138
  %v490 = vunpack.c.l.b16 %v139
  %v491 = vunpack.c.l.b16 %v140
  %v492 = vpack.c.b16 %v421, %v420
  %v493 = vpack.c.b16 %v423, %v422
  %v494 = vpack.c.b16 %v425, %v424
  %v495 = vpack.c.b16 %v427, %v426
  %v496 = vpack.c.b16 %v429, %v428
  %v497 = vpack.c.b16 %v431, %v430
  %v498 = vpack.c.b16 %v433, %v432
  %v499 = vpack.c.b16 %v435, %v434
  %v500 = vpack.c.b16 %v437, %v436
  %v501 = vpack.c.b16 %v439, %v438
  %v502 = vpack.c.b16 %v441, %v440
  %v503 = vpack.c.b16 %v443, %v442
  %v504 = vpack.c.b16 %v445, %v444
  %v505 = vpack.c.b16 %v447, %v446
  %v506 = vpack.c.b16 %v449, %v448
  %v507 = vpack.c.b16 %v451, %v450
  %v508 = vpack.c.b16 %v453, %v452
  %v509 = vpack.c.b16 %v455, %v454
  %v510 = vpack.c.b16 %v457, %v456
  %v511 = vpack.c.b16 %v459, %v458
  %v512 = vpack.c.b16 %v461, %v460
  %v513 = vpack.c.b16 %v463, %v462
  %v514 = vpack.c.b16 %v465, %v464
  %v515 = vpack.c.b16 %v467, %v466
  %v516 = vpack.c.b16 %v469, %v468
  %v517 = vpack.c.b16 %v471, %v470
  %v518 = vpack.c.b16 %v473, %v472
  %v519 = vpack.c.b16 %v475, %v474
  %v520 = vpack.c.b16 %v477, %v476
  %v521 = vpack.c.b16 %v479, %v478
  %v522 = vpack.c.b16 %v481, %v480
  %v523 = vpack.c.b16 %v483, %v482
  %v524 = vpack.c.b16 %v485, %v484
  %v525 = vpack.c.b16 %v487, %v486
  %v526 = vpack.c.b16 %v489, %v488
  %v527 = vpack.c.b16 %v491, %v490
  %vm564 = vcmask 523264
  %v566 = vsel %vm564, %v280, 0
  %v569 = vsel %vm564, %v285, 0
  %v572 = vsel %vm564, %v290, 0
  %v575 = vsel %vm564, %v295, 0
  %v578 = vsel %vm564, %v300, 0
  %v581 = vsel %vm564, %v305, 0
  %v584 = vsel %vm564, %v310, 0
  %v587 = vsel %vm564, %v315, 0
  %589 = vmatprep.subr.bf16.mxu0 0
  %590 = vmatpush1.bf16.msra.mxu0 %v499
  %591 = vmatprep.subr.bf16.mxu0 0
  %592 = vmatpush1.bf16.msra.mxu0 %v498
  %593 = vmatprep.subr.bf16.mxu0 0
  %594 = vmatpush1.bf16.msra.mxu0 %v497
  %595 = vmatprep.subr.bf16.mxu0 0
  %596 = vmatpush1.bf16.msra.mxu0 %v496
  %597 = vmatprep.subr.bf16.mxu0 0
  %598 = vmatpush1.bf16.msra.mxu0 %v495
  %599 = vmatprep.subr.bf16.mxu0 0
  %600 = vmatpush1.bf16.msra.mxu0 %v494
  %601 = vmatprep.subr.bf16.mxu0 0
  %602 = vmatpush1.bf16.msra.mxu0 %v493
  %603 = vmatprep.subr.bf16.mxu0 0
  %604 = vmatpush1.bf16.msra.mxu0 %v492
  %605 = vmatprep.subr.bf16.mxu0 0
  %606 = vmatpush2.bf16.msra.mxu0 %v507
  %607 = vmatprep.subr.bf16.mxu0 0
  %608 = vmatpush2.bf16.msra.mxu0 %v506
  %609 = vmatprep.subr.bf16.mxu0 0
  %610 = vmatpush2.bf16.msra.mxu0 %v505
  %611 = vmatprep.subr.bf16.mxu0 0
  %612 = vmatpush2.bf16.msra.mxu0 %v504
  %613 = vmatprep.subr.bf16.mxu0 0
  %614 = vmatpush2.bf16.msra.mxu0 %v503
  %615 = vmatprep.subr.bf16.mxu0 0
  %616 = vmatpush2.bf16.msra.mxu0 %v502
  %617 = vmatprep.subr.bf16.mxu0 0
  %618 = vmatpush2.bf16.msra.mxu0 %v501
  %619 = vmatprep.subr.bf16.mxu0 0
  %620 = vmatpush2.bf16.msra.mxu0 %v500
  %621 = vmatprep.mubr.bf16.mxu0 %v277
  %622 = vmatmul.mubr.bf16.gmra.mxu0 %v276
  %v623 = vpop.f32.mrf.mxu0
  %v624 = vadd.f32 %v146, %v623
  %v625 = vpop.f32.mrf.mxu0
  %v626 = vpop.f32.mrf.mxu0
  %v627 = vadd.f32 %v146, %v626
  %v628 = vpop.f32.mrf.mxu0
  %629 = vmatprep.mubr.bf16.mxu0 %v282
  %630 = vmatmul.mubr.bf16.gmra.mxu0 %v281
  %v631 = vpop.f32.mrf.mxu0
  %v632 = vadd.f32 %v146, %v631
  %v633 = vpop.f32.mrf.mxu0
  %v634 = vpop.f32.mrf.mxu0
  %v635 = vadd.f32 %v146, %v634
  %v636 = vpop.f32.mrf.mxu0
  %637 = vmatprep.mubr.bf16.mxu0 %v287
  %638 = vmatmul.mubr.bf16.gmra.mxu0 %v286
  %v639 = vpop.f32.mrf.mxu0
  %v640 = vadd.f32 %v146, %v639
  %v641 = vpop.f32.mrf.mxu0
  %v642 = vpop.f32.mrf.mxu0
  %v643 = vadd.f32 %v146, %v642
  %v644 = vpop.f32.mrf.mxu0
  %645 = vmatprep.mubr.bf16.mxu0 %v292
  %646 = vmatmul.mubr.bf16.gmra.mxu0 %v291
  %v647 = vpop.f32.mrf.mxu0
  %v648 = vadd.f32 %v146, %v647
  %v649 = vpop.f32.mrf.mxu0
  %v650 = vpop.f32.mrf.mxu0
  %v651 = vadd.f32 %v146, %v650
  %v652 = vpop.f32.mrf.mxu0
  %653 = vmatprep.mubr.bf16.mxu0 %v297
  %654 = vmatmul.mubr.bf16.gmra.mxu0 %v296
  %v655 = vpop.f32.mrf.mxu0
  %v656 = vadd.f32 %v146, %v655
  %v657 = vpop.f32.mrf.mxu0
  %v658 = vpop.f32.mrf.mxu0
  %v659 = vadd.f32 %v146, %v658
  %v660 = vpop.f32.mrf.mxu0
  %661 = vmatprep.mubr.bf16.mxu0 %v302
  %662 = vmatmul.mubr.bf16.gmra.mxu0 %v301
  %v663 = vpop.f32.mrf.mxu0
  %v664 = vadd.f32 %v146, %v663
  %v665 = vpop.f32.mrf.mxu0
  %v666 = vpop.f32.mrf.mxu0
  %v667 = vadd.f32 %v146, %v666
  %v668 = vpop.f32.mrf.mxu0
  %669 = vmatprep.mubr.bf16.mxu0 %v307
  %670 = vmatmul.mubr.bf16.gmra.mxu0 %v306
  %v671 = vpop.f32.mrf.mxu0
  %v672 = vadd.f32 %v146, %v671
  %v673 = vpop.f32.mrf.mxu0
  %v674 = vpop.f32.mrf.mxu0
  %v675 = vadd.f32 %v146, %v674
  %v676 = vpop.f32.mrf.mxu0
  %677 = vmatprep.mubr.bf16.mxu0 %v312
  %678 = vmatmul.mubr.bf16.gmra.mxu0 %v311
  %v679 = vpop.f32.mrf.mxu0
  %v680 = vadd.f32 %v146, %v679
  %v681 = vpop.f32.mrf.mxu0
  %v682 = vpop.f32.mrf.mxu0
  %v683 = vadd.f32 %v146, %v682
  %v684 = vpop.f32.mrf.mxu0
  %685 = vdwg.mxu0
  %686 = vmatprep.subr.bf16.mxu0 0
  %687 = vmatpush1.bf16.msra.mxu0 %v515
  %688 = vmatprep.subr.bf16.mxu0 0
  %689 = vmatpush1.bf16.msra.mxu0 %v514
  %690 = vmatprep.subr.bf16.mxu0 0
  %691 = vmatpush1.bf16.msra.mxu0 %v513
  %692 = vmatprep.subr.bf16.mxu0 0
  %693 = vmatpush1.bf16.msra.mxu0 %v512
  %694 = vmatprep.subr.bf16.mxu0 0
  %695 = vmatpush1.bf16.msra.mxu0 %v511
  %696 = vmatprep.subr.bf16.mxu0 0
  %697 = vmatpush1.bf16.msra.mxu0 %v510
  %698 = vmatprep.subr.bf16.mxu0 0
  %699 = vmatpush1.bf16.msra.mxu0 %v509
  %700 = vmatprep.subr.bf16.mxu0 0
  %701 = vmatpush1.bf16.msra.mxu0 %v508
  %702 = vmatprep.subr.bf16.mxu0 0
  %703 = vmatpush2.bf16.msra.mxu0 %v523
  %704 = vmatprep.subr.bf16.mxu0 0
  %705 = vmatpush2.bf16.msra.mxu0 %v522
  %706 = vmatprep.subr.bf16.mxu0 0
  %707 = vmatpush2.bf16.msra.mxu0 %v521
  %708 = vmatprep.subr.bf16.mxu0 0
  %709 = vmatpush2.bf16.msra.mxu0 %v520
  %710 = vmatprep.subr.bf16.mxu0 0
  %711 = vmatpush2.bf16.msra.mxu0 %v519
  %712 = vmatprep.subr.bf16.mxu0 0
  %713 = vmatpush2.bf16.msra.mxu0 %v518
  %714 = vmatprep.subr.bf16.mxu0 0
  %715 = vmatpush2.bf16.msra.mxu0 %v517
  %716 = vmatprep.subr.bf16.mxu0 0
  %717 = vmatpush2.bf16.msra.mxu0 %v516
  %718 = vmatprep.mubr.bf16.mxu0 %v279
  %719 = vmatmul.mubr.bf16.gmra.mxu0 %v278
  %v720 = vpop.f32.mrf.mxu0
  %v721 = vadd.f32 %v624, %v720
  %v722 = vpop.f32.mrf.mxu0
  %v723 = vpop.f32.mrf.mxu0
  %v724 = vadd.f32 %v627, %v723
  %v725 = vpop.f32.mrf.mxu0
  %726 = vmatprep.mubr.bf16.mxu0 %v284
  %727 = vmatmul.mubr.bf16.gmra.mxu0 %v283
  %v728 = vpop.f32.mrf.mxu0
  %v729 = vadd.f32 %v632, %v728
  %v730 = vpop.f32.mrf.mxu0
  %v731 = vpop.f32.mrf.mxu0
  %v732 = vadd.f32 %v635, %v731
  %v733 = vpop.f32.mrf.mxu0
  %734 = vmatprep.mubr.bf16.mxu0 %v289
  %735 = vmatmul.mubr.bf16.gmra.mxu0 %v288
  %v736 = vpop.f32.mrf.mxu0
  %v737 = vadd.f32 %v640, %v736
  %v738 = vpop.f32.mrf.mxu0
  %v739 = vpop.f32.mrf.mxu0
  %v740 = vadd.f32 %v643, %v739
  %v741 = vpop.f32.mrf.mxu0
  %742 = vmatprep.mubr.bf16.mxu0 %v294
  %743 = vmatmul.mubr.bf16.gmra.mxu0 %v293
  %v744 = vpop.f32.mrf.mxu0
  %v745 = vadd.f32 %v648, %v744
  %v746 = vpop.f32.mrf.mxu0
  %v747 = vpop.f32.mrf.mxu0
  %v748 = vadd.f32 %v651, %v747
  %v749 = vpop.f32.mrf.mxu0
  %750 = vmatprep.mubr.bf16.mxu0 %v299
  %751 = vmatmul.mubr.bf16.gmra.mxu0 %v298
  %v752 = vpop.f32.mrf.mxu0
  %v753 = vadd.f32 %v656, %v752
  %v754 = vpop.f32.mrf.mxu0
  %v755 = vpop.f32.mrf.mxu0
  %v756 = vadd.f32 %v659, %v755
  %v757 = vpop.f32.mrf.mxu0
  %758 = vmatprep.mubr.bf16.mxu0 %v304
  %759 = vmatmul.mubr.bf16.gmra.mxu0 %v303
  %v760 = vpop.f32.mrf.mxu0
  %v761 = vadd.f32 %v664, %v760
  %v762 = vpop.f32.mrf.mxu0
  %v763 = vpop.f32.mrf.mxu0
  %v764 = vadd.f32 %v667, %v763
  %v765 = vpop.f32.mrf.mxu0
  %766 = vmatprep.mubr.bf16.mxu0 %v309
  %767 = vmatmul.mubr.bf16.gmra.mxu0 %v308
  %v768 = vpop.f32.mrf.mxu0
  %v769 = vadd.f32 %v672, %v768
  %v770 = vpop.f32.mrf.mxu0
  %v771 = vpop.f32.mrf.mxu0
  %v772 = vadd.f32 %v675, %v771
  %v773 = vpop.f32.mrf.mxu0
  %774 = vmatprep.mubr.bf16.mxu0 %v314
  %775 = vmatmul.mubr.bf16.gmra.mxu0 %v313
  %v776 = vpop.f32.mrf.mxu0
  %v777 = vadd.f32 %v680, %v776
  %v778 = vpop.f32.mrf.mxu0
  %v779 = vpop.f32.mrf.mxu0
  %v780 = vadd.f32 %v683, %v779
  %v781 = vpop.f32.mrf.mxu0
  %782 = vdwg.mxu0
  %783 = vmatprep.subr.bf16.mxu0 0
  %784 = vmatpush1.bf16.msra.mxu0 0
  %785 = vmatprep.subr.bf16.mxu0 0
  %786 = vmatpush1.bf16.msra.mxu0 0
  %787 = vmatprep.subr.bf16.mxu0 0
  %788 = vmatpush1.bf16.msra.mxu0 0
  %789 = vmatprep.subr.bf16.mxu0 0
  %790 = vmatpush1.bf16.msra.mxu0 0
  %791 = vmatprep.subr.bf16.mxu0 0
  %792 = vmatpush1.bf16.msra.mxu0 %v527
  %793 = vmatprep.subr.bf16.mxu0 0
  %794 = vmatpush1.bf16.msra.mxu0 %v526
  %795 = vmatprep.subr.bf16.mxu0 0
  %796 = vmatpush1.bf16.msra.mxu0 %v525
  %797 = vmatprep.subr.bf16.mxu0 0
  %798 = vmatpush1.bf16.msra.mxu0 %v524
  %799 = vmatprep.subr.bf16.mxu0 0
  %800 = vmatpush2.bf16.msra.mxu0 0
  %801 = vmatprep.subr.bf16.mxu0 0
  %802 = vmatpush2.bf16.msra.mxu0 0
  %803 = vmatprep.subr.bf16.mxu0 0
  %804 = vmatpush2.bf16.msra.mxu0 0
  %805 = vmatprep.subr.bf16.mxu0 0
  %806 = vmatpush2.bf16.msra.mxu0 0
  %807 = vmatprep.subr.bf16.mxu0 0
  %808 = vmatpush2.bf16.msra.mxu0 0
  %809 = vmatprep.subr.bf16.mxu0 0
  %810 = vmatpush2.bf16.msra.mxu0 0
  %811 = vmatprep.subr.bf16.mxu0 0
  %812 = vmatpush2.bf16.msra.mxu0 0
  %813 = vmatprep.subr.bf16.mxu0 0
  %814 = vmatpush2.bf16.msra.mxu0 0
  %815 = vmatprep.mubr.bf16.mxu0 0
  %816 = vmatmul.mubr.bf16.gmra.mxu0 %v566
  %v817 = vpop.f32.mrf.mxu0
  %v818 = vadd.f32 %v721, %v817
  %v819 = vpop.f32.mrf.mxu0
  %v820 = vpop.f32.mrf.mxu0
  %v821 = vadd.f32 %v724, %v820
  %v822 = vpop.f32.mrf.mxu0
  %823 = vmatprep.mubr.bf16.mxu0 0
  %824 = vmatmul.mubr.bf16.gmra.mxu0 %v569
  %v825 = vpop.f32.mrf.mxu0
  %v826 = vadd.f32 %v729, %v825
  %v827 = vpop.f32.mrf.mxu0
  %v828 = vpop.f32.mrf.mxu0
  %v829 = vadd.f32 %v732, %v828
  %v830 = vpop.f32.mrf.mxu0
  %831 = vmatprep.mubr.bf16.mxu0 0
  %832 = vmatmul.mubr.bf16.gmra.mxu0 %v572
  %v833 = vpop.f32.mrf.mxu0
  %v834 = vadd.f32 %v737, %v833
  %v835 = vpop.f32.mrf.mxu0
  %v836 = vpop.f32.mrf.mxu0
  %v837 = vadd.f32 %v740, %v836
  %v838 = vpop.f32.mrf.mxu0
  %839 = vmatprep.mubr.bf16.mxu0 0
  %840 = vmatmul.mubr.bf16.gmra.mxu0 %v575
  %v841 = vpop.f32.mrf.mxu0
  %v842 = vadd.f32 %v745, %v841
  %v843 = vpop.f32.mrf.mxu0
  %v844 = vpop.f32.mrf.mxu0
  %v845 = vadd.f32 %v748, %v844
  %v846 = vpop.f32.mrf.mxu0
  %847 = vmatprep.mubr.bf16.mxu0 0
  %848 = vmatmul.mubr.bf16.gmra.mxu0 %v578
  %v849 = vpop.f32.mrf.mxu0
  %v850 = vadd.f32 %v753, %v849
  %v851 = vpop.f32.mrf.mxu0
  %v852 = vpop.f32.mrf.mxu0
  %v853 = vadd.f32 %v756, %v852
  %v854 = vpop.f32.mrf.mxu0
  %855 = vmatprep.mubr.bf16.mxu0 0
  %856 = vmatmul.mubr.bf16.gmra.mxu0 %v581
  %v857 = vpop.f32.mrf.mxu0
  %v858 = vadd.f32 %v761, %v857
  %v859 = vpop.f32.mrf.mxu0
  %v860 = vpop.f32.mrf.mxu0
  %v861 = vadd.f32 %v764, %v860
  %v862 = vpop.f32.mrf.mxu0
  %863 = vmatprep.mubr.bf16.mxu0 0
  %864 = vmatmul.mubr.bf16.gmra.mxu0 %v584
  %v865 = vpop.f32.mrf.mxu0
  %v866 = vadd.f32 %v769, %v865
  %v867 = vpop.f32.mrf.mxu0
  %v868 = vpop.f32.mrf.mxu0
  %v869 = vadd.f32 %v772, %v868
  %v870 = vpop.f32.mrf.mxu0
  %871 = vmatprep.mubr.bf16.mxu0 0
  %872 = vmatmul.mubr.bf16.gmra.mxu0 %v587
  %v873 = vpop.f32.mrf.mxu0
  %v874 = vadd.f32 %v777, %v873
  %v875 = vpop.f32.mrf.mxu0
  %v876 = vpop.f32.mrf.mxu0
  %v877 = vadd.f32 %v780, %v876
  %v878 = vpop.f32.mrf.mxu0
  %879 = vdwg.mxu0
  %v880 = vmul.f32 %v818, 0.1
  %v881 = vmul.f32 %v821, 0.1
  %v882 = vmul.f32 %v826, 0.1
  %v883 = vmul.f32 %v829, 0.1
  %v884 = vmul.f32 %v834, 0.1
  %v885 = vmul.f32 %v837, 0.1
  %v886 = vmul.f32 %v842, 0.1
  %v887 = vmul.f32 %v845, 0.1
  %v888 = vmul.f32 %v850, 0.1
  %v889 = vmul.f32 %v853, 0.1
  %v890 = vmul.f32 %v858, 0.1
  %v891 = vmul.f32 %v861, 0.1
  %v892 = vmul.f32 %v866, 0.1
  %v893 = vmul.f32 %v869, 0.1
  %v894 = vmul.f32 %v874, 0.1
  %v895 = vmul.f32 %v877, 0.1
  %v896 = vmax.f32 %v818, %v880
  %v897 = vmax.f32 %v821, %v881
  %v898 = vmax.f32 %v826, %v882
  %v899 = vmax.f32 %v829, %v883
  %v900 = vmax.f32 %v834, %v884
  %v901 = vmax.f32 %v837, %v885
  %v902 = vmax.f32 %v842, %v886
  %v903 = vmax.f32 %v845, %v887
  %v904 = vmax.f32 %v850, %v888
  %v905 = vmax.f32 %v853, %v889
  %v906 = vmax.f32 %v858, %v890
  %v907 = vmax.f32 %v861, %v891
  %v908 = vmax.f32 %v866, %v892
  %v909 = vmax.f32 %v869, %v893
  %v910 = vmax.f32 %v874, %v894
  %v911 = vmax.f32 %v877, %v895
  %v912 = vld [vmem:[%s3] sm:$0xf]
  %v913 = vld [vmem:[%s3 + $0x4] sm:$0xf]
  %v914 = vld [vmem:[%s3 + $0x8] sm:$0xf]
  %v915 = vld [vmem:[%s3 + $0xc] sm:$0xf]
  %v916 = vld [vmem:[%s3 + $0x10] sm:$0xf]
  %v917 = vld [vmem:[%s3 + $0x14] sm:$0xf]
  %v918 = vld [vmem:[%s3 + $0x18] sm:$0xf]
  %v919 = vld [vmem:[%s3 + $0x1c] sm:$0xf]
  %v920 = vld [vmem:[%s4] sm:$0x1]
  %v922 = vlaneseq
  %v923 = vshrl.u32 %v922, 7
  %v924 = vsub.s32 0, %v923
  %v925 = vrot.slane %v920, %v924
  %v935 = vunpack.c.l.b16 %v912
  %v936 = vunpack.c.l.b16 %v913
  %v937 = vunpack.c.l.b16 %v914
  %v938 = vunpack.c.l.b16 %v915
  %v939 = vunpack.c.l.b16 %v916
  %v940 = vunpack.c.l.b16 %v917
  %v941 = vunpack.c.l.b16 %v918
  %v942 = vunpack.c.l.b16 %v919
  %v943 = vpack.c.b16 %v936, %v935
  %v944 = vpack.c.b16 %v938, %v937
  %v945 = vpack.c.b16 %v940, %v939
  %v946 = vpack.c.b16 %v942, %v941
  %v952 = vsel %vm564, %v278, 0
  %v955 = vsel %vm564, %v283, 0
  %v958 = vsel %vm564, %v288, 0
  %v961 = vsel %vm564, %v293, 0
  %v964 = vsel %vm564, %v298, 0
  %v967 = vsel %vm564, %v303, 0
  %v970 = vsel %vm564, %v308, 0
  %v973 = vsel %vm564, %v313, 0
  %975 = vmatprep.subr.bf16.mxu0 0
  %976 = vmatpush1.bf16.msra.mxu0 0
  %977 = vmatprep.subr.bf16.mxu0 0
  %978 = vmatpush1.bf16.msra.mxu0 0
  %979 = vmatprep.subr.bf16.mxu0 0
  %980 = vmatpush1.bf16.msra.mxu0 0
  %981 = vmatprep.subr.bf16.mxu0 0
  %982 = vmatpush1.bf16.msra.mxu0 0
  %983 = vmatprep.subr.bf16.mxu0 0
  %984 = vmatpush1.bf16.msra.mxu0 %v946
  %985 = vmatprep.subr.bf16.mxu0 0
  %986 = vmatpush1.bf16.msra.mxu0 %v945
  %987 = vmatprep.subr.bf16.mxu0 0
  %988 = vmatpush1.bf16.msra.mxu0 %v944
  %989 = vmatprep.subr.bf16.mxu0 0
  %990 = vmatpush1.bf16.msra.mxu0 %v943
  %991 = vmatprep.subr.bf16.mxu0 0
  %992 = vmatpush2.bf16.msra.mxu0 0
  %993 = vmatprep.subr.bf16.mxu0 0
  %994 = vmatpush2.bf16.msra.mxu0 0
  %995 = vmatprep.subr.bf16.mxu0 0
  %996 = vmatpush2.bf16.msra.mxu0 0
  %997 = vmatprep.subr.bf16.mxu0 0
  %998 = vmatpush2.bf16.msra.mxu0 0
  %999 = vmatprep.subr.bf16.mxu0 0
  %1000 = vmatpush2.bf16.msra.mxu0 0
  %1001 = vmatprep.subr.bf16.mxu0 0
  %1002 = vmatpush2.bf16.msra.mxu0 0
  %1003 = vmatprep.subr.bf16.mxu0 0
  %1004 = vmatpush2.bf16.msra.mxu0 0
  %1005 = vmatprep.subr.bf16.mxu0 0
  %1006 = vmatpush2.bf16.msra.mxu0 0
  %1007 = vmatprep.mubr.bf16.mxu0 0
  %1008 = vmatmul.mubr.bf16.gmra.mxu0 %v952
  %v1009 = vpop.f32.mrf.mxu0
  %v1010 = vadd.f32 %v925, %v1009
  %v1011 = vpop.f32.mrf.mxu0
  %v1012 = vpop.f32.mrf.mxu0
  %v1013 = vadd.f32 %v925, %v1012
  %v1014 = vpop.f32.mrf.mxu0
  %1015 = vmatprep.mubr.bf16.mxu0 0
  %1016 = vmatmul.mubr.bf16.gmra.mxu0 %v955
  %v1017 = vpop.f32.mrf.mxu0
  %v1018 = vadd.f32 %v925, %v1017
  %v1019 = vpop.f32.mrf.mxu0
  %v1020 = vpop.f32.mrf.mxu0
  %v1021 = vadd.f32 %v925, %v1020
  %v1022 = vpop.f32.mrf.mxu0
  %1023 = vmatprep.mubr.bf16.mxu0 0
  %1024 = vmatmul.mubr.bf16.gmra.mxu0 %v958
  %v1025 = vpop.f32.mrf.mxu0
  %v1026 = vadd.f32 %v925, %v1025
  %v1027 = vpop.f32.mrf.mxu0
  %v1028 = vpop.f32.mrf.mxu0
  %v1029 = vadd.f32 %v925, %v1028
  %v1030 = vpop.f32.mrf.mxu0
  %1031 = vmatprep.mubr.bf16.mxu0 0
  %1032 = vmatmul.mubr.bf16.gmra.mxu0 %v961
  %v1033 = vpop.f32.mrf.mxu0
  %v1034 = vadd.f32 %v925, %v1033
  %v1035 = vpop.f32.mrf.mxu0
  %v1036 = vpop.f32.mrf.mxu0
  %v1037 = vadd.f32 %v925, %v1036
  %v1038 = vpop.f32.mrf.mxu0
  %1039 = vmatprep.mubr.bf16.mxu0 0
  %1040 = vmatmul.mubr.bf16.gmra.mxu0 %v964
  %v1041 = vpop.f32.mrf.mxu0
  %v1042 = vadd.f32 %v925, %v1041
  %v1043 = vpop.f32.mrf.mxu0
  %v1044 = vpop.f32.mrf.mxu0
  %v1045 = vadd.f32 %v925, %v1044
  %v1046 = vpop.f32.mrf.mxu0
  %1047 = vmatprep.mubr.bf16.mxu0 0
  %1048 = vmatmul.mubr.bf16.gmra.mxu0 %v967
  %v1049 = vpop.f32.mrf.mxu0
  %v1050 = vadd.f32 %v925, %v1049
  %v1051 = vpop.f32.mrf.mxu0
  %v1052 = vpop.f32.mrf.mxu0
  %v1053 = vadd.f32 %v925, %v1052
  %v1054 = vpop.f32.mrf.mxu0
  %1055 = vmatprep.mubr.bf16.mxu0 0
  %1056 = vmatmul.mubr.bf16.gmra.mxu0 %v970
  %v1057 = vpop.f32.mrf.mxu0
  %v1058 = vadd.f32 %v925, %v1057
  %v1059 = vpop.f32.mrf.mxu0
  %v1060 = vpop.f32.mrf.mxu0
  %v1061 = vadd.f32 %v925, %v1060
  %v1062 = vpop.f32.mrf.mxu0
  %1063 = vmatprep.mubr.bf16.mxu0 0
  %1064 = vmatmul.mubr.bf16.gmra.mxu0 %v973
  %v1065 = vpop.f32.mrf.mxu0
  %v1066 = vadd.f32 %v925, %v1065
  %v1067 = vpop.f32.mrf.mxu0
  %v1068 = vpop.f32.mrf.mxu0
  %v1069 = vadd.f32 %v925, %v1068
  %v1070 = vpop.f32.mrf.mxu0
  %1071 = vdwg.mxu0
  %v1072 = vadd.f32 %v896, %v1010
  %v1073 = vadd.f32 %v897, %v1013
  %v1074 = vadd.f32 %v898, %v1018
  %v1075 = vadd.f32 %v899, %v1021
  %v1076 = vadd.f32 %v900, %v1026
  %v1077 = vadd.f32 %v901, %v1029
  %v1078 = vadd.f32 %v902, %v1034
  %v1079 = vadd.f32 %v903, %v1037
  %v1080 = vadd.f32 %v904, %v1042
  %v1081 = vadd.f32 %v905, %v1045
  %v1082 = vadd.f32 %v906, %v1050
  %v1083 = vadd.f32 %v907, %v1053
  %v1084 = vadd.f32 %v908, %v1058
  %v1085 = vadd.f32 %v909, %v1061
  %v1086 = vadd.f32 %v910, %v1066
  %v1087 = vadd.f32 %v911, %v1069
  %1088 = vst [vmem:[%s5] sm:$0xff] %v1072
  %1089 = vst [vmem:[%s5 + $0x8] sm:$0xff] %v1073
  %1090 = vst [vmem:[%s5 + $0x10] sm:$0xff] %v1074
  %1091 = vst [vmem:[%s5 + $0x18] sm:$0xff] %v1075
  %1092 = vst [vmem:[%s5 + $0x20] sm:$0xff] %v1076
  %1093 = vst [vmem:[%s5 + $0x28] sm:$0xff] %v1077
  %1094 = vst [vmem:[%s5 + $0x30] sm:$0xff] %v1078
  %1095 = vst [vmem:[%s5 + $0x38] sm:$0xff] %v1079
  %1096 = vst [vmem:[%s5 + $0x40] sm:$0xff] %v1080
  %1097 = vst [vmem:[%s5 + $0x48] sm:$0xff] %v1081
  %1098 = vst [vmem:[%s5 + $0x50] sm:$0xff] %v1082
  %1099 = vst [vmem:[%s5 + $0x58] sm:$0xff] %v1083
  %1100 = vst [vmem:[%s5 + $0x60] sm:$0xff] %v1084
  %1101 = vst [vmem:[%s5 + $0x68] sm:$0xff] %v1085
  %1102 = vst [vmem:[%s5 + $0x70] sm:$0xff] %v1086
  %1103 = vst [vmem:[%s5 + $0x78] sm:$0xff] %v1087
  // Predicated region
  $region22: #{_lambda_.23} parent=0 // pred_check
    _
  $region23: #{_lambda_.23} parent=0 // pred_check_branch
    %1105 = sbr.rel (0) target = $region25
  $region24: #{_lambda_.23} parent=0 // pred_region
    _
  $region25: #{_lambda_.23} parent=0 // pred_fallthru
    _
  // Predicated region
  $region26: #{_lambda_.23} parent=0 // pred_check
    _
  $region27: #{_lambda_.23} parent=0 // pred_check_branch
    %1107 = sbr.rel (0) target = $region29
  $region28: #{_lambda_.23} parent=0 // pred_region
    _
  $region29: #{_lambda_.23} parent=0 // pred_fallthru
    _

// kernel: _lambda_.25
$region0: #{_lambda_.25}
  #allocation0 [shape = 'u32[]', space=smem, size = 0x4, offset = 0x4, fixed_abs, tag = 'smem constant byte address 0x4 - core index']
  #allocation1 [shape = 'u32[144,128]{1,0:T(1,128)}', space=vmem, size = 0x12000, scoped, tag = 'internal scratch']
  %s0 = inlined_call_operand.vmem [shape: bf16[128,1377], index: 0, kind: input, shape index: {}]
  %s1 = inlined_call_operand.vmem [shape: bf16[1377,128], index: 1, kind: input, shape index: {}]
  %s2 = inlined_call_operand.vmem [shape: f32[1,128], index: 2, kind: input, shape index: {}]
  %s3 = inlined_call_operand.vmem [shape: bf16[153,128], index: 3, kind: input, shape index: {}]
  %s4 = inlined_call_operand.vmem [shape: f32[1,128], index: 4, kind: input, shape index: {}]
  %s5 = inlined_call_operand.vmem [shape: f32[128,128], index: 5, kind: output, shape index: {}]
  %s6 = sld [smem:[#allocation0]]
  $region30: #{_lambda_.25} parent=0
    _
  %s8 = ssub.s32 1, %s6
  %s9 = scalar_select 0, %s8, %s6
  // Predicated region
  $region2: #{_lambda_.25} parent=0 // pred_check
    _
  $region3: #{_lambda_.25} parent=0 // pred_check_branch
    %11 = sbr.rel (0) target = $region5
  $region4: #{_lambda_.25} parent=0 // pred_region
    _
  $region5: #{_lambda_.25} parent=0 // pred_fallthru
    _
  // Predicated region
  $region6: #{_lambda_.25} parent=0 // pred_check
    _
  $region7: #{_lambda_.25} parent=0 // pred_check_branch
    %13 = sbr.rel (0) target = $region9
  $region8: #{_lambda_.25} parent=0 // pred_region
    _
  $region9: #{_lambda_.25} parent=0 // pred_fallthru
    _
  // Predicated region
  $region10: #{_lambda_.25} parent=0 // pred_check
    _
  $region11: #{_lambda_.25} parent=0 // pred_check_branch
    %15 = sbr.rel (0) target = $region13
  $region12: #{_lambda_.25} parent=0 // pred_region
    _
  $region13: #{_lambda_.25} parent=0 // pred_fallthru
    _
  // Predicated region
  $region14: #{_lambda_.25} parent=0 // pred_check
    _
  $region15: #{_lambda_.25} parent=0 // pred_check_branch
    %17 = sbr.rel (0) target = $region17
  $region16: #{_lambda_.25} parent=0 // pred_region
    _
  $region17: #{_lambda_.25} parent=0 // pred_fallthru
    _
  // Predicated region
  $region18: #{_lambda_.25} parent=0 // pred_check
    _
  $region19: #{_lambda_.25} parent=0 // pred_check_branch
    %19 = sbr.rel (0) target = $region21
  $region20: #{_lambda_.25} parent=0 // pred_region
    _
  $region21: #{_lambda_.25} parent=0 // pred_fallthru
    _
  %v21 = vld [vmem:[%s0] sm:$0xff]
  %v22 = vld [vmem:[%s0 + $0x8] sm:$0xff]
  %v23 = vld [vmem:[%s0 + $0x10] sm:$0xff]
  %v24 = vld [vmem:[%s0 + $0x18] sm:$0xff]
  %v25 = vld [vmem:[%s0 + $0x20] sm:$0xff]
  %v26 = vld [vmem:[%s0 + $0x28] sm:$0xf]
  %v27 = vld [vmem:[%s0 + $0x2c] sm:$0xff]
  %v28 = vld [vmem:[%s0 + $0x34] sm:$0xff]
  %v29 = vld [vmem:[%s0 + $0x3c] sm:$0xff]
  %v30 = vld [vmem:[%s0 + $0x44] sm:$0xff]
  %v31 = vld [vmem:[%s0 + $0x4c] sm:$0xff]
  %v32 = vld [vmem:[%s0 + $0x54] sm:$0xf]
  %v33 = vld [vmem:[%s0 + $0x58] sm:$0xff]
  %v34 = vld [vmem:[%s0 + $0x60] sm:$0xff]
  %v35 = vld [vmem:[%s0 + $0x68] sm:$0xff]
  %v36 = vld [vmem:[%s0 + $0x70] sm:$0xff]
  %v37 = vld [vmem:[%s0 + $0x78] sm:$0xff]
  %v38 = vld [vmem:[%s0 + $0x80] sm:$0xf]
  %v39 = vld [vmem:[%s0 + $0x84] sm:$0xff]
  %v40 = vld [vmem:[%s0 + $0x8c] sm:$0xff]
  %v41 = vld [vmem:[%s0 + $0x94] sm:$0xff]
  %v42 = vld [vmem:[%s0 + $0x9c] sm:$0xff]
  %v43 = vld [vmem:[%s0 + $0xa4] sm:$0xff]
  %v44 = vld [vmem:[%s0 + $0xac] sm:$0xf]
  %v45 = vld [vmem:[%s0 + $0xb0] sm:$0xff]
  %v46 = vld [vmem:[%s0 + $0xb8] sm:$0xff]
  %v47 = vld [vmem:[%s0 + $0xc0] sm:$0xff]
  %v48 = vld [vmem:[%s0 + $0xc8] sm:$0xff]
  %v49 = vld [vmem:[%s0 + $0xd0] sm:$0xff]
  %v50 = vld [vmem:[%s0 + $0xd8] sm:$0xf]
  %v51 = vld [vmem:[%s0 + $0xdc] sm:$0xff]
  %v52 = vld [vmem:[%s0 + $0xe4] sm:$0xff]
  %v53 = vld [vmem:[%s0 + $0xec] sm:$0xff]
  %v54 = vld [vmem:[%s0 + $0xf4] sm:$0xff]
  %v55 = vld [vmem:[%s0 + $0xfc] sm:$0xff]
  %v56 = vld [vmem:[%s0 + $0x104] sm:$0xf]
  %v57 = vld [vmem:[%s0 + $0x108] sm:$0xff]
  %v58 = vld [vmem:[%s0 + $0x110] sm:$0xff]
  %v59 = vld [vmem:[%s0 + $0x118] sm:$0xff]
  %v60 = vld [vmem:[%s0 + $0x120] sm:$0xff]
  %v61 = vld [vmem:[%s0 + $0x128] sm:$0xff]
  %v62 = vld [vmem:[%s0 + $0x130] sm:$0xf]
  %v63 = vld [vmem:[%s0 + $0x134] sm:$0xff]
  %v64 = vld [vmem:[%s0 + $0x13c] sm:$0xff]
  %v65 = vld [vmem:[%s0 + $0x144] sm:$0xff]
  %v66 = vld [vmem:[%s0 + $0x14c] sm:$0xff]
  %v67 = vld [vmem:[%s0 + $0x154] sm:$0xff]
  %v68 = vld [vmem:[%s0 + $0x15c] sm:$0xf]
  %v69 = vld [vmem:[%s0 + $0x160] sm:$0xff]
  %v70 = vld [vmem:[%s0 + $0x168] sm:$0xff]
  %v71 = vld [vmem:[%s0 + $0x170] sm:$0xff]
  %v72 = vld [vmem:[%s0 + $0x178] sm:$0xff]
  %v73 = vld [vmem:[%s0 + $0x180] sm:$0xff]
  %v74 = vld [vmem:[%s0 + $0x188] sm:$0xf]
  %v75 = vld [vmem:[%s0 + $0x18c] sm:$0xff]
  %v76 = vld [vmem:[%s0 + $0x194] sm:$0xff]
  %v77 = vld [vmem:[%s0 + $0x19c] sm:$0xff]
  %v78 = vld [vmem:[%s0 + $0x1a4] sm:$0xff]
  %v79 = vld [vmem:[%s0 + $0x1ac] sm:$0xff]
  %v80 = vld [vmem:[%s0 + $0x1b4] sm:$0xf]
  %v81 = vld [vmem:[%s0 + $0x1b8] sm:$0xff]
  %v82 = vld [vmem:[%s0 + $0x1c0] sm:$0xff]
  %v83 = vld [vmem:[%s0 + $0x1c8] sm:$0xff]
  %v84 = vld [vmem:[%s0 + $0x1d0] sm:$0xff]
  %v85 = vld [vmem:[%s0 + $0x1d8] sm:$0xff]
  %v86 = vld [vmem:[%s0 + $0x1e0] sm:$0xf]
  %v87 = vld [vmem:[%s0 + $0x1e4] sm:$0xff]
  %v88 = vld [vmem:[%s0 + $0x1ec] sm:$0xff]
  %v89 = vld [vmem:[%s0 + $0x1f4] sm:$0xff]
  %v90 = vld [vmem:[%s0 + $0x1fc] sm:$0xff]
  %v91 = vld [vmem:[%s0 + $0x204] sm:$0xff]
  %v92 = vld [vmem:[%s0 + $0x20c] sm:$0xf]
  %v93 = vld [vmem:[%s0 + $0x210] sm:$0xff]
  %v94 = vld [vmem:[%s0 + $0x218] sm:$0xff]
  %v95 = vld [vmem:[%s0 + $0x220] sm:$0xff]
  %v96 = vld [vmem:[%s0 + $0x228] sm:$0xff]
  %v97 = vld [vmem:[%s0 + $0x230] sm:$0xff]
  %v98 = vld [vmem:[%s0 + $0x238] sm:$0xf]
  %v99 = vld [vmem:[%s0 + $0x23c] sm:$0xff]
  %v100 = vld [vmem:[%s0 + $0x244] sm:$0xff]
  %v101 = vld [vmem:[%s0 + $0x24c] sm:$0xff]
  %v102 = vld [vmem:[%s0 + $0x254] sm:$0xff]
  %v103 = vld [vmem:[%s0 + $0x25c] sm:$0xff]
  %v104 = vld [vmem:[%s0 + $0x264] sm:$0xf]
  %v105 = vld [vmem:[%s0 + $0x268] sm:$0xff]
  %v106 = vld [vmem:[%s0 + $0x270] sm:$0xff]
  %v107 = vld [vmem:[%s0 + $0x278] sm:$0xff]
  %v108 = vld [vmem:[%s0 + $0x280] sm:$0xff]
  %v109 = vld [vmem:[%s0 + $0x288] sm:$0xff]
  %v110 = vld [vmem:[%s0 + $0x290] sm:$0xf]
  %v111 = vld [vmem:[%s0 + $0x294] sm:$0xff]
  %v112 = vld [vmem:[%s0 + $0x29c] sm:$0xff]
  %v113 = vld [vmem:[%s0 + $0x2a4] sm:$0xff]
  %v114 = vld [vmem:[%s0 + $0x2ac] sm:$0xff]
  %v115 = vld [vmem:[%s0 + $0x2b4] sm:$0xff]
  %v116 = vld [vmem:[%s0 + $0x2bc] sm:$0xf]
  %v117 = vld [vmem:[%s1] sm:$0xf]
  %v118 = vld [vmem:[%s1 + $0x4] sm:$0xf]
  %v119 = vld [vmem:[%s1 + $0x8] sm:$0xf]
  %v120 = vld [vmem:[%s1 + $0xc] sm:$0xf]
  %v121 = vld [vmem:[%s1 + $0x10] sm:$0xf]
  %v122 = vld [vmem:[%s1 + $0x14] sm:$0xf]
  %v123 = vld [vmem:[%s1 + $0x18] sm:$0xf]
  %v124 = vld [vmem:[%s1 + $0x1c] sm:$0xf]
  %v125 = vld [vmem:[%s1 + $0x20] sm:$0xf]
  %v126 = vld [vmem:[%s1 + $0x24] sm:$0xf]
  %v127 = vld [vmem:[%s1 + $0x28] sm:$0xf]
  %v128 = vld [vmem:[%s1 + $0x2c] sm:$0xf]
  %v129 = vld [vmem:[%s1 + $0x30] sm:$0xf]
  %v130 = vld [vmem:[%s1 + $0x34] sm:$0xf]
  %v131 = vld [vmem:[%s1 + $0x38] sm:$0xf]
  %v132 = vld [vmem:[%s1 + $0x3c] sm:$0xf]
  %v133 = vld [vmem:[%s1 + $0x40] sm:$0xf]
  %v134 = vld [vmem:[%s1 + $0x44] sm:$0xf]
  %v135 = vld [vmem:[%s1 + $0x48] sm:$0xf]
  %v136 = vld [vmem:[%s1 + $0x4c] sm:$0xf]
  %v137 = vld [vmem:[%s1 + $0x50] sm:$0xf]
  %v138 = vld [vmem:[%s1 + $0x54] sm:$0xf]
  %v139 = vld [vmem:[%s1 + $0x58] sm:$0xf]
  %v140 = vld [vmem:[%s1 + $0x5c] sm:$0xf]
  %v141 = vld [vmem:[%s1 + $0x60] sm:$0xf]
  %v142 = vld [vmem:[%s1 + $0x64] sm:$0xf]
  %v143 = vld [vmem:[%s1 + $0x68] sm:$0xf]
  %v144 = vld [vmem:[%s1 + $0x6c] sm:$0xf]
  %v145 = vld [vmem:[%s1 + $0x70] sm:$0xf]
  %v146 = vld [vmem:[%s1 + $0x74] sm:$0xf]
  %v147 = vld [vmem:[%s1 + $0x78] sm:$0xf]
  %v148 = vld [vmem:[%s1 + $0x7c] sm:$0xf]
  %v149 = vld [vmem:[%s1 + $0x80] sm:$0xf]
  %v150 = vld [vmem:[%s1 + $0x84] sm:$0xf]
  %v151 = vld [vmem:[%s1 + $0x88] sm:$0xf]
  %v152 = vld [vmem:[%s1 + $0x8c] sm:$0xf]
  %v153 = vld [vmem:[%s1 + $0x90] sm:$0xf]
  %v154 = vld [vmem:[%s1 + $0x94] sm:$0xf]
  %v155 = vld [vmem:[%s1 + $0x98] sm:$0xf]
  %v156 = vld [vmem:[%s1 + $0x9c] sm:$0xf]
  %v157 = vld [vmem:[%s1 + $0xa0] sm:$0xf]
  %v158 = vld [vmem:[%s1 + $0xa4] sm:$0xf]
  %v159 = vld [vmem:[%s1 + $0xa8] sm:$0xf]
  %v160 = vld [vmem:[%s1 + $0xac] sm:$0xf]
  %v161 = vld [vmem:[%s1 + $0xb0] sm:$0xf]
  %v162 = vld [vmem:[%s1 + $0xb4] sm:$0xf]
  %v163 = vld [vmem:[%s1 + $0xb8] sm:$0xf]
  %v164 = vld [vmem:[%s1 + $0xbc] sm:$0xf]
  %v165 = vld [vmem:[%s1 + $0xc0] sm:$0xf]
  %v166 = vld [vmem:[%s1 + $0xc4] sm:$0xf]
  %v167 = vld [vmem:[%s1 + $0xc8] sm:$0xf]
  %v168 = vld [vmem:[%s1 + $0xcc] sm:$0xf]
  %v169 = vld [vmem:[%s1 + $0xd0] sm:$0xf]
  %v170 = vld [vmem:[%s1 + $0xd4] sm:$0xf]
  %v171 = vld [vmem:[%s1 + $0xd8] sm:$0xf]
  %v172 = vld [vmem:[%s1 + $0xdc] sm:$0xf]
  %v173 = vld [vmem:[%s1 + $0xe0] sm:$0xf]
  %v174 = vld [vmem:[%s1 + $0xe4] sm:$0xf]
  %v175 = vld [vmem:[%s1 + $0xe8] sm:$0xf]
  %v176 = vld [vmem:[%s1 + $0xec] sm:$0xf]
  %v177 = vld [vmem:[%s1 + $0xf0] sm:$0xf]
  %v178 = vld [vmem:[%s1 + $0xf4] sm:$0xf]
  %v179 = vld [vmem:[%s1 + $0xf8] sm:$0xf]
  %v180 = vld [vmem:[%s1 + $0xfc] sm:$0xf]
  %v181 = vld [vmem:[%s1 + $0x100] sm:$0xf]
  %v182 = vld [vmem:[%s1 + $0x104] sm:$0xf]
  %v183 = vld [vmem:[%s1 + $0x108] sm:$0xf]
  %v184 = vld [vmem:[%s1 + $0x10c] sm:$0xf]
  %v185 = vld [vmem:[%s1 + $0x110] sm:$0xf]
  %v186 = vld [vmem:[%s1 + $0x114] sm:$0xf]
  %v187 = vld [vmem:[%s1 + $0x118] sm:$0xf]
  %v188 = vld [vmem:[%s1 + $0x11c] sm:$0xf]
  %v189 = vld [vmem:[%s1 + $0x120] sm:$0xf]
  %v190 = vld [vmem:[%s1 + $0x124] sm:$0xf]
  %v191 = vld [vmem:[%s1 + $0x128] sm:$0xf]
  %v192 = vld [vmem:[%s1 + $0x12c] sm:$0xf]
  %v193 = vld [vmem:[%s1 + $0x130] sm:$0xf]
  %v194 = vld [vmem:[%s1 + $0x134] sm:$0xf]
  %v195 = vld [vmem:[%s1 + $0x138] sm:$0xf]
  %v196 = vld [vmem:[%s1 + $0x13c] sm:$0xf]
  %v197 = vld [vmem:[%s1 + $0x140] sm:$0xf]
  %v198 = vld [vmem:[%s1 + $0x144] sm:$0xf]
  %v199 = vld [vmem:[%s1 + $0x148] sm:$0xf]
  %v200 = vld [vmem:[%s1 + $0x14c] sm:$0xf]
  %v201 = vld [vmem:[%s1 + $0x150] sm:$0xf]
  %v202 = vld [vmem:[%s1 + $0x154] sm:$0xf]
  %v203 = vld [vmem:[%s1 + $0x158] sm:$0xf]
  %v204 = vld [vmem:[%s1 + $0x15c] sm:$0xf]
  %v205 = vld [vmem:[%s1 + $0x160] sm:$0xf]
  %v206 = vld [vmem:[%s1 + $0x164] sm:$0xf]
  %v207 = vld [vmem:[%s1 + $0x168] sm:$0xf]
  %v208 = vld [vmem:[%s1 + $0x16c] sm:$0xf]
  %v209 = vld [vmem:[%s1 + $0x170] sm:$0xf]
  %v210 = vld [vmem:[%s1 + $0x174] sm:$0xf]
  %v211 = vld [vmem:[%s1 + $0x178] sm:$0xf]
  %v212 = vld [vmem:[%s1 + $0x17c] sm:$0xf]
  %v213 = vld [vmem:[%s1 + $0x180] sm:$0xf]
  %v214 = vld [vmem:[%s1 + $0x184] sm:$0xf]
  %v215 = vld [vmem:[%s1 + $0x188] sm:$0xf]
  %v216 = vld [vmem:[%s1 + $0x18c] sm:$0xf]
  %v217 = vld [vmem:[%s1 + $0x190] sm:$0xf]
  %v218 = vld [vmem:[%s1 + $0x194] sm:$0xf]
  %v219 = vld [vmem:[%s1 + $0x198] sm:$0xf]
  %v220 = vld [vmem:[%s1 + $0x19c] sm:$0xf]
  %v221 = vld [vmem:[%s1 + $0x1a0] sm:$0xf]
  %v222 = vld [vmem:[%s1 + $0x1a4] sm:$0xf]
  %v223 = vld [vmem:[%s1 + $0x1a8] sm:$0xf]
  %v224 = vld [vmem:[%s1 + $0x1ac] sm:$0xf]
  %v225 = vld [vmem:[%s1 + $0x1b0] sm:$0xf]
  %v226 = vld [vmem:[%s1 + $0x1b4] sm:$0xf]
  %v227 = vld [vmem:[%s1 + $0x1b8] sm:$0xf]
  %v228 = vld [vmem:[%s1 + $0x1bc] sm:$0xf]
  %v229 = vld [vmem:[%s1 + $0x1c0] sm:$0xf]
  %v230 = vld [vmem:[%s1 + $0x1c4] sm:$0xf]
  %v231 = vld [vmem:[%s1 + $0x1c8] sm:$0xf]
  %v232 = vld [vmem:[%s1 + $0x1cc] sm:$0xf]
  %v233 = vld [vmem:[%s1 + $0x1d0] sm:$0xf]
  %v234 = vld [vmem:[%s1 + $0x1d4] sm:$0xf]
  %v235 = vld [vmem:[%s1 + $0x1d8] sm:$0xf]
  %v236 = vld [vmem:[%s1 + $0x1dc] sm:$0xf]
  %v237 = vld [vmem:[%s1 + $0x1e0] sm:$0xf]
  %v238 = vld [vmem:[%s1 + $0x1e4] sm:$0xf]
  %v239 = vld [vmem:[%s1 + $0x1e8] sm:$0xf]
  %v240 = vld [vmem:[%s1 + $0x1ec] sm:$0xf]
  %v241 = vld [vmem:[%s1 + $0x1f0] sm:$0xf]
  %v242 = vld [vmem:[%s1 + $0x1f4] sm:$0xf]
  %v243 = vld [vmem:[%s1 + $0x1f8] sm:$0xf]
  %v244 = vld [vmem:[%s1 + $0x1fc] sm:$0xf]
  %v245 = vld [vmem:[%s1 + $0x200] sm:$0xf]
  %v246 = vld [vmem:[%s1 + $0x204] sm:$0xf]
  %v247 = vld [vmem:[%s1 + $0x208] sm:$0xf]
  %v248 = vld [vmem:[%s1 + $0x20c] sm:$0xf]
  %v249 = vld [vmem:[%s1 + $0x210] sm:$0xf]
  %v250 = vld [vmem:[%s1 + $0x214] sm:$0xf]
  %v251 = vld [vmem:[%s1 + $0x218] sm:$0xf]
  %v252 = vld [vmem:[%s1 + $0x21c] sm:$0xf]
  %v253 = vld [vmem:[%s1 + $0x220] sm:$0xf]
  %v254 = vld [vmem:[%s1 + $0x224] sm:$0xf]
  %v255 = vld [vmem:[%s1 + $0x228] sm:$0xf]
  %v256 = vld [vmem:[%s1 + $0x22c] sm:$0xf]
  %v257 = vld [vmem:[%s1 + $0x230] sm:$0xf]
  %v258 = vld [vmem:[%s1 + $0x234] sm:$0xf]
  %v259 = vld [vmem:[%s1 + $0x238] sm:$0xf]
  %v260 = vld [vmem:[%s1 + $0x23c] sm:$0xf]
  %v261 = vld [vmem:[%s1 + $0x240] sm:$0xf]
  %v262 = vld [vmem:[%s1 + $0x244] sm:$0xf]
  %v263 = vld [vmem:[%s1 + $0x248] sm:$0xf]
  %v264 = vld [vmem:[%s1 + $0x24c] sm:$0xf]
  %v265 = vld [vmem:[%s1 + $0x250] sm:$0xf]
  %v266 = vld [vmem:[%s1 + $0x254] sm:$0xf]
  %v267 = vld [vmem:[%s1 + $0x258] sm:$0xf]
  %v268 = vld [vmem:[%s1 + $0x25c] sm:$0xf]
  %v269 = vld [vmem:[%s1 + $0x260] sm:$0xf]
  %v270 = vld [vmem:[%s1 + $0x264] sm:$0xf]
  %v271 = vld [vmem:[%s1 + $0x268] sm:$0xf]
  %v272 = vld [vmem:[%s1 + $0x26c] sm:$0xf]
  %v273 = vld [vmem:[%s1 + $0x270] sm:$0xf]
  %v274 = vld [vmem:[%s1 + $0x274] sm:$0xf]
  %v275 = vld [vmem:[%s1 + $0x278] sm:$0xf]
  %v276 = vld [vmem:[%s1 + $0x27c] sm:$0xf]
  %v277 = vld [vmem:[%s1 + $0x280] sm:$0xf]
  %v278 = vld [vmem:[%s1 + $0x284] sm:$0xf]
  %v279 = vld [vmem:[%s1 + $0x288] sm:$0xf]
  %v280 = vld [vmem:[%s1 + $0x28c] sm:$0xf]
  %v281 = vld [vmem:[%s1 + $0x290] sm:$0xf]
  %v282 = vld [vmem:[%s1 + $0x294] sm:$0xf]
  %v283 = vld [vmem:[%s1 + $0x298] sm:$0xf]
  %v284 = vld [vmem:[%s1 + $0x29c] sm:$0xf]
  %v285 = vld [vmem:[%s1 + $0x2a0] sm:$0xf]
  %v286 = vld [vmem:[%s1 + $0x2a4] sm:$0xf]
  %v287 = vld [vmem:[%s1 + $0x2a8] sm:$0xf]
  %v288 = vld [vmem:[%s1 + $0x2ac] sm:$0xf]
  %v289 = vld [vmem:[%s1 + $0x2b0] sm:$0x1]
  %v290 = vld [vmem:[%s2] sm:$0x1]
  %v292 = vlaneseq
  %v293 = vshrl.u32 %v292, 7
  %v294 = vsub.s32 0, %v293
  %v295 = vrot.slane %v290, %v294
  %v393 = vunpack.c.l.b16 %v21
  %v394 = vunpack.c.h.b16 %v21
  %v395 = vunpack.c.l.b16 %v22
  %v396 = vunpack.c.h.b16 %v22
  %v397 = vunpack.c.l.b16 %v23
  %v398 = vunpack.c.h.b16 %v23
  %v399 = vunpack.c.l.b16 %v24
  %v400 = vunpack.c.h.b16 %v24
  %v401 = vunpack.c.l.b16 %v25
  %v402 = vunpack.c.h.b16 %v25
  %v403 = vunpack.c.l.b16 %v26
  %v404 = vunpack.c.l.b16 %v27
  %v405 = vunpack.c.h.b16 %v27
  %v406 = vunpack.c.l.b16 %v28
  %v407 = vunpack.c.h.b16 %v28
  %v408 = vunpack.c.l.b16 %v29
  %v409 = vunpack.c.h.b16 %v29
  %v410 = vunpack.c.l.b16 %v30
  %v411 = vunpack.c.h.b16 %v30
  %v412 = vunpack.c.l.b16 %v31
  %v413 = vunpack.c.h.b16 %v31
  %v414 = vunpack.c.l.b16 %v32
  %v415 = vunpack.c.l.b16 %v33
  %v416 = vunpack.c.h.b16 %v33
  %v417 = vunpack.c.l.b16 %v34
  %v418 = vunpack.c.h.b16 %v34
  %v419 = vunpack.c.l.b16 %v35
  %v420 = vunpack.c.h.b16 %v35
  %v421 = vunpack.c.l.b16 %v36
  %v422 = vunpack.c.h.b16 %v36
  %v423 = vunpack.c.l.b16 %v37
  %v424 = vunpack.c.h.b16 %v37
  %v425 = vunpack.c.l.b16 %v38
  %v426 = vunpack.c.l.b16 %v39
  %v427 = vunpack.c.h.b16 %v39
  %v428 = vunpack.c.l.b16 %v40
  %v429 = vunpack.c.h.b16 %v40
  %v430 = vunpack.c.l.b16 %v41
  %v431 = vunpack.c.h.b16 %v41
  %v432 = vunpack.c.l.b16 %v42
  %v433 = vunpack.c.h.b16 %v42
  %v434 = vunpack.c.l.b16 %v43
  %v435 = vunpack.c.h.b16 %v43
  %v436 = vunpack.c.l.b16 %v44
  %v437 = vunpack.c.l.b16 %v45
  %v438 = vunpack.c.h.b16 %v45
  %v439 = vunpack.c.l.b16 %v46
  %v440 = vunpack.c.h.b16 %v46
  %v441 = vunpack.c.l.b16 %v47
  %v442 = vunpack.c.h.b16 %v47
  %v443 = vunpack.c.l.b16 %v48
  %v444 = vunpack.c.h.b16 %v48
  %v445 = vunpack.c.l.b16 %v49
  %v446 = vunpack.c.h.b16 %v49
  %v447 = vunpack.c.l.b16 %v50
  %v448 = vunpack.c.l.b16 %v51
  %v449 = vunpack.c.h.b16 %v51
  %v450 = vunpack.c.l.b16 %v52
  %v451 = vunpack.c.h.b16 %v52
  %v452 = vunpack.c.l.b16 %v53
  %v453 = vunpack.c.h.b16 %v53
  %v454 = vunpack.c.l.b16 %v54
  %v455 = vunpack.c.h.b16 %v54
  %v456 = vunpack.c.l.b16 %v55
  %v457 = vunpack.c.h.b16 %v55
  %v458 = vunpack.c.l.b16 %v56
  %v459 = vunpack.c.l.b16 %v57
  %v460 = vunpack.c.h.b16 %v57
  %v461 = vunpack.c.l.b16 %v58
  %v462 = vunpack.c.h.b16 %v58
  %v463 = vunpack.c.l.b16 %v59
  %v464 = vunpack.c.h.b16 %v59
  %v465 = vunpack.c.l.b16 %v60
  %v466 = vunpack.c.h.b16 %v60
  %v467 = vunpack.c.l.b16 %v61
  %v468 = vunpack.c.h.b16 %v61
  %v469 = vunpack.c.l.b16 %v62
  %v470 = vunpack.c.l.b16 %v63
  %v471 = vunpack.c.h.b16 %v63
  %v472 = vunpack.c.l.b16 %v64
  %v473 = vunpack.c.h.b16 %v64
  %v474 = vunpack.c.l.b16 %v65
  %v475 = vunpack.c.h.b16 %v65
  %v476 = vunpack.c.l.b16 %v66
  %v477 = vunpack.c.h.b16 %v66
  %v478 = vunpack.c.l.b16 %v67
  %v479 = vunpack.c.h.b16 %v67
  %v480 = vunpack.c.l.b16 %v68
  %v481 = vunpack.c.l.b16 %v69
  %v482 = vunpack.c.h.b16 %v69
  %v483 = vunpack.c.l.b16 %v70
  %v484 = vunpack.c.h.b16 %v70
  %v485 = vunpack.c.l.b16 %v71
  %v486 = vunpack.c.h.b16 %v71
  %v487 = vunpack.c.l.b16 %v72
  %v488 = vunpack.c.h.b16 %v72
  %v489 = vunpack.c.l.b16 %v73
  %v490 = vunpack.c.h.b16 %v73
  %v491 = vunpack.c.l.b16 %v74
  %v492 = vunpack.c.l.b16 %v75
  %v493 = vunpack.c.h.b16 %v75
  %v494 = vunpack.c.l.b16 %v76
  %v495 = vunpack.c.h.b16 %v76
  %v496 = vunpack.c.l.b16 %v77
  %v497 = vunpack.c.h.b16 %v77
  %v498 = vunpack.c.l.b16 %v78
  %v499 = vunpack.c.h.b16 %v78
  %v500 = vunpack.c.l.b16 %v79
  %v501 = vunpack.c.h.b16 %v79
  %v502 = vunpack.c.l.b16 %v80
  %v503 = vunpack.c.l.b16 %v81
  %v504 = vunpack.c.h.b16 %v81
  %v505 = vunpack.c.l.b16 %v82
  %v506 = vunpack.c.h.b16 %v82
  %v507 = vunpack.c.l.b16 %v83
  %v508 = vunpack.c.h.b16 %v83
  %v509 = vunpack.c.l.b16 %v84
  %v510 = vunpack.c.h.b16 %v84
  %v511 = vunpack.c.l.b16 %v85
  %v512 = vunpack.c.h.b16 %v85
  %v513 = vunpack.c.l.b16 %v86
  %v514 = vunpack.c.l.b16 %v87
  %v515 = vunpack.c.h.b16 %v87
  %v516 = vunpack.c.l.b16 %v88
  %v517 = vunpack.c.h.b16 %v88
  %v518 = vunpack.c.l.b16 %v89
  %v519 = vunpack.c.h.b16 %v89
  %v520 = vunpack.c.l.b16 %v90
  %v521 = vunpack.c.h.b16 %v90
  %v522 = vunpack.c.l.b16 %v91
  %v523 = vunpack.c.h.b16 %v91
  %v524 = vunpack.c.l.b16 %v92
  %v525 = vunpack.c.l.b16 %v93
  %v526 = vunpack.c.h.b16 %v93
  %v527 = vunpack.c.l.b16 %v94
  %v528 = vunpack.c.h.b16 %v94
  %v529 = vunpack.c.l.b16 %v95
  %v530 = vunpack.c.h.b16 %v95
  %v531 = vunpack.c.l.b16 %v96
  %v532 = vunpack.c.h.b16 %v96
  %v533 = vunpack.c.l.b16 %v97
  %v534 = vunpack.c.h.b16 %v97
  %v535 = vunpack.c.l.b16 %v98
  %v536 = vunpack.c.l.b16 %v99
  %v537 = vunpack.c.h.b16 %v99
  %v538 = vunpack.c.l.b16 %v100
  %v539 = vunpack.c.h.b16 %v100
  %v540 = vunpack.c.l.b16 %v101
  %v541 = vunpack.c.h.b16 %v101
  %v542 = vunpack.c.l.b16 %v102
  %v543 = vunpack.c.h.b16 %v102
  %v544 = vunpack.c.l.b16 %v103
  %v545 = vunpack.c.h.b16 %v103
  %v546 = vunpack.c.l.b16 %v104
  %v547 = vunpack.c.l.b16 %v105
  %v548 = vunpack.c.h.b16 %v105
  %v549 = vunpack.c.l.b16 %v106
  %v550 = vunpack.c.h.b16 %v106
  %v551 = vunpack.c.l.b16 %v107
  %v552 = vunpack.c.h.b16 %v107
  %v553 = vunpack.c.l.b16 %v108
  %v554 = vunpack.c.h.b16 %v108
  %v555 = vunpack.c.l.b16 %v109
  %v556 = vunpack.c.h.b16 %v109
  %v557 = vunpack.c.l.b16 %v110
  %v558 = vunpack.c.l.b16 %v111
  %v559 = vunpack.c.h.b16 %v111
  %v560 = vunpack.c.l.b16 %v112
  %v561 = vunpack.c.h.b16 %v112
  %v562 = vunpack.c.l.b16 %v113
  %v563 = vunpack.c.h.b16 %v113
  %v564 = vunpack.c.l.b16 %v114
  %v565 = vunpack.c.h.b16 %v114
  %v566 = vunpack.c.l.b16 %v115
  %v567 = vunpack.c.h.b16 %v115
  %v568 = vunpack.c.l.b16 %v116
  %v569 = vpack.c.b16 %v404, %v393
  %v570 = vpack.c.b16 %v405, %v394
  %v571 = vpack.c.b16 %v406, %v395
  %v572 = vpack.c.b16 %v407, %v396
  %v573 = vpack.c.b16 %v408, %v397
  %v574 = vpack.c.b16 %v409, %v398
  %v575 = vpack.c.b16 %v410, %v399
  %v576 = vpack.c.b16 %v411, %v400
  %v577 = vpack.c.b16 %v412, %v401
  %v578 = vpack.c.b16 %v413, %v402
  %v579 = vpack.c.b16 %v414, %v403
  %v580 = vpack.c.b16 %v426, %v415
  %v581 = vpack.c.b16 %v427, %v416
  %v582 = vpack.c.b16 %v428, %v417
  %v583 = vpack.c.b16 %v429, %v418
  %v584 = vpack.c.b16 %v430, %v419
  %v585 = vpack.c.b16 %v431, %v420
  %v586 = vpack.c.b16 %v432, %v421
  %v587 = vpack.c.b16 %v433, %v422
  %v588 = vpack.c.b16 %v434, %v423
  %v589 = vpack.c.b16 %v435, %v424
  %v590 = vpack.c.b16 %v436, %v425
  %v591 = vpack.c.b16 %v448, %v437
  %v592 = vpack.c.b16 %v449, %v438
  %v593 = vpack.c.b16 %v450, %v439
  %v594 = vpack.c.b16 %v451, %v440
  %v595 = vpack.c.b16 %v452, %v441
  %v596 = vpack.c.b16 %v453, %v442
  %v597 = vpack.c.b16 %v454, %v443
  %v598 = vpack.c.b16 %v455, %v444
  %v599 = vpack.c.b16 %v456, %v445
  %v600 = vpack.c.b16 %v457, %v446
  %v601 = vpack.c.b16 %v458, %v447
  %v602 = vpack.c.b16 %v470, %v459
  %v603 = vpack.c.b16 %v471, %v460
  %v604 = vpack.c.b16 %v472, %v461
  %v605 = vpack.c.b16 %v473, %v462
  %v606 = vpack.c.b16 %v474, %v463
  %v607 = vpack.c.b16 %v475, %v464
  %v608 = vpack.c.b16 %v476, %v465
  %v609 = vpack.c.b16 %v477, %v466
  %v610 = vpack.c.b16 %v478, %v467
  %v611 = vpack.c.b16 %v479, %v468
  %v612 = vpack.c.b16 %v480, %v469
  %v613 = vpack.c.b16 %v492, %v481
  %v614 = vpack.c.b16 %v493, %v482
  %v615 = vpack.c.b16 %v494, %v483
  %v616 = vpack.c.b16 %v495, %v484
  %v617 = vpack.c.b16 %v496, %v485
  %v618 = vpack.c.b16 %v497, %v486
  %v619 = vpack.c.b16 %v498, %v487
  %v620 = vpack.c.b16 %v499, %v488
  %v621 = vpack.c.b16 %v500, %v489
  %v622 = vpack.c.b16 %v501, %v490
  %v623 = vpack.c.b16 %v502, %v491
  %v624 = vpack.c.b16 %v514, %v503
  %v625 = vpack.c.b16 %v515, %v504
  %v626 = vpack.c.b16 %v516, %v505
  %v627 = vpack.c.b16 %v517, %v506
  %v628 = vpack.c.b16 %v518, %v507
  %v629 = vpack.c.b16 %v519, %v508
  %v630 = vpack.c.b16 %v520, %v509
  %v631 = vpack.c.b16 %v521, %v510
  %v632 = vpack.c.b16 %v522, %v511
  %v633 = vpack.c.b16 %v523, %v512
  %v634 = vpack.c.b16 %v524, %v513
  %v635 = vpack.c.b16 %v536, %v525
  %v636 = vpack.c.b16 %v537, %v526
  %v637 = vpack.c.b16 %v538, %v527
  %v638 = vpack.c.b16 %v539, %v528
  %v639 = vpack.c.b16 %v540, %v529
  %v640 = vpack.c.b16 %v541, %v530
  %v641 = vpack.c.b16 %v542, %v531
  %v642 = vpack.c.b16 %v543, %v532
  %v643 = vpack.c.b16 %v544, %v533
  %v644 = vpack.c.b16 %v545, %v534
  %v645 = vpack.c.b16 %v546, %v535
  %v646 = vpack.c.b16 %v558, %v547
  %v647 = vpack.c.b16 %v559, %v548
  %v648 = vpack.c.b16 %v560, %v549
  %v649 = vpack.c.b16 %v561, %v550
  %v650 = vpack.c.b16 %v562, %v551
  %v651 = vpack.c.b16 %v563, %v552
  %v652 = vpack.c.b16 %v564, %v553
  %v653 = vpack.c.b16 %v565, %v554
  %v654 = vpack.c.b16 %v566, %v555
  %v655 = vpack.c.b16 %v567, %v556
  %v656 = vpack.c.b16 %v568, %v557
  %v910 = vunpack.c.l.b16 %v117
  %v911 = vunpack.c.l.b16 %v118
  %v912 = vunpack.c.l.b16 %v119
  %v913 = vunpack.c.l.b16 %v120
  %v914 = vunpack.c.l.b16 %v121
  %v915 = vunpack.c.l.b16 %v122
  %v916 = vunpack.c.l.b16 %v123
  %v917 = vunpack.c.l.b16 %v124
  %v918 = vunpack.c.l.b16 %v125
  %v919 = vunpack.c.l.b16 %v126
  %v920 = vunpack.c.l.b16 %v127
  %v921 = vunpack.c.l.b16 %v128
  %v922 = vunpack.c.l.b16 %v129
  %v923 = vunpack.c.l.b16 %v130
  %v924 = vunpack.c.l.b16 %v131
  %v925 = vunpack.c.l.b16 %v132
  %v926 = vunpack.c.l.b16 %v133
  %v927 = vunpack.c.l.b16 %v134
  %v928 = vunpack.c.l.b16 %v135
  %v929 = vunpack.c.l.b16 %v136
  %v930 = vunpack.c.l.b16 %v137
  %v931 = vunpack.c.l.b16 %v138
  %v932 = vunpack.c.l.b16 %v139
  %v933 = vunpack.c.l.b16 %v140
  %v934 = vunpack.c.l.b16 %v141
  %v935 = vunpack.c.l.b16 %v142
  %v936 = vunpack.c.l.b16 %v143
  %v937 = vunpack.c.l.b16 %v144
  %v938 = vunpack.c.l.b16 %v145
  %v939 = vunpack.c.l.b16 %v146
  %v940 = vunpack.c.l.b16 %v147
  %v941 = vunpack.c.l.b16 %v148
  %v942 = vunpack.c.l.b16 %v149
  %v943 = vunpack.c.l.b16 %v150
  %v944 = vunpack.c.l.b16 %v151
  %v945 = vunpack.c.l.b16 %v152
  %v946 = vunpack.c.l.b16 %v153
  %v947 = vunpack.c.l.b16 %v154
  %v948 = vunpack.c.l.b16 %v155
  %v949 = vunpack.c.l.b16 %v156
  %v950 = vunpack.c.l.b16 %v157
  %v951 = vunpack.c.l.b16 %v158
  %v952 = vunpack.c.l.b16 %v159
  %v953 = vunpack.c.l.b16 %v160
  %v954 = vunpack.c.l.b16 %v161
  %v955 = vunpack.c.l.b16 %v162
  %v956 = vunpack.c.l.b16 %v163
  %v957 = vunpack.c.l.b16 %v164
  %v958 = vunpack.c.l.b16 %v165
  %v959 = vunpack.c.l.b16 %v166
  %v960 = vunpack.c.l.b16 %v167
  %v961 = vunpack.c.l.b16 %v168
  %v962 = vunpack.c.l.b16 %v169
  %v963 = vunpack.c.l.b16 %v170
  %v964 = vunpack.c.l.b16 %v171
  %v965 = vunpack.c.l.b16 %v172
  %v966 = vunpack.c.l.b16 %v173
  %v967 = vunpack.c.l.b16 %v174
  %v968 = vunpack.c.l.b16 %v175
  %v969 = vunpack.c.l.b16 %v176
  %v970 = vunpack.c.l.b16 %v177
  %v971 = vunpack.c.l.b16 %v178
  %v972 = vunpack.c.l.b16 %v179
  %v973 = vunpack.c.l.b16 %v180
  %v974 = vunpack.c.l.b16 %v181
  %v975 = vunpack.c.l.b16 %v182
  %v976 = vunpack.c.l.b16 %v183
  %v977 = vunpack.c.l.b16 %v184
  %v978 = vunpack.c.l.b16 %v185
  %v979 = vunpack.c.l.b16 %v186
  %v980 = vunpack.c.l.b16 %v187
  %v981 = vunpack.c.l.b16 %v188
  %v982 = vunpack.c.l.b16 %v189
  %v983 = vunpack.c.l.b16 %v190
  %v984 = vunpack.c.l.b16 %v191
  %v985 = vunpack.c.l.b16 %v192
  %v986 = vunpack.c.l.b16 %v193
  %v987 = vunpack.c.l.b16 %v194
  %v988 = vunpack.c.l.b16 %v195
  %v989 = vunpack.c.l.b16 %v196
  %v990 = vunpack.c.l.b16 %v197
  %v991 = vunpack.c.l.b16 %v198
  %v992 = vunpack.c.l.b16 %v199
  %v993 = vunpack.c.l.b16 %v200
  %v994 = vunpack.c.l.b16 %v201
  %v995 = vunpack.c.l.b16 %v202
  %v996 = vunpack.c.l.b16 %v203
  %v997 = vunpack.c.l.b16 %v204
  %v998 = vunpack.c.l.b16 %v205
  %v999 = vunpack.c.l.b16 %v206
  %v1000 = vunpack.c.l.b16 %v207
  %v1001 = vunpack.c.l.b16 %v208
  %v1002 = vunpack.c.l.b16 %v209
  %v1003 = vunpack.c.l.b16 %v210
  %v1004 = vunpack.c.l.b16 %v211
  %v1005 = vunpack.c.l.b16 %v212
  %v1006 = vunpack.c.l.b16 %v213
  %v1007 = vunpack.c.l.b16 %v214
  %v1008 = vunpack.c.l.b16 %v215
  %v1009 = vunpack.c.l.b16 %v216
  %v1010 = vunpack.c.l.b16 %v217
  %v1011 = vunpack.c.l.b16 %v218
  %v1012 = vunpack.c.l.b16 %v219
  %v1013 = vunpack.c.l.b16 %v220
  %v1014 = vunpack.c.l.b16 %v221
  %v1015 = vunpack.c.l.b16 %v222
  %v1016 = vunpack.c.l.b16 %v223
  %v1017 = vunpack.c.l.b16 %v224
  %v1018 = vunpack.c.l.b16 %v225
  %v1019 = vunpack.c.l.b16 %v226
  %v1020 = vunpack.c.l.b16 %v227
  %v1021 = vunpack.c.l.b16 %v228
  %v1022 = vunpack.c.l.b16 %v229
  %v1023 = vunpack.c.l.b16 %v230
  %v1024 = vunpack.c.l.b16 %v231
  %v1025 = vunpack.c.l.b16 %v232
  %v1026 = vunpack.c.l.b16 %v233
  %v1027 = vunpack.c.l.b16 %v234
  %v1028 = vunpack.c.l.b16 %v235
  %v1029 = vunpack.c.l.b16 %v236
  %v1030 = vunpack.c.l.b16 %v237
  %v1031 = vunpack.c.l.b16 %v238
  %v1032 = vunpack.c.l.b16 %v239
  %v1033 = vunpack.c.l.b16 %v240
  %v1034 = vunpack.c.l.b16 %v241
  %v1035 = vunpack.c.l.b16 %v242
  %v1036 = vunpack.c.l.b16 %v243
  %v1037 = vunpack.c.l.b16 %v244
  %v1038 = vunpack.c.l.b16 %v245
  %v1039 = vunpack.c.l.b16 %v246
  %v1040 = vunpack.c.l.b16 %v247
  %v1041 = vunpack.c.l.b16 %v248
  %v1042 = vunpack.c.l.b16 %v249
  %v1043 = vunpack.c.l.b16 %v250
  %v1044 = vunpack.c.l.b16 %v251
  %v1045 = vunpack.c.l.b16 %v252
  %v1046 = vunpack.c.l.b16 %v253
  %v1047 = vunpack.c.l.b16 %v254
  %v1048 = vunpack.c.l.b16 %v255
  %v1049 = vunpack.c.l.b16 %v256
  %v1050 = vunpack.c.l.b16 %v257
  %v1051 = vunpack.c.l.b16 %v258
  %v1052 = vunpack.c.l.b16 %v259
  %v1053 = vunpack.c.l.b16 %v260
  %v1054 = vunpack.c.l.b16 %v261
  %v1055 = vunpack.c.l.b16 %v262
  %v1056 = vunpack.c.l.b16 %v263
  %v1057 = vunpack.c.l.b16 %v264
  %v1058 = vunpack.c.l.b16 %v265
  %v1059 = vunpack.c.l.b16 %v266
  %v1060 = vunpack.c.l.b16 %v267
  %v1061 = vunpack.c.l.b16 %v268
  %v1062 = vunpack.c.l.b16 %v269
  %v1063 = vunpack.c.l.b16 %v270
  %v1064 = vunpack.c.l.b16 %v271
  %v1065 = vunpack.c.l.b16 %v272
  %v1066 = vunpack.c.l.b16 %v273
  %v1067 = vunpack.c.l.b16 %v274
  %v1068 = vunpack.c.l.b16 %v275
  %v1069 = vunpack.c.l.b16 %v276
  %v1070 = vunpack.c.l.b16 %v277
  %v1071 = vunpack.c.l.b16 %v278
  %v1072 = vunpack.c.l.b16 %v279
  %v1073 = vunpack.c.l.b16 %v280
  %v1074 = vunpack.c.l.b16 %v281
  %v1075 = vunpack.c.l.b16 %v282
  %v1076 = vunpack.c.l.b16 %v283
  %v1077 = vunpack.c.l.b16 %v284
  %v1078 = vunpack.c.l.b16 %v285
  %v1079 = vunpack.c.l.b16 %v286
  %v1080 = vunpack.c.l.b16 %v287
  %v1081 = vunpack.c.l.b16 %v288
  %v1082 = vunpack.c.l.b16 %v289
  %v1083 = vpack.c.b16 %v911, %v910
  %v1084 = vpack.c.b16 %v913, %v912
  %v1085 = vpack.c.b16 %v915, %v914
  %v1086 = vpack.c.b16 %v917, %v916
  %v1087 = vpack.c.b16 %v919, %v918
  %v1088 = vpack.c.b16 %v921, %v920
  %v1089 = vpack.c.b16 %v923, %v922
  %v1090 = vpack.c.b16 %v925, %v924
  %v1091 = vpack.c.b16 %v927, %v926
  %v1092 = vpack.c.b16 %v929, %v928
  %v1093 = vpack.c.b16 %v931, %v930
  %v1094 = vpack.c.b16 %v933, %v932
  %v1095 = vpack.c.b16 %v935, %v934
  %v1096 = vpack.c.b16 %v937, %v936
  %v1097 = vpack.c.b16 %v939, %v938
  %v1098 = vpack.c.b16 %v941, %v940
  %v1099 = vpack.c.b16 %v943, %v942
  %v1100 = vpack.c.b16 %v945, %v944
  %v1101 = vpack.c.b16 %v947, %v946
  %v1102 = vpack.c.b16 %v949, %v948
  %v1103 = vpack.c.b16 %v951, %v950
  %v1104 = vpack.c.b16 %v953, %v952
  %v1105 = vpack.c.b16 %v955, %v954
  %v1106 = vpack.c.b16 %v957, %v956
  %v1107 = vpack.c.b16 %v959, %v958
  %v1108 = vpack.c.b16 %v961, %v960
  %v1109 = vpack.c.b16 %v963, %v962
  %v1110 = vpack.c.b16 %v965, %v964
  %v1111 = vpack.c.b16 %v967, %v966
  %v1112 = vpack.c.b16 %v969, %v968
  %v1113 = vpack.c.b16 %v971, %v970
  %v1114 = vpack.c.b16 %v973, %v972
  %v1115 = vpack.c.b16 %v975, %v974
  %v1116 = vpack.c.b16 %v977, %v976
  %v1117 = vpack.c.b16 %v979, %v978
  %v1118 = vpack.c.b16 %v981, %v980
  %v1119 = vpack.c.b16 %v983, %v982
  %v1120 = vpack.c.b16 %v985, %v984
  %v1121 = vpack.c.b16 %v987, %v986
  %v1122 = vpack.c.b16 %v989, %v988
  %v1123 = vpack.c.b16 %v991, %v990
  %v1124 = vpack.c.b16 %v993, %v992
  %v1125 = vpack.c.b16 %v995, %v994
  %v1126 = vpack.c.b16 %v997, %v996
  %v1127 = vpack.c.b16 %v999, %v998
  %v1128 = vpack.c.b16 %v1001, %v1000
  %v1129 = vpack.c.b16 %v1003, %v1002
  %v1130 = vpack.c.b16 %v1005, %v1004
  %v1131 = vpack.c.b16 %v1007, %v1006
  %v1132 = vpack.c.b16 %v1009, %v1008
  %v1133 = vpack.c.b16 %v1011, %v1010
  %v1134 = vpack.c.b16 %v1013, %v1012
  %v1135 = vpack.c.b16 %v1015, %v1014
  %v1136 = vpack.c.b16 %v1017, %v1016
  %v1137 = vpack.c.b16 %v1019, %v1018
  %v1138 = vpack.c.b16 %v1021, %v1020
  %v1139 = vpack.c.b16 %v1023, %v1022
  %v1140 = vpack.c.b16 %v1025, %v1024
  %v1141 = vpack.c.b16 %v1027, %v1026
  %v1142 = vpack.c.b16 %v1029, %v1028
  %v1143 = vpack.c.b16 %v1031, %v1030
  %v1144 = vpack.c.b16 %v1033, %v1032
  %v1145 = vpack.c.b16 %v1035, %v1034
  %v1146 = vpack.c.b16 %v1037, %v1036
  %v1147 = vpack.c.b16 %v1039, %v1038
  %v1148 = vpack.c.b16 %v1041, %v1040
  %v1149 = vpack.c.b16 %v1043, %v1042
  %v1150 = vpack.c.b16 %v1045, %v1044
  %v1151 = vpack.c.b16 %v1047, %v1046
  %v1152 = vpack.c.b16 %v1049, %v1048
  %v1153 = vpack.c.b16 %v1051, %v1050
  %v1154 = vpack.c.b16 %v1053, %v1052
  %v1155 = vpack.c.b16 %v1055, %v1054
  %v1156 = vpack.c.b16 %v1057, %v1056
  %v1157 = vpack.c.b16 %v1059, %v1058
  %v1158 = vpack.c.b16 %v1061, %v1060
  %v1159 = vpack.c.b16 %v1063, %v1062
  %v1160 = vpack.c.b16 %v1065, %v1064
  %v1161 = vpack.c.b16 %v1067, %v1066
  %v1162 = vpack.c.b16 %v1069, %v1068
  %v1163 = vpack.c.b16 %v1071, %v1070
  %v1164 = vpack.c.b16 %v1073, %v1072
  %v1165 = vpack.c.b16 %v1075, %v1074
  %v1166 = vpack.c.b16 %v1077, %v1076
  %v1167 = vpack.c.b16 %v1079, %v1078
  %v1168 = vpack.c.b16 %v1081, %v1080
  %v1169 = vpack.c.b16 %v1082, %v1082
  %vm1256 = vcmask 793600
  %v1258 = vsel %vm1256, %v579, 0
  %v1261 = vsel %vm1256, %v590, 0
  %v1264 = vsel %vm1256, %v601, 0
  %v1267 = vsel %vm1256, %v612, 0
  %v1270 = vsel %vm1256, %v623, 0
  %v1273 = vsel %vm1256, %v634, 0
  %v1276 = vsel %vm1256, %v645, 0
  %v1279 = vsel %vm1256, %v656, 0
  %vm1281 = vcmask 1040384
  %v1282 = vsel 0, 4294967295, 65535
  %v1283 = vsel %vm1281, %v1282, 0
  %v1285 = vand.u32 %v1169, %v1283
  %1287 = vmatprep.subr.bf16.mxu0 0
  %1288 = vmatpush1.bf16.msra.mxu0 %v1090
  %1289 = vmatprep.subr.bf16.mxu0 0
  %1290 = vmatpush1.bf16.msra.mxu0 %v1089
  %1291 = vmatprep.subr.bf16.mxu0 0
  %1292 = vmatpush1.bf16.msra.mxu0 %v1088
  %1293 = vmatprep.subr.bf16.mxu0 0
  %1294 = vmatpush1.bf16.msra.mxu0 %v1087
  %1295 = vmatprep.subr.bf16.mxu0 0
  %1296 = vmatpush1.bf16.msra.mxu0 %v1086
  %1297 = vmatprep.subr.bf16.mxu0 0
  %1298 = vmatpush1.bf16.msra.mxu0 %v1085
  %1299 = vmatprep.subr.bf16.mxu0 0
  %1300 = vmatpush1.bf16.msra.mxu0 %v1084
  %1301 = vmatprep.subr.bf16.mxu0 0
  %1302 = vmatpush1.bf16.msra.mxu0 %v1083
  %1303 = vmatprep.subr.bf16.mxu0 0
  %1304 = vmatpush2.bf16.msra.mxu0 %v1098
  %1305 = vmatprep.subr.bf16.mxu0 0
  %1306 = vmatpush2.bf16.msra.mxu0 %v1097
  %1307 = vmatprep.subr.bf16.mxu0 0
  %1308 = vmatpush2.bf16.msra.mxu0 %v1096
  %1309 = vmatprep.subr.bf16.mxu0 0
  %1310 = vmatpush2.bf16.msra.mxu0 %v1095
  %1311 = vmatprep.subr.bf16.mxu0 0
  %1312 = vmatpush2.bf16.msra.mxu0 %v1094
  %1313 = vmatprep.subr.bf16.mxu0 0
  %1314 = vmatpush2.bf16.msra.mxu0 %v1093
  %1315 = vmatprep.subr.bf16.mxu0 0
  %1316 = vmatpush2.bf16.msra.mxu0 %v1092
  %1317 = vmatprep.subr.bf16.mxu0 0
  %1318 = vmatpush2.bf16.msra.mxu0 %v1091
  %1319 = vmatprep.mubr.bf16.mxu0 %v570
  %1320 = vmatmul.mubr.bf16.gmra.mxu0 %v569
  %v1321 = vpop.f32.mrf.mxu0
  %v1322 = vadd.f32 %v295, %v1321
  %v1323 = vpop.f32.mrf.mxu0
  %v1324 = vpop.f32.mrf.mxu0
  %v1325 = vadd.f32 %v295, %v1324
  %v1326 = vpop.f32.mrf.mxu0
  %1327 = vmatprep.mubr.bf16.mxu0 %v581
  %1328 = vmatmul.mubr.bf16.gmra.mxu0 %v580
  %v1329 = vpop.f32.mrf.mxu0
  %v1330 = vadd.f32 %v295, %v1329
  %v1331 = vpop.f32.mrf.mxu0
  %v1332 = vpop.f32.mrf.mxu0
  %v1333 = vadd.f32 %v295, %v1332
  %v1334 = vpop.f32.mrf.mxu0
  %1335 = vmatprep.mubr.bf16.mxu0 %v592
  %1336 = vmatmul.mubr.bf16.gmra.mxu0 %v591
  %v1337 = vpop.f32.mrf.mxu0
  %v1338 = vadd.f32 %v295, %v1337
  %v1339 = vpop.f32.mrf.mxu0
  %v1340 = vpop.f32.mrf.mxu0
  %v1341 = vadd.f32 %v295, %v1340
  %v1342 = vpop.f32.mrf.mxu0
  %1343 = vmatprep.mubr.bf16.mxu0 %v603
  %1344 = vmatmul.mubr.bf16.gmra.mxu0 %v602
  %v1345 = vpop.f32.mrf.mxu0
  %v1346 = vadd.f32 %v295, %v1345
  %v1347 = vpop.f32.mrf.mxu0
  %v1348 = vpop.f32.mrf.mxu0
  %v1349 = vadd.f32 %v295, %v1348
  %v1350 = vpop.f32.mrf.mxu0
  %1351 = vmatprep.mubr.bf16.mxu0 %v614
  %1352 = vmatmul.mubr.bf16.gmra.mxu0 %v613
  %v1353 = vpop.f32.mrf.mxu0
  %v1354 = vadd.f32 %v295, %v1353
  %v1355 = vpop.f32.mrf.mxu0
  %v1356 = vpop.f32.mrf.mxu0
  %v1357 = vadd.f32 %v295, %v1356
  %v1358 = vpop.f32.mrf.mxu0
  %1359 = vmatprep.mubr.bf16.mxu0 %v625
  %1360 = vmatmul.mubr.bf16.gmra.mxu0 %v624
  %v1361 = vpop.f32.mrf.mxu0
  %v1362 = vadd.f32 %v295, %v1361
  %v1363 = vpop.f32.mrf.mxu0
  %v1364 = vpop.f32.mrf.mxu0
  %v1365 = vadd.f32 %v295, %v1364
  %v1366 = vpop.f32.mrf.mxu0
  %1367 = vmatprep.mubr.bf16.mxu0 %v636
  %1368 = vmatmul.mubr.bf16.gmra.mxu0 %v635
  %v1369 = vpop.f32.mrf.mxu0
  %v1370 = vadd.f32 %v295, %v1369
  %v1371 = vpop.f32.mrf.mxu0
  %v1372 = vpop.f32.mrf.mxu0
  %v1373 = vadd.f32 %v295, %v1372
  %v1374 = vpop.f32.mrf.mxu0
  %1375 = vmatprep.mubr.bf16.mxu0 %v647
  %1376 = vmatmul.mubr.bf16.gmra.mxu0 %v646
  %v1377 = vpop.f32.mrf.mxu0
  %v1378 = vadd.f32 %v295, %v1377
  %v1379 = vpop.f32.mrf.mxu0
  %v1380 = vpop.f32.mrf.mxu0
  %v1381 = vadd.f32 %v295, %v1380
  %v1382 = vpop.f32.mrf.mxu0
  %1383 = vdwg.mxu0
  %1384 = vmatprep.subr.bf16.mxu0 0
  %1385 = vmatpush1.bf16.msra.mxu0 %v1106
  %1386 = vmatprep.subr.bf16.mxu0 0
  %1387 = vmatpush1.bf16.msra.mxu0 %v1105
  %1388 = vmatprep.subr.bf16.mxu0 0
  %1389 = vmatpush1.bf16.msra.mxu0 %v1104
  %1390 = vmatprep.subr.bf16.mxu0 0
  %1391 = vmatpush1.bf16.msra.mxu0 %v1103
  %1392 = vmatprep.subr.bf16.mxu0 0
  %1393 = vmatpush1.bf16.msra.mxu0 %v1102
  %1394 = vmatprep.subr.bf16.mxu0 0
  %1395 = vmatpush1.bf16.msra.mxu0 %v1101
  %1396 = vmatprep.subr.bf16.mxu0 0
  %1397 = vmatpush1.bf16.msra.mxu0 %v1100
  %1398 = vmatprep.subr.bf16.mxu0 0
  %1399 = vmatpush1.bf16.msra.mxu0 %v1099
  %1400 = vmatprep.subr.bf16.mxu0 0
  %1401 = vmatpush2.bf16.msra.mxu0 %v1114
  %1402 = vmatprep.subr.bf16.mxu0 0
  %1403 = vmatpush2.bf16.msra.mxu0 %v1113
  %1404 = vmatprep.subr.bf16.mxu0 0
  %1405 = vmatpush2.bf16.msra.mxu0 %v1112
  %1406 = vmatprep.subr.bf16.mxu0 0
  %1407 = vmatpush2.bf16.msra.mxu0 %v1111
  %1408 = vmatprep.subr.bf16.mxu0 0
  %1409 = vmatpush2.bf16.msra.mxu0 %v1110
  %1410 = vmatprep.subr.bf16.mxu0 0
  %1411 = vmatpush2.bf16.msra.mxu0 %v1109
  %1412 = vmatprep.subr.bf16.mxu0 0
  %1413 = vmatpush2.bf16.msra.mxu0 %v1108
  %1414 = vmatprep.subr.bf16.mxu0 0
  %1415 = vmatpush2.bf16.msra.mxu0 %v1107
  %1416 = vmatprep.mubr.bf16.mxu0 %v572
  %1417 = vmatmul.mubr.bf16.gmra.mxu0 %v571
  %v1418 = vpop.f32.mrf.mxu0
  %v1419 = vadd.f32 %v1322, %v1418
  %v1420 = vpop.f32.mrf.mxu0
  %v1421 = vpop.f32.mrf.mxu0
  %v1422 = vadd.f32 %v1325, %v1421
  %v1423 = vpop.f32.mrf.mxu0
  %1424 = vmatprep.mubr.bf16.mxu0 %v583
  %1425 = vmatmul.mubr.bf16.gmra.mxu0 %v582
  %v1426 = vpop.f32.mrf.mxu0
  %v1427 = vadd.f32 %v1330, %v1426
  %v1428 = vpop.f32.mrf.mxu0
  %v1429 = vpop.f32.mrf.mxu0
  %v1430 = vadd.f32 %v1333, %v1429
  %v1431 = vpop.f32.mrf.mxu0
  %1432 = vmatprep.mubr.bf16.mxu0 %v594
  %1433 = vmatmul.mubr.bf16.gmra.mxu0 %v593
  %v1434 = vpop.f32.mrf.mxu0
  %v1435 = vadd.f32 %v1338, %v1434
  %v1436 = vpop.f32.mrf.mxu0
  %v1437 = vpop.f32.mrf.mxu0
  %v1438 = vadd.f32 %v1341, %v1437
  %v1439 = vpop.f32.mrf.mxu0
  %1440 = vmatprep.mubr.bf16.mxu0 %v605
  %1441 = vmatmul.mubr.bf16.gmra.mxu0 %v604
  %v1442 = vpop.f32.mrf.mxu0
  %v1443 = vadd.f32 %v1346, %v1442
  %v1444 = vpop.f32.mrf.mxu0
  %v1445 = vpop.f32.mrf.mxu0
  %v1446 = vadd.f32 %v1349, %v1445
  %v1447 = vpop.f32.mrf.mxu0
  %1448 = vmatprep.mubr.bf16.mxu0 %v616
  %1449 = vmatmul.mubr.bf16.gmra.mxu0 %v615
  %v1450 = vpop.f32.mrf.mxu0
  %v1451 = vadd.f32 %v1354, %v1450
  %v1452 = vpop.f32.mrf.mxu0
  %v1453 = vpop.f32.mrf.mxu0
  %v1454 = vadd.f32 %v1357, %v1453
  %v1455 = vpop.f32.mrf.mxu0
  %1456 = vmatprep.mubr.bf16.mxu0 %v627
  %1457 = vmatmul.mubr.bf16.gmra.mxu0 %v626
  %v1458 = vpop.f32.mrf.mxu0
  %v1459 = vadd.f32 %v1362, %v1458
  %v1460 = vpop.f32.mrf.mxu0
  %v1461 = vpop.f32.mrf.mxu0
  %v1462 = vadd.f32 %v1365, %v1461
  %v1463 = vpop.f32.mrf.mxu0
  %1464 = vmatprep.mubr.bf16.mxu0 %v638
  %1465 = vmatmul.mubr.bf16.gmra.mxu0 %v637
  %v1466 = vpop.f32.mrf.mxu0
  %v1467 = vadd.f32 %v1370, %v1466
  %v1468 = vpop.f32.mrf.mxu0
  %v1469 = vpop.f32.mrf.mxu0
  %v1470 = vadd.f32 %v1373, %v1469
  %v1471 = vpop.f32.mrf.mxu0
  %1472 = vmatprep.mubr.bf16.mxu0 %v649
  %1473 = vmatmul.mubr.bf16.gmra.mxu0 %v648
  %v1474 = vpop.f32.mrf.mxu0
  %v1475 = vadd.f32 %v1378, %v1474
  %v1476 = vpop.f32.mrf.mxu0
  %v1477 = vpop.f32.mrf.mxu0
  %v1478 = vadd.f32 %v1381, %v1477
  %v1479 = vpop.f32.mrf.mxu0
  %1480 = vdwg.mxu0
  %1481 = vmatprep.subr.bf16.mxu0 0
  %1482 = vmatpush1.bf16.msra.mxu0 %v1122
  %1483 = vmatprep.subr.bf16.mxu0 0
  %1484 = vmatpush1.bf16.msra.mxu0 %v1121
  %1485 = vmatprep.subr.bf16.mxu0 0
  %1486 = vmatpush1.bf16.msra.mxu0 %v1120
  %1487 = vmatprep.subr.bf16.mxu0 0
  %1488 = vmatpush1.bf16.msra.mxu0 %v1119
  %1489 = vmatprep.subr.bf16.mxu0 0
  %1490 = vmatpush1.bf16.msra.mxu0 %v1118
  %1491 = vmatprep.subr.bf16.mxu0 0
  %1492 = vmatpush1.bf16.msra.mxu0 %v1117
  %1493 = vmatprep.subr.bf16.mxu0 0
  %1494 = vmatpush1.bf16.msra.mxu0 %v1116
  %1495 = vmatprep.subr.bf16.mxu0 0
  %1496 = vmatpush1.bf16.msra.mxu0 %v1115
  %1497 = vmatprep.subr.bf16.mxu0 0
  %1498 = vmatpush2.bf16.msra.mxu0 %v1130
  %1499 = vmatprep.subr.bf16.mxu0 0
  %1500 = vmatpush2.bf16.msra.mxu0 %v1129
  %1501 = vmatprep.subr.bf16.mxu0 0
  %1502 = vmatpush2.bf16.msra.mxu0 %v1128
  %1503 = vmatprep.subr.bf16.mxu0 0
  %1504 = vmatpush2.bf16.msra.mxu0 %v1127
  %1505 = vmatprep.subr.bf16.mxu0 0
  %1506 = vmatpush2.bf16.msra.mxu0 %v1126
  %1507 = vmatprep.subr.bf16.mxu0 0
  %1508 = vmatpush2.bf16.msra.mxu0 %v1125
  %1509 = vmatprep.subr.bf16.mxu0 0
  %1510 = vmatpush2.bf16.msra.mxu0 %v1124
  %1511 = vmatprep.subr.bf16.mxu0 0
  %1512 = vmatpush2.bf16.msra.mxu0 %v1123
  %1513 = vmatprep.mubr.bf16.mxu0 %v574
  %1514 = vmatmul.mubr.bf16.gmra.mxu0 %v573
  %v1515 = vpop.f32.mrf.mxu0
  %v1516 = vadd.f32 %v1419, %v1515
  %v1517 = vpop.f32.mrf.mxu0
  %v1518 = vpop.f32.mrf.mxu0
  %v1519 = vadd.f32 %v1422, %v1518
  %v1520 = vpop.f32.mrf.mxu0
  %1521 = vmatprep.mubr.bf16.mxu0 %v585
  %1522 = vmatmul.mubr.bf16.gmra.mxu0 %v584
  %v1523 = vpop.f32.mrf.mxu0
  %v1524 = vadd.f32 %v1427, %v1523
  %v1525 = vpop.f32.mrf.mxu0
  %v1526 = vpop.f32.mrf.mxu0
  %v1527 = vadd.f32 %v1430, %v1526
  %v1528 = vpop.f32.mrf.mxu0
  %1529 = vmatprep.mubr.bf16.mxu0 %v596
  %1530 = vmatmul.mubr.bf16.gmra.mxu0 %v595
  %v1531 = vpop.f32.mrf.mxu0
  %v1532 = vadd.f32 %v1435, %v1531
  %v1533 = vpop.f32.mrf.mxu0
  %v1534 = vpop.f32.mrf.mxu0
  %v1535 = vadd.f32 %v1438, %v1534
  %v1536 = vpop.f32.mrf.mxu0
  %1537 = vmatprep.mubr.bf16.mxu0 %v607
  %1538 = vmatmul.mubr.bf16.gmra.mxu0 %v606
  %v1539 = vpop.f32.mrf.mxu0
  %v1540 = vadd.f32 %v1443, %v1539
  %v1541 = vpop.f32.mrf.mxu0
  %v1542 = vpop.f32.mrf.mxu0
  %v1543 = vadd.f32 %v1446, %v1542
  %v1544 = vpop.f32.mrf.mxu0
  %1545 = vmatprep.mubr.bf16.mxu0 %v618
  %1546 = vmatmul.mubr.bf16.gmra.mxu0 %v617
  %v1547 = vpop.f32.mrf.mxu0
  %v1548 = vadd.f32 %v1451, %v1547
  %v1549 = vpop.f32.mrf.mxu0
  %v1550 = vpop.f32.mrf.mxu0
  %v1551 = vadd.f32 %v1454, %v1550
  %v1552 = vpop.f32.mrf.mxu0
  %1553 = vmatprep.mubr.bf16.mxu0 %v629
  %1554 = vmatmul.mubr.bf16.gmra.mxu0 %v628
  %v1555 = vpop.f32.mrf.mxu0
  %v1556 = vadd.f32 %v1459, %v1555
  %v1557 = vpop.f32.mrf.mxu0
  %v1558 = vpop.f32.mrf.mxu0
  %v1559 = vadd.f32 %v1462, %v1558
  %v1560 = vpop.f32.mrf.mxu0
  %1561 = vmatprep.mubr.bf16.mxu0 %v640
  %1562 = vmatmul.mubr.bf16.gmra.mxu0 %v639
  %v1563 = vpop.f32.mrf.mxu0
  %v1564 = vadd.f32 %v1467, %v1563
  %v1565 = vpop.f32.mrf.mxu0
  %v1566 = vpop.f32.mrf.mxu0
  %v1567 = vadd.f32 %v1470, %v1566
  %v1568 = vpop.f32.mrf.mxu0
  %1569 = vmatprep.mubr.bf16.mxu0 %v651
  %1570 = vmatmul.mubr.bf16.gmra.mxu0 %v650
  %v1571 = vpop.f32.mrf.mxu0
  %v1572 = vadd.f32 %v1475, %v1571
  %v1573 = vpop.f32.mrf.mxu0
  %v1574 = vpop.f32.mrf.mxu0
  %v1575 = vadd.f32 %v1478, %v1574
  %v1576 = vpop.f32.mrf.mxu0
  %1577 = vdwg.mxu0
  %1578 = vmatprep.subr.bf16.mxu0 0
  %1579 = vmatpush1.bf16.msra.mxu0 %v1138
  %1580 = vmatprep.subr.bf16.mxu0 0
  %1581 = vmatpush1.bf16.msra.mxu0 %v1137
  %1582 = vmatprep.subr.bf16.mxu0 0
  %1583 = vmatpush1.bf16.msra.mxu0 %v1136
  %1584 = vmatprep.subr.bf16.mxu0 0
  %1585 = vmatpush1.bf16.msra.mxu0 %v1135
  %1586 = vmatprep.subr.bf16.mxu0 0
  %1587 = vmatpush1.bf16.msra.mxu0 %v1134
  %1588 = vmatprep.subr.bf16.mxu0 0
  %1589 = vmatpush1.bf16.msra.mxu0 %v1133
  %1590 = vmatprep.subr.bf16.mxu0 0
  %1591 = vmatpush1.bf16.msra.mxu0 %v1132
  %1592 = vmatprep.subr.bf16.mxu0 0
  %1593 = vmatpush1.bf16.msra.mxu0 %v1131
  %1594 = vmatprep.subr.bf16.mxu0 0
  %1595 = vmatpush2.bf16.msra.mxu0 %v1146
  %1596 = vmatprep.subr.bf16.mxu0 0
  %1597 = vmatpush2.bf16.msra.mxu0 %v1145
  %1598 = vmatprep.subr.bf16.mxu0 0
  %1599 = vmatpush2.bf16.msra.mxu0 %v1144
  %1600 = vmatprep.subr.bf16.mxu0 0
  %1601 = vmatpush2.bf16.msra.mxu0 %v1143
  %1602 = vmatprep.subr.bf16.mxu0 0
  %1603 = vmatpush2.bf16.msra.mxu0 %v1142
  %1604 = vmatprep.subr.bf16.mxu0 0
  %1605 = vmatpush2.bf16.msra.mxu0 %v1141
  %1606 = vmatprep.subr.bf16.mxu0 0
  %1607 = vmatpush2.bf16.msra.mxu0 %v1140
  %1608 = vmatprep.subr.bf16.mxu0 0
  %1609 = vmatpush2.bf16.msra.mxu0 %v1139
  %1610 = vmatprep.mubr.bf16.mxu0 %v576
  %1611 = vmatmul.mubr.bf16.gmra.mxu0 %v575
  %v1612 = vpop.f32.mrf.mxu0
  %v1613 = vadd.f32 %v1516, %v1612
  %v1614 = vpop.f32.mrf.mxu0
  %v1615 = vpop.f32.mrf.mxu0
  %v1616 = vadd.f32 %v1519, %v1615
  %v1617 = vpop.f32.mrf.mxu0
  %1618 = vmatprep.mubr.bf16.mxu0 %v587
  %1619 = vmatmul.mubr.bf16.gmra.mxu0 %v586
  %v1620 = vpop.f32.mrf.mxu0
  %v1621 = vadd.f32 %v1524, %v1620
  %v1622 = vpop.f32.mrf.mxu0
  %v1623 = vpop.f32.mrf.mxu0
  %v1624 = vadd.f32 %v1527, %v1623
  %v1625 = vpop.f32.mrf.mxu0
  %1626 = vmatprep.mubr.bf16.mxu0 %v598
  %1627 = vmatmul.mubr.bf16.gmra.mxu0 %v597
  %v1628 = vpop.f32.mrf.mxu0
  %v1629 = vadd.f32 %v1532, %v1628
  %v1630 = vpop.f32.mrf.mxu0
  %v1631 = vpop.f32.mrf.mxu0
  %v1632 = vadd.f32 %v1535, %v1631
  %v1633 = vpop.f32.mrf.mxu0
  %1634 = vmatprep.mubr.bf16.mxu0 %v609
  %1635 = vmatmul.mubr.bf16.gmra.mxu0 %v608
  %v1636 = vpop.f32.mrf.mxu0
  %v1637 = vadd.f32 %v1540, %v1636
  %v1638 = vpop.f32.mrf.mxu0
  %v1639 = vpop.f32.mrf.mxu0
  %v1640 = vadd.f32 %v1543, %v1639
  %v1641 = vpop.f32.mrf.mxu0
  %1642 = vmatprep.mubr.bf16.mxu0 %v620
  %1643 = vmatmul.mubr.bf16.gmra.mxu0 %v619
  %v1644 = vpop.f32.mrf.mxu0
  %v1645 = vadd.f32 %v1548, %v1644
  %v1646 = vpop.f32.mrf.mxu0
  %v1647 = vpop.f32.mrf.mxu0
  %v1648 = vadd.f32 %v1551, %v1647
  %v1649 = vpop.f32.mrf.mxu0
  %1650 = vmatprep.mubr.bf16.mxu0 %v631
  %1651 = vmatmul.mubr.bf16.gmra.mxu0 %v630
  %v1652 = vpop.f32.mrf.mxu0
  %v1653 = vadd.f32 %v1556, %v1652
  %v1654 = vpop.f32.mrf.mxu0
  %v1655 = vpop.f32.mrf.mxu0
  %v1656 = vadd.f32 %v1559, %v1655
  %v1657 = vpop.f32.mrf.mxu0
  %1658 = vmatprep.mubr.bf16.mxu0 %v642
  %1659 = vmatmul.mubr.bf16.gmra.mxu0 %v641
  %v1660 = vpop.f32.mrf.mxu0
  %v1661 = vadd.f32 %v1564, %v1660
  %v1662 = vpop.f32.mrf.mxu0
  %v1663 = vpop.f32.mrf.mxu0
  %v1664 = vadd.f32 %v1567, %v1663
  %v1665 = vpop.f32.mrf.mxu0
  %1666 = vmatprep.mubr.bf16.mxu0 %v653
  %1667 = vmatmul.mubr.bf16.gmra.mxu0 %v652
  %v1668 = vpop.f32.mrf.mxu0
  %v1669 = vadd.f32 %v1572, %v1668
  %v1670 = vpop.f32.mrf.mxu0
  %v1671 = vpop.f32.mrf.mxu0
  %v1672 = vadd.f32 %v1575, %v1671
  %v1673 = vpop.f32.mrf.mxu0
  %1674 = vdwg.mxu0
  %1675 = vmatprep.subr.bf16.mxu0 0
  %1676 = vmatpush1.bf16.msra.mxu0 %v1154
  %1677 = vmatprep.subr.bf16.mxu0 0
  %1678 = vmatpush1.bf16.msra.mxu0 %v1153
  %1679 = vmatprep.subr.bf16.mxu0 0
  %1680 = vmatpush1.bf16.msra.mxu0 %v1152
  %1681 = vmatprep.subr.bf16.mxu0 0
  %1682 = vmatpush1.bf16.msra.mxu0 %v1151
  %1683 = vmatprep.subr.bf16.mxu0 0
  %1684 = vmatpush1.bf16.msra.mxu0 %v1150
  %1685 = vmatprep.subr.bf16.mxu0 0
  %1686 = vmatpush1.bf16.msra.mxu0 %v1149
  %1687 = vmatprep.subr.bf16.mxu0 0
  %1688 = vmatpush1.bf16.msra.mxu0 %v1148
  %1689 = vmatprep.subr.bf16.mxu0 0
  %1690 = vmatpush1.bf16.msra.mxu0 %v1147
  %1691 = vmatprep.subr.bf16.mxu0 0
  %1692 = vmatpush2.bf16.msra.mxu0 %v1162
  %1693 = vmatprep.subr.bf16.mxu0 0
  %1694 = vmatpush2.bf16.msra.mxu0 %v1161
  %1695 = vmatprep.subr.bf16.mxu0 0
  %1696 = vmatpush2.bf16.msra.mxu0 %v1160
  %1697 = vmatprep.subr.bf16.mxu0 0
  %1698 = vmatpush2.bf16.msra.mxu0 %v1159
  %1699 = vmatprep.subr.bf16.mxu0 0
  %1700 = vmatpush2.bf16.msra.mxu0 %v1158
  %1701 = vmatprep.subr.bf16.mxu0 0
  %1702 = vmatpush2.bf16.msra.mxu0 %v1157
  %1703 = vmatprep.subr.bf16.mxu0 0
  %1704 = vmatpush2.bf16.msra.mxu0 %v1156
  %1705 = vmatprep.subr.bf16.mxu0 0
  %1706 = vmatpush2.bf16.msra.mxu0 %v1155
  %1707 = vmatprep.mubr.bf16.mxu0 %v578
  %1708 = vmatmul.mubr.bf16.gmra.mxu0 %v577
  %v1709 = vpop.f32.mrf.mxu0
  %v1710 = vadd.f32 %v1613, %v1709
  %v1711 = vpop.f32.mrf.mxu0
  %v1712 = vpop.f32.mrf.mxu0
  %v1713 = vadd.f32 %v1616, %v1712
  %v1714 = vpop.f32.mrf.mxu0
  %1715 = vmatprep.mubr.bf16.mxu0 %v589
  %1716 = vmatmul.mubr.bf16.gmra.mxu0 %v588
  %v1717 = vpop.f32.mrf.mxu0
  %v1718 = vadd.f32 %v1621, %v1717
  %v1719 = vpop.f32.mrf.mxu0
  %v1720 = vpop.f32.mrf.mxu0
  %v1721 = vadd.f32 %v1624, %v1720
  %v1722 = vpop.f32.mrf.mxu0
  %1723 = vmatprep.mubr.bf16.mxu0 %v600
  %1724 = vmatmul.mubr.bf16.gmra.mxu0 %v599
  %v1725 = vpop.f32.mrf.mxu0
  %v1726 = vadd.f32 %v1629, %v1725
  %v1727 = vpop.f32.mrf.mxu0
  %v1728 = vpop.f32.mrf.mxu0
  %v1729 = vadd.f32 %v1632, %v1728
  %v1730 = vpop.f32.mrf.mxu0
  %1731 = vmatprep.mubr.bf16.mxu0 %v611
  %1732 = vmatmul.mubr.bf16.gmra.mxu0 %v610
  %v1733 = vpop.f32.mrf.mxu0
  %v1734 = vadd.f32 %v1637, %v1733
  %v1735 = vpop.f32.mrf.mxu0
  %v1736 = vpop.f32.mrf.mxu0
  %v1737 = vadd.f32 %v1640, %v1736
  %v1738 = vpop.f32.mrf.mxu0
  %1739 = vmatprep.mubr.bf16.mxu0 %v622
  %1740 = vmatmul.mubr.bf16.gmra.mxu0 %v621
  %v1741 = vpop.f32.mrf.mxu0
  %v1742 = vadd.f32 %v1645, %v1741
  %v1743 = vpop.f32.mrf.mxu0
  %v1744 = vpop.f32.mrf.mxu0
  %v1745 = vadd.f32 %v1648, %v1744
  %v1746 = vpop.f32.mrf.mxu0
  %1747 = vmatprep.mubr.bf16.mxu0 %v633
  %1748 = vmatmul.mubr.bf16.gmra.mxu0 %v632
  %v1749 = vpop.f32.mrf.mxu0
  %v1750 = vadd.f32 %v1653, %v1749
  %v1751 = vpop.f32.mrf.mxu0
  %v1752 = vpop.f32.mrf.mxu0
  %v1753 = vadd.f32 %v1656, %v1752
  %v1754 = vpop.f32.mrf.mxu0
  %1755 = vmatprep.mubr.bf16.mxu0 %v644
  %1756 = vmatmul.mubr.bf16.gmra.mxu0 %v643
  %v1757 = vpop.f32.mrf.mxu0
  %v1758 = vadd.f32 %v1661, %v1757
  %v1759 = vpop.f32.mrf.mxu0
  %v1760 = vpop.f32.mrf.mxu0
  %v1761 = vadd.f32 %v1664, %v1760
  %v1762 = vpop.f32.mrf.mxu0
  %1763 = vmatprep.mubr.bf16.mxu0 %v655
  %1764 = vmatmul.mubr.bf16.gmra.mxu0 %v654
  %v1765 = vpop.f32.mrf.mxu0
  %v1766 = vadd.f32 %v1669, %v1765
  %v1767 = vpop.f32.mrf.mxu0
  %v1768 = vpop.f32.mrf.mxu0
  %v1769 = vadd.f32 %v1672, %v1768
  %v1770 = vpop.f32.mrf.mxu0
  %1771 = vdwg.mxu0
  %1772 = vmatprep.subr.bf16.mxu0 0
  %1773 = vmatpush1.bf16.msra.mxu0 0
  %1774 = vmatprep.subr.bf16.mxu0 0
  %1775 = vmatpush1.bf16.msra.mxu0 %v1285
  %1776 = vmatprep.subr.bf16.mxu0 0
  %1777 = vmatpush1.bf16.msra.mxu0 %v1168
  %1778 = vmatprep.subr.bf16.mxu0 0
  %1779 = vmatpush1.bf16.msra.mxu0 %v1167
  %1780 = vmatprep.subr.bf16.mxu0 0
  %1781 = vmatpush1.bf16.msra.mxu0 %v1166
  %1782 = vmatprep.subr.bf16.mxu0 0
  %1783 = vmatpush1.bf16.msra.mxu0 %v1165
  %1784 = vmatprep.subr.bf16.mxu0 0
  %1785 = vmatpush1.bf16.msra.mxu0 %v1164
  %1786 = vmatprep.subr.bf16.mxu0 0
  %1787 = vmatpush1.bf16.msra.mxu0 %v1163
  %1788 = vmatprep.subr.bf16.mxu0 0
  %1789 = vmatpush2.bf16.msra.mxu0 0
  %1790 = vmatprep.subr.bf16.mxu0 0
  %1791 = vmatpush2.bf16.msra.mxu0 0
  %1792 = vmatprep.subr.bf16.mxu0 0
  %1793 = vmatpush2.bf16.msra.mxu0 0
  %1794 = vmatprep.subr.bf16.mxu0 0
  %1795 = vmatpush2.bf16.msra.mxu0 0
  %1796 = vmatprep.subr.bf16.mxu0 0
  %1797 = vmatpush2.bf16.msra.mxu0 0
  %1798 = vmatprep.subr.bf16.mxu0 0
  %1799 = vmatpush2.bf16.msra.mxu0 0
  %1800 = vmatprep.subr.bf16.mxu0 0
  %1801 = vmatpush2.bf16.msra.mxu0 0
  %1802 = vmatprep.subr.bf16.mxu0 0
  %1803 = vmatpush2.bf16.msra.mxu0 0
  %1804 = vmatprep.mubr.bf16.mxu0 0
  %1805 = vmatmul.mubr.bf16.gmra.mxu0 %v1258
  %v1806 = vpop.f32.mrf.mxu0
  %v1807 = vadd.f32 %v1710, %v1806
  %v1808 = vpop.f32.mrf.mxu0
  %v1809 = vpop.f32.mrf.mxu0
  %v1810 = vadd.f32 %v1713, %v1809
  %v1811 = vpop.f32.mrf.mxu0
  %1812 = vmatprep.mubr.bf16.mxu0 0
  %1813 = vmatmul.mubr.bf16.gmra.mxu0 %v1261
  %v1814 = vpop.f32.mrf.mxu0
  %v1815 = vadd.f32 %v1718, %v1814
  %v1816 = vpop.f32.mrf.mxu0
  %v1817 = vpop.f32.mrf.mxu0
  %v1818 = vadd.f32 %v1721, %v1817
  %v1819 = vpop.f32.mrf.mxu0
  %1820 = vmatprep.mubr.bf16.mxu0 0
  %1821 = vmatmul.mubr.bf16.gmra.mxu0 %v1264
  %v1822 = vpop.f32.mrf.mxu0
  %v1823 = vadd.f32 %v1726, %v1822
  %v1824 = vpop.f32.mrf.mxu0
  %v1825 = vpop.f32.mrf.mxu0
  %v1826 = vadd.f32 %v1729, %v1825
  %v1827 = vpop.f32.mrf.mxu0
  %1828 = vmatprep.mubr.bf16.mxu0 0
  %1829 = vmatmul.mubr.bf16.gmra.mxu0 %v1267
  %v1830 = vpop.f32.mrf.mxu0
  %v1831 = vadd.f32 %v1734, %v1830
  %v1832 = vpop.f32.mrf.mxu0
  %v1833 = vpop.f32.mrf.mxu0
  %v1834 = vadd.f32 %v1737, %v1833
  %v1835 = vpop.f32.mrf.mxu0
  %1836 = vmatprep.mubr.bf16.mxu0 0
  %1837 = vmatmul.mubr.bf16.gmra.mxu0 %v1270
  %v1838 = vpop.f32.mrf.mxu0
  %v1839 = vadd.f32 %v1742, %v1838
  %v1840 = vpop.f32.mrf.mxu0
  %v1841 = vpop.f32.mrf.mxu0
  %v1842 = vadd.f32 %v1745, %v1841
  %v1843 = vpop.f32.mrf.mxu0
  %1844 = vmatprep.mubr.bf16.mxu0 0
  %1845 = vmatmul.mubr.bf16.gmra.mxu0 %v1273
  %v1846 = vpop.f32.mrf.mxu0
  %v1847 = vadd.f32 %v1750, %v1846
  %v1848 = vpop.f32.mrf.mxu0
  %v1849 = vpop.f32.mrf.mxu0
  %v1850 = vadd.f32 %v1753, %v1849
  %v1851 = vpop.f32.mrf.mxu0
  %1852 = vmatprep.mubr.bf16.mxu0 0
  %1853 = vmatmul.mubr.bf16.gmra.mxu0 %v1276
  %v1854 = vpop.f32.mrf.mxu0
  %v1855 = vadd.f32 %v1758, %v1854
  %v1856 = vpop.f32.mrf.mxu0
  %v1857 = vpop.f32.mrf.mxu0
  %v1858 = vadd.f32 %v1761, %v1857
  %v1859 = vpop.f32.mrf.mxu0
  %1860 = vmatprep.mubr.bf16.mxu0 0
  %1861 = vmatmul.mubr.bf16.gmra.mxu0 %v1279
  %v1862 = vpop.f32.mrf.mxu0
  %v1863 = vadd.f32 %v1766, %v1862
  %v1864 = vpop.f32.mrf.mxu0
  %v1865 = vpop.f32.mrf.mxu0
  %v1866 = vadd.f32 %v1769, %v1865
  %v1867 = vpop.f32.mrf.mxu0
  %1868 = vdwg.mxu0
  %v1869 = vmul.f32 %v1807, 0.1
  %v1870 = vmul.f32 %v1810, 0.1
  %v1871 = vmul.f32 %v1815, 0.1
  %v1872 = vmul.f32 %v1818, 0.1
  %v1873 = vmul.f32 %v1823, 0.1
  %v1874 = vmul.f32 %v1826, 0.1
  %v1875 = vmul.f32 %v1831, 0.1
  %v1876 = vmul.f32 %v1834, 0.1
  %v1877 = vmul.f32 %v1839, 0.1
  %v1878 = vmul.f32 %v1842, 0.1
  %v1879 = vmul.f32 %v1847, 0.1
  %v1880 = vmul.f32 %v1850, 0.1
  %v1881 = vmul.f32 %v1855, 0.1
  %v1882 = vmul.f32 %v1858, 0.1
  %v1883 = vmul.f32 %v1863, 0.1
  %v1884 = vmul.f32 %v1866, 0.1
  %v1885 = vmax.f32 %v1807, %v1869
  %v1886 = vmax.f32 %v1810, %v1870
  %v1887 = vmax.f32 %v1815, %v1871
  %v1888 = vmax.f32 %v1818, %v1872
  %v1889 = vmax.f32 %v1823, %v1873
  %v1890 = vmax.f32 %v1826, %v1874
  %v1891 = vmax.f32 %v1831, %v1875
  %v1892 = vmax.f32 %v1834, %v1876
  %v1893 = vmax.f32 %v1839, %v1877
  %v1894 = vmax.f32 %v1842, %v1878
  %v1895 = vmax.f32 %v1847, %v1879
  %v1896 = vmax.f32 %v1850, %v1880
  %v1897 = vmax.f32 %v1855, %v1881
  %v1898 = vmax.f32 %v1858, %v1882
  %v1899 = vmax.f32 %v1863, %v1883
  %v1900 = vmax.f32 %v1866, %v1884
  %v1901 = vld [vmem:[%s3] sm:$0xf]
  %v1902 = vld [vmem:[%s3 + $0x4] sm:$0xf]
  %v1903 = vld [vmem:[%s3 + $0x8] sm:$0xf]
  %v1904 = vld [vmem:[%s3 + $0xc] sm:$0xf]
  %v1905 = vld [vmem:[%s3 + $0x10] sm:$0xf]
  %v1906 = vld [vmem:[%s3 + $0x14] sm:$0xf]
  %v1907 = vld [vmem:[%s3 + $0x18] sm:$0xf]
  %v1908 = vld [vmem:[%s3 + $0x1c] sm:$0xf]
  %v1909 = vld [vmem:[%s3 + $0x20] sm:$0xf]
  %v1910 = vld [vmem:[%s3 + $0x24] sm:$0xf]
  %v1911 = vld [vmem:[%s3 + $0x28] sm:$0xf]
  %v1912 = vld [vmem:[%s3 + $0x2c] sm:$0xf]
  %v1913 = vld [vmem:[%s3 + $0x30] sm:$0xf]
  %v1914 = vld [vmem:[%s3 + $0x34] sm:$0xf]
  %v1915 = vld [vmem:[%s3 + $0x38] sm:$0xf]
  %v1916 = vld [vmem:[%s3 + $0x3c] sm:$0xf]
  %v1917 = vld [vmem:[%s3 + $0x40] sm:$0xf]
  %v1918 = vld [vmem:[%s3 + $0x44] sm:$0xf]
  %v1919 = vld [vmem:[%s3 + $0x48] sm:$0xf]
  %v1920 = vld [vmem:[%s3 + $0x4c] sm:$0x1]
  %v1921 = vld [vmem:[%s4] sm:$0x1]
  %v1923 = vlaneseq
  %v1924 = vshrl.u32 %v1923, 7
  %v1925 = vsub.s32 0, %v1924
  %v1926 = vrot.slane %v1921, %v1925
  %1928 = vrot.lane.b32.xlu0 %v573, 28
  %v1929 = vpop.permute.xlu0 %1928
  %1930 = vrot.lane.b32.xlu0 %v574, 28
  %v1931 = vpop.permute.xlu0 %1930
  %1932 = vrot.lane.b32.xlu0 %v584, 28
  %v1933 = vpop.permute.xlu0 %1932
  %1934 = vrot.lane.b32.xlu0 %v585, 28
  %v1935 = vpop.permute.xlu0 %1934
  %1936 = vrot.lane.b32.xlu0 %v595, 28
  %v1937 = vpop.permute.xlu0 %1936
  %1938 = vrot.lane.b32.xlu0 %v596, 28
  %v1939 = vpop.permute.xlu0 %1938
  %1940 = vrot.lane.b32.xlu0 %v606, 28
  %v1941 = vpop.permute.xlu0 %1940
  %1942 = vrot.lane.b32.xlu0 %v607, 28
  %v1943 = vpop.permute.xlu0 %1942
  %1944 = vrot.lane.b32.xlu0 %v617, 28
  %v1945 = vpop.permute.xlu0 %1944
  %1946 = vrot.lane.b32.xlu0 %v618, 28
  %v1947 = vpop.permute.xlu0 %1946
  %1948 = vrot.lane.b32.xlu0 %v628, 28
  %v1949 = vpop.permute.xlu0 %1948
  %1950 = vrot.lane.b32.xlu0 %v629, 28
  %v1951 = vpop.permute.xlu0 %1950
  %1952 = vrot.lane.b32.xlu0 %v639, 28
  %v1953 = vpop.permute.xlu0 %1952
  %1954 = vrot.lane.b32.xlu0 %v640, 28
  %v1955 = vpop.permute.xlu0 %1954
  %1956 = vrot.lane.b32.xlu0 %v650, 28
  %v1957 = vpop.permute.xlu0 %1956
  %1958 = vrot.lane.b32.xlu0 %v651, 28
  %v1959 = vpop.permute.xlu0 %1958
  %vm1960 = vcmask 228352
  %v1961 = vsel %vm1960, %v1929, %v1931
  %v1962 = vsel %vm1960, %v1933, %v1935
  %v1963 = vsel %vm1960, %v1937, %v1939
  %v1964 = vsel %vm1960, %v1941, %v1943
  %v1965 = vsel %vm1960, %v1945, %v1947
  %v1966 = vsel %vm1960, %v1949, %v1951
  %v1967 = vsel %vm1960, %v1953, %v1955
  %v1968 = vsel %vm1960, %v1957, %v1959
  %v1997 = vunpack.c.l.b16 %v1901
  %v1998 = vunpack.c.l.b16 %v1902
  %v1999 = vunpack.c.l.b16 %v1903
  %v2000 = vunpack.c.l.b16 %v1904
  %v2001 = vunpack.c.l.b16 %v1905
  %v2002 = vunpack.c.l.b16 %v1906
  %v2003 = vunpack.c.l.b16 %v1907
  %v2004 = vunpack.c.l.b16 %v1908
  %v2005 = vunpack.c.l.b16 %v1909
  %v2006 = vunpack.c.l.b16 %v1910
  %v2007 = vunpack.c.l.b16 %v1911
  %v2008 = vunpack.c.l.b16 %v1912
  %v2009 = vunpack.c.l.b16 %v1913
  %v2010 = vunpack.c.l.b16 %v1914
  %v2011 = vunpack.c.l.b16 %v1915
  %v2012 = vunpack.c.l.b16 %v1916
  %v2013 = vunpack.c.l.b16 %v1917
  %v2014 = vunpack.c.l.b16 %v1918
  %v2015 = vunpack.c.l.b16 %v1919
  %v2016 = vunpack.c.l.b16 %v1920
  %v2017 = vpack.c.b16 %v1998, %v1997
  %v2018 = vpack.c.b16 %v2000, %v1999
  %v2019 = vpack.c.b16 %v2002, %v2001
  %v2020 = vpack.c.b16 %v2004, %v2003
  %v2021 = vpack.c.b16 %v2006, %v2005
  %v2022 = vpack.c.b16 %v2008, %v2007
  %v2023 = vpack.c.b16 %v2010, %v2009
  %v2024 = vpack.c.b16 %v2012, %v2011
  %v2025 = vpack.c.b16 %v2014, %v2013
  %v2026 = vpack.c.b16 %v2016, %v2015
  %vm2036 = vcmask 203776
  %v2038 = vsel %vm2036, %v1931, 0
  %v2041 = vsel %vm2036, %v1935, 0
  %v2044 = vsel %vm2036, %v1939, 0
  %v2047 = vsel %vm2036, %v1943, 0
  %v2050 = vsel %vm2036, %v1947, 0
  %v2053 = vsel %vm2036, %v1951, 0
  %v2056 = vsel %vm2036, %v1955, 0
  %v2059 = vsel %vm2036, %v1959, 0
  %vm2061 = vcmask 1043456
  %vm2062 = vcmask 1044480
  %v2063 = vsel %vm2061, 4294967295, 65535
  %v2064 = vsel %vm2062, %v2063, 0
  %v2066 = vand.u32 %v2026, %v2064
  %2068 = vmatprep.subr.bf16.mxu0 0
  %2069 = vmatpush1.bf16.msra.mxu0 %v2024
  %2070 = vmatprep.subr.bf16.mxu0 0
  %2071 = vmatpush1.bf16.msra.mxu0 %v2023
  %2072 = vmatprep.subr.bf16.mxu0 0
  %2073 = vmatpush1.bf16.msra.mxu0 %v2022
  %2074 = vmatprep.subr.bf16.mxu0 0
  %2075 = vmatpush1.bf16.msra.mxu0 %v2021
  %2076 = vmatprep.subr.bf16.mxu0 0
  %2077 = vmatpush1.bf16.msra.mxu0 %v2020
  %2078 = vmatprep.subr.bf16.mxu0 0
  %2079 = vmatpush1.bf16.msra.mxu0 %v2019
  %2080 = vmatprep.subr.bf16.mxu0 0
  %2081 = vmatpush1.bf16.msra.mxu0 %v2018
  %2082 = vmatprep.subr.bf16.mxu0 0
  %2083 = vmatpush1.bf16.msra.mxu0 %v2017
  %2084 = vmatprep.subr.bf16.mxu0 0
  %2085 = vmatpush2.bf16.msra.mxu0 0
  %2086 = vmatprep.subr.bf16.mxu0 0
  %2087 = vmatpush2.bf16.msra.mxu0 0
  %2088 = vmatprep.subr.bf16.mxu0 0
  %2089 = vmatpush2.bf16.msra.mxu0 0
  %2090 = vmatprep.subr.bf16.mxu0 0
  %2091 = vmatpush2.bf16.msra.mxu0 0
  %2092 = vmatprep.subr.bf16.mxu0 0
  %2093 = vmatpush2.bf16.msra.mxu0 0
  %2094 = vmatprep.subr.bf16.mxu0 0
  %2095 = vmatpush2.bf16.msra.mxu0 0
  %2096 = vmatprep.subr.bf16.mxu0 0
  %2097 = vmatpush2.bf16.msra.mxu0 %v2066
  %2098 = vmatprep.subr.bf16.mxu0 0
  %2099 = vmatpush2.bf16.msra.mxu0 %v2025
  %2100 = vmatprep.mubr.bf16.mxu0 %v2038
  %2101 = vmatmul.mubr.bf16.gmra.mxu0 %v1961
  %v2102 = vpop.f32.mrf.mxu0
  %v2103 = vadd.f32 %v1926, %v2102
  %v2104 = vpop.f32.mrf.mxu0
  %v2105 = vpop.f32.mrf.mxu0
  %v2106 = vadd.f32 %v1926, %v2105
  %v2107 = vpop.f32.mrf.mxu0
  %2108 = vmatprep.mubr.bf16.mxu0 %v2041
  %2109 = vmatmul.mubr.bf16.gmra.mxu0 %v1962
  %v2110 = vpop.f32.mrf.mxu0
  %v2111 = vadd.f32 %v1926, %v2110
  %v2112 = vpop.f32.mrf.mxu0
  %v2113 = vpop.f32.mrf.mxu0
  %v2114 = vadd.f32 %v1926, %v2113
  %v2115 = vpop.f32.mrf.mxu0
  %2116 = vmatprep.mubr.bf16.mxu0 %v2044
  %2117 = vmatmul.mubr.bf16.gmra.mxu0 %v1963
  %v2118 = vpop.f32.mrf.mxu0
  %v2119 = vadd.f32 %v1926, %v2118
  %v2120 = vpop.f32.mrf.mxu0
  %v2121 = vpop.f32.mrf.mxu0
  %v2122 = vadd.f32 %v1926, %v2121
  %v2123 = vpop.f32.mrf.mxu0
  %2124 = vmatprep.mubr.bf16.mxu0 %v2047
  %2125 = vmatmul.mubr.bf16.gmra.mxu0 %v1964
  %v2126 = vpop.f32.mrf.mxu0
  %v2127 = vadd.f32 %v1926, %v2126
  %v2128 = vpop.f32.mrf.mxu0
  %v2129 = vpop.f32.mrf.mxu0
  %v2130 = vadd.f32 %v1926, %v2129
  %v2131 = vpop.f32.mrf.mxu0
  %2132 = vmatprep.mubr.bf16.mxu0 %v2050
  %2133 = vmatmul.mubr.bf16.gmra.mxu0 %v1965
  %v2134 = vpop.f32.mrf.mxu0
  %v2135 = vadd.f32 %v1926, %v2134
  %v2136 = vpop.f32.mrf.mxu0
  %v2137 = vpop.f32.mrf.mxu0
  %v2138 = vadd.f32 %v1926, %v2137
  %v2139 = vpop.f32.mrf.mxu0
  %2140 = vmatprep.mubr.bf16.mxu0 %v2053
  %2141 = vmatmul.mubr.bf16.gmra.mxu0 %v1966
  %v2142 = vpop.f32.mrf.mxu0
  %v2143 = vadd.f32 %v1926, %v2142
  %v2144 = vpop.f32.mrf.mxu0
  %v2145 = vpop.f32.mrf.mxu0
  %v2146 = vadd.f32 %v1926, %v2145
  %v2147 = vpop.f32.mrf.mxu0
  %2148 = vmatprep.mubr.bf16.mxu0 %v2056
  %2149 = vmatmul.mubr.bf16.gmra.mxu0 %v1967
  %v2150 = vpop.f32.mrf.mxu0
  %v2151 = vadd.f32 %v1926, %v2150
  %v2152 = vpop.f32.mrf.mxu0
  %v2153 = vpop.f32.mrf.mxu0
  %v2154 = vadd.f32 %v1926, %v2153
  %v2155 = vpop.f32.mrf.mxu0
  %2156 = vmatprep.mubr.bf16.mxu0 %v2059
  %2157 = vmatmul.mubr.bf16.gmra.mxu0 %v1968
  %v2158 = vpop.f32.mrf.mxu0
  %v2159 = vadd.f32 %v1926, %v2158
  %v2160 = vpop.f32.mrf.mxu0
  %v2161 = vpop.f32.mrf.mxu0
  %v2162 = vadd.f32 %v1926, %v2161
  %v2163 = vpop.f32.mrf.mxu0
  %2164 = vdwg.mxu0
  %v2165 = vadd.f32 %v1885, %v2103
  %v2166 = vadd.f32 %v1886, %v2106
  %v2167 = vadd.f32 %v1887, %v2111
  %v2168 = vadd.f32 %v1888, %v2114
  %v2169 = vadd.f32 %v1889, %v2119
  %v2170 = vadd.f32 %v1890, %v2122
  %v2171 = vadd.f32 %v1891, %v2127
  %v2172 = vadd.f32 %v1892, %v2130
  %v2173 = vadd.f32 %v1893, %v2135
  %v2174 = vadd.f32 %v1894, %v2138
  %v2175 = vadd.f32 %v1895, %v2143
  %v2176 = vadd.f32 %v1896, %v2146
  %v2177 = vadd.f32 %v1897, %v2151
  %v2178 = vadd.f32 %v1898, %v2154
  %v2179 = vadd.f32 %v1899, %v2159
  %v2180 = vadd.f32 %v1900, %v2162
  %2181 = vst [vmem:[%s5] sm:$0xff] %v2165
  %2182 = vst [vmem:[%s5 + $0x8] sm:$0xff] %v2166
  %2183 = vst [vmem:[%s5 + $0x10] sm:$0xff] %v2167
  %2184 = vst [vmem:[%s5 + $0x18] sm:$0xff] %v2168
  %2185 = vst [vmem:[%s5 + $0x20] sm:$0xff] %v2169
  %2186 = vst [vmem:[%s5 + $0x28] sm:$0xff] %v2170
  %2187 = vst [vmem:[%s5 + $0x30] sm:$0xff] %v2171
  %2188 = vst [vmem:[%s5 + $0x38] sm:$0xff] %v2172
  %2189 = vst [vmem:[%s5 + $0x40] sm:$0xff] %v2173
  %2190 = vst [vmem:[%s5 + $0x48] sm:$0xff] %v2174
  %2191 = vst [vmem:[%s5 + $0x50] sm:$0xff] %v2175
  %2192 = vst [vmem:[%s5 + $0x58] sm:$0xff] %v2176
  %2193 = vst [vmem:[%s5 + $0x60] sm:$0xff] %v2177
  %2194 = vst [vmem:[%s5 + $0x68] sm:$0xff] %v2178
  %2195 = vst [vmem:[%s5 + $0x70] sm:$0xff] %v2179
  %2196 = vst [vmem:[%s5 + $0x78] sm:$0xff] %v2180
  // Predicated region
  $region22: #{_lambda_.25} parent=0 // pred_check
    _
  $region23: #{_lambda_.25} parent=0 // pred_check_branch
    %2198 = sbr.rel (0) target = $region25
  $region24: #{_lambda_.25} parent=0 // pred_region
    _
  $region25: #{_lambda_.25} parent=0 // pred_fallthru
    _
  // Predicated region
  $region26: #{_lambda_.25} parent=0 // pred_check
    _
  $region27: #{_lambda_.25} parent=0 // pred_check_branch
    %2200 = sbr.rel (0) target = $region29
  $region28: #{_lambda_.25} parent=0 // pred_region
    _
  $region29: #{_lambda_.25} parent=0 // pred_fallthru
    _

// kernel: _lambda_.26
$region0: #{_lambda_.26}
  #allocation0 [shape = 'u32[]', space=smem, size = 0x4, offset = 0x4, fixed_abs, tag = 'smem constant byte address 0x4 - core index']
  #allocation1 [shape = 'u32[144,128]{1,0:T(1,128)}', space=vmem, size = 0x12000, scoped, tag = 'internal scratch']
  %s0 = inlined_call_operand.vmem [shape: bf16[128,1152], index: 0, kind: input, shape index: {}]
  %s1 = inlined_call_operand.vmem [shape: bf16[1152,128], index: 1, kind: input, shape index: {}]
  %s2 = inlined_call_operand.vmem [shape: f32[1,128], index: 2, kind: input, shape index: {}]
  %s3 = inlined_call_operand.vmem [shape: f32[128,128], index: 3, kind: output, shape index: {}]
  %s4 = sld [smem:[#allocation0]]
  $region22: #{_lambda_.26} parent=0
    _
  %s6 = ssub.s32 1, %s4
  %s7 = scalar_select 0, %s6, %s4
  // Predicated region
  $region2: #{_lambda_.26} parent=0 // pred_check
    _
  $region3: #{_lambda_.26} parent=0 // pred_check_branch
    %9 = sbr.rel (0) target = $region5
  $region4: #{_lambda_.26} parent=0 // pred_region
    _
  $region5: #{_lambda_.26} parent=0 // pred_fallthru
    _
  // Predicated region
  $region6: #{_lambda_.26} parent=0 // pred_check
    _
  $region7: #{_lambda_.26} parent=0 // pred_check_branch
    %11 = sbr.rel (0) target = $region9
  $region8: #{_lambda_.26} parent=0 // pred_region
    _
  $region9: #{_lambda_.26} parent=0 // pred_fallthru
    _
  // Predicated region
  $region10: #{_lambda_.26} parent=0 // pred_check
    _
  $region11: #{_lambda_.26} parent=0 // pred_check_branch
    %13 = sbr.rel (0) target = $region13
  $region12: #{_lambda_.26} parent=0 // pred_region
    _
  $region13: #{_lambda_.26} parent=0 // pred_fallthru
    _
  %v15 = vld [vmem:[%s0] sm:$0xff]
  %v16 = vld [vmem:[%s0 + $0x8] sm:$0xff]
  %v17 = vld [vmem:[%s0 + $0x10] sm:$0xff]
  %v18 = vld [vmem:[%s0 + $0x18] sm:$0xff]
  %v19 = vld [vmem:[%s0 + $0x20] sm:$0xf]
  %v20 = vld [vmem:[%s0 + $0x24] sm:$0xff]
  %v21 = vld [vmem:[%s0 + $0x2c] sm:$0xff]
  %v22 = vld [vmem:[%s0 + $0x34] sm:$0xff]
  %v23 = vld [vmem:[%s0 + $0x3c] sm:$0xff]
  %v24 = vld [vmem:[%s0 + $0x44] sm:$0xf]
  %v25 = vld [vmem:[%s0 + $0x48] sm:$0xff]
  %v26 = vld [vmem:[%s0 + $0x50] sm:$0xff]
  %v27 = vld [vmem:[%s0 + $0x58] sm:$0xff]
  %v28 = vld [vmem:[%s0 + $0x60] sm:$0xff]
  %v29 = vld [vmem:[%s0 + $0x68] sm:$0xf]
  %v30 = vld [vmem:[%s0 + $0x6c] sm:$0xff]
  %v31 = vld [vmem:[%s0 + $0x74] sm:$0xff]
  %v32 = vld [vmem:[%s0 + $0x7c] sm:$0xff]
  %v33 = vld [vmem:[%s0 + $0x84] sm:$0xff]
  %v34 = vld [vmem:[%s0 + $0x8c] sm:$0xf]
  %v35 = vld [vmem:[%s0 + $0x90] sm:$0xff]
  %v36 = vld [vmem:[%s0 + $0x98] sm:$0xff]
  %v37 = vld [vmem:[%s0 + $0xa0] sm:$0xff]
  %v38 = vld [vmem:[%s0 + $0xa8] sm:$0xff]
  %v39 = vld [vmem:[%s0 + $0xb0] sm:$0xf]
  %v40 = vld [vmem:[%s0 + $0xb4] sm:$0xff]
  %v41 = vld [vmem:[%s0 + $0xbc] sm:$0xff]
  %v42 = vld [vmem:[%s0 + $0xc4] sm:$0xff]
  %v43 = vld [vmem:[%s0 + $0xcc] sm:$0xff]
  %v44 = vld [vmem:[%s0 + $0xd4] sm:$0xf]
  %v45 = vld [vmem:[%s0 + $0xd8] sm:$0xff]
  %v46 = vld [vmem:[%s0 + $0xe0] sm:$0xff]
  %v47 = vld [vmem:[%s0 + $0xe8] sm:$0xff]
  %v48 = vld [vmem:[%s0 + $0xf0] sm:$0xff]
  %v49 = vld [vmem:[%s0 + $0xf8] sm:$0xf]
  %v50 = vld [vmem:[%s0 + $0xfc] sm:$0xff]
  %v51 = vld [vmem:[%s0 + $0x104] sm:$0xff]
  %v52 = vld [vmem:[%s0 + $0x10c] sm:$0xff]
  %v53 = vld [vmem:[%s0 + $0x114] sm:$0xff]
  %v54 = vld [vmem:[%s0 + $0x11c] sm:$0xf]
  %v55 = vld [vmem:[%s0 + $0x120] sm:$0xff]
  %v56 = vld [vmem:[%s0 + $0x128] sm:$0xff]
  %v57 = vld [vmem:[%s0 + $0x130] sm:$0xff]
  %v58 = vld [vmem:[%s0 + $0x138] sm:$0xff]
  %v59 = vld [vmem:[%s0 + $0x140] sm:$0xf]
  %v60 = vld [vmem:[%s0 + $0x144] sm:$0xff]
  %v61 = vld [vmem:[%s0 + $0x14c] sm:$0xff]
  %v62 = vld [vmem:[%s0 + $0x154] sm:$0xff]
  %v63 = vld [vmem:[%s0 + $0x15c] sm:$0xff]
  %v64 = vld [vmem:[%s0 + $0x164] sm:$0xf]
  %v65 = vld [vmem:[%s0 + $0x168] sm:$0xff]
  %v66 = vld [vmem:[%s0 + $0x170] sm:$0xff]
  %v67 = vld [vmem:[%s0 + $0x178] sm:$0xff]
  %v68 = vld [vmem:[%s0 + $0x180] sm:$0xff]
  %v69 = vld [vmem:[%s0 + $0x188] sm:$0xf]
  %v70 = vld [vmem:[%s0 + $0x18c] sm:$0xff]
  %v71 = vld [vmem:[%s0 + $0x194] sm:$0xff]
  %v72 = vld [vmem:[%s0 + $0x19c] sm:$0xff]
  %v73 = vld [vmem:[%s0 + $0x1a4] sm:$0xff]
  %v74 = vld [vmem:[%s0 + $0x1ac] sm:$0xf]
  %v75 = vld [vmem:[%s0 + $0x1b0] sm:$0xff]
  %v76 = vld [vmem:[%s0 + $0x1b8] sm:$0xff]
  %v77 = vld [vmem:[%s0 + $0x1c0] sm:$0xff]
  %v78 = vld [vmem:[%s0 + $0x1c8] sm:$0xff]
  %v79 = vld [vmem:[%s0 + $0x1d0] sm:$0xf]
  %v80 = vld [vmem:[%s0 + $0x1d4] sm:$0xff]
  %v81 = vld [vmem:[%s0 + $0x1dc] sm:$0xff]
  %v82 = vld [vmem:[%s0 + $0x1e4] sm:$0xff]
  %v83 = vld [vmem:[%s0 + $0x1ec] sm:$0xff]
  %v84 = vld [vmem:[%s0 + $0x1f4] sm:$0xf]
  %v85 = vld [vmem:[%s0 + $0x1f8] sm:$0xff]
  %v86 = vld [vmem:[%s0 + $0x200] sm:$0xff]
  %v87 = vld [vmem:[%s0 + $0x208] sm:$0xff]
  %v88 = vld [vmem:[%s0 + $0x210] sm:$0xff]
  %v89 = vld [vmem:[%s0 + $0x218] sm:$0xf]
  %v90 = vld [vmem:[%s0 + $0x21c] sm:$0xff]
  %v91 = vld [vmem:[%s0 + $0x224] sm:$0xff]
  %v92 = vld [vmem:[%s0 + $0x22c] sm:$0xff]
  %v93 = vld [vmem:[%s0 + $0x234] sm:$0xff]
  %v94 = vld [vmem:[%s0 + $0x23c] sm:$0xf]
  %v95 = vld [vmem:[%s1] sm:$0xf]
  %v96 = vld [vmem:[%s1 + $0x4] sm:$0xf]
  %v97 = vld [vmem:[%s1 + $0x8] sm:$0xf]
  %v98 = vld [vmem:[%s1 + $0xc] sm:$0xf]
  %v99 = vld [vmem:[%s1 + $0x10] sm:$0xf]
  %v100 = vld [vmem:[%s1 + $0x14] sm:$0xf]
  %v101 = vld [vmem:[%s1 + $0x18] sm:$0xf]
  %v102 = vld [vmem:[%s1 + $0x1c] sm:$0xf]
  %v103 = vld [vmem:[%s1 + $0x20] sm:$0xf]
  %v104 = vld [vmem:[%s1 + $0x24] sm:$0xf]
  %v105 = vld [vmem:[%s1 + $0x28] sm:$0xf]
  %v106 = vld [vmem:[%s1 + $0x2c] sm:$0xf]
  %v107 = vld [vmem:[%s1 + $0x30] sm:$0xf]
  %v108 = vld [vmem:[%s1 + $0x34] sm:$0xf]
  %v109 = vld [vmem:[%s1 + $0x38] sm:$0xf]
  %v110 = vld [vmem:[%s1 + $0x3c] sm:$0xf]
  %v111 = vld [vmem:[%s1 + $0x40] sm:$0xf]
  %v112 = vld [vmem:[%s1 + $0x44] sm:$0xf]
  %v113 = vld [vmem:[%s1 + $0x48] sm:$0xf]
  %v114 = vld [vmem:[%s1 + $0x4c] sm:$0xf]
  %v115 = vld [vmem:[%s1 + $0x50] sm:$0xf]
  %v116 = vld [vmem:[%s1 + $0x54] sm:$0xf]
  %v117 = vld [vmem:[%s1 + $0x58] sm:$0xf]
  %v118 = vld [vmem:[%s1 + $0x5c] sm:$0xf]
  %v119 = vld [vmem:[%s1 + $0x60] sm:$0xf]
  %v120 = vld [vmem:[%s1 + $0x64] sm:$0xf]
  %v121 = vld [vmem:[%s1 + $0x68] sm:$0xf]
  %v122 = vld [vmem:[%s1 + $0x6c] sm:$0xf]
  %v123 = vld [vmem:[%s1 + $0x70] sm:$0xf]
  %v124 = vld [vmem:[%s1 + $0x74] sm:$0xf]
  %v125 = vld [vmem:[%s1 + $0x78] sm:$0xf]
  %v126 = vld [vmem:[%s1 + $0x7c] sm:$0xf]
  %v127 = vld [vmem:[%s1 + $0x80] sm:$0xf]
  %v128 = vld [vmem:[%s1 + $0x84] sm:$0xf]
  %v129 = vld [vmem:[%s1 + $0x88] sm:$0xf]
  %v130 = vld [vmem:[%s1 + $0x8c] sm:$0xf]
  %v131 = vld [vmem:[%s1 + $0x90] sm:$0xf]
  %v132 = vld [vmem:[%s1 + $0x94] sm:$0xf]
  %v133 = vld [vmem:[%s1 + $0x98] sm:$0xf]
  %v134 = vld [vmem:[%s1 + $0x9c] sm:$0xf]
  %v135 = vld [vmem:[%s1 + $0xa0] sm:$0xf]
  %v136 = vld [vmem:[%s1 + $0xa4] sm:$0xf]
  %v137 = vld [vmem:[%s1 + $0xa8] sm:$0xf]
  %v138 = vld [vmem:[%s1 + $0xac] sm:$0xf]
  %v139 = vld [vmem:[%s1 + $0xb0] sm:$0xf]
  %v140 = vld [vmem:[%s1 + $0xb4] sm:$0xf]
  %v141 = vld [vmem:[%s1 + $0xb8] sm:$0xf]
  %v142 = vld [vmem:[%s1 + $0xbc] sm:$0xf]
  %v143 = vld [vmem:[%s1 + $0xc0] sm:$0xf]
  %v144 = vld [vmem:[%s1 + $0xc4] sm:$0xf]
  %v145 = vld [vmem:[%s1 + $0xc8] sm:$0xf]
  %v146 = vld [vmem:[%s1 + $0xcc] sm:$0xf]
  %v147 = vld [vmem:[%s1 + $0xd0] sm:$0xf]
  %v148 = vld [vmem:[%s1 + $0xd4] sm:$0xf]
  %v149 = vld [vmem:[%s1 + $0xd8] sm:$0xf]
  %v150 = vld [vmem:[%s1 + $0xdc] sm:$0xf]
  %v151 = vld [vmem:[%s1 + $0xe0] sm:$0xf]
  %v152 = vld [vmem:[%s1 + $0xe4] sm:$0xf]
  %v153 = vld [vmem:[%s1 + $0xe8] sm:$0xf]
  %v154 = vld [vmem:[%s1 + $0xec] sm:$0xf]
  %v155 = vld [vmem:[%s1 + $0xf0] sm:$0xf]
  %v156 = vld [vmem:[%s1 + $0xf4] sm:$0xf]
  %v157 = vld [vmem:[%s1 + $0xf8] sm:$0xf]
  %v158 = vld [vmem:[%s1 + $0xfc] sm:$0xf]
  %v159 = vld [vmem:[%s1 + $0x100] sm:$0xf]
  %v160 = vld [vmem:[%s1 + $0x104] sm:$0xf]
  %v161 = vld [vmem:[%s1 + $0x108] sm:$0xf]
  %v162 = vld [vmem:[%s1 + $0x10c] sm:$0xf]
  %v163 = vld [vmem:[%s1 + $0x110] sm:$0xf]
  %v164 = vld [vmem:[%s1 + $0x114] sm:$0xf]
  %v165 = vld [vmem:[%s1 + $0x118] sm:$0xf]
  %v166 = vld [vmem:[%s1 + $0x11c] sm:$0xf]
  %v167 = vld [vmem:[%s1 + $0x120] sm:$0xf]
  %v168 = vld [vmem:[%s1 + $0x124] sm:$0xf]
  %v169 = vld [vmem:[%s1 + $0x128] sm:$0xf]
  %v170 = vld [vmem:[%s1 + $0x12c] sm:$0xf]
  %v171 = vld [vmem:[%s1 + $0x130] sm:$0xf]
  %v172 = vld [vmem:[%s1 + $0x134] sm:$0xf]
  %v173 = vld [vmem:[%s1 + $0x138] sm:$0xf]
  %v174 = vld [vmem:[%s1 + $0x13c] sm:$0xf]
  %v175 = vld [vmem:[%s1 + $0x140] sm:$0xf]
  %v176 = vld [vmem:[%s1 + $0x144] sm:$0xf]
  %v177 = vld [vmem:[%s1 + $0x148] sm:$0xf]
  %v178 = vld [vmem:[%s1 + $0x14c] sm:$0xf]
  %v179 = vld [vmem:[%s1 + $0x150] sm:$0xf]
  %v180 = vld [vmem:[%s1 + $0x154] sm:$0xf]
  %v181 = vld [vmem:[%s1 + $0x158] sm:$0xf]
  %v182 = vld [vmem:[%s1 + $0x15c] sm:$0xf]
  %v183 = vld [vmem:[%s1 + $0x160] sm:$0xf]
  %v184 = vld [vmem:[%s1 + $0x164] sm:$0xf]
  %v185 = vld [vmem:[%s1 + $0x168] sm:$0xf]
  %v186 = vld [vmem:[%s1 + $0x16c] sm:$0xf]
  %v187 = vld [vmem:[%s1 + $0x170] sm:$0xf]
  %v188 = vld [vmem:[%s1 + $0x174] sm:$0xf]
  %v189 = vld [vmem:[%s1 + $0x178] sm:$0xf]
  %v190 = vld [vmem:[%s1 + $0x17c] sm:$0xf]
  %v191 = vld [vmem:[%s1 + $0x180] sm:$0xf]
  %v192 = vld [vmem:[%s1 + $0x184] sm:$0xf]
  %v193 = vld [vmem:[%s1 + $0x188] sm:$0xf]
  %v194 = vld [vmem:[%s1 + $0x18c] sm:$0xf]
  %v195 = vld [vmem:[%s1 + $0x190] sm:$0xf]
  %v196 = vld [vmem:[%s1 + $0x194] sm:$0xf]
  %v197 = vld [vmem:[%s1 + $0x198] sm:$0xf]
  %v198 = vld [vmem:[%s1 + $0x19c] sm:$0xf]
  %v199 = vld [vmem:[%s1 + $0x1a0] sm:$0xf]
  %v200 = vld [vmem:[%s1 + $0x1a4] sm:$0xf]
  %v201 = vld [vmem:[%s1 + $0x1a8] sm:$0xf]
  %v202 = vld [vmem:[%s1 + $0x1ac] sm:$0xf]
  %v203 = vld [vmem:[%s1 + $0x1b0] sm:$0xf]
  %v204 = vld [vmem:[%s1 + $0x1b4] sm:$0xf]
  %v205 = vld [vmem:[%s1 + $0x1b8] sm:$0xf]
  %v206 = vld [vmem:[%s1 + $0x1bc] sm:$0xf]
  %v207 = vld [vmem:[%s1 + $0x1c0] sm:$0xf]
  %v208 = vld [vmem:[%s1 + $0x1c4] sm:$0xf]
  %v209 = vld [vmem:[%s1 + $0x1c8] sm:$0xf]
  %v210 = vld [vmem:[%s1 + $0x1cc] sm:$0xf]
  %v211 = vld [vmem:[%s1 + $0x1d0] sm:$0xf]
  %v212 = vld [vmem:[%s1 + $0x1d4] sm:$0xf]
  %v213 = vld [vmem:[%s1 + $0x1d8] sm:$0xf]
  %v214 = vld [vmem:[%s1 + $0x1dc] sm:$0xf]
  %v215 = vld [vmem:[%s1 + $0x1e0] sm:$0xf]
  %v216 = vld [vmem:[%s1 + $0x1e4] sm:$0xf]
  %v217 = vld [vmem:[%s1 + $0x1e8] sm:$0xf]
  %v218 = vld [vmem:[%s1 + $0x1ec] sm:$0xf]
  %v219 = vld [vmem:[%s1 + $0x1f0] sm:$0xf]
  %v220 = vld [vmem:[%s1 + $0x1f4] sm:$0xf]
  %v221 = vld [vmem:[%s1 + $0x1f8] sm:$0xf]
  %v222 = vld [vmem:[%s1 + $0x1fc] sm:$0xf]
  %v223 = vld [vmem:[%s1 + $0x200] sm:$0xf]
  %v224 = vld [vmem:[%s1 + $0x204] sm:$0xf]
  %v225 = vld [vmem:[%s1 + $0x208] sm:$0xf]
  %v226 = vld [vmem:[%s1 + $0x20c] sm:$0xf]
  %v227 = vld [vmem:[%s1 + $0x210] sm:$0xf]
  %v228 = vld [vmem:[%s1 + $0x214] sm:$0xf]
  %v229 = vld [vmem:[%s1 + $0x218] sm:$0xf]
  %v230 = vld [vmem:[%s1 + $0x21c] sm:$0xf]
  %v231 = vld [vmem:[%s1 + $0x220] sm:$0xf]
  %v232 = vld [vmem:[%s1 + $0x224] sm:$0xf]
  %v233 = vld [vmem:[%s1 + $0x228] sm:$0xf]
  %v234 = vld [vmem:[%s1 + $0x22c] sm:$0xf]
  %v235 = vld [vmem:[%s1 + $0x230] sm:$0xf]
  %v236 = vld [vmem:[%s1 + $0x234] sm:$0xf]
  %v237 = vld [vmem:[%s1 + $0x238] sm:$0xf]
  %v238 = vld [vmem:[%s1 + $0x23c] sm:$0xf]
  %v239 = vld [vmem:[%s2] sm:$0x1]
  %v241 = vlaneseq
  %v242 = vshrl.u32 %v241, 7
  %v243 = vsub.s32 0, %v242
  %v244 = vrot.slane %v239, %v243
  %v326 = vunpack.c.l.b16 %v15
  %v327 = vunpack.c.h.b16 %v15
  %v328 = vunpack.c.l.b16 %v16
  %v329 = vunpack.c.h.b16 %v16
  %v330 = vunpack.c.l.b16 %v17
  %v331 = vunpack.c.h.b16 %v17
  %v332 = vunpack.c.l.b16 %v18
  %v333 = vunpack.c.h.b16 %v18
  %v334 = vunpack.c.l.b16 %v19
  %v335 = vunpack.c.l.b16 %v20
  %v336 = vunpack.c.h.b16 %v20
  %v337 = vunpack.c.l.b16 %v21
  %v338 = vunpack.c.h.b16 %v21
  %v339 = vunpack.c.l.b16 %v22
  %v340 = vunpack.c.h.b16 %v22
  %v341 = vunpack.c.l.b16 %v23
  %v342 = vunpack.c.h.b16 %v23
  %v343 = vunpack.c.l.b16 %v24
  %v344 = vunpack.c.l.b16 %v25
  %v345 = vunpack.c.h.b16 %v25
  %v346 = vunpack.c.l.b16 %v26
  %v347 = vunpack.c.h.b16 %v26
  %v348 = vunpack.c.l.b16 %v27
  %v349 = vunpack.c.h.b16 %v27
  %v350 = vunpack.c.l.b16 %v28
  %v351 = vunpack.c.h.b16 %v28
  %v352 = vunpack.c.l.b16 %v29
  %v353 = vunpack.c.l.b16 %v30
  %v354 = vunpack.c.h.b16 %v30
  %v355 = vunpack.c.l.b16 %v31
  %v356 = vunpack.c.h.b16 %v31
  %v357 = vunpack.c.l.b16 %v32
  %v358 = vunpack.c.h.b16 %v32
  %v359 = vunpack.c.l.b16 %v33
  %v360 = vunpack.c.h.b16 %v33
  %v361 = vunpack.c.l.b16 %v34
  %v362 = vunpack.c.l.b16 %v35
  %v363 = vunpack.c.h.b16 %v35
  %v364 = vunpack.c.l.b16 %v36
  %v365 = vunpack.c.h.b16 %v36
  %v366 = vunpack.c.l.b16 %v37
  %v367 = vunpack.c.h.b16 %v37
  %v368 = vunpack.c.l.b16 %v38
  %v369 = vunpack.c.h.b16 %v38
  %v370 = vunpack.c.l.b16 %v39
  %v371 = vunpack.c.l.b16 %v40
  %v372 = vunpack.c.h.b16 %v40
  %v373 = vunpack.c.l.b16 %v41
  %v374 = vunpack.c.h.b16 %v41
  %v375 = vunpack.c.l.b16 %v42
  %v376 = vunpack.c.h.b16 %v42
  %v377 = vunpack.c.l.b16 %v43
  %v378 = vunpack.c.h.b16 %v43
  %v379 = vunpack.c.l.b16 %v44
  %v380 = vunpack.c.l.b16 %v45
  %v381 = vunpack.c.h.b16 %v45
  %v382 = vunpack.c.l.b16 %v46
  %v383 = vunpack.c.h.b16 %v46
  %v384 = vunpack.c.l.b16 %v47
  %v385 = vunpack.c.h.b16 %v47
  %v386 = vunpack.c.l.b16 %v48
  %v387 = vunpack.c.h.b16 %v48
  %v388 = vunpack.c.l.b16 %v49
  %v389 = vunpack.c.l.b16 %v50
  %v390 = vunpack.c.h.b16 %v50
  %v391 = vunpack.c.l.b16 %v51
  %v392 = vunpack.c.h.b16 %v51
  %v393 = vunpack.c.l.b16 %v52
  %v394 = vunpack.c.h.b16 %v52
  %v395 = vunpack.c.l.b16 %v53
  %v396 = vunpack.c.h.b16 %v53
  %v397 = vunpack.c.l.b16 %v54
  %v398 = vunpack.c.l.b16 %v55
  %v399 = vunpack.c.h.b16 %v55
  %v400 = vunpack.c.l.b16 %v56
  %v401 = vunpack.c.h.b16 %v56
  %v402 = vunpack.c.l.b16 %v57
  %v403 = vunpack.c.h.b16 %v57
  %v404 = vunpack.c.l.b16 %v58
  %v405 = vunpack.c.h.b16 %v58
  %v406 = vunpack.c.l.b16 %v59
  %v407 = vunpack.c.l.b16 %v60
  %v408 = vunpack.c.h.b16 %v60
  %v409 = vunpack.c.l.b16 %v61
  %v410 = vunpack.c.h.b16 %v61
  %v411 = vunpack.c.l.b16 %v62
  %v412 = vunpack.c.h.b16 %v62
  %v413 = vunpack.c.l.b16 %v63
  %v414 = vunpack.c.h.b16 %v63
  %v415 = vunpack.c.l.b16 %v64
  %v416 = vunpack.c.l.b16 %v65
  %v417 = vunpack.c.h.b16 %v65
  %v418 = vunpack.c.l.b16 %v66
  %v419 = vunpack.c.h.b16 %v66
  %v420 = vunpack.c.l.b16 %v67
  %v421 = vunpack.c.h.b16 %v67
  %v422 = vunpack.c.l.b16 %v68
  %v423 = vunpack.c.h.b16 %v68
  %v424 = vunpack.c.l.b16 %v69
  %v425 = vunpack.c.l.b16 %v70
  %v426 = vunpack.c.h.b16 %v70
  %v427 = vunpack.c.l.b16 %v71
  %v428 = vunpack.c.h.b16 %v71
  %v429 = vunpack.c.l.b16 %v72
  %v430 = vunpack.c.h.b16 %v72
  %v431 = vunpack.c.l.b16 %v73
  %v432 = vunpack.c.h.b16 %v73
  %v433 = vunpack.c.l.b16 %v74
  %v434 = vunpack.c.l.b16 %v75
  %v435 = vunpack.c.h.b16 %v75
  %v436 = vunpack.c.l.b16 %v76
  %v437 = vunpack.c.h.b16 %v76
  %v438 = vunpack.c.l.b16 %v77
  %v439 = vunpack.c.h.b16 %v77
  %v440 = vunpack.c.l.b16 %v78
  %v441 = vunpack.c.h.b16 %v78
  %v442 = vunpack.c.l.b16 %v79
  %v443 = vunpack.c.l.b16 %v80
  %v444 = vunpack.c.h.b16 %v80
  %v445 = vunpack.c.l.b16 %v81
  %v446 = vunpack.c.h.b16 %v81
  %v447 = vunpack.c.l.b16 %v82
  %v448 = vunpack.c.h.b16 %v82
  %v449 = vunpack.c.l.b16 %v83
  %v450 = vunpack.c.h.b16 %v83
  %v451 = vunpack.c.l.b16 %v84
  %v452 = vunpack.c.l.b16 %v85
  %v453 = vunpack.c.h.b16 %v85
  %v454 = vunpack.c.l.b16 %v86
  %v455 = vunpack.c.h.b16 %v86
  %v456 = vunpack.c.l.b16 %v87
  %v457 = vunpack.c.h.b16 %v87
  %v458 = vunpack.c.l.b16 %v88
  %v459 = vunpack.c.h.b16 %v88
  %v460 = vunpack.c.l.b16 %v89
  %v461 = vunpack.c.l.b16 %v90
  %v462 = vunpack.c.h.b16 %v90
  %v463 = vunpack.c.l.b16 %v91
  %v464 = vunpack.c.h.b16 %v91
  %v465 = vunpack.c.l.b16 %v92
  %v466 = vunpack.c.h.b16 %v92
  %v467 = vunpack.c.l.b16 %v93
  %v468 = vunpack.c.h.b16 %v93
  %v469 = vunpack.c.l.b16 %v94
  %v470 = vpack.c.b16 %v335, %v326
  %v471 = vpack.c.b16 %v336, %v327
  %v472 = vpack.c.b16 %v337, %v328
  %v473 = vpack.c.b16 %v338, %v329
  %v474 = vpack.c.b16 %v339, %v330
  %v475 = vpack.c.b16 %v340, %v331
  %v476 = vpack.c.b16 %v341, %v332
  %v477 = vpack.c.b16 %v342, %v333
  %v478 = vpack.c.b16 %v343, %v334
  %v479 = vpack.c.b16 %v353, %v344
  %v480 = vpack.c.b16 %v354, %v345
  %v481 = vpack.c.b16 %v355, %v346
  %v482 = vpack.c.b16 %v356, %v347
  %v483 = vpack.c.b16 %v357, %v348
  %v484 = vpack.c.b16 %v358, %v349
  %v485 = vpack.c.b16 %v359, %v350
  %v486 = vpack.c.b16 %v360, %v351
  %v487 = vpack.c.b16 %v361, %v352
  %v488 = vpack.c.b16 %v371, %v362
  %v489 = vpack.c.b16 %v372, %v363
  %v490 = vpack.c.b16 %v373, %v364
  %v491 = vpack.c.b16 %v374, %v365
  %v492 = vpack.c.b16 %v375, %v366
  %v493 = vpack.c.b16 %v376, %v367
  %v494 = vpack.c.b16 %v377, %v368
  %v495 = vpack.c.b16 %v378, %v369
  %v496 = vpack.c.b16 %v379, %v370
  %v497 = vpack.c.b16 %v389, %v380
  %v498 = vpack.c.b16 %v390, %v381
  %v499 = vpack.c.b16 %v391, %v382
  %v500 = vpack.c.b16 %v392, %v383
  %v501 = vpack.c.b16 %v393, %v384
  %v502 = vpack.c.b16 %v394, %v385
  %v503 = vpack.c.b16 %v395, %v386
  %v504 = vpack.c.b16 %v396, %v387
  %v505 = vpack.c.b16 %v397, %v388
  %v506 = vpack.c.b16 %v407, %v398
  %v507 = vpack.c.b16 %v408, %v399
  %v508 = vpack.c.b16 %v409, %v400
  %v509 = vpack.c.b16 %v410, %v401
  %v510 = vpack.c.b16 %v411, %v402
  %v511 = vpack.c.b16 %v412, %v403
  %v512 = vpack.c.b16 %v413, %v404
  %v513 = vpack.c.b16 %v414, %v405
  %v514 = vpack.c.b16 %v415, %v406
  %v515 = vpack.c.b16 %v425, %v416
  %v516 = vpack.c.b16 %v426, %v417
  %v517 = vpack.c.b16 %v427, %v418
  %v518 = vpack.c.b16 %v428, %v419
  %v519 = vpack.c.b16 %v429, %v420
  %v520 = vpack.c.b16 %v430, %v421
  %v521 = vpack.c.b16 %v431, %v422
  %v522 = vpack.c.b16 %v432, %v423
  %v523 = vpack.c.b16 %v433, %v424
  %v524 = vpack.c.b16 %v443, %v434
  %v525 = vpack.c.b16 %v444, %v435
  %v526 = vpack.c.b16 %v445, %v436
  %v527 = vpack.c.b16 %v446, %v437
  %v528 = vpack.c.b16 %v447, %v438
  %v529 = vpack.c.b16 %v448, %v439
  %v530 = vpack.c.b16 %v449, %v440
  %v531 = vpack.c.b16 %v450, %v441
  %v532 = vpack.c.b16 %v451, %v442
  %v533 = vpack.c.b16 %v461, %v452
  %v534 = vpack.c.b16 %v462, %v453
  %v535 = vpack.c.b16 %v463, %v454
  %v536 = vpack.c.b16 %v464, %v455
  %v537 = vpack.c.b16 %v465, %v456
  %v538 = vpack.c.b16 %v466, %v457
  %v539 = vpack.c.b16 %v467, %v458
  %v540 = vpack.c.b16 %v468, %v459
  %v541 = vpack.c.b16 %v469, %v460
  %v758 = vunpack.c.l.b16 %v95
  %v759 = vunpack.c.l.b16 %v96
  %v760 = vunpack.c.l.b16 %v97
  %v761 = vunpack.c.l.b16 %v98
  %v762 = vunpack.c.l.b16 %v99
  %v763 = vunpack.c.l.b16 %v100
  %v764 = vunpack.c.l.b16 %v101
  %v765 = vunpack.c.l.b16 %v102
  %v766 = vunpack.c.l.b16 %v103
  %v767 = vunpack.c.l.b16 %v104
  %v768 = vunpack.c.l.b16 %v105
  %v769 = vunpack.c.l.b16 %v106
  %v770 = vunpack.c.l.b16 %v107
  %v771 = vunpack.c.l.b16 %v108
  %v772 = vunpack.c.l.b16 %v109
  %v773 = vunpack.c.l.b16 %v110
  %v774 = vunpack.c.l.b16 %v111
  %v775 = vunpack.c.l.b16 %v112
  %v776 = vunpack.c.l.b16 %v113
  %v777 = vunpack.c.l.b16 %v114
  %v778 = vunpack.c.l.b16 %v115
  %v779 = vunpack.c.l.b16 %v116
  %v780 = vunpack.c.l.b16 %v117
  %v781 = vunpack.c.l.b16 %v118
  %v782 = vunpack.c.l.b16 %v119
  %v783 = vunpack.c.l.b16 %v120
  %v784 = vunpack.c.l.b16 %v121
  %v785 = vunpack.c.l.b16 %v122
  %v786 = vunpack.c.l.b16 %v123
  %v787 = vunpack.c.l.b16 %v124
  %v788 = vunpack.c.l.b16 %v125
  %v789 = vunpack.c.l.b16 %v126
  %v790 = vunpack.c.l.b16 %v127
  %v791 = vunpack.c.l.b16 %v128
  %v792 = vunpack.c.l.b16 %v129
  %v793 = vunpack.c.l.b16 %v130
  %v794 = vunpack.c.l.b16 %v131
  %v795 = vunpack.c.l.b16 %v132
  %v796 = vunpack.c.l.b16 %v133
  %v797 = vunpack.c.l.b16 %v134
  %v798 = vunpack.c.l.b16 %v135
  %v799 = vunpack.c.l.b16 %v136
  %v800 = vunpack.c.l.b16 %v137
  %v801 = vunpack.c.l.b16 %v138
  %v802 = vunpack.c.l.b16 %v139
  %v803 = vunpack.c.l.b16 %v140
  %v804 = vunpack.c.l.b16 %v141
  %v805 = vunpack.c.l.b16 %v142
  %v806 = vunpack.c.l.b16 %v143
  %v807 = vunpack.c.l.b16 %v144
  %v808 = vunpack.c.l.b16 %v145
  %v809 = vunpack.c.l.b16 %v146
  %v810 = vunpack.c.l.b16 %v147
  %v811 = vunpack.c.l.b16 %v148
  %v812 = vunpack.c.l.b16 %v149
  %v813 = vunpack.c.l.b16 %v150
  %v814 = vunpack.c.l.b16 %v151
  %v815 = vunpack.c.l.b16 %v152
  %v816 = vunpack.c.l.b16 %v153
  %v817 = vunpack.c.l.b16 %v154
  %v818 = vunpack.c.l.b16 %v155
  %v819 = vunpack.c.l.b16 %v156
  %v820 = vunpack.c.l.b16 %v157
  %v821 = vunpack.c.l.b16 %v158
  %v822 = vunpack.c.l.b16 %v159
  %v823 = vunpack.c.l.b16 %v160
  %v824 = vunpack.c.l.b16 %v161
  %v825 = vunpack.c.l.b16 %v162
  %v826 = vunpack.c.l.b16 %v163
  %v827 = vunpack.c.l.b16 %v164
  %v828 = vunpack.c.l.b16 %v165
  %v829 = vunpack.c.l.b16 %v166
  %v830 = vunpack.c.l.b16 %v167
  %v831 = vunpack.c.l.b16 %v168
  %v832 = vunpack.c.l.b16 %v169
  %v833 = vunpack.c.l.b16 %v170
  %v834 = vunpack.c.l.b16 %v171
  %v835 = vunpack.c.l.b16 %v172
  %v836 = vunpack.c.l.b16 %v173
  %v837 = vunpack.c.l.b16 %v174
  %v838 = vunpack.c.l.b16 %v175
  %v839 = vunpack.c.l.b16 %v176
  %v840 = vunpack.c.l.b16 %v177
  %v841 = vunpack.c.l.b16 %v178
  %v842 = vunpack.c.l.b16 %v179
  %v843 = vunpack.c.l.b16 %v180
  %v844 = vunpack.c.l.b16 %v181
  %v845 = vunpack.c.l.b16 %v182
  %v846 = vunpack.c.l.b16 %v183
  %v847 = vunpack.c.l.b16 %v184
  %v848 = vunpack.c.l.b16 %v185
  %v849 = vunpack.c.l.b16 %v186
  %v850 = vunpack.c.l.b16 %v187
  %v851 = vunpack.c.l.b16 %v188
  %v852 = vunpack.c.l.b16 %v189
  %v853 = vunpack.c.l.b16 %v190
  %v854 = vunpack.c.l.b16 %v191
  %v855 = vunpack.c.l.b16 %v192
  %v856 = vunpack.c.l.b16 %v193
  %v857 = vunpack.c.l.b16 %v194
  %v858 = vunpack.c.l.b16 %v195
  %v859 = vunpack.c.l.b16 %v196
  %v860 = vunpack.c.l.b16 %v197
  %v861 = vunpack.c.l.b16 %v198
  %v862 = vunpack.c.l.b16 %v199
  %v863 = vunpack.c.l.b16 %v200
  %v864 = vunpack.c.l.b16 %v201
  %v865 = vunpack.c.l.b16 %v202
  %v866 = vunpack.c.l.b16 %v203
  %v867 = vunpack.c.l.b16 %v204
  %v868 = vunpack.c.l.b16 %v205
  %v869 = vunpack.c.l.b16 %v206
  %v870 = vunpack.c.l.b16 %v207
  %v871 = vunpack.c.l.b16 %v208
  %v872 = vunpack.c.l.b16 %v209
  %v873 = vunpack.c.l.b16 %v210
  %v874 = vunpack.c.l.b16 %v211
  %v875 = vunpack.c.l.b16 %v212
  %v876 = vunpack.c.l.b16 %v213
  %v877 = vunpack.c.l.b16 %v214
  %v878 = vunpack.c.l.b16 %v215
  %v879 = vunpack.c.l.b16 %v216
  %v880 = vunpack.c.l.b16 %v217
  %v881 = vunpack.c.l.b16 %v218
  %v882 = vunpack.c.l.b16 %v219
  %v883 = vunpack.c.l.b16 %v220
  %v884 = vunpack.c.l.b16 %v221
  %v885 = vunpack.c.l.b16 %v222
  %v886 = vunpack.c.l.b16 %v223
  %v887 = vunpack.c.l.b16 %v224
  %v888 = vunpack.c.l.b16 %v225
  %v889 = vunpack.c.l.b16 %v226
  %v890 = vunpack.c.l.b16 %v227
  %v891 = vunpack.c.l.b16 %v228
  %v892 = vunpack.c.l.b16 %v229
  %v893 = vunpack.c.l.b16 %v230
  %v894 = vunpack.c.l.b16 %v231
  %v895 = vunpack.c.l.b16 %v232
  %v896 = vunpack.c.l.b16 %v233
  %v897 = vunpack.c.l.b16 %v234
  %v898 = vunpack.c.l.b16 %v235
  %v899 = vunpack.c.l.b16 %v236
  %v900 = vunpack.c.l.b16 %v237
  %v901 = vunpack.c.l.b16 %v238
  %v902 = vpack.c.b16 %v759, %v758
  %v903 = vpack.c.b16 %v761, %v760
  %v904 = vpack.c.b16 %v763, %v762
  %v905 = vpack.c.b16 %v765, %v764
  %v906 = vpack.c.b16 %v767, %v766
  %v907 = vpack.c.b16 %v769, %v768
  %v908 = vpack.c.b16 %v771, %v770
  %v909 = vpack.c.b16 %v773, %v772
  %v910 = vpack.c.b16 %v775, %v774
  %v911 = vpack.c.b16 %v777, %v776
  %v912 = vpack.c.b16 %v779, %v778
  %v913 = vpack.c.b16 %v781, %v780
  %v914 = vpack.c.b16 %v783, %v782
  %v915 = vpack.c.b16 %v785, %v784
  %v916 = vpack.c.b16 %v787, %v786
  %v917 = vpack.c.b16 %v789, %v788
  %v918 = vpack.c.b16 %v791, %v790
  %v919 = vpack.c.b16 %v793, %v792
  %v920 = vpack.c.b16 %v795, %v794
  %v921 = vpack.c.b16 %v797, %v796
  %v922 = vpack.c.b16 %v799, %v798
  %v923 = vpack.c.b16 %v801, %v800
  %v924 = vpack.c.b16 %v803, %v802
  %v925 = vpack.c.b16 %v805, %v804
  %v926 = vpack.c.b16 %v807, %v806
  %v927 = vpack.c.b16 %v809, %v808
  %v928 = vpack.c.b16 %v811, %v810
  %v929 = vpack.c.b16 %v813, %v812
  %v930 = vpack.c.b16 %v815, %v814
  %v931 = vpack.c.b16 %v817, %v816
  %v932 = vpack.c.b16 %v819, %v818
  %v933 = vpack.c.b16 %v821, %v820
  %v934 = vpack.c.b16 %v823, %v822
  %v935 = vpack.c.b16 %v825, %v824
  %v936 = vpack.c.b16 %v827, %v826
  %v937 = vpack.c.b16 %v829, %v828
  %v938 = vpack.c.b16 %v831, %v830
  %v939 = vpack.c.b16 %v833, %v832
  %v940 = vpack.c.b16 %v835, %v834
  %v941 = vpack.c.b16 %v837, %v836
  %v942 = vpack.c.b16 %v839, %v838
  %v943 = vpack.c.b16 %v841, %v840
  %v944 = vpack.c.b16 %v843, %v842
  %v945 = vpack.c.b16 %v845, %v844
  %v946 = vpack.c.b16 %v847, %v846
  %v947 = vpack.c.b16 %v849, %v848
  %v948 = vpack.c.b16 %v851, %v850
  %v949 = vpack.c.b16 %v853, %v852
  %v950 = vpack.c.b16 %v855, %v854
  %v951 = vpack.c.b16 %v857, %v856
  %v952 = vpack.c.b16 %v859, %v858
  %v953 = vpack.c.b16 %v861, %v860
  %v954 = vpack.c.b16 %v863, %v862
  %v955 = vpack.c.b16 %v865, %v864
  %v956 = vpack.c.b16 %v867, %v866
  %v957 = vpack.c.b16 %v869, %v868
  %v958 = vpack.c.b16 %v871, %v870
  %v959 = vpack.c.b16 %v873, %v872
  %v960 = vpack.c.b16 %v875, %v874
  %v961 = vpack.c.b16 %v877, %v876
  %v962 = vpack.c.b16 %v879, %v878
  %v963 = vpack.c.b16 %v881, %v880
  %v964 = vpack.c.b16 %v883, %v882
  %v965 = vpack.c.b16 %v885, %v884
  %v966 = vpack.c.b16 %v887, %v886
  %v967 = vpack.c.b16 %v889, %v888
  %v968 = vpack.c.b16 %v891, %v890
  %v969 = vpack.c.b16 %v893, %v892
  %v970 = vpack.c.b16 %v895, %v894
  %v971 = vpack.c.b16 %v897, %v896
  %v972 = vpack.c.b16 %v899, %v898
  %v973 = vpack.c.b16 %v901, %v900
  %1046 = vmatprep.subr.bf16.mxu0 0
  %1047 = vmatpush1.bf16.msra.mxu0 %v909
  %1048 = vmatprep.subr.bf16.mxu0 0
  %1049 = vmatpush1.bf16.msra.mxu0 %v908
  %1050 = vmatprep.subr.bf16.mxu0 0
  %1051 = vmatpush1.bf16.msra.mxu0 %v907
  %1052 = vmatprep.subr.bf16.mxu0 0
  %1053 = vmatpush1.bf16.msra.mxu0 %v906
  %1054 = vmatprep.subr.bf16.mxu0 0
  %1055 = vmatpush1.bf16.msra.mxu0 %v905
  %1056 = vmatprep.subr.bf16.mxu0 0
  %1057 = vmatpush1.bf16.msra.mxu0 %v904
  %1058 = vmatprep.subr.bf16.mxu0 0
  %1059 = vmatpush1.bf16.msra.mxu0 %v903
  %1060 = vmatprep.subr.bf16.mxu0 0
  %1061 = vmatpush1.bf16.msra.mxu0 %v902
  %1062 = vmatprep.subr.bf16.mxu0 0
  %1063 = vmatpush2.bf16.msra.mxu0 %v917
  %1064 = vmatprep.subr.bf16.mxu0 0
  %1065 = vmatpush2.bf16.msra.mxu0 %v916
  %1066 = vmatprep.subr.bf16.mxu0 0
  %1067 = vmatpush2.bf16.msra.mxu0 %v915
  %1068 = vmatprep.subr.bf16.mxu0 0
  %1069 = vmatpush2.bf16.msra.mxu0 %v914
  %1070 = vmatprep.subr.bf16.mxu0 0
  %1071 = vmatpush2.bf16.msra.mxu0 %v913
  %1072 = vmatprep.subr.bf16.mxu0 0
  %1073 = vmatpush2.bf16.msra.mxu0 %v912
  %1074 = vmatprep.subr.bf16.mxu0 0
  %1075 = vmatpush2.bf16.msra.mxu0 %v911
  %1076 = vmatprep.subr.bf16.mxu0 0
  %1077 = vmatpush2.bf16.msra.mxu0 %v910
  %1078 = vmatprep.mubr.bf16.mxu0 %v471
  %1079 = vmatmul.mubr.bf16.gmra.mxu0 %v470
  %v1080 = vpop.f32.mrf.mxu0
  %v1081 = vadd.f32 %v244, %v1080
  %v1082 = vpop.f32.mrf.mxu0
  %v1083 = vpop.f32.mrf.mxu0
  %v1084 = vadd.f32 %v244, %v1083
  %v1085 = vpop.f32.mrf.mxu0
  %1086 = vmatprep.mubr.bf16.mxu0 %v480
  %1087 = vmatmul.mubr.bf16.gmra.mxu0 %v479
  %v1088 = vpop.f32.mrf.mxu0
  %v1089 = vadd.f32 %v244, %v1088
  %v1090 = vpop.f32.mrf.mxu0
  %v1091 = vpop.f32.mrf.mxu0
  %v1092 = vadd.f32 %v244, %v1091
  %v1093 = vpop.f32.mrf.mxu0
  %1094 = vmatprep.mubr.bf16.mxu0 %v489
  %1095 = vmatmul.mubr.bf16.gmra.mxu0 %v488
  %v1096 = vpop.f32.mrf.mxu0
  %v1097 = vadd.f32 %v244, %v1096
  %v1098 = vpop.f32.mrf.mxu0
  %v1099 = vpop.f32.mrf.mxu0
  %v1100 = vadd.f32 %v244, %v1099
  %v1101 = vpop.f32.mrf.mxu0
  %1102 = vmatprep.mubr.bf16.mxu0 %v498
  %1103 = vmatmul.mubr.bf16.gmra.mxu0 %v497
  %v1104 = vpop.f32.mrf.mxu0
  %v1105 = vadd.f32 %v244, %v1104
  %v1106 = vpop.f32.mrf.mxu0
  %v1107 = vpop.f32.mrf.mxu0
  %v1108 = vadd.f32 %v244, %v1107
  %v1109 = vpop.f32.mrf.mxu0
  %1110 = vmatprep.mubr.bf16.mxu0 %v507
  %1111 = vmatmul.mubr.bf16.gmra.mxu0 %v506
  %v1112 = vpop.f32.mrf.mxu0
  %v1113 = vadd.f32 %v244, %v1112
  %v1114 = vpop.f32.mrf.mxu0
  %v1115 = vpop.f32.mrf.mxu0
  %v1116 = vadd.f32 %v244, %v1115
  %v1117 = vpop.f32.mrf.mxu0
  %1118 = vmatprep.mubr.bf16.mxu0 %v516
  %1119 = vmatmul.mubr.bf16.gmra.mxu0 %v515
  %v1120 = vpop.f32.mrf.mxu0
  %v1121 = vadd.f32 %v244, %v1120
  %v1122 = vpop.f32.mrf.mxu0
  %v1123 = vpop.f32.mrf.mxu0
  %v1124 = vadd.f32 %v244, %v1123
  %v1125 = vpop.f32.mrf.mxu0
  %1126 = vmatprep.mubr.bf16.mxu0 %v525
  %1127 = vmatmul.mubr.bf16.gmra.mxu0 %v524
  %v1128 = vpop.f32.mrf.mxu0
  %v1129 = vadd.f32 %v244, %v1128
  %v1130 = vpop.f32.mrf.mxu0
  %v1131 = vpop.f32.mrf.mxu0
  %v1132 = vadd.f32 %v244, %v1131
  %v1133 = vpop.f32.mrf.mxu0
  %1134 = vmatprep.mubr.bf16.mxu0 %v534
  %1135 = vmatmul.mubr.bf16.gmra.mxu0 %v533
  %v1136 = vpop.f32.mrf.mxu0
  %v1137 = vadd.f32 %v244, %v1136
  %v1138 = vpop.f32.mrf.mxu0
  %v1139 = vpop.f32.mrf.mxu0
  %v1140 = vadd.f32 %v244, %v1139
  %v1141 = vpop.f32.mrf.mxu0
  %1142 = vdwg.mxu0
  %1143 = vmatprep.subr.bf16.mxu0 0
  %1144 = vmatpush1.bf16.msra.mxu0 %v925
  %1145 = vmatprep.subr.bf16.mxu0 0
  %1146 = vmatpush1.bf16.msra.mxu0 %v924
  %1147 = vmatprep.subr.bf16.mxu0 0
  %1148 = vmatpush1.bf16.msra.mxu0 %v923
  %1149 = vmatprep.subr.bf16.mxu0 0
  %1150 = vmatpush1.bf16.msra.mxu0 %v922
  %1151 = vmatprep.subr.bf16.mxu0 0
  %1152 = vmatpush1.bf16.msra.mxu0 %v921
  %1153 = vmatprep.subr.bf16.mxu0 0
  %1154 = vmatpush1.bf16.msra.mxu0 %v920
  %1155 = vmatprep.subr.bf16.mxu0 0
  %1156 = vmatpush1.bf16.msra.mxu0 %v919
  %1157 = vmatprep.subr.bf16.mxu0 0
  %1158 = vmatpush1.bf16.msra.mxu0 %v918
  %1159 = vmatprep.subr.bf16.mxu0 0
  %1160 = vmatpush2.bf16.msra.mxu0 %v933
  %1161 = vmatprep.subr.bf16.mxu0 0
  %1162 = vmatpush2.bf16.msra.mxu0 %v932
  %1163 = vmatprep.subr.bf16.mxu0 0
  %1164 = vmatpush2.bf16.msra.mxu0 %v931
  %1165 = vmatprep.subr.bf16.mxu0 0
  %1166 = vmatpush2.bf16.msra.mxu0 %v930
  %1167 = vmatprep.subr.bf16.mxu0 0
  %1168 = vmatpush2.bf16.msra.mxu0 %v929
  %1169 = vmatprep.subr.bf16.mxu0 0
  %1170 = vmatpush2.bf16.msra.mxu0 %v928
  %1171 = vmatprep.subr.bf16.mxu0 0
  %1172 = vmatpush2.bf16.msra.mxu0 %v927
  %1173 = vmatprep.subr.bf16.mxu0 0
  %1174 = vmatpush2.bf16.msra.mxu0 %v926
  %1175 = vmatprep.mubr.bf16.mxu0 %v473
  %1176 = vmatmul.mubr.bf16.gmra.mxu0 %v472
  %v1177 = vpop.f32.mrf.mxu0
  %v1178 = vadd.f32 %v1081, %v1177
  %v1179 = vpop.f32.mrf.mxu0
  %v1180 = vpop.f32.mrf.mxu0
  %v1181 = vadd.f32 %v1084, %v1180
  %v1182 = vpop.f32.mrf.mxu0
  %1183 = vmatprep.mubr.bf16.mxu0 %v482
  %1184 = vmatmul.mubr.bf16.gmra.mxu0 %v481
  %v1185 = vpop.f32.mrf.mxu0
  %v1186 = vadd.f32 %v1089, %v1185
  %v1187 = vpop.f32.mrf.mxu0
  %v1188 = vpop.f32.mrf.mxu0
  %v1189 = vadd.f32 %v1092, %v1188
  %v1190 = vpop.f32.mrf.mxu0
  %1191 = vmatprep.mubr.bf16.mxu0 %v491
  %1192 = vmatmul.mubr.bf16.gmra.mxu0 %v490
  %v1193 = vpop.f32.mrf.mxu0
  %v1194 = vadd.f32 %v1097, %v1193
  %v1195 = vpop.f32.mrf.mxu0
  %v1196 = vpop.f32.mrf.mxu0
  %v1197 = vadd.f32 %v1100, %v1196
  %v1198 = vpop.f32.mrf.mxu0
  %1199 = vmatprep.mubr.bf16.mxu0 %v500
  %1200 = vmatmul.mubr.bf16.gmra.mxu0 %v499
  %v1201 = vpop.f32.mrf.mxu0
  %v1202 = vadd.f32 %v1105, %v1201
  %v1203 = vpop.f32.mrf.mxu0
  %v1204 = vpop.f32.mrf.mxu0
  %v1205 = vadd.f32 %v1108, %v1204
  %v1206 = vpop.f32.mrf.mxu0
  %1207 = vmatprep.mubr.bf16.mxu0 %v509
  %1208 = vmatmul.mubr.bf16.gmra.mxu0 %v508
  %v1209 = vpop.f32.mrf.mxu0
  %v1210 = vadd.f32 %v1113, %v1209
  %v1211 = vpop.f32.mrf.mxu0
  %v1212 = vpop.f32.mrf.mxu0
  %v1213 = vadd.f32 %v1116, %v1212
  %v1214 = vpop.f32.mrf.mxu0
  %1215 = vmatprep.mubr.bf16.mxu0 %v518
  %1216 = vmatmul.mubr.bf16.gmra.mxu0 %v517
  %v1217 = vpop.f32.mrf.mxu0
  %v1218 = vadd.f32 %v1121, %v1217
  %v1219 = vpop.f32.mrf.mxu0
  %v1220 = vpop.f32.mrf.mxu0
  %v1221 = vadd.f32 %v1124, %v1220
  %v1222 = vpop.f32.mrf.mxu0
  %1223 = vmatprep.mubr.bf16.mxu0 %v527
  %1224 = vmatmul.mubr.bf16.gmra.mxu0 %v526
  %v1225 = vpop.f32.mrf.mxu0
  %v1226 = vadd.f32 %v1129, %v1225
  %v1227 = vpop.f32.mrf.mxu0
  %v1228 = vpop.f32.mrf.mxu0
  %v1229 = vadd.f32 %v1132, %v1228
  %v1230 = vpop.f32.mrf.mxu0
  %1231 = vmatprep.mubr.bf16.mxu0 %v536
  %1232 = vmatmul.mubr.bf16.gmra.mxu0 %v535
  %v1233 = vpop.f32.mrf.mxu0
  %v1234 = vadd.f32 %v1137, %v1233
  %v1235 = vpop.f32.mrf.mxu0
  %v1236 = vpop.f32.mrf.mxu0
  %v1237 = vadd.f32 %v1140, %v1236
  %v1238 = vpop.f32.mrf.mxu0
  %1239 = vdwg.mxu0
  %1240 = vmatprep.subr.bf16.mxu0 0
  %1241 = vmatpush1.bf16.msra.mxu0 %v941
  %1242 = vmatprep.subr.bf16.mxu0 0
  %1243 = vmatpush1.bf16.msra.mxu0 %v940
  %1244 = vmatprep.subr.bf16.mxu0 0
  %1245 = vmatpush1.bf16.msra.mxu0 %v939
  %1246 = vmatprep.subr.bf16.mxu0 0
  %1247 = vmatpush1.bf16.msra.mxu0 %v938
  %1248 = vmatprep.subr.bf16.mxu0 0
  %1249 = vmatpush1.bf16.msra.mxu0 %v937
  %1250 = vmatprep.subr.bf16.mxu0 0
  %1251 = vmatpush1.bf16.msra.mxu0 %v936
  %1252 = vmatprep.subr.bf16.mxu0 0
  %1253 = vmatpush1.bf16.msra.mxu0 %v935
  %1254 = vmatprep.subr.bf16.mxu0 0
  %1255 = vmatpush1.bf16.msra.mxu0 %v934
  %1256 = vmatprep.subr.bf16.mxu0 0
  %1257 = vmatpush2.bf16.msra.mxu0 %v949
  %1258 = vmatprep.subr.bf16.mxu0 0
  %1259 = vmatpush2.bf16.msra.mxu0 %v948
  %1260 = vmatprep.subr.bf16.mxu0 0
  %1261 = vmatpush2.bf16.msra.mxu0 %v947
  %1262 = vmatprep.subr.bf16.mxu0 0
  %1263 = vmatpush2.bf16.msra.mxu0 %v946
  %1264 = vmatprep.subr.bf16.mxu0 0
  %1265 = vmatpush2.bf16.msra.mxu0 %v945
  %1266 = vmatprep.subr.bf16.mxu0 0
  %1267 = vmatpush2.bf16.msra.mxu0 %v944
  %1268 = vmatprep.subr.bf16.mxu0 0
  %1269 = vmatpush2.bf16.msra.mxu0 %v943
  %1270 = vmatprep.subr.bf16.mxu0 0
  %1271 = vmatpush2.bf16.msra.mxu0 %v942
  %1272 = vmatprep.mubr.bf16.mxu0 %v475
  %1273 = vmatmul.mubr.bf16.gmra.mxu0 %v474
  %v1274 = vpop.f32.mrf.mxu0
  %v1275 = vadd.f32 %v1178, %v1274
  %v1276 = vpop.f32.mrf.mxu0
  %v1277 = vpop.f32.mrf.mxu0
  %v1278 = vadd.f32 %v1181, %v1277
  %v1279 = vpop.f32.mrf.mxu0
  %1280 = vmatprep.mubr.bf16.mxu0 %v484
  %1281 = vmatmul.mubr.bf16.gmra.mxu0 %v483
  %v1282 = vpop.f32.mrf.mxu0
  %v1283 = vadd.f32 %v1186, %v1282
  %v1284 = vpop.f32.mrf.mxu0
  %v1285 = vpop.f32.mrf.mxu0
  %v1286 = vadd.f32 %v1189, %v1285
  %v1287 = vpop.f32.mrf.mxu0
  %1288 = vmatprep.mubr.bf16.mxu0 %v493
  %1289 = vmatmul.mubr.bf16.gmra.mxu0 %v492
  %v1290 = vpop.f32.mrf.mxu0
  %v1291 = vadd.f32 %v1194, %v1290
  %v1292 = vpop.f32.mrf.mxu0
  %v1293 = vpop.f32.mrf.mxu0
  %v1294 = vadd.f32 %v1197, %v1293
  %v1295 = vpop.f32.mrf.mxu0
  %1296 = vmatprep.mubr.bf16.mxu0 %v502
  %1297 = vmatmul.mubr.bf16.gmra.mxu0 %v501
  %v1298 = vpop.f32.mrf.mxu0
  %v1299 = vadd.f32 %v1202, %v1298
  %v1300 = vpop.f32.mrf.mxu0
  %v1301 = vpop.f32.mrf.mxu0
  %v1302 = vadd.f32 %v1205, %v1301
  %v1303 = vpop.f32.mrf.mxu0
  %1304 = vmatprep.mubr.bf16.mxu0 %v511
  %1305 = vmatmul.mubr.bf16.gmra.mxu0 %v510
  %v1306 = vpop.f32.mrf.mxu0
  %v1307 = vadd.f32 %v1210, %v1306
  %v1308 = vpop.f32.mrf.mxu0
  %v1309 = vpop.f32.mrf.mxu0
  %v1310 = vadd.f32 %v1213, %v1309
  %v1311 = vpop.f32.mrf.mxu0
  %1312 = vmatprep.mubr.bf16.mxu0 %v520
  %1313 = vmatmul.mubr.bf16.gmra.mxu0 %v519
  %v1314 = vpop.f32.mrf.mxu0
  %v1315 = vadd.f32 %v1218, %v1314
  %v1316 = vpop.f32.mrf.mxu0
  %v1317 = vpop.f32.mrf.mxu0
  %v1318 = vadd.f32 %v1221, %v1317
  %v1319 = vpop.f32.mrf.mxu0
  %1320 = vmatprep.mubr.bf16.mxu0 %v529
  %1321 = vmatmul.mubr.bf16.gmra.mxu0 %v528
  %v1322 = vpop.f32.mrf.mxu0
  %v1323 = vadd.f32 %v1226, %v1322
  %v1324 = vpop.f32.mrf.mxu0
  %v1325 = vpop.f32.mrf.mxu0
  %v1326 = vadd.f32 %v1229, %v1325
  %v1327 = vpop.f32.mrf.mxu0
  %1328 = vmatprep.mubr.bf16.mxu0 %v538
  %1329 = vmatmul.mubr.bf16.gmra.mxu0 %v537
  %v1330 = vpop.f32.mrf.mxu0
  %v1331 = vadd.f32 %v1234, %v1330
  %v1332 = vpop.f32.mrf.mxu0
  %v1333 = vpop.f32.mrf.mxu0
  %v1334 = vadd.f32 %v1237, %v1333
  %v1335 = vpop.f32.mrf.mxu0
  %1336 = vdwg.mxu0
  %1337 = vmatprep.subr.bf16.mxu0 0
  %1338 = vmatpush1.bf16.msra.mxu0 %v957
  %1339 = vmatprep.subr.bf16.mxu0 0
  %1340 = vmatpush1.bf16.msra.mxu0 %v956
  %1341 = vmatprep.subr.bf16.mxu0 0
  %1342 = vmatpush1.bf16.msra.mxu0 %v955
  %1343 = vmatprep.subr.bf16.mxu0 0
  %1344 = vmatpush1.bf16.msra.mxu0 %v954
  %1345 = vmatprep.subr.bf16.mxu0 0
  %1346 = vmatpush1.bf16.msra.mxu0 %v953
  %1347 = vmatprep.subr.bf16.mxu0 0
  %1348 = vmatpush1.bf16.msra.mxu0 %v952
  %1349 = vmatprep.subr.bf16.mxu0 0
  %1350 = vmatpush1.bf16.msra.mxu0 %v951
  %1351 = vmatprep.subr.bf16.mxu0 0
  %1352 = vmatpush1.bf16.msra.mxu0 %v950
  %1353 = vmatprep.subr.bf16.mxu0 0
  %1354 = vmatpush2.bf16.msra.mxu0 %v965
  %1355 = vmatprep.subr.bf16.mxu0 0
  %1356 = vmatpush2.bf16.msra.mxu0 %v964
  %1357 = vmatprep.subr.bf16.mxu0 0
  %1358 = vmatpush2.bf16.msra.mxu0 %v963
  %1359 = vmatprep.subr.bf16.mxu0 0
  %1360 = vmatpush2.bf16.msra.mxu0 %v962
  %1361 = vmatprep.subr.bf16.mxu0 0
  %1362 = vmatpush2.bf16.msra.mxu0 %v961
  %1363 = vmatprep.subr.bf16.mxu0 0
  %1364 = vmatpush2.bf16.msra.mxu0 %v960
  %1365 = vmatprep.subr.bf16.mxu0 0
  %1366 = vmatpush2.bf16.msra.mxu0 %v959
  %1367 = vmatprep.subr.bf16.mxu0 0
  %1368 = vmatpush2.bf16.msra.mxu0 %v958
  %1369 = vmatprep.mubr.bf16.mxu0 %v477
  %1370 = vmatmul.mubr.bf16.gmra.mxu0 %v476
  %v1371 = vpop.f32.mrf.mxu0
  %v1372 = vadd.f32 %v1275, %v1371
  %v1373 = vpop.f32.mrf.mxu0
  %v1374 = vpop.f32.mrf.mxu0
  %v1375 = vadd.f32 %v1278, %v1374
  %v1376 = vpop.f32.mrf.mxu0
  %1377 = vmatprep.mubr.bf16.mxu0 %v486
  %1378 = vmatmul.mubr.bf16.gmra.mxu0 %v485
  %v1379 = vpop.f32.mrf.mxu0
  %v1380 = vadd.f32 %v1283, %v1379
  %v1381 = vpop.f32.mrf.mxu0
  %v1382 = vpop.f32.mrf.mxu0
  %v1383 = vadd.f32 %v1286, %v1382
  %v1384 = vpop.f32.mrf.mxu0
  %1385 = vmatprep.mubr.bf16.mxu0 %v495
  %1386 = vmatmul.mubr.bf16.gmra.mxu0 %v494
  %v1387 = vpop.f32.mrf.mxu0
  %v1388 = vadd.f32 %v1291, %v1387
  %v1389 = vpop.f32.mrf.mxu0
  %v1390 = vpop.f32.mrf.mxu0
  %v1391 = vadd.f32 %v1294, %v1390
  %v1392 = vpop.f32.mrf.mxu0
  %1393 = vmatprep.mubr.bf16.mxu0 %v504
  %1394 = vmatmul.mubr.bf16.gmra.mxu0 %v503
  %v1395 = vpop.f32.mrf.mxu0
  %v1396 = vadd.f32 %v1299, %v1395
  %v1397 = vpop.f32.mrf.mxu0
  %v1398 = vpop.f32.mrf.mxu0
  %v1399 = vadd.f32 %v1302, %v1398
  %v1400 = vpop.f32.mrf.mxu0
  %1401 = vmatprep.mubr.bf16.mxu0 %v513
  %1402 = vmatmul.mubr.bf16.gmra.mxu0 %v512
  %v1403 = vpop.f32.mrf.mxu0
  %v1404 = vadd.f32 %v1307, %v1403
  %v1405 = vpop.f32.mrf.mxu0
  %v1406 = vpop.f32.mrf.mxu0
  %v1407 = vadd.f32 %v1310, %v1406
  %v1408 = vpop.f32.mrf.mxu0
  %1409 = vmatprep.mubr.bf16.mxu0 %v522
  %1410 = vmatmul.mubr.bf16.gmra.mxu0 %v521
  %v1411 = vpop.f32.mrf.mxu0
  %v1412 = vadd.f32 %v1315, %v1411
  %v1413 = vpop.f32.mrf.mxu0
  %v1414 = vpop.f32.mrf.mxu0
  %v1415 = vadd.f32 %v1318, %v1414
  %v1416 = vpop.f32.mrf.mxu0
  %1417 = vmatprep.mubr.bf16.mxu0 %v531
  %1418 = vmatmul.mubr.bf16.gmra.mxu0 %v530
  %v1419 = vpop.f32.mrf.mxu0
  %v1420 = vadd.f32 %v1323, %v1419
  %v1421 = vpop.f32.mrf.mxu0
  %v1422 = vpop.f32.mrf.mxu0
  %v1423 = vadd.f32 %v1326, %v1422
  %v1424 = vpop.f32.mrf.mxu0
  %1425 = vmatprep.mubr.bf16.mxu0 %v540
  %1426 = vmatmul.mubr.bf16.gmra.mxu0 %v539
  %v1427 = vpop.f32.mrf.mxu0
  %v1428 = vadd.f32 %v1331, %v1427
  %v1429 = vpop.f32.mrf.mxu0
  %v1430 = vpop.f32.mrf.mxu0
  %v1431 = vadd.f32 %v1334, %v1430
  %v1432 = vpop.f32.mrf.mxu0
  %1433 = vdwg.mxu0
  %1434 = vmatprep.subr.bf16.mxu0 0
  %1435 = vmatpush1.bf16.msra.mxu0 %v973
  %1436 = vmatprep.subr.bf16.mxu0 0
  %1437 = vmatpush1.bf16.msra.mxu0 %v972
  %1438 = vmatprep.subr.bf16.mxu0 0
  %1439 = vmatpush1.bf16.msra.mxu0 %v971
  %1440 = vmatprep.subr.bf16.mxu0 0
  %1441 = vmatpush1.bf16.msra.mxu0 %v970
  %1442 = vmatprep.subr.bf16.mxu0 0
  %1443 = vmatpush1.bf16.msra.mxu0 %v969
  %1444 = vmatprep.subr.bf16.mxu0 0
  %1445 = vmatpush1.bf16.msra.mxu0 %v968
  %1446 = vmatprep.subr.bf16.mxu0 0
  %1447 = vmatpush1.bf16.msra.mxu0 %v967
  %1448 = vmatprep.subr.bf16.mxu0 0
  %1449 = vmatpush1.bf16.msra.mxu0 %v966
  %1450 = vmatprep.subr.bf16.mxu0 0
  %1451 = vmatpush2.bf16.msra.mxu0 0
  %1452 = vmatprep.subr.bf16.mxu0 0
  %1453 = vmatpush2.bf16.msra.mxu0 0
  %1454 = vmatprep.subr.bf16.mxu0 0
  %1455 = vmatpush2.bf16.msra.mxu0 0
  %1456 = vmatprep.subr.bf16.mxu0 0
  %1457 = vmatpush2.bf16.msra.mxu0 0
  %1458 = vmatprep.subr.bf16.mxu0 0
  %1459 = vmatpush2.bf16.msra.mxu0 0
  %1460 = vmatprep.subr.bf16.mxu0 0
  %1461 = vmatpush2.bf16.msra.mxu0 0
  %1462 = vmatprep.subr.bf16.mxu0 0
  %1463 = vmatpush2.bf16.msra.mxu0 0
  %1464 = vmatprep.subr.bf16.mxu0 0
  %1465 = vmatpush2.bf16.msra.mxu0 0
  %1466 = vmatprep.mubr.bf16.mxu0 0
  %1467 = vmatmul.mubr.bf16.gmra.mxu0 %v478
  %v1468 = vpop.f32.mrf.mxu0
  %v1469 = vadd.f32 %v1372, %v1468
  %v1470 = vpop.f32.mrf.mxu0
  %v1471 = vpop.f32.mrf.mxu0
  %v1472 = vadd.f32 %v1375, %v1471
  %v1473 = vpop.f32.mrf.mxu0
  %1474 = vmatprep.mubr.bf16.mxu0 0
  %1475 = vmatmul.mubr.bf16.gmra.mxu0 %v487
  %v1476 = vpop.f32.mrf.mxu0
  %v1477 = vadd.f32 %v1380, %v1476
  %v1478 = vpop.f32.mrf.mxu0
  %v1479 = vpop.f32.mrf.mxu0
  %v1480 = vadd.f32 %v1383, %v1479
  %v1481 = vpop.f32.mrf.mxu0
  %1482 = vmatprep.mubr.bf16.mxu0 0
  %1483 = vmatmul.mubr.bf16.gmra.mxu0 %v496
  %v1484 = vpop.f32.mrf.mxu0
  %v1485 = vadd.f32 %v1388, %v1484
  %v1486 = vpop.f32.mrf.mxu0
  %v1487 = vpop.f32.mrf.mxu0
  %v1488 = vadd.f32 %v1391, %v1487
  %v1489 = vpop.f32.mrf.mxu0
  %1490 = vmatprep.mubr.bf16.mxu0 0
  %1491 = vmatmul.mubr.bf16.gmra.mxu0 %v505
  %v1492 = vpop.f32.mrf.mxu0
  %v1493 = vadd.f32 %v1396, %v1492
  %v1494 = vpop.f32.mrf.mxu0
  %v1495 = vpop.f32.mrf.mxu0
  %v1496 = vadd.f32 %v1399, %v1495
  %v1497 = vpop.f32.mrf.mxu0
  %1498 = vmatprep.mubr.bf16.mxu0 0
  %1499 = vmatmul.mubr.bf16.gmra.mxu0 %v514
  %v1500 = vpop.f32.mrf.mxu0
  %v1501 = vadd.f32 %v1404, %v1500
  %v1502 = vpop.f32.mrf.mxu0
  %v1503 = vpop.f32.mrf.mxu0
  %v1504 = vadd.f32 %v1407, %v1503
  %v1505 = vpop.f32.mrf.mxu0
  %1506 = vmatprep.mubr.bf16.mxu0 0
  %1507 = vmatmul.mubr.bf16.gmra.mxu0 %v523
  %v1508 = vpop.f32.mrf.mxu0
  %v1509 = vadd.f32 %v1412, %v1508
  %v1510 = vpop.f32.mrf.mxu0
  %v1511 = vpop.f32.mrf.mxu0
  %v1512 = vadd.f32 %v1415, %v1511
  %v1513 = vpop.f32.mrf.mxu0
  %1514 = vmatprep.mubr.bf16.mxu0 0
  %1515 = vmatmul.mubr.bf16.gmra.mxu0 %v532
  %v1516 = vpop.f32.mrf.mxu0
  %v1517 = vadd.f32 %v1420, %v1516
  %v1518 = vpop.f32.mrf.mxu0
  %v1519 = vpop.f32.mrf.mxu0
  %v1520 = vadd.f32 %v1423, %v1519
  %v1521 = vpop.f32.mrf.mxu0
  %1522 = vmatprep.mubr.bf16.mxu0 0
  %1523 = vmatmul.mubr.bf16.gmra.mxu0 %v541
  %v1524 = vpop.f32.mrf.mxu0
  %v1525 = vadd.f32 %v1428, %v1524
  %v1526 = vpop.f32.mrf.mxu0
  %v1527 = vpop.f32.mrf.mxu0
  %v1528 = vadd.f32 %v1431, %v1527
  %v1529 = vpop.f32.mrf.mxu0
  %1530 = vdwg.mxu0
  %v1531 = vmul.f32 %v1469, 0.1
  %v1532 = vmul.f32 %v1472, 0.1
  %v1533 = vmul.f32 %v1477, 0.1
  %v1534 = vmul.f32 %v1480, 0.1
  %v1535 = vmul.f32 %v1485, 0.1
  %v1536 = vmul.f32 %v1488, 0.1
  %v1537 = vmul.f32 %v1493, 0.1
  %v1538 = vmul.f32 %v1496, 0.1
  %v1539 = vmul.f32 %v1501, 0.1
  %v1540 = vmul.f32 %v1504, 0.1
  %v1541 = vmul.f32 %v1509, 0.1
  %v1542 = vmul.f32 %v1512, 0.1
  %v1543 = vmul.f32 %v1517, 0.1
  %v1544 = vmul.f32 %v1520, 0.1
  %v1545 = vmul.f32 %v1525, 0.1
  %v1546 = vmul.f32 %v1528, 0.1
  %v1547 = vmax.f32 %v1469, %v1531
  %v1548 = vmax.f32 %v1472, %v1532
  %v1549 = vmax.f32 %v1477, %v1533
  %v1550 = vmax.f32 %v1480, %v1534
  %v1551 = vmax.f32 %v1485, %v1535
  %v1552 = vmax.f32 %v1488, %v1536
  %v1553 = vmax.f32 %v1493, %v1537
  %v1554 = vmax.f32 %v1496, %v1538
  %v1555 = vmax.f32 %v1501, %v1539
  %v1556 = vmax.f32 %v1504, %v1540
  %v1557 = vmax.f32 %v1509, %v1541
  %v1558 = vmax.f32 %v1512, %v1542
  %v1559 = vmax.f32 %v1517, %v1543
  %v1560 = vmax.f32 %v1520, %v1544
  %v1561 = vmax.f32 %v1525, %v1545
  %v1562 = vmax.f32 %v1528, %v1546
  %v1563 = vunpack.c.l.bf16 %v17
  %v1564 = vunpack.c.l.bf16 %v22
  %v1565 = vunpack.c.l.bf16 %v27
  %v1566 = vunpack.c.l.bf16 %v32
  %v1567 = vunpack.c.l.bf16 %v37
  %v1568 = vunpack.c.l.bf16 %v42
  %v1569 = vunpack.c.l.bf16 %v47
  %v1570 = vunpack.c.l.bf16 %v52
  %v1571 = vunpack.c.l.bf16 %v57
  %v1572 = vunpack.c.l.bf16 %v62
  %v1573 = vunpack.c.l.bf16 %v67
  %v1574 = vunpack.c.l.bf16 %v72
  %v1575 = vunpack.c.l.bf16 %v77
  %v1576 = vunpack.c.l.bf16 %v82
  %v1577 = vunpack.c.l.bf16 %v87
  %v1578 = vunpack.c.l.bf16 %v92
  %v1579 = vadd.f32 %v1547, %v1563
  %v1580 = vadd.f32 %v1548, %v1564
  %v1581 = vadd.f32 %v1549, %v1565
  %v1582 = vadd.f32 %v1550, %v1566
  %v1583 = vadd.f32 %v1551, %v1567
  %v1584 = vadd.f32 %v1552, %v1568
  %v1585 = vadd.f32 %v1553, %v1569
  %v1586 = vadd.f32 %v1554, %v1570
  %v1587 = vadd.f32 %v1555, %v1571
  %v1588 = vadd.f32 %v1556, %v1572
  %v1589 = vadd.f32 %v1557, %v1573
  %v1590 = vadd.f32 %v1558, %v1574
  %v1591 = vadd.f32 %v1559, %v1575
  %v1592 = vadd.f32 %v1560, %v1576
  %v1593 = vadd.f32 %v1561, %v1577
  %v1594 = vadd.f32 %v1562, %v1578
  %1595 = vst [vmem:[%s3] sm:$0xff] %v1579
  %1596 = vst [vmem:[%s3 + $0x8] sm:$0xff] %v1580
  %1597 = vst [vmem:[%s3 + $0x10] sm:$0xff] %v1581
  %1598 = vst [vmem:[%s3 + $0x18] sm:$0xff] %v1582
  %1599 = vst [vmem:[%s3 + $0x20] sm:$0xff] %v1583
  %1600 = vst [vmem:[%s3 + $0x28] sm:$0xff] %v1584
  %1601 = vst [vmem:[%s3 + $0x30] sm:$0xff] %v1585
  %1602 = vst [vmem:[%s3 + $0x38] sm:$0xff] %v1586
  %1603 = vst [vmem:[%s3 + $0x40] sm:$0xff] %v1587
  %1604 = vst [vmem:[%s3 + $0x48] sm:$0xff] %v1588
  %1605 = vst [vmem:[%s3 + $0x50] sm:$0xff] %v1589
  %1606 = vst [vmem:[%s3 + $0x58] sm:$0xff] %v1590
  %1607 = vst [vmem:[%s3 + $0x60] sm:$0xff] %v1591
  %1608 = vst [vmem:[%s3 + $0x68] sm:$0xff] %v1592
  %1609 = vst [vmem:[%s3 + $0x70] sm:$0xff] %v1593
  %1610 = vst [vmem:[%s3 + $0x78] sm:$0xff] %v1594
  // Predicated region
  $region14: #{_lambda_.26} parent=0 // pred_check
    _
  $region15: #{_lambda_.26} parent=0 // pred_check_branch
    %1612 = sbr.rel (0) target = $region17
  $region16: #{_lambda_.26} parent=0 // pred_region
    _
  $region17: #{_lambda_.26} parent=0 // pred_fallthru
    _
  // Predicated region
  $region18: #{_lambda_.26} parent=0 // pred_check
    _
  $region19: #{_lambda_.26} parent=0 // pred_check_branch
    %1614 = sbr.rel (0) target = $region21
  $region20: #{_lambda_.26} parent=0 // pred_region
    _
  $region21: #{_lambda_.26} parent=0 // pred_fallthru
    _

// kernel: _lambda_.27
$region0: #{_lambda_.27}
  #allocation0 [shape = 'u32[]', space=smem, size = 0x4, offset = 0x4, fixed_abs, tag = 'smem constant byte address 0x4 - core index']
  #allocation1 [shape = 'u32[144,128]{1,0:T(1,128)}', space=vmem, size = 0x12000, scoped, tag = 'internal scratch']
  %s0 = inlined_call_operand.vmem [shape: bf16[128,512], index: 0, kind: input, shape index: {}]
  %s1 = inlined_call_operand.vmem [shape: bf16[512,64], index: 1, kind: input, shape index: {}]
  %s2 = inlined_call_operand.vmem [shape: f32[1,64], index: 2, kind: input, shape index: {}]
  %s3 = inlined_call_operand.vmem [shape: f32[1,64], index: 3, kind: input, shape index: {}]
  %s4 = inlined_call_operand.vmem [shape: f32[1,64], index: 4, kind: input, shape index: {}]
  %s5 = inlined_call_operand.vmem [shape: f32[128,64], index: 5, kind: output, shape index: {}]
  %s6 = sld [smem:[#allocation0]]
  $region30: #{_lambda_.27} parent=0
    _
  %s8 = ssub.s32 1, %s6
  %s9 = scalar_select 0, %s8, %s6
  // Predicated region
  $region2: #{_lambda_.27} parent=0 // pred_check
    _
  $region3: #{_lambda_.27} parent=0 // pred_check_branch
    %11 = sbr.rel (0) target = $region5
  $region4: #{_lambda_.27} parent=0 // pred_region
    _
  $region5: #{_lambda_.27} parent=0 // pred_fallthru
    _
  // Predicated region
  $region6: #{_lambda_.27} parent=0 // pred_check
    _
  $region7: #{_lambda_.27} parent=0 // pred_check_branch
    %13 = sbr.rel (0) target = $region9
  $region8: #{_lambda_.27} parent=0 // pred_region
    _
  $region9: #{_lambda_.27} parent=0 // pred_fallthru
    _
  // Predicated region
  $region10: #{_lambda_.27} parent=0 // pred_check
    _
  $region11: #{_lambda_.27} parent=0 // pred_check_branch
    %15 = sbr.rel (0) target = $region13
  $region12: #{_lambda_.27} parent=0 // pred_region
    _
  $region13: #{_lambda_.27} parent=0 // pred_fallthru
    _
  // Predicated region
  $region14: #{_lambda_.27} parent=0 // pred_check
    _
  $region15: #{_lambda_.27} parent=0 // pred_check_branch
    %17 = sbr.rel (0) target = $region17
  $region16: #{_lambda_.27} parent=0 // pred_region
    _
  $region17: #{_lambda_.27} parent=0 // pred_fallthru
    _
  // Predicated region
  $region18: #{_lambda_.27} parent=0 // pred_check
    _
  $region19: #{_lambda_.27} parent=0 // pred_check_branch
    %19 = sbr.rel (0) target = $region21
  $region20: #{_lambda_.27} parent=0 // pred_region
    _
  $region21: #{_lambda_.27} parent=0 // pred_fallthru
    _
  %v21 = vld [vmem:[%s0] sm:$0xff]
  %v22 = vld [vmem:[%s0 + $0x8] sm:$0xff]
  %v23 = vld [vmem:[%s0 + $0x10] sm:$0xff]
  %v24 = vld [vmem:[%s0 + $0x18] sm:$0xff]
  %v25 = vld [vmem:[%s0 + $0x20] sm:$0xff]
  %v26 = vld [vmem:[%s0 + $0x28] sm:$0xff]
  %v27 = vld [vmem:[%s0 + $0x30] sm:$0xff]
  %v28 = vld [vmem:[%s0 + $0x38] sm:$0xff]
  %v29 = vld [vmem:[%s0 + $0x40] sm:$0xff]
  %v30 = vld [vmem:[%s0 + $0x48] sm:$0xff]
  %v31 = vld [vmem:[%s0 + $0x50] sm:$0xff]
  %v32 = vld [vmem:[%s0 + $0x58] sm:$0xff]
  %v33 = vld [vmem:[%s0 + $0x60] sm:$0xff]
  %v34 = vld [vmem:[%s0 + $0x68] sm:$0xff]
  %v35 = vld [vmem:[%s0 + $0x70] sm:$0xff]
  %v36 = vld [vmem:[%s0 + $0x78] sm:$0xff]
  %v37 = vld [vmem:[%s0 + $0x80] sm:$0xff]
  %v38 = vld [vmem:[%s0 + $0x88] sm:$0xff]
  %v39 = vld [vmem:[%s0 + $0x90] sm:$0xff]
  %v40 = vld [vmem:[%s0 + $0x98] sm:$0xff]
  %v41 = vld [vmem:[%s0 + $0xa0] sm:$0xff]
  %v42 = vld [vmem:[%s0 + $0xa8] sm:$0xff]
  %v43 = vld [vmem:[%s0 + $0xb0] sm:$0xff]
  %v44 = vld [vmem:[%s0 + $0xb8] sm:$0xff]
  %v45 = vld [vmem:[%s0 + $0xc0] sm:$0xff]
  %v46 = vld [vmem:[%s0 + $0xc8] sm:$0xff]
  %v47 = vld [vmem:[%s0 + $0xd0] sm:$0xff]
  %v48 = vld [vmem:[%s0 + $0xd8] sm:$0xff]
  %v49 = vld [vmem:[%s0 + $0xe0] sm:$0xff]
  %v50 = vld [vmem:[%s0 + $0xe8] sm:$0xff]
  %v51 = vld [vmem:[%s0 + $0xf0] sm:$0xff]
  %v52 = vld [vmem:[%s0 + $0xf8] sm:$0xff]
  %v53 = vld [vmem:[%s1] sm:$0xf]
  %v54 = vld [vmem:[%s1 + $0x4] sm:$0xf]
  %v55 = vld [vmem:[%s1 + $0x8] sm:$0xf]
  %v56 = vld [vmem:[%s1 + $0xc] sm:$0xf]
  %v57 = vld [vmem:[%s1 + $0x10] sm:$0xf]
  %v58 = vld [vmem:[%s1 + $0x14] sm:$0xf]
  %v59 = vld [vmem:[%s1 + $0x18] sm:$0xf]
  %v60 = vld [vmem:[%s1 + $0x1c] sm:$0xf]
  %v61 = vld [vmem:[%s1 + $0x20] sm:$0xf]
  %v62 = vld [vmem:[%s1 + $0x24] sm:$0xf]
  %v63 = vld [vmem:[%s1 + $0x28] sm:$0xf]
  %v64 = vld [vmem:[%s1 + $0x2c] sm:$0xf]
  %v65 = vld [vmem:[%s1 + $0x30] sm:$0xf]
  %v66 = vld [vmem:[%s1 + $0x34] sm:$0xf]
  %v67 = vld [vmem:[%s1 + $0x38] sm:$0xf]
  %v68 = vld [vmem:[%s1 + $0x3c] sm:$0xf]
  %v69 = vld [vmem:[%s1 + $0x40] sm:$0xf]
  %v70 = vld [vmem:[%s1 + $0x44] sm:$0xf]
  %v71 = vld [vmem:[%s1 + $0x48] sm:$0xf]
  %v72 = vld [vmem:[%s1 + $0x4c] sm:$0xf]
  %v73 = vld [vmem:[%s1 + $0x50] sm:$0xf]
  %v74 = vld [vmem:[%s1 + $0x54] sm:$0xf]
  %v75 = vld [vmem:[%s1 + $0x58] sm:$0xf]
  %v76 = vld [vmem:[%s1 + $0x5c] sm:$0xf]
  %v77 = vld [vmem:[%s1 + $0x60] sm:$0xf]
  %v78 = vld [vmem:[%s1 + $0x64] sm:$0xf]
  %v79 = vld [vmem:[%s1 + $0x68] sm:$0xf]
  %v80 = vld [vmem:[%s1 + $0x6c] sm:$0xf]
  %v81 = vld [vmem:[%s1 + $0x70] sm:$0xf]
  %v82 = vld [vmem:[%s1 + $0x74] sm:$0xf]
  %v83 = vld [vmem:[%s1 + $0x78] sm:$0xf]
  %v84 = vld [vmem:[%s1 + $0x7c] sm:$0xf]
  %v85 = vld [vmem:[%s1 + $0x80] sm:$0xf]
  %v86 = vld [vmem:[%s1 + $0x84] sm:$0xf]
  %v87 = vld [vmem:[%s1 + $0x88] sm:$0xf]
  %v88 = vld [vmem:[%s1 + $0x8c] sm:$0xf]
  %v89 = vld [vmem:[%s1 + $0x90] sm:$0xf]
  %v90 = vld [vmem:[%s1 + $0x94] sm:$0xf]
  %v91 = vld [vmem:[%s1 + $0x98] sm:$0xf]
  %v92 = vld [vmem:[%s1 + $0x9c] sm:$0xf]
  %v93 = vld [vmem:[%s1 + $0xa0] sm:$0xf]
  %v94 = vld [vmem:[%s1 + $0xa4] sm:$0xf]
  %v95 = vld [vmem:[%s1 + $0xa8] sm:$0xf]
  %v96 = vld [vmem:[%s1 + $0xac] sm:$0xf]
  %v97 = vld [vmem:[%s1 + $0xb0] sm:$0xf]
  %v98 = vld [vmem:[%s1 + $0xb4] sm:$0xf]
  %v99 = vld [vmem:[%s1 + $0xb8] sm:$0xf]
  %v100 = vld [vmem:[%s1 + $0xbc] sm:$0xf]
  %v101 = vld [vmem:[%s1 + $0xc0] sm:$0xf]
  %v102 = vld [vmem:[%s1 + $0xc4] sm:$0xf]
  %v103 = vld [vmem:[%s1 + $0xc8] sm:$0xf]
  %v104 = vld [vmem:[%s1 + $0xcc] sm:$0xf]
  %v105 = vld [vmem:[%s1 + $0xd0] sm:$0xf]
  %v106 = vld [vmem:[%s1 + $0xd4] sm:$0xf]
  %v107 = vld [vmem:[%s1 + $0xd8] sm:$0xf]
  %v108 = vld [vmem:[%s1 + $0xdc] sm:$0xf]
  %v109 = vld [vmem:[%s1 + $0xe0] sm:$0xf]
  %v110 = vld [vmem:[%s1 + $0xe4] sm:$0xf]
  %v111 = vld [vmem:[%s1 + $0xe8] sm:$0xf]
  %v112 = vld [vmem:[%s1 + $0xec] sm:$0xf]
  %v113 = vld [vmem:[%s1 + $0xf0] sm:$0xf]
  %v114 = vld [vmem:[%s1 + $0xf4] sm:$0xf]
  %v115 = vld [vmem:[%s1 + $0xf8] sm:$0xf]
  %v116 = vld [vmem:[%s1 + $0xfc] sm:$0xf]
  %v117 = vld [vmem:[%s2] sm:$0x1]
  %v119 = vlaneseq
  %v120 = vshrl.u32 %v119, 7
  %v121 = vsub.s32 0, %v120
  %v122 = vrot.slane %v117, %v121
  %v156 = vunpack.c.l.b16 %v21
  %v157 = vunpack.c.h.b16 %v21
  %v158 = vunpack.c.l.b16 %v22
  %v159 = vunpack.c.h.b16 %v22
  %v160 = vunpack.c.l.b16 %v23
  %v161 = vunpack.c.h.b16 %v23
  %v162 = vunpack.c.l.b16 %v24
  %v163 = vunpack.c.h.b16 %v24
  %v164 = vunpack.c.l.b16 %v25
  %v165 = vunpack.c.h.b16 %v25
  %v166 = vunpack.c.l.b16 %v26
  %v167 = vunpack.c.h.b16 %v26
  %v168 = vunpack.c.l.b16 %v27
  %v169 = vunpack.c.h.b16 %v27
  %v170 = vunpack.c.l.b16 %v28
  %v171 = vunpack.c.h.b16 %v28
  %v172 = vunpack.c.l.b16 %v29
  %v173 = vunpack.c.h.b16 %v29
  %v174 = vunpack.c.l.b16 %v30
  %v175 = vunpack.c.h.b16 %v30
  %v176 = vunpack.c.l.b16 %v31
  %v177 = vunpack.c.h.b16 %v31
  %v178 = vunpack.c.l.b16 %v32
  %v179 = vunpack.c.h.b16 %v32
  %v180 = vunpack.c.l.b16 %v33
  %v181 = vunpack.c.h.b16 %v33
  %v182 = vunpack.c.l.b16 %v34
  %v183 = vunpack.c.h.b16 %v34
  %v184 = vunpack.c.l.b16 %v35
  %v185 = vunpack.c.h.b16 %v35
  %v186 = vunpack.c.l.b16 %v36
  %v187 = vunpack.c.h.b16 %v36
  %v188 = vunpack.c.l.b16 %v37
  %v189 = vunpack.c.h.b16 %v37
  %v190 = vunpack.c.l.b16 %v38
  %v191 = vunpack.c.h.b16 %v38
  %v192 = vunpack.c.l.b16 %v39
  %v193 = vunpack.c.h.b16 %v39
  %v194 = vunpack.c.l.b16 %v40
  %v195 = vunpack.c.h.b16 %v40
  %v196 = vunpack.c.l.b16 %v41
  %v197 = vunpack.c.h.b16 %v41
  %v198 = vunpack.c.l.b16 %v42
  %v199 = vunpack.c.h.b16 %v42
  %v200 = vunpack.c.l.b16 %v43
  %v201 = vunpack.c.h.b16 %v43
  %v202 = vunpack.c.l.b16 %v44
  %v203 = vunpack.c.h.b16 %v44
  %v204 = vunpack.c.l.b16 %v45
  %v205 = vunpack.c.h.b16 %v45
  %v206 = vunpack.c.l.b16 %v46
  %v207 = vunpack.c.h.b16 %v46
  %v208 = vunpack.c.l.b16 %v47
  %v209 = vunpack.c.h.b16 %v47
  %v210 = vunpack.c.l.b16 %v48
  %v211 = vunpack.c.h.b16 %v48
  %v212 = vunpack.c.l.b16 %v49
  %v213 = vunpack.c.h.b16 %v49
  %v214 = vunpack.c.l.b16 %v50
  %v215 = vunpack.c.h.b16 %v50
  %v216 = vunpack.c.l.b16 %v51
  %v217 = vunpack.c.h.b16 %v51
  %v218 = vunpack.c.l.b16 %v52
  %v219 = vunpack.c.h.b16 %v52
  %v220 = vpack.c.b16 %v160, %v156
  %v221 = vpack.c.b16 %v161, %v157
  %v222 = vpack.c.b16 %v162, %v158
  %v223 = vpack.c.b16 %v163, %v159
  %v224 = vpack.c.b16 %v168, %v164
  %v225 = vpack.c.b16 %v169, %v165
  %v226 = vpack.c.b16 %v170, %v166
  %v227 = vpack.c.b16 %v171, %v167
  %v228 = vpack.c.b16 %v176, %v172
  %v229 = vpack.c.b16 %v177, %v173
  %v230 = vpack.c.b16 %v178, %v174
  %v231 = vpack.c.b16 %v179, %v175
  %v232 = vpack.c.b16 %v184, %v180
  %v233 = vpack.c.b16 %v185, %v181
  %v234 = vpack.c.b16 %v186, %v182
  %v235 = vpack.c.b16 %v187, %v183
  %v236 = vpack.c.b16 %v192, %v188
  %v237 = vpack.c.b16 %v193, %v189
  %v238 = vpack.c.b16 %v194, %v190
  %v239 = vpack.c.b16 %v195, %v191
  %v240 = vpack.c.b16 %v200, %v196
  %v241 = vpack.c.b16 %v201, %v197
  %v242 = vpack.c.b16 %v202, %v198
  %v243 = vpack.c.b16 %v203, %v199
  %v244 = vpack.c.b16 %v208, %v204
  %v245 = vpack.c.b16 %v209, %v205
  %v246 = vpack.c.b16 %v210, %v206
  %v247 = vpack.c.b16 %v211, %v207
  %v248 = vpack.c.b16 %v216, %v212
  %v249 = vpack.c.b16 %v217, %v213
  %v250 = vpack.c.b16 %v218, %v214
  %v251 = vpack.c.b16 %v219, %v215
  %v348 = vunpack.c.l.b16 %v53
  %v349 = vunpack.c.l.b16 %v54
  %v350 = vunpack.c.l.b16 %v55
  %v351 = vunpack.c.l.b16 %v56
  %v352 = vunpack.c.l.b16 %v57
  %v353 = vunpack.c.l.b16 %v58
  %v354 = vunpack.c.l.b16 %v59
  %v355 = vunpack.c.l.b16 %v60
  %v356 = vunpack.c.l.b16 %v61
  %v357 = vunpack.c.l.b16 %v62
  %v358 = vunpack.c.l.b16 %v63
  %v359 = vunpack.c.l.b16 %v64
  %v360 = vunpack.c.l.b16 %v65
  %v361 = vunpack.c.l.b16 %v66
  %v362 = vunpack.c.l.b16 %v67
  %v363 = vunpack.c.l.b16 %v68
  %v364 = vunpack.c.l.b16 %v69
  %v365 = vunpack.c.l.b16 %v70
  %v366 = vunpack.c.l.b16 %v71
  %v367 = vunpack.c.l.b16 %v72
  %v368 = vunpack.c.l.b16 %v73
  %v369 = vunpack.c.l.b16 %v74
  %v370 = vunpack.c.l.b16 %v75
  %v371 = vunpack.c.l.b16 %v76
  %v372 = vunpack.c.l.b16 %v77
  %v373 = vunpack.c.l.b16 %v78
  %v374 = vunpack.c.l.b16 %v79
  %v375 = vunpack.c.l.b16 %v80
  %v376 = vunpack.c.l.b16 %v81
  %v377 = vunpack.c.l.b16 %v82
  %v378 = vunpack.c.l.b16 %v83
  %v379 = vunpack.c.l.b16 %v84
  %v380 = vunpack.c.l.b16 %v85
  %v381 = vunpack.c.l.b16 %v86
  %v382 = vunpack.c.l.b16 %v87
  %v383 = vunpack.c.l.b16 %v88
  %v384 = vunpack.c.l.b16 %v89
  %v385 = vunpack.c.l.b16 %v90
  %v386 = vunpack.c.l.b16 %v91
  %v387 = vunpack.c.l.b16 %v92
  %v388 = vunpack.c.l.b16 %v93
  %v389 = vunpack.c.l.b16 %v94
  %v390 = vunpack.c.l.b16 %v95
  %v391 = vunpack.c.l.b16 %v96
  %v392 = vunpack.c.l.b16 %v97
  %v393 = vunpack.c.l.b16 %v98
  %v394 = vunpack.c.l.b16 %v99
  %v395 = vunpack.c.l.b16 %v100
  %v396 = vunpack.c.l.b16 %v101
  %v397 = vunpack.c.l.b16 %v102
  %v398 = vunpack.c.l.b16 %v103
  %v399 = vunpack.c.l.b16 %v104
  %v400 = vunpack.c.l.b16 %v105
  %v401 = vunpack.c.l.b16 %v106
  %v402 = vunpack.c.l.b16 %v107
  %v403 = vunpack.c.l.b16 %v108
  %v404 = vunpack.c.l.b16 %v109
  %v405 = vunpack.c.l.b16 %v110
  %v406 = vunpack.c.l.b16 %v111
  %v407 = vunpack.c.l.b16 %v112
  %v408 = vunpack.c.l.b16 %v113
  %v409 = vunpack.c.l.b16 %v114
  %v410 = vunpack.c.l.b16 %v115
  %v411 = vunpack.c.l.b16 %v116
  %v412 = vpack.c.b16 %v349, %v348
  %v413 = vpack.c.b16 %v351, %v350
  %v414 = vpack.c.b16 %v353, %v352
  %v415 = vpack.c.b16 %v355, %v354
  %v416 = vpack.c.b16 %v357, %v356
  %v417 = vpack.c.b16 %v359, %v358
  %v418 = vpack.c.b16 %v361, %v360
  %v419 = vpack.c.b16 %v363, %v362
  %v420 = vpack.c.b16 %v365, %v364
  %v421 = vpack.c.b16 %v367, %v366
  %v422 = vpack.c.b16 %v369, %v368
  %v423 = vpack.c.b16 %v371, %v370
  %v424 = vpack.c.b16 %v373, %v372
  %v425 = vpack.c.b16 %v375, %v374
  %v426 = vpack.c.b16 %v377, %v376
  %v427 = vpack.c.b16 %v379, %v378
  %v428 = vpack.c.b16 %v381, %v380
  %v429 = vpack.c.b16 %v383, %v382
  %v430 = vpack.c.b16 %v385, %v384
  %v431 = vpack.c.b16 %v387, %v386
  %v432 = vpack.c.b16 %v389, %v388
  %v433 = vpack.c.b16 %v391, %v390
  %v434 = vpack.c.b16 %v393, %v392
  %v435 = vpack.c.b16 %v395, %v394
  %v436 = vpack.c.b16 %v397, %v396
  %v437 = vpack.c.b16 %v399, %v398
  %v438 = vpack.c.b16 %v401, %v400
  %v439 = vpack.c.b16 %v403, %v402
  %v440 = vpack.c.b16 %v405, %v404
  %v441 = vpack.c.b16 %v407, %v406
  %v442 = vpack.c.b16 %v409, %v408
  %v443 = vpack.c.b16 %v411, %v410
  %476 = vmatprep.subr.bf16.mxu0 0
  %477 = vmatpush1.bf16.msra.mxu0 %v419
  %478 = vmatprep.subr.bf16.mxu0 0
  %479 = vmatpush1.bf16.msra.mxu0 %v418
  %480 = vmatprep.subr.bf16.mxu0 0
  %481 = vmatpush1.bf16.msra.mxu0 %v417
  %482 = vmatprep.subr.bf16.mxu0 0
  %483 = vmatpush1.bf16.msra.mxu0 %v416
  %484 = vmatprep.subr.bf16.mxu0 0
  %485 = vmatpush1.bf16.msra.mxu0 %v415
  %486 = vmatprep.subr.bf16.mxu0 0
  %487 = vmatpush1.bf16.msra.mxu0 %v414
  %488 = vmatprep.subr.bf16.mxu0 0
  %489 = vmatpush1.bf16.msra.mxu0 %v413
  %490 = vmatprep.subr.bf16.mxu0 0
  %491 = vmatpush1.bf16.msra.mxu0 %v412
  %492 = vmatprep.subr.bf16.mxu0 0
  %493 = vmatpush2.bf16.msra.mxu0 %v427
  %494 = vmatprep.subr.bf16.mxu0 0
  %495 = vmatpush2.bf16.msra.mxu0 %v426
  %496 = vmatprep.subr.bf16.mxu0 0
  %497 = vmatpush2.bf16.msra.mxu0 %v425
  %498 = vmatprep.subr.bf16.mxu0 0
  %499 = vmatpush2.bf16.msra.mxu0 %v424
  %500 = vmatprep.subr.bf16.mxu0 0
  %501 = vmatpush2.bf16.msra.mxu0 %v423
  %502 = vmatprep.subr.bf16.mxu0 0
  %503 = vmatpush2.bf16.msra.mxu0 %v422
  %504 = vmatprep.subr.bf16.mxu0 0
  %505 = vmatpush2.bf16.msra.mxu0 %v421
  %506 = vmatprep.subr.bf16.mxu0 0
  %507 = vmatpush2.bf16.msra.mxu0 %v420
  %508 = vmatprep.mubr.bf16.mxu0 %v221
  %509 = vmatmul.mubr.bf16.gmra.mxu0 %v220
  %v510 = vpop.f32.mrf.mxu0
  %v511 = vadd.f32 %v122, %v510
  %v512 = vpop.f32.mrf.mxu0
  %v513 = vpop.f32.mrf.mxu0
  %v514 = vadd.f32 %v122, %v513
  %v515 = vpop.f32.mrf.mxu0
  %516 = vmatprep.mubr.bf16.mxu0 %v225
  %517 = vmatmul.mubr.bf16.gmra.mxu0 %v224
  %v518 = vpop.f32.mrf.mxu0
  %v519 = vadd.f32 %v122, %v518
  %v520 = vpop.f32.mrf.mxu0
  %v521 = vpop.f32.mrf.mxu0
  %v522 = vadd.f32 %v122, %v521
  %v523 = vpop.f32.mrf.mxu0
  %524 = vmatprep.mubr.bf16.mxu0 %v229
  %525 = vmatmul.mubr.bf16.gmra.mxu0 %v228
  %v526 = vpop.f32.mrf.mxu0
  %v527 = vadd.f32 %v122, %v526
  %v528 = vpop.f32.mrf.mxu0
  %v529 = vpop.f32.mrf.mxu0
  %v530 = vadd.f32 %v122, %v529
  %v531 = vpop.f32.mrf.mxu0
  %532 = vmatprep.mubr.bf16.mxu0 %v233
  %533 = vmatmul.mubr.bf16.gmra.mxu0 %v232
  %v534 = vpop.f32.mrf.mxu0
  %v535 = vadd.f32 %v122, %v534
  %v536 = vpop.f32.mrf.mxu0
  %v537 = vpop.f32.mrf.mxu0
  %v538 = vadd.f32 %v122, %v537
  %v539 = vpop.f32.mrf.mxu0
  %540 = vmatprep.mubr.bf16.mxu0 %v237
  %541 = vmatmul.mubr.bf16.gmra.mxu0 %v236
  %v542 = vpop.f32.mrf.mxu0
  %v543 = vadd.f32 %v122, %v542
  %v544 = vpop.f32.mrf.mxu0
  %v545 = vpop.f32.mrf.mxu0
  %v546 = vadd.f32 %v122, %v545
  %v547 = vpop.f32.mrf.mxu0
  %548 = vmatprep.mubr.bf16.mxu0 %v241
  %549 = vmatmul.mubr.bf16.gmra.mxu0 %v240
  %v550 = vpop.f32.mrf.mxu0
  %v551 = vadd.f32 %v122, %v550
  %v552 = vpop.f32.mrf.mxu0
  %v553 = vpop.f32.mrf.mxu0
  %v554 = vadd.f32 %v122, %v553
  %v555 = vpop.f32.mrf.mxu0
  %556 = vmatprep.mubr.bf16.mxu0 %v245
  %557 = vmatmul.mubr.bf16.gmra.mxu0 %v244
  %v558 = vpop.f32.mrf.mxu0
  %v559 = vadd.f32 %v122, %v558
  %v560 = vpop.f32.mrf.mxu0
  %v561 = vpop.f32.mrf.mxu0
  %v562 = vadd.f32 %v122, %v561
  %v563 = vpop.f32.mrf.mxu0
  %564 = vmatprep.mubr.bf16.mxu0 %v249
  %565 = vmatmul.mubr.bf16.gmra.mxu0 %v248
  %v566 = vpop.f32.mrf.mxu0
  %v567 = vadd.f32 %v122, %v566
  %v568 = vpop.f32.mrf.mxu0
  %v569 = vpop.f32.mrf.mxu0
  %v570 = vadd.f32 %v122, %v569
  %v571 = vpop.f32.mrf.mxu0
  %572 = vdwg.mxu0
  %573 = vmatprep.subr.bf16.mxu0 0
  %574 = vmatpush1.bf16.msra.mxu0 %v435
  %575 = vmatprep.subr.bf16.mxu0 0
  %576 = vmatpush1.bf16.msra.mxu0 %v434
  %577 = vmatprep.subr.bf16.mxu0 0
  %578 = vmatpush1.bf16.msra.mxu0 %v433
  %579 = vmatprep.subr.bf16.mxu0 0
  %580 = vmatpush1.bf16.msra.mxu0 %v432
  %581 = vmatprep.subr.bf16.mxu0 0
  %582 = vmatpush1.bf16.msra.mxu0 %v431
  %583 = vmatprep.subr.bf16.mxu0 0
  %584 = vmatpush1.bf16.msra.mxu0 %v430
  %585 = vmatprep.subr.bf16.mxu0 0
  %586 = vmatpush1.bf16.msra.mxu0 %v429
  %587 = vmatprep.subr.bf16.mxu0 0
  %588 = vmatpush1.bf16.msra.mxu0 %v428
  %589 = vmatprep.subr.bf16.mxu0 0
  %590 = vmatpush2.bf16.msra.mxu0 %v443
  %591 = vmatprep.subr.bf16.mxu0 0
  %592 = vmatpush2.bf16.msra.mxu0 %v442
  %593 = vmatprep.subr.bf16.mxu0 0
  %594 = vmatpush2.bf16.msra.mxu0 %v441
  %595 = vmatprep.subr.bf16.mxu0 0
  %596 = vmatpush2.bf16.msra.mxu0 %v440
  %597 = vmatprep.subr.bf16.mxu0 0
  %598 = vmatpush2.bf16.msra.mxu0 %v439
  %599 = vmatprep.subr.bf16.mxu0 0
  %600 = vmatpush2.bf16.msra.mxu0 %v438
  %601 = vmatprep.subr.bf16.mxu0 0
  %602 = vmatpush2.bf16.msra.mxu0 %v437
  %603 = vmatprep.subr.bf16.mxu0 0
  %604 = vmatpush2.bf16.msra.mxu0 %v436
  %605 = vmatprep.mubr.bf16.mxu0 %v223
  %606 = vmatmul.mubr.bf16.gmra.mxu0 %v222
  %v607 = vpop.f32.mrf.mxu0
  %v608 = vadd.f32 %v511, %v607
  %v609 = vpop.f32.mrf.mxu0
  %v610 = vpop.f32.mrf.mxu0
  %v611 = vadd.f32 %v514, %v610
  %v612 = vpop.f32.mrf.mxu0
  %613 = vmatprep.mubr.bf16.mxu0 %v227
  %614 = vmatmul.mubr.bf16.gmra.mxu0 %v226
  %v615 = vpop.f32.mrf.mxu0
  %v616 = vadd.f32 %v519, %v615
  %v617 = vpop.f32.mrf.mxu0
  %v618 = vpop.f32.mrf.mxu0
  %v619 = vadd.f32 %v522, %v618
  %v620 = vpop.f32.mrf.mxu0
  %621 = vmatprep.mubr.bf16.mxu0 %v231
  %622 = vmatmul.mubr.bf16.gmra.mxu0 %v230
  %v623 = vpop.f32.mrf.mxu0
  %v624 = vadd.f32 %v527, %v623
  %v625 = vpop.f32.mrf.mxu0
  %v626 = vpop.f32.mrf.mxu0
  %v627 = vadd.f32 %v530, %v626
  %v628 = vpop.f32.mrf.mxu0
  %629 = vmatprep.mubr.bf16.mxu0 %v235
  %630 = vmatmul.mubr.bf16.gmra.mxu0 %v234
  %v631 = vpop.f32.mrf.mxu0
  %v632 = vadd.f32 %v535, %v631
  %v633 = vpop.f32.mrf.mxu0
  %v634 = vpop.f32.mrf.mxu0
  %v635 = vadd.f32 %v538, %v634
  %v636 = vpop.f32.mrf.mxu0
  %637 = vmatprep.mubr.bf16.mxu0 %v239
  %638 = vmatmul.mubr.bf16.gmra.mxu0 %v238
  %v639 = vpop.f32.mrf.mxu0
  %v640 = vadd.f32 %v543, %v639
  %v641 = vpop.f32.mrf.mxu0
  %v642 = vpop.f32.mrf.mxu0
  %v643 = vadd.f32 %v546, %v642
  %v644 = vpop.f32.mrf.mxu0
  %645 = vmatprep.mubr.bf16.mxu0 %v243
  %646 = vmatmul.mubr.bf16.gmra.mxu0 %v242
  %v647 = vpop.f32.mrf.mxu0
  %v648 = vadd.f32 %v551, %v647
  %v649 = vpop.f32.mrf.mxu0
  %v650 = vpop.f32.mrf.mxu0
  %v651 = vadd.f32 %v554, %v650
  %v652 = vpop.f32.mrf.mxu0
  %653 = vmatprep.mubr.bf16.mxu0 %v247
  %654 = vmatmul.mubr.bf16.gmra.mxu0 %v246
  %v655 = vpop.f32.mrf.mxu0
  %v656 = vadd.f32 %v559, %v655
  %v657 = vpop.f32.mrf.mxu0
  %v658 = vpop.f32.mrf.mxu0
  %v659 = vadd.f32 %v562, %v658
  %v660 = vpop.f32.mrf.mxu0
  %661 = vmatprep.mubr.bf16.mxu0 %v251
  %662 = vmatmul.mubr.bf16.gmra.mxu0 %v250
  %v663 = vpop.f32.mrf.mxu0
  %v664 = vadd.f32 %v567, %v663
  %v665 = vpop.f32.mrf.mxu0
  %v666 = vpop.f32.mrf.mxu0
  %v667 = vadd.f32 %v570, %v666
  %v668 = vpop.f32.mrf.mxu0
  %669 = vdwg.mxu0
  %v670 = vmul.f32 %v608, 0.1
  %v671 = vmul.f32 %v611, 0.1
  %v672 = vmul.f32 %v616, 0.1
  %v673 = vmul.f32 %v619, 0.1
  %v674 = vmul.f32 %v624, 0.1
  %v675 = vmul.f32 %v627, 0.1
  %v676 = vmul.f32 %v632, 0.1
  %v677 = vmul.f32 %v635, 0.1
  %v678 = vmul.f32 %v640, 0.1
  %v679 = vmul.f32 %v643, 0.1
  %v680 = vmul.f32 %v648, 0.1
  %v681 = vmul.f32 %v651, 0.1
  %v682 = vmul.f32 %v656, 0.1
  %v683 = vmul.f32 %v659, 0.1
  %v684 = vmul.f32 %v664, 0.1
  %v685 = vmul.f32 %v667, 0.1
  %v686 = vmax.f32 %v608, %v670
  %v687 = vmax.f32 %v611, %v671
  %v688 = vmax.f32 %v616, %v672
  %v689 = vmax.f32 %v619, %v673
  %v690 = vmax.f32 %v624, %v674
  %v691 = vmax.f32 %v627, %v675
  %v692 = vmax.f32 %v632, %v676
  %v693 = vmax.f32 %v635, %v677
  %v694 = vmax.f32 %v640, %v678
  %v695 = vmax.f32 %v643, %v679
  %v696 = vmax.f32 %v648, %v680
  %v697 = vmax.f32 %v651, %v681
  %v698 = vmax.f32 %v656, %v682
  %v699 = vmax.f32 %v659, %v683
  %v700 = vmax.f32 %v664, %v684
  %v701 = vmax.f32 %v667, %v685
  %v702 = vld [vmem:[%s3] sm:$0x1]
  %v704 = vlaneseq
  %v705 = vshrl.u32 %v704, 7
  %v706 = vsub.s32 0, %v705
  %v707 = vrot.slane %v702, %v706
  %v709 = vmul.f32 %v686, %v707
  %v710 = vmul.f32 %v687, %v707
  %v711 = vmul.f32 %v688, %v707
  %v712 = vmul.f32 %v689, %v707
  %v713 = vmul.f32 %v690, %v707
  %v714 = vmul.f32 %v691, %v707
  %v715 = vmul.f32 %v692, %v707
  %v716 = vmul.f32 %v693, %v707
  %v717 = vmul.f32 %v694, %v707
  %v718 = vmul.f32 %v695, %v707
  %v719 = vmul.f32 %v696, %v707
  %v720 = vmul.f32 %v697, %v707
  %v721 = vmul.f32 %v698, %v707
  %v722 = vmul.f32 %v699, %v707
  %v723 = vmul.f32 %v700, %v707
  %v724 = vmul.f32 %v701, %v707
  %v725 = vld [vmem:[%s4] sm:$0x1]
  %v727 = vlaneseq
  %v728 = vshrl.u32 %v727, 7
  %v729 = vsub.s32 0, %v728
  %v730 = vrot.slane %v725, %v729
  %v732 = vadd.f32 %v709, %v730
  %v733 = vadd.f32 %v710, %v730
  %v734 = vadd.f32 %v711, %v730
  %v735 = vadd.f32 %v712, %v730
  %v736 = vadd.f32 %v713, %v730
  %v737 = vadd.f32 %v714, %v730
  %v738 = vadd.f32 %v715, %v730
  %v739 = vadd.f32 %v716, %v730
  %v740 = vadd.f32 %v717, %v730
  %v741 = vadd.f32 %v718, %v730
  %v742 = vadd.f32 %v719, %v730
  %v743 = vadd.f32 %v720, %v730
  %v744 = vadd.f32 %v721, %v730
  %v745 = vadd.f32 %v722, %v730
  %v746 = vadd.f32 %v723, %v730
  %v747 = vadd.f32 %v724, %v730
  %vm748 = vcmask 523264
  %749 = vst.msk [vmem:[%s5] sm:$0xff] %vm748, %v732
  %750 = vst.msk [vmem:[%s5 + $0x8] sm:$0xff] %vm748, %v733
  %751 = vst.msk [vmem:[%s5 + $0x10] sm:$0xff] %vm748, %v734
  %752 = vst.msk [vmem:[%s5 + $0x18] sm:$0xff] %vm748, %v735
  %753 = vst.msk [vmem:[%s5 + $0x20] sm:$0xff] %vm748, %v736
  %754 = vst.msk [vmem:[%s5 + $0x28] sm:$0xff] %vm748, %v737
  %755 = vst.msk [vmem:[%s5 + $0x30] sm:$0xff] %vm748, %v738
  %756 = vst.msk [vmem:[%s5 + $0x38] sm:$0xff] %vm748, %v739
  %757 = vst.msk [vmem:[%s5 + $0x40] sm:$0xff] %vm748, %v740
  %758 = vst.msk [vmem:[%s5 + $0x48] sm:$0xff] %vm748, %v741
  %759 = vst.msk [vmem:[%s5 + $0x50] sm:$0xff] %vm748, %v742
  %760 = vst.msk [vmem:[%s5 + $0x58] sm:$0xff] %vm748, %v743
  %761 = vst.msk [vmem:[%s5 + $0x60] sm:$0xff] %vm748, %v744
  %762 = vst.msk [vmem:[%s5 + $0x68] sm:$0xff] %vm748, %v745
  %763 = vst.msk [vmem:[%s5 + $0x70] sm:$0xff] %vm748, %v746
  %764 = vst.msk [vmem:[%s5 + $0x78] sm:$0xff] %vm748, %v747
  // Predicated region
  $region22: #{_lambda_.27} parent=0 // pred_check
    _
  $region23: #{_lambda_.27} parent=0 // pred_check_branch
    %766 = sbr.rel (0) target = $region25
  $region24: #{_lambda_.27} parent=0 // pred_region
    _
  $region25: #{_lambda_.27} parent=0 // pred_fallthru
    _
  // Predicated region
  $region26: #{_lambda_.27} parent=0 // pred_check
    _
  $region27: #{_lambda_.27} parent=0 // pred_check_branch
    %768 = sbr.rel (0) target = $region29
  $region28: #{_lambda_.27} parent=0 // pred_region
    _
  $region29: #{_lambda_.27} parent=0 // pred_fallthru
    _

// kernel: _lambda_.31
$region0: #{_lambda_.31}
  #allocation0 [shape = 'u32[]', space=smem, size = 0x4, offset = 0x4, fixed_abs, tag = 'smem constant byte address 0x4 - core index']
  #allocation1 [shape = 'u32[144,128]{1,0:T(1,128)}', space=vmem, size = 0x12000, scoped, tag = 'internal scratch']
  %s0 = inlined_call_operand.vmem [shape: bf16[128,256], index: 0, kind: input, shape index: {}]
  %s1 = inlined_call_operand.vmem [shape: bf16[256,32], index: 1, kind: input, shape index: {}]
  %s2 = inlined_call_operand.vmem [shape: f32[1,32], index: 2, kind: input, shape index: {}]
  %s3 = inlined_call_operand.vmem [shape: f32[1,32], index: 3, kind: input, shape index: {}]
  %s4 = inlined_call_operand.vmem [shape: f32[1,32], index: 4, kind: input, shape index: {}]
  %s5 = inlined_call_operand.vmem [shape: f32[128,32], index: 5, kind: output, shape index: {}]
  %s6 = sld [smem:[#allocation0]]
  $region30: #{_lambda_.31} parent=0
    _
  %s8 = ssub.s32 1, %s6
  %s9 = scalar_select 0, %s8, %s6
  // Predicated region
  $region2: #{_lambda_.31} parent=0 // pred_check
    _
  $region3: #{_lambda_.31} parent=0 // pred_check_branch
    %11 = sbr.rel (0) target = $region5
  $region4: #{_lambda_.31} parent=0 // pred_region
    _
  $region5: #{_lambda_.31} parent=0 // pred_fallthru
    _
  // Predicated region
  $region6: #{_lambda_.31} parent=0 // pred_check
    _
  $region7: #{_lambda_.31} parent=0 // pred_check_branch
    %13 = sbr.rel (0) target = $region9
  $region8: #{_lambda_.31} parent=0 // pred_region
    _
  $region9: #{_lambda_.31} parent=0 // pred_fallthru
    _
  // Predicated region
  $region10: #{_lambda_.31} parent=0 // pred_check
    _
  $region11: #{_lambda_.31} parent=0 // pred_check_branch
    %15 = sbr.rel (0) target = $region13
  $region12: #{_lambda_.31} parent=0 // pred_region
    _
  $region13: #{_lambda_.31} parent=0 // pred_fallthru
    _
  // Predicated region
  $region14: #{_lambda_.31} parent=0 // pred_check
    _
  $region15: #{_lambda_.31} parent=0 // pred_check_branch
    %17 = sbr.rel (0) target = $region17
  $region16: #{_lambda_.31} parent=0 // pred_region
    _
  $region17: #{_lambda_.31} parent=0 // pred_fallthru
    _
  // Predicated region
  $region18: #{_lambda_.31} parent=0 // pred_check
    _
  $region19: #{_lambda_.31} parent=0 // pred_check_branch
    %19 = sbr.rel (0) target = $region21
  $region20: #{_lambda_.31} parent=0 // pred_region
    _
  $region21: #{_lambda_.31} parent=0 // pred_fallthru
    _
  %v21 = vld [vmem:[%s0] sm:$0xff]
  %v22 = vld [vmem:[%s0 + $0x8] sm:$0xff]
  %v23 = vld [vmem:[%s0 + $0x10] sm:$0xff]
  %v24 = vld [vmem:[%s0 + $0x18] sm:$0xff]
  %v25 = vld [vmem:[%s0 + $0x20] sm:$0xff]
  %v26 = vld [vmem:[%s0 + $0x28] sm:$0xff]
  %v27 = vld [vmem:[%s0 + $0x30] sm:$0xff]
  %v28 = vld [vmem:[%s0 + $0x38] sm:$0xff]
  %v29 = vld [vmem:[%s0 + $0x40] sm:$0xff]
  %v30 = vld [vmem:[%s0 + $0x48] sm:$0xff]
  %v31 = vld [vmem:[%s0 + $0x50] sm:$0xff]
  %v32 = vld [vmem:[%s0 + $0x58] sm:$0xff]
  %v33 = vld [vmem:[%s0 + $0x60] sm:$0xff]
  %v34 = vld [vmem:[%s0 + $0x68] sm:$0xff]
  %v35 = vld [vmem:[%s0 + $0x70] sm:$0xff]
  %v36 = vld [vmem:[%s0 + $0x78] sm:$0xff]
  %v37 = vld [vmem:[%s1] sm:$0xf]
  %v38 = vld [vmem:[%s1 + $0x4] sm:$0xf]
  %v39 = vld [vmem:[%s1 + $0x8] sm:$0xf]
  %v40 = vld [vmem:[%s1 + $0xc] sm:$0xf]
  %v41 = vld [vmem:[%s1 + $0x10] sm:$0xf]
  %v42 = vld [vmem:[%s1 + $0x14] sm:$0xf]
  %v43 = vld [vmem:[%s1 + $0x18] sm:$0xf]
  %v44 = vld [vmem:[%s1 + $0x1c] sm:$0xf]
  %v45 = vld [vmem:[%s1 + $0x20] sm:$0xf]
  %v46 = vld [vmem:[%s1 + $0x24] sm:$0xf]
  %v47 = vld [vmem:[%s1 + $0x28] sm:$0xf]
  %v48 = vld [vmem:[%s1 + $0x2c] sm:$0xf]
  %v49 = vld [vmem:[%s1 + $0x30] sm:$0xf]
  %v50 = vld [vmem:[%s1 + $0x34] sm:$0xf]
  %v51 = vld [vmem:[%s1 + $0x38] sm:$0xf]
  %v52 = vld [vmem:[%s1 + $0x3c] sm:$0xf]
  %v53 = vld [vmem:[%s1 + $0x40] sm:$0xf]
  %v54 = vld [vmem:[%s1 + $0x44] sm:$0xf]
  %v55 = vld [vmem:[%s1 + $0x48] sm:$0xf]
  %v56 = vld [vmem:[%s1 + $0x4c] sm:$0xf]
  %v57 = vld [vmem:[%s1 + $0x50] sm:$0xf]
  %v58 = vld [vmem:[%s1 + $0x54] sm:$0xf]
  %v59 = vld [vmem:[%s1 + $0x58] sm:$0xf]
  %v60 = vld [vmem:[%s1 + $0x5c] sm:$0xf]
  %v61 = vld [vmem:[%s1 + $0x60] sm:$0xf]
  %v62 = vld [vmem:[%s1 + $0x64] sm:$0xf]
  %v63 = vld [vmem:[%s1 + $0x68] sm:$0xf]
  %v64 = vld [vmem:[%s1 + $0x6c] sm:$0xf]
  %v65 = vld [vmem:[%s1 + $0x70] sm:$0xf]
  %v66 = vld [vmem:[%s1 + $0x74] sm:$0xf]
  %v67 = vld [vmem:[%s1 + $0x78] sm:$0xf]
  %v68 = vld [vmem:[%s1 + $0x7c] sm:$0xf]
  %v69 = vld [vmem:[%s2] sm:$0x1]
  %v71 = vlaneseq
  %v72 = vshrl.u32 %v71, 7
  %v73 = vsub.s32 0, %v72
  %v74 = vrot.slane %v69, %v73
  %v92 = vunpack.c.l.b16 %v21
  %v93 = vunpack.c.h.b16 %v21
  %v94 = vunpack.c.l.b16 %v22
  %v95 = vunpack.c.h.b16 %v22
  %v96 = vunpack.c.l.b16 %v23
  %v97 = vunpack.c.h.b16 %v23
  %v98 = vunpack.c.l.b16 %v24
  %v99 = vunpack.c.h.b16 %v24
  %v100 = vunpack.c.l.b16 %v25
  %v101 = vunpack.c.h.b16 %v25
  %v102 = vunpack.c.l.b16 %v26
  %v103 = vunpack.c.h.b16 %v26
  %v104 = vunpack.c.l.b16 %v27
  %v105 = vunpack.c.h.b16 %v27
  %v106 = vunpack.c.l.b16 %v28
  %v107 = vunpack.c.h.b16 %v28
  %v108 = vunpack.c.l.b16 %v29
  %v109 = vunpack.c.h.b16 %v29
  %v110 = vunpack.c.l.b16 %v30
  %v111 = vunpack.c.h.b16 %v30
  %v112 = vunpack.c.l.b16 %v31
  %v113 = vunpack.c.h.b16 %v31
  %v114 = vunpack.c.l.b16 %v32
  %v115 = vunpack.c.h.b16 %v32
  %v116 = vunpack.c.l.b16 %v33
  %v117 = vunpack.c.h.b16 %v33
  %v118 = vunpack.c.l.b16 %v34
  %v119 = vunpack.c.h.b16 %v34
  %v120 = vunpack.c.l.b16 %v35
  %v121 = vunpack.c.h.b16 %v35
  %v122 = vunpack.c.l.b16 %v36
  %v123 = vunpack.c.h.b16 %v36
  %v124 = vpack.c.b16 %v94, %v92
  %v125 = vpack.c.b16 %v95, %v93
  %v126 = vpack.c.b16 %v98, %v96
  %v127 = vpack.c.b16 %v99, %v97
  %v128 = vpack.c.b16 %v102, %v100
  %v129 = vpack.c.b16 %v103, %v101
  %v130 = vpack.c.b16 %v106, %v104
  %v131 = vpack.c.b16 %v107, %v105
  %v132 = vpack.c.b16 %v110, %v108
  %v133 = vpack.c.b16 %v111, %v109
  %v134 = vpack.c.b16 %v114, %v112
  %v135 = vpack.c.b16 %v115, %v113
  %v136 = vpack.c.b16 %v118, %v116
  %v137 = vpack.c.b16 %v119, %v117
  %v138 = vpack.c.b16 %v122, %v120
  %v139 = vpack.c.b16 %v123, %v121
  %v188 = vunpack.c.l.b16 %v37
  %v189 = vunpack.c.l.b16 %v38
  %v190 = vunpack.c.l.b16 %v39
  %v191 = vunpack.c.l.b16 %v40
  %v192 = vunpack.c.l.b16 %v41
  %v193 = vunpack.c.l.b16 %v42
  %v194 = vunpack.c.l.b16 %v43
  %v195 = vunpack.c.l.b16 %v44
  %v196 = vunpack.c.l.b16 %v45
  %v197 = vunpack.c.l.b16 %v46
  %v198 = vunpack.c.l.b16 %v47
  %v199 = vunpack.c.l.b16 %v48
  %v200 = vunpack.c.l.b16 %v49
  %v201 = vunpack.c.l.b16 %v50
  %v202 = vunpack.c.l.b16 %v51
  %v203 = vunpack.c.l.b16 %v52
  %v204 = vunpack.c.l.b16 %v53
  %v205 = vunpack.c.l.b16 %v54
  %v206 = vunpack.c.l.b16 %v55
  %v207 = vunpack.c.l.b16 %v56
  %v208 = vunpack.c.l.b16 %v57
  %v209 = vunpack.c.l.b16 %v58
  %v210 = vunpack.c.l.b16 %v59
  %v211 = vunpack.c.l.b16 %v60
  %v212 = vunpack.c.l.b16 %v61
  %v213 = vunpack.c.l.b16 %v62
  %v214 = vunpack.c.l.b16 %v63
  %v215 = vunpack.c.l.b16 %v64
  %v216 = vunpack.c.l.b16 %v65
  %v217 = vunpack.c.l.b16 %v66
  %v218 = vunpack.c.l.b16 %v67
  %v219 = vunpack.c.l.b16 %v68
  %v220 = vpack.c.b16 %v189, %v188
  %v221 = vpack.c.b16 %v191, %v190
  %v222 = vpack.c.b16 %v193, %v192
  %v223 = vpack.c.b16 %v195, %v194
  %v224 = vpack.c.b16 %v197, %v196
  %v225 = vpack.c.b16 %v199, %v198
  %v226 = vpack.c.b16 %v201, %v200
  %v227 = vpack.c.b16 %v203, %v202
  %v228 = vpack.c.b16 %v205, %v204
  %v229 = vpack.c.b16 %v207, %v206
  %v230 = vpack.c.b16 %v209, %v208
  %v231 = vpack.c.b16 %v211, %v210
  %v232 = vpack.c.b16 %v213, %v212
  %v233 = vpack.c.b16 %v215, %v214
  %v234 = vpack.c.b16 %v217, %v216
  %v235 = vpack.c.b16 %v219, %v218
  %252 = vmatprep.subr.bf16.mxu0 0
  %253 = vmatpush1.bf16.msra.mxu0 %v227
  %254 = vmatprep.subr.bf16.mxu0 0
  %255 = vmatpush1.bf16.msra.mxu0 %v226
  %256 = vmatprep.subr.bf16.mxu0 0
  %257 = vmatpush1.bf16.msra.mxu0 %v225
  %258 = vmatprep.subr.bf16.mxu0 0
  %259 = vmatpush1.bf16.msra.mxu0 %v224
  %260 = vmatprep.subr.bf16.mxu0 0
  %261 = vmatpush1.bf16.msra.mxu0 %v223
  %262 = vmatprep.subr.bf16.mxu0 0
  %263 = vmatpush1.bf16.msra.mxu0 %v222
  %264 = vmatprep.subr.bf16.mxu0 0
  %265 = vmatpush1.bf16.msra.mxu0 %v221
  %266 = vmatprep.subr.bf16.mxu0 0
  %267 = vmatpush1.bf16.msra.mxu0 %v220
  %268 = vmatprep.subr.bf16.mxu0 0
  %269 = vmatpush2.bf16.msra.mxu0 %v235
  %270 = vmatprep.subr.bf16.mxu0 0
  %271 = vmatpush2.bf16.msra.mxu0 %v234
  %272 = vmatprep.subr.bf16.mxu0 0
  %273 = vmatpush2.bf16.msra.mxu0 %v233
  %274 = vmatprep.subr.bf16.mxu0 0
  %275 = vmatpush2.bf16.msra.mxu0 %v232
  %276 = vmatprep.subr.bf16.mxu0 0
  %277 = vmatpush2.bf16.msra.mxu0 %v231
  %278 = vmatprep.subr.bf16.mxu0 0
  %279 = vmatpush2.bf16.msra.mxu0 %v230
  %280 = vmatprep.subr.bf16.mxu0 0
  %281 = vmatpush2.bf16.msra.mxu0 %v229
  %282 = vmatprep.subr.bf16.mxu0 0
  %283 = vmatpush2.bf16.msra.mxu0 %v228
  %284 = vmatprep.mubr.bf16.mxu0 %v125
  %285 = vmatmul.mubr.bf16.gmra.mxu0 %v124
  %v286 = vpop.f32.mrf.mxu0
  %v287 = vadd.f32 %v74, %v286
  %v288 = vpop.f32.mrf.mxu0
  %v289 = vpop.f32.mrf.mxu0
  %v290 = vadd.f32 %v74, %v289
  %v291 = vpop.f32.mrf.mxu0
  %292 = vmatprep.mubr.bf16.mxu0 %v127
  %293 = vmatmul.mubr.bf16.gmra.mxu0 %v126
  %v294 = vpop.f32.mrf.mxu0
  %v295 = vadd.f32 %v74, %v294
  %v296 = vpop.f32.mrf.mxu0
  %v297 = vpop.f32.mrf.mxu0
  %v298 = vadd.f32 %v74, %v297
  %v299 = vpop.f32.mrf.mxu0
  %300 = vmatprep.mubr.bf16.mxu0 %v129
  %301 = vmatmul.mubr.bf16.gmra.mxu0 %v128
  %v302 = vpop.f32.mrf.mxu0
  %v303 = vadd.f32 %v74, %v302
  %v304 = vpop.f32.mrf.mxu0
  %v305 = vpop.f32.mrf.mxu0
  %v306 = vadd.f32 %v74, %v305
  %v307 = vpop.f32.mrf.mxu0
  %308 = vmatprep.mubr.bf16.mxu0 %v131
  %309 = vmatmul.mubr.bf16.gmra.mxu0 %v130
  %v310 = vpop.f32.mrf.mxu0
  %v311 = vadd.f32 %v74, %v310
  %v312 = vpop.f32.mrf.mxu0
  %v313 = vpop.f32.mrf.mxu0
  %v314 = vadd.f32 %v74, %v313
  %v315 = vpop.f32.mrf.mxu0
  %316 = vmatprep.mubr.bf16.mxu0 %v133
  %317 = vmatmul.mubr.bf16.gmra.mxu0 %v132
  %v318 = vpop.f32.mrf.mxu0
  %v319 = vadd.f32 %v74, %v318
  %v320 = vpop.f32.mrf.mxu0
  %v321 = vpop.f32.mrf.mxu0
  %v322 = vadd.f32 %v74, %v321
  %v323 = vpop.f32.mrf.mxu0
  %324 = vmatprep.mubr.bf16.mxu0 %v135
  %325 = vmatmul.mubr.bf16.gmra.mxu0 %v134
  %v326 = vpop.f32.mrf.mxu0
  %v327 = vadd.f32 %v74, %v326
  %v328 = vpop.f32.mrf.mxu0
  %v329 = vpop.f32.mrf.mxu0
  %v330 = vadd.f32 %v74, %v329
  %v331 = vpop.f32.mrf.mxu0
  %332 = vmatprep.mubr.bf16.mxu0 %v137
  %333 = vmatmul.mubr.bf16.gmra.mxu0 %v136
  %v334 = vpop.f32.mrf.mxu0
  %v335 = vadd.f32 %v74, %v334
  %v336 = vpop.f32.mrf.mxu0
  %v337 = vpop.f32.mrf.mxu0
  %v338 = vadd.f32 %v74, %v337
  %v339 = vpop.f32.mrf.mxu0
  %340 = vmatprep.mubr.bf16.mxu0 %v139
  %341 = vmatmul.mubr.bf16.gmra.mxu0 %v138
  %v342 = vpop.f32.mrf.mxu0
  %v343 = vadd.f32 %v74, %v342
  %v344 = vpop.f32.mrf.mxu0
  %v345 = vpop.f32.mrf.mxu0
  %v346 = vadd.f32 %v74, %v345
  %v347 = vpop.f32.mrf.mxu0
  %348 = vdwg.mxu0
  %v349 = vmul.f32 %v287, 0.1
  %v350 = vmul.f32 %v290, 0.1
  %v351 = vmul.f32 %v295, 0.1
  %v352 = vmul.f32 %v298, 0.1
  %v353 = vmul.f32 %v303, 0.1
  %v354 = vmul.f32 %v306, 0.1
  %v355 = vmul.f32 %v311, 0.1
  %v356 = vmul.f32 %v314, 0.1
  %v357 = vmul.f32 %v319, 0.1
  %v358 = vmul.f32 %v322, 0.1
  %v359 = vmul.f32 %v327, 0.1
  %v360 = vmul.f32 %v330, 0.1
  %v361 = vmul.f32 %v335, 0.1
  %v362 = vmul.f32 %v338, 0.1
  %v363 = vmul.f32 %v343, 0.1
  %v364 = vmul.f32 %v346, 0.1
  %v365 = vmax.f32 %v287, %v349
  %v366 = vmax.f32 %v290, %v350
  %v367 = vmax.f32 %v295, %v351
  %v368 = vmax.f32 %v298, %v352
  %v369 = vmax.f32 %v303, %v353
  %v370 = vmax.f32 %v306, %v354
  %v371 = vmax.f32 %v311, %v355
  %v372 = vmax.f32 %v314, %v356
  %v373 = vmax.f32 %v319, %v357
  %v374 = vmax.f32 %v322, %v358
  %v375 = vmax.f32 %v327, %v359
  %v376 = vmax.f32 %v330, %v360
  %v377 = vmax.f32 %v335, %v361
  %v378 = vmax.f32 %v338, %v362
  %v379 = vmax.f32 %v343, %v363
  %v380 = vmax.f32 %v346, %v364
  %v381 = vld [vmem:[%s3] sm:$0x1]
  %v383 = vlaneseq
  %v384 = vshrl.u32 %v383, 7
  %v385 = vsub.s32 0, %v384
  %v386 = vrot.slane %v381, %v385
  %v388 = vmul.f32 %v365, %v386
  %v389 = vmul.f32 %v366, %v386
  %v390 = vmul.f32 %v367, %v386
  %v391 = vmul.f32 %v368, %v386
  %v392 = vmul.f32 %v369, %v386
  %v393 = vmul.f32 %v370, %v386
  %v394 = vmul.f32 %v371, %v386
  %v395 = vmul.f32 %v372, %v386
  %v396 = vmul.f32 %v373, %v386
  %v397 = vmul.f32 %v374, %v386
  %v398 = vmul.f32 %v375, %v386
  %v399 = vmul.f32 %v376, %v386
  %v400 = vmul.f32 %v377, %v386
  %v401 = vmul.f32 %v378, %v386
  %v402 = vmul.f32 %v379, %v386
  %v403 = vmul.f32 %v380, %v386
  %v404 = vld [vmem:[%s4] sm:$0x1]
  %v406 = vlaneseq
  %v407 = vshrl.u32 %v406, 7
  %v408 = vsub.s32 0, %v407
  %v409 = vrot.slane %v404, %v408
  %v411 = vadd.f32 %v388, %v409
  %v412 = vadd.f32 %v389, %v409
  %v413 = vadd.f32 %v390, %v409
  %v414 = vadd.f32 %v391, %v409
  %v415 = vadd.f32 %v392, %v409
  %v416 = vadd.f32 %v393, %v409
  %v417 = vadd.f32 %v394, %v409
  %v418 = vadd.f32 %v395, %v409
  %v419 = vadd.f32 %v396, %v409
  %v420 = vadd.f32 %v397, %v409
  %v421 = vadd.f32 %v398, %v409
  %v422 = vadd.f32 %v399, %v409
  %v423 = vadd.f32 %v400, %v409
  %v424 = vadd.f32 %v401, %v409
  %v425 = vadd.f32 %v402, %v409
  %v426 = vadd.f32 %v403, %v409
  %vm427 = vcmask 261120
  %428 = vst.msk [vmem:[%s5] sm:$0xff] %vm427, %v411
  %429 = vst.msk [vmem:[%s5 + $0x8] sm:$0xff] %vm427, %v412
  %430 = vst.msk [vmem:[%s5 + $0x10] sm:$0xff] %vm427, %v413
  %431 = vst.msk [vmem:[%s5 + $0x18] sm:$0xff] %vm427, %v414
  %432 = vst.msk [vmem:[%s5 + $0x20] sm:$0xff] %vm427, %v415
  %433 = vst.msk [vmem:[%s5 + $0x28] sm:$0xff] %vm427, %v416
  %434 = vst.msk [vmem:[%s5 + $0x30] sm:$0xff] %vm427, %v417
  %435 = vst.msk [vmem:[%s5 + $0x38] sm:$0xff] %vm427, %v418
  %436 = vst.msk [vmem:[%s5 + $0x40] sm:$0xff] %vm427, %v419
  %437 = vst.msk [vmem:[%s5 + $0x48] sm:$0xff] %vm427, %v420
  %438 = vst.msk [vmem:[%s5 + $0x50] sm:$0xff] %vm427, %v421
  %439 = vst.msk [vmem:[%s5 + $0x58] sm:$0xff] %vm427, %v422
  %440 = vst.msk [vmem:[%s5 + $0x60] sm:$0xff] %vm427, %v423
  %441 = vst.msk [vmem:[%s5 + $0x68] sm:$0xff] %vm427, %v424
  %442 = vst.msk [vmem:[%s5 + $0x70] sm:$0xff] %vm427, %v425
  %443 = vst.msk [vmem:[%s5 + $0x78] sm:$0xff] %vm427, %v426
  // Predicated region
  $region22: #{_lambda_.31} parent=0 // pred_check
    _
  $region23: #{_lambda_.31} parent=0 // pred_check_branch
    %445 = sbr.rel (0) target = $region25
  $region24: #{_lambda_.31} parent=0 // pred_region
    _
  $region25: #{_lambda_.31} parent=0 // pred_fallthru
    _
  // Predicated region
  $region26: #{_lambda_.31} parent=0 // pred_check
    _
  $region27: #{_lambda_.31} parent=0 // pred_check_branch
    %447 = sbr.rel (0) target = $region29
  $region28: #{_lambda_.31} parent=0 // pred_region
    _
  $region29: #{_lambda_.31} parent=0 // pred_fallthru
    _

// kernel: _lambda_.35
$region0: #{_lambda_.35}
  #allocation0 [shape = 'u32[]', space=smem, size = 0x4, offset = 0x4, fixed_abs, tag = 'smem constant byte address 0x4 - core index']
  #allocation1 [shape = 'u32[144,128]{1,0:T(1,128)}', space=vmem, size = 0x12000, scoped, tag = 'internal scratch']
  %s0 = inlined_call_operand.vmem [shape: bf16[512,288], index: 0, kind: input, shape index: {}]
  %s1 = inlined_call_operand.vmem [shape: bf16[288,2], index: 1, kind: input, shape index: {}]
  %s2 = inlined_call_operand.vmem [shape: f32[1,2], index: 2, kind: input, shape index: {}]
  %s3 = inlined_call_operand.vmem [shape: f32[512,2], index: 3, kind: output, shape index: {}]
  %s4 = sld [smem:[#allocation0]]
  $region45: #{_lambda_.35} parent=0
    _
  %s6 = ssub.s32 1, %s4
  %s7 = scalar_select 0, %s6, %s4
  loop: start=0, step=1, limit=4
  $region2: #{_lambda_.35} parent=0 // loop_pre_header
    _
  $region3: #{_lambda_.35} parent=0 // loop_header
    %s9 = sphi 0, %s13
    %p10 = scmp.ge.s32.totalorder %s9, 4
    %s19 = sphi 0, %s21
    %s22 = sphi 0, %s19
    %s23 = sphi 0, %s22
    %s39 = sphi 0, %s23
    %s43 = sphi 0, %s43
    %s45 = sphi 0, %s43
    %s46 = sphi 0, %s45
    %s60 = sphi 0, %s46
    %s64 = sphi 0, %s64
    %s66 = sphi 0, %s64
    %s67 = sphi 0, %s66
    %s81 = sphi 0, %s67
    %s87 = sphi 0, %s89
    %s90 = sphi 0, %s87
    %s91 = sphi 0, %s90
    %s107 = sphi 0, %s91
  $region4: #{_lambda_.35} parent=0 // loop_header_branch
    %12 = sbr.rel (%p10) target = $region8
  $region5: #{_lambda_.35} parent=0 // loop_body
    %s14 = ssub.s32 %s9, 1
    %s15 = ssub.s32 %s9, 2
    %s16 = sadd.s32 %s9, 1
    %s17 = ssub.s32 %s9, %s16
    %p18 = scmp.eq.s32.totalorder %s17, 0
    %s20 = sadd.s32 %s19, 1
    %s21 = scalar_select %p18, %s19, %s20
    %p24 = pneg %p18
    %p25 = scmp.eq.s32.totalorder %s9, 1
    %p26 = por %p24, %p25
    %p27 = scmp.ne.s32.totalorder %s19, %s22
    %p28 = scmp.eq.s32.totalorder %s9, 0
    %p29 = por %p27, %p28
    %p30 = scmp.ne.s32.totalorder %s19, %s22
    %p31 = scmp.eq.s32.totalorder %s14, 1
    %p32 = por %p30, %p31
    %p33 = scmp.ne.s32.totalorder %s22, %s23
    %p34 = scmp.eq.s32.totalorder %s14, 0
    %p35 = por %p33, %p34
    %p36 = scmp.ne.s32.totalorder %s22, %s23
    %p37 = scmp.eq.s32.totalorder %s15, 1
    %p38 = por %p36, %p37
    %p40 = scmp.ne.s32.totalorder %s23, %s39
    %p41 = scmp.eq.s32.totalorder %s15, 0
    %p42 = por %p40, %p41
    %s44 = sadd.s32 %s43, 1
    %p47 = scmp.eq.s32.totalorder %s9, 1
    %p48 = scmp.ne.s32.totalorder %s43, %s45
    %p49 = scmp.eq.s32.totalorder %s9, 0
    %p50 = por %p48, %p49
    %p51 = scmp.ne.s32.totalorder %s43, %s45
    %p52 = scmp.eq.s32.totalorder %s14, 1
    %p53 = por %p51, %p52
    %p54 = scmp.ne.s32.totalorder %s45, %s46
    %p55 = scmp.eq.s32.totalorder %s14, 0
    %p56 = por %p54, %p55
    %p57 = scmp.ne.s32.totalorder %s45, %s46
    %p58 = scmp.eq.s32.totalorder %s15, 1
    %p59 = por %p57, %p58
    %p61 = scmp.ne.s32.totalorder %s46, %s60
    %p62 = scmp.eq.s32.totalorder %s15, 0
    %p63 = por %p61, %p62
    %s65 = sadd.s32 %s64, 1
    %p68 = scmp.eq.s32.totalorder %s9, 1
    %p69 = scmp.ne.s32.totalorder %s64, %s66
    %p70 = scmp.eq.s32.totalorder %s9, 0
    %p71 = por %p69, %p70
    %p72 = scmp.ne.s32.totalorder %s64, %s66
    %p73 = scmp.eq.s32.totalorder %s14, 1
    %p74 = por %p72, %p73
    %p75 = scmp.ne.s32.totalorder %s66, %s67
    %p76 = scmp.eq.s32.totalorder %s14, 0
    %p77 = por %p75, %p76
    %p78 = scmp.ne.s32.totalorder %s66, %s67
    %p79 = scmp.eq.s32.totalorder %s15, 1
    %p80 = por %p78, %p79
    %p82 = scmp.ne.s32.totalorder %s67, %s81
    %p83 = scmp.eq.s32.totalorder %s15, 0
    %p84 = por %p82, %p83
    %s85 = ssub.s32 %s9, %s16
    %p86 = scmp.eq.s32.totalorder %s85, 0
    %s88 = sadd.s32 %s87, 1
    %s89 = scalar_select %p86, %s87, %s88
    %p92 = pneg %p86
    %p93 = scmp.eq.s32.totalorder %s9, 1
    %p94 = por %p92, %p93
    %p95 = scmp.ne.s32.totalorder %s87, %s90
    %p96 = scmp.eq.s32.totalorder %s9, 0
    %p97 = por %p95, %p96
    %p98 = scmp.ne.s32.totalorder %s87, %s90
    %p99 = scmp.eq.s32.totalorder %s14, 1
    %p100 = por %p98, %p99
    %p101 = scmp.ne.s32.totalorder %s90, %s91
    %p102 = scmp.eq.s32.totalorder %s14, 0
    %p103 = por %p101, %p102
    %p104 = scmp.ne.s32.totalorder %s90, %s91
    %p105 = scmp.eq.s32.totalorder %s15, 1
    %p106 = por %p104, %p105
    %p108 = scmp.ne.s32.totalorder %s91, %s107
    %p109 = scmp.eq.s32.totalorder %s15, 0
    %p110 = por %p108, %p109
    %p111 = scmp.le.s32.totalorder 1, %s9
    %p112 = scmp.lt.s32.totalorder %s9, 3
    %p113 = pnand %p111, %p112
    %p114 = pneg %p113
    // Predicated region
    $region9: #{_lambda_.35} parent=5 // pred_check
      _
    $region10: #{_lambda_.35} parent=5 // pred_check_branch
      %116 = sbr.rel (%p113) target = $region12
    $region11: #{_lambda_.35} parent=5 // pred_region
      %s117 = ssub.s32 %s9, 1
      // Predicated region
      $region13: #{_lambda_.35} parent=11 // pred_check
        %p118 = pneg %p56
      $region14: #{_lambda_.35} parent=11 // pred_check_branch
        %120 = sbr.rel (%p118) target = $region16
      $region15: #{_lambda_.35} parent=11 // pred_region
        _
      $region16: #{_lambda_.35} parent=11 // pred_fallthru
        _
      // Predicated region
      $region17: #{_lambda_.35} parent=11 // pred_check
        %p121 = pneg %p77
      $region18: #{_lambda_.35} parent=11 // pred_check_branch
        %123 = sbr.rel (%p121) target = $region20
      $region19: #{_lambda_.35} parent=11 // pred_region
        _
      $region20: #{_lambda_.35} parent=11 // pred_fallthru
        _
    $region12: #{_lambda_.35} parent=5 // pred_fallthru
      _
    %p124 = scmp.lt.s32.totalorder %s9, 2
    // Predicated region
    $region21: #{_lambda_.35} parent=5 // pred_check
      %p125 = pneg %p124
    $region22: #{_lambda_.35} parent=5 // pred_check_branch
      %127 = sbr.rel (%p125) target = $region24
    $region23: #{_lambda_.35} parent=5 // pred_region
      // Predicated region
      $region25: #{_lambda_.35} parent=23 // pred_check
        %p128 = pneg %p29
      $region26: #{_lambda_.35} parent=23 // pred_check_branch
        %130 = sbr.rel (%p128) target = $region28
      $region27: #{_lambda_.35} parent=23 // pred_region
        %s131 = smul.u32 32, %s9
        %p132 = scmp.lt.s32.totalorder %s131, 63
        %s133 = scalar_select %p132, %s131, 63
        %s134 = smul.addr %s133, 3
        %s135 = smul.addr %s134, 4
        %s136 = scalar_lea.vmem %s0, %s135
        %s137 = smul.u32 32, %s9
      $region28: #{_lambda_.35} parent=23 // pred_fallthru
        _
    $region24: #{_lambda_.35} parent=5 // pred_fallthru
      _
    %p138 = scmp.le.s32.totalorder 1, %s9
    %p139 = scmp.lt.s32.totalorder %s9, 3
    %p140 = pnand %p138, %p139
    %p141 = pneg %p140
    // Predicated region
    $region29: #{_lambda_.35} parent=5 // pred_check
      _
    $region30: #{_lambda_.35} parent=5 // pred_check_branch
      %143 = sbr.rel (%p140) target = $region32
    $region31: #{_lambda_.35} parent=5 // pred_region
      %s144 = ssub.s32 %s9, 1
      %s145 = smul.u32 32, %s14
      %p146 = scmp.lt.s32.totalorder %s145, 63
      %s147 = scalar_select %p146, %s145, 63
      %s148 = smul.addr %s147, 3
      %s149 = smul.addr %s148, 4
      %s150 = scalar_lea.vmem %s0, %s149
      %p151 = pneg %p35
      %p152 = pneg %p32
      %p153 = pneg %p56
      %p154 = pneg %p53
      %p155 = pneg %p77
      %p156 = pneg %p74
      %p157 = pneg %p103
      %p158 = pneg %p100
      %s159 = smul.u32 32, %s14
      %p160 = scmp.lt.s32.totalorder %s159, 63
      %s161 = scalar_select %p160, %s159, 63
      %s162 = smul.addr %s161, 8
      %s163 = scalar_lea.vmem %s3, %s162
      %s164 = smul.u32 32, %s14
      %p165 = scmp.lt.s32.totalorder %s164, 63
      %s166 = scalar_select %p165, %s164, 63
      %s167 = smul.addr %s166, 3
      %s168 = smul.addr %s167, 4
      %s169 = scalar_lea.vmem %s0, %s168
      %s170 = smul.u32 32, %s14
      %s171 = smul.u32 32, %s14
      %p172 = scmp.lt.s32.totalorder %s171, 63
      %s173 = scalar_select %p172, %s171, 63
      %s174 = smul.addr %s173, 8
      %s175 = scalar_lea.vmem %s3, %s174
      %s176 = smul.u32 32, %s14
      %v178 = vld [vmem:[%s169] sm:$0xff]
      %v179 = vld [vmem:[%s169 + $0x8] sm:$0xf]
      %v180 = vld [vmem:[%s169 + $0xc] sm:$0xff]
      %v181 = vld [vmem:[%s169 + $0x14] sm:$0xf]
      %v182 = vld [vmem:[%s169 + $0x18] sm:$0xff]
      %v183 = vld [vmem:[%s169 + $0x20] sm:$0xf]
      %v184 = vld [vmem:[%s169 + $0x24] sm:$0xff]
      %v185 = vld [vmem:[%s169 + $0x2c] sm:$0xf]
      %v186 = vld [vmem:[%s169 + $0x30] sm:$0xff]
      %v187 = vld [vmem:[%s169 + $0x38] sm:$0xf]
      %v188 = vld [vmem:[%s169 + $0x3c] sm:$0xff]
      %v189 = vld [vmem:[%s169 + $0x44] sm:$0xf]
      %v190 = vld [vmem:[%s169 + $0x48] sm:$0xff]
      %v191 = vld [vmem:[%s169 + $0x50] sm:$0xf]
      %v192 = vld [vmem:[%s169 + $0x54] sm:$0xff]
      %v193 = vld [vmem:[%s169 + $0x5c] sm:$0xf]
      %v194 = vld [vmem:[%s169 + $0x60] sm:$0xff]
      %v195 = vld [vmem:[%s169 + $0x68] sm:$0xf]
      %v196 = vld [vmem:[%s169 + $0x6c] sm:$0xff]
      %v197 = vld [vmem:[%s169 + $0x74] sm:$0xf]
      %v198 = vld [vmem:[%s169 + $0x78] sm:$0xff]
      %v199 = vld [vmem:[%s169 + $0x80] sm:$0xf]
      %v200 = vld [vmem:[%s169 + $0x84] sm:$0xff]
      %v201 = vld [vmem:[%s169 + $0x8c] sm:$0xf]
      %v202 = vld [vmem:[%s169 + $0x90] sm:$0xff]
      %v203 = vld [vmem:[%s169 + $0x98] sm:$0xf]
      %v204 = vld [vmem:[%s169 + $0x9c] sm:$0xff]
      %v205 = vld [vmem:[%s169 + $0xa4] sm:$0xf]
      %v206 = vld [vmem:[%s169 + $0xa8] sm:$0xff]
      %v207 = vld [vmem:[%s169 + $0xb0] sm:$0xf]
      %v208 = vld [vmem:[%s169 + $0xb4] sm:$0xff]
      %v209 = vld [vmem:[%s169 + $0xbc] sm:$0xf]
      %v210 = vld [vmem:[%s169 + $0xc0] sm:$0xff]
      %v211 = vld [vmem:[%s169 + $0xc8] sm:$0xf]
      %v212 = vld [vmem:[%s169 + $0xcc] sm:$0xff]
      %v213 = vld [vmem:[%s169 + $0xd4] sm:$0xf]
      %v214 = vld [vmem:[%s169 + $0xd8] sm:$0xff]
      %v215 = vld [vmem:[%s169 + $0xe0] sm:$0xf]
      %v216 = vld [vmem:[%s169 + $0xe4] sm:$0xff]
      %v217 = vld [vmem:[%s169 + $0xec] sm:$0xf]
      %v218 = vld [vmem:[%s169 + $0xf0] sm:$0xff]
      %v219 = vld [vmem:[%s169 + $0xf8] sm:$0xf]
      %v220 = vld [vmem:[%s169 + $0xfc] sm:$0xff]
      %v221 = vld [vmem:[%s169 + $0x104] sm:$0xf]
      %v222 = vld [vmem:[%s169 + $0x108] sm:$0xff]
      %v223 = vld [vmem:[%s169 + $0x110] sm:$0xf]
      %v224 = vld [vmem:[%s169 + $0x114] sm:$0xff]
      %v225 = vld [vmem:[%s169 + $0x11c] sm:$0xf]
      %v226 = vld [vmem:[%s169 + $0x120] sm:$0xff]
      %v227 = vld [vmem:[%s169 + $0x128] sm:$0xf]
      %v228 = vld [vmem:[%s169 + $0x12c] sm:$0xff]
      %v229 = vld [vmem:[%s169 + $0x134] sm:$0xf]
      %v230 = vld [vmem:[%s169 + $0x138] sm:$0xff]
      %v231 = vld [vmem:[%s169 + $0x140] sm:$0xf]
      %v232 = vld [vmem:[%s169 + $0x144] sm:$0xff]
      %v233 = vld [vmem:[%s169 + $0x14c] sm:$0xf]
      %v234 = vld [vmem:[%s169 + $0x150] sm:$0xff]
      %v235 = vld [vmem:[%s169 + $0x158] sm:$0xf]
      %v236 = vld [vmem:[%s169 + $0x15c] sm:$0xff]
      %v237 = vld [vmem:[%s169 + $0x164] sm:$0xf]
      %v238 = vld [vmem:[%s169 + $0x168] sm:$0xff]
      %v239 = vld [vmem:[%s169 + $0x170] sm:$0xf]
      %v240 = vld [vmem:[%s169 + $0x174] sm:$0xff]
      %v241 = vld [vmem:[%s169 + $0x17c] sm:$0xf]
      %v242 = vld [vmem:[%s1] sm:$0xf]
      %v243 = vld [vmem:[%s1 + $0x4] sm:$0xf]
      %v244 = vld [vmem:[%s1 + $0x8] sm:$0xf]
      %v245 = vld [vmem:[%s1 + $0xc] sm:$0xf]
      %v246 = vld [vmem:[%s1 + $0x10] sm:$0xf]
      %v247 = vld [vmem:[%s1 + $0x14] sm:$0xf]
      %v248 = vld [vmem:[%s1 + $0x18] sm:$0xf]
      %v249 = vld [vmem:[%s1 + $0x1c] sm:$0xf]
      %v250 = vld [vmem:[%s1 + $0x20] sm:$0xf]
      %v251 = vld [vmem:[%s1 + $0x24] sm:$0xf]
      %v252 = vld [vmem:[%s1 + $0x28] sm:$0xf]
      %v253 = vld [vmem:[%s1 + $0x2c] sm:$0xf]
      %v254 = vld [vmem:[%s1 + $0x30] sm:$0xf]
      %v255 = vld [vmem:[%s1 + $0x34] sm:$0xf]
      %v256 = vld [vmem:[%s1 + $0x38] sm:$0xf]
      %v257 = vld [vmem:[%s1 + $0x3c] sm:$0xf]
      %v258 = vld [vmem:[%s1 + $0x40] sm:$0xf]
      %v259 = vld [vmem:[%s1 + $0x44] sm:$0xf]
      %v260 = vld [vmem:[%s1 + $0x48] sm:$0xf]
      %v261 = vld [vmem:[%s1 + $0x4c] sm:$0xf]
      %v262 = vld [vmem:[%s1 + $0x50] sm:$0xf]
      %v263 = vld [vmem:[%s1 + $0x54] sm:$0xf]
      %v264 = vld [vmem:[%s1 + $0x58] sm:$0xf]
      %v265 = vld [vmem:[%s1 + $0x5c] sm:$0xf]
      %v266 = vld [vmem:[%s1 + $0x60] sm:$0xf]
      %v267 = vld [vmem:[%s1 + $0x64] sm:$0xf]
      %v268 = vld [vmem:[%s1 + $0x68] sm:$0xf]
      %v269 = vld [vmem:[%s1 + $0x6c] sm:$0xf]
      %v270 = vld [vmem:[%s1 + $0x70] sm:$0xf]
      %v271 = vld [vmem:[%s1 + $0x74] sm:$0xf]
      %v272 = vld [vmem:[%s1 + $0x78] sm:$0xf]
      %v273 = vld [vmem:[%s1 + $0x7c] sm:$0xf]
      %v274 = vld [vmem:[%s1 + $0x80] sm:$0xf]
      %v275 = vld [vmem:[%s1 + $0x84] sm:$0xf]
      %v276 = vld [vmem:[%s1 + $0x88] sm:$0xf]
      %v277 = vld [vmem:[%s1 + $0x8c] sm:$0xf]
      %v278 = vld [vmem:[%s2] sm:$0x1]
      %v280 = vlaneseq
      %v281 = vshrl.u32 %v280, 7
      %v282 = vsub.s32 0, %v281
      %v283 = vrot.slane %v278, %v282
      %v349 = vunpack.c.l.b16 %v178
      %v350 = vunpack.c.h.b16 %v178
      %v351 = vunpack.c.l.b16 %v179
      %v352 = vunpack.c.l.b16 %v180
      %v353 = vunpack.c.h.b16 %v180
      %v354 = vunpack.c.l.b16 %v181
      %v355 = vunpack.c.l.b16 %v182
      %v356 = vunpack.c.h.b16 %v182
      %v357 = vunpack.c.l.b16 %v183
      %v358 = vunpack.c.l.b16 %v184
      %v359 = vunpack.c.h.b16 %v184
      %v360 = vunpack.c.l.b16 %v185
      %v361 = vunpack.c.l.b16 %v186
      %v362 = vunpack.c.h.b16 %v186
      %v363 = vunpack.c.l.b16 %v187
      %v364 = vunpack.c.l.b16 %v188
      %v365 = vunpack.c.h.b16 %v188
      %v366 = vunpack.c.l.b16 %v189
      %v367 = vunpack.c.l.b16 %v190
      %v368 = vunpack.c.h.b16 %v190
      %v369 = vunpack.c.l.b16 %v191
      %v370 = vunpack.c.l.b16 %v192
      %v371 = vunpack.c.h.b16 %v192
      %v372 = vunpack.c.l.b16 %v193
      %v373 = vunpack.c.l.b16 %v194
      %v374 = vunpack.c.h.b16 %v194
      %v375 = vunpack.c.l.b16 %v195
      %v376 = vunpack.c.l.b16 %v196
      %v377 = vunpack.c.h.b16 %v196
      %v378 = vunpack.c.l.b16 %v197
      %v379 = vunpack.c.l.b16 %v198
      %v380 = vunpack.c.h.b16 %v198
      %v381 = vunpack.c.l.b16 %v199
      %v382 = vunpack.c.l.b16 %v200
      %v383 = vunpack.c.h.b16 %v200
      %v384 = vunpack.c.l.b16 %v201
      %v385 = vunpack.c.l.b16 %v202
      %v386 = vunpack.c.h.b16 %v202
      %v387 = vunpack.c.l.b16 %v203
      %v388 = vunpack.c.l.b16 %v204
      %v389 = vunpack.c.h.b16 %v204
      %v390 = vunpack.c.l.b16 %v205
      %v391 = vunpack.c.l.b16 %v206
      %v392 = vunpack.c.h.b16 %v206
      %v393 = vunpack.c.l.b16 %v207
      %v394 = vunpack.c.l.b16 %v208
      %v395 = vunpack.c.h.b16 %v208
      %v396 = vunpack.c.l.b16 %v209
      %v397 = vunpack.c.l.b16 %v210
      %v398 = vunpack.c.h.b16 %v210
      %v399 = vunpack.c.l.b16 %v211
      %v400 = vunpack.c.l.b16 %v212
      %v401 = vunpack.c.h.b16 %v212
      %v402 = vunpack.c.l.b16 %v213
      %v403 = vunpack.c.l.b16 %v214
      %v404 = vunpack.c.h.b16 %v214
      %v405 = vunpack.c.l.b16 %v215
      %v406 = vunpack.c.l.b16 %v216
      %v407 = vunpack.c.h.b16 %v216
      %v408 = vunpack.c.l.b16 %v217
      %v409 = vunpack.c.l.b16 %v218
      %v410 = vunpack.c.h.b16 %v218
      %v411 = vunpack.c.l.b16 %v219
      %v412 = vunpack.c.l.b16 %v220
      %v413 = vunpack.c.h.b16 %v220
      %v414 = vunpack.c.l.b16 %v221
      %v415 = vunpack.c.l.b16 %v222
      %v416 = vunpack.c.h.b16 %v222
      %v417 = vunpack.c.l.b16 %v223
      %v418 = vunpack.c.l.b16 %v224
      %v419 = vunpack.c.h.b16 %v224
      %v420 = vunpack.c.l.b16 %v225
      %v421 = vunpack.c.l.b16 %v226
      %v422 = vunpack.c.h.b16 %v226
      %v423 = vunpack.c.l.b16 %v227
      %v424 = vunpack.c.l.b16 %v228
      %v425 = vunpack.c.h.b16 %v228
      %v426 = vunpack.c.l.b16 %v229
      %v427 = vunpack.c.l.b16 %v230
      %v428 = vunpack.c.h.b16 %v230
      %v429 = vunpack.c.l.b16 %v231
      %v430 = vunpack.c.l.b16 %v232
      %v431 = vunpack.c.h.b16 %v232
      %v432 = vunpack.c.l.b16 %v233
      %v433 = vunpack.c.l.b16 %v234
      %v434 = vunpack.c.h.b16 %v234
      %v435 = vunpack.c.l.b16 %v235
      %v436 = vunpack.c.l.b16 %v236
      %v437 = vunpack.c.h.b16 %v236
      %v438 = vunpack.c.l.b16 %v237
      %v439 = vunpack.c.l.b16 %v238
      %v440 = vunpack.c.h.b16 %v238
      %v441 = vunpack.c.l.b16 %v239
      %v442 = vunpack.c.l.b16 %v240
      %v443 = vunpack.c.h.b16 %v240
      %v444 = vunpack.c.l.b16 %v241
      %v445 = vpack.c.b16 %v352, %v349
      %v446 = vpack.c.b16 %v353, %v350
      %v447 = vpack.c.b16 %v354, %v351
      %v448 = vpack.c.b16 %v358, %v355
      %v449 = vpack.c.b16 %v359, %v356
      %v450 = vpack.c.b16 %v360, %v357
      %v451 = vpack.c.b16 %v364, %v361
      %v452 = vpack.c.b16 %v365, %v362
      %v453 = vpack.c.b16 %v366, %v363
      %v454 = vpack.c.b16 %v370, %v367
      %v455 = vpack.c.b16 %v371, %v368
      %v456 = vpack.c.b16 %v372, %v369
      %v457 = vpack.c.b16 %v376, %v373
      %v458 = vpack.c.b16 %v377, %v374
      %v459 = vpack.c.b16 %v378, %v375
      %v460 = vpack.c.b16 %v382, %v379
      %v461 = vpack.c.b16 %v383, %v380
      %v462 = vpack.c.b16 %v384, %v381
      %v463 = vpack.c.b16 %v388, %v385
      %v464 = vpack.c.b16 %v389, %v386
      %v465 = vpack.c.b16 %v390, %v387
      %v466 = vpack.c.b16 %v394, %v391
      %v467 = vpack.c.b16 %v395, %v392
      %v468 = vpack.c.b16 %v396, %v393
      %v469 = vpack.c.b16 %v400, %v397
      %v470 = vpack.c.b16 %v401, %v398
      %v471 = vpack.c.b16 %v402, %v399
      %v472 = vpack.c.b16 %v406, %v403
      %v473 = vpack.c.b16 %v407, %v404
      %v474 = vpack.c.b16 %v408, %v405
      %v475 = vpack.c.b16 %v412, %v409
      %v476 = vpack.c.b16 %v413, %v410
      %v477 = vpack.c.b16 %v414, %v411
      %v478 = vpack.c.b16 %v418, %v415
      %v479 = vpack.c.b16 %v419, %v416
      %v480 = vpack.c.b16 %v420, %v417
      %v481 = vpack.c.b16 %v424, %v421
      %v482 = vpack.c.b16 %v425, %v422
      %v483 = vpack.c.b16 %v426, %v423
      %v484 = vpack.c.b16 %v430, %v427
      %v485 = vpack.c.b16 %v431, %v428
      %v486 = vpack.c.b16 %v432, %v429
      %v487 = vpack.c.b16 %v436, %v433
      %v488 = vpack.c.b16 %v437, %v434
      %v489 = vpack.c.b16 %v438, %v435
      %v490 = vpack.c.b16 %v442, %v439
      %v491 = vpack.c.b16 %v443, %v440
      %v492 = vpack.c.b16 %v444, %v441
      %v561 = vunpack.c.l.b16 %v242
      %v562 = vunpack.c.l.b16 %v243
      %v563 = vunpack.c.l.b16 %v244
      %v564 = vunpack.c.l.b16 %v245
      %v565 = vunpack.c.l.b16 %v246
      %v566 = vunpack.c.l.b16 %v247
      %v567 = vunpack.c.l.b16 %v248
      %v568 = vunpack.c.l.b16 %v249
      %v569 = vunpack.c.l.b16 %v250
      %v570 = vunpack.c.l.b16 %v251
      %v571 = vunpack.c.l.b16 %v252
      %v572 = vunpack.c.l.b16 %v253
      %v573 = vunpack.c.l.b16 %v254
      %v574 = vunpack.c.l.b16 %v255
      %v575 = vunpack.c.l.b16 %v256
      %v576 = vunpack.c.l.b16 %v257
      %v577 = vunpack.c.l.b16 %v258
      %v578 = vunpack.c.l.b16 %v259
      %v579 = vunpack.c.l.b16 %v260
      %v580 = vunpack.c.l.b16 %v261
      %v581 = vunpack.c.l.b16 %v262
      %v582 = vunpack.c.l.b16 %v263
      %v583 = vunpack.c.l.b16 %v264
      %v584 = vunpack.c.l.b16 %v265
      %v585 = vunpack.c.l.b16 %v266
      %v586 = vunpack.c.l.b16 %v267
      %v587 = vunpack.c.l.b16 %v268
      %v588 = vunpack.c.l.b16 %v269
      %v589 = vunpack.c.l.b16 %v270
      %v590 = vunpack.c.l.b16 %v271
      %v591 = vunpack.c.l.b16 %v272
      %v592 = vunpack.c.l.b16 %v273
      %v593 = vunpack.c.l.b16 %v274
      %v594 = vunpack.c.l.b16 %v275
      %v595 = vunpack.c.l.b16 %v276
      %v596 = vunpack.c.l.b16 %v277
      %v597 = vpack.c.b16 %v562, %v561
      %v598 = vpack.c.b16 %v564, %v563
      %v599 = vpack.c.b16 %v566, %v565
      %v600 = vpack.c.b16 %v568, %v567
      %v601 = vpack.c.b16 %v570, %v569
      %v602 = vpack.c.b16 %v572, %v571
      %v603 = vpack.c.b16 %v574, %v573
      %v604 = vpack.c.b16 %v576, %v575
      %v605 = vpack.c.b16 %v578, %v577
      %v606 = vpack.c.b16 %v580, %v579
      %v607 = vpack.c.b16 %v582, %v581
      %v608 = vpack.c.b16 %v584, %v583
      %v609 = vpack.c.b16 %v586, %v585
      %v610 = vpack.c.b16 %v588, %v587
      %v611 = vpack.c.b16 %v590, %v589
      %v612 = vpack.c.b16 %v592, %v591
      %v613 = vpack.c.b16 %v594, %v593
      %v614 = vpack.c.b16 %v596, %v595
      %vm633 = vcmask 261120
      %v635 = vsel %vm633, %v447, 0
      %v638 = vsel %vm633, %v450, 0
      %v641 = vsel %vm633, %v453, 0
      %v644 = vsel %vm633, %v456, 0
      %v647 = vsel %vm633, %v459, 0
      %v650 = vsel %vm633, %v462, 0
      %v653 = vsel %vm633, %v465, 0
      %v656 = vsel %vm633, %v468, 0
      %v659 = vsel %vm633, %v471, 0
      %v662 = vsel %vm633, %v474, 0
      %v665 = vsel %vm633, %v477, 0
      %v668 = vsel %vm633, %v480, 0
      %v671 = vsel %vm633, %v483, 0
      %v674 = vsel %vm633, %v486, 0
      %v677 = vsel %vm633, %v489, 0
      %v680 = vsel %vm633, %v492, 0
      %682 = vmatprep.subr.bf16.mxu0 0
      %683 = vmatpush1.bf16.msra.mxu0 %v604
      %684 = vmatprep.subr.bf16.mxu0 0
      %685 = vmatpush1.bf16.msra.mxu0 %v603
      %686 = vmatprep.subr.bf16.mxu0 0
      %687 = vmatpush1.bf16.msra.mxu0 %v602
      %688 = vmatprep.subr.bf16.mxu0 0
      %689 = vmatpush1.bf16.msra.mxu0 %v601
      %690 = vmatprep.subr.bf16.mxu0 0
      %691 = vmatpush1.bf16.msra.mxu0 %v600
      %692 = vmatprep.subr.bf16.mxu0 0
      %693 = vmatpush1.bf16.msra.mxu0 %v599
      %694 = vmatprep.subr.bf16.mxu0 0
      %695 = vmatpush1.bf16.msra.mxu0 %v598
      %696 = vmatprep.subr.bf16.mxu0 0
      %697 = vmatpush1.bf16.msra.mxu0 %v597
      %698 = vmatprep.subr.bf16.mxu0 0
      %699 = vmatpush2.bf16.msra.mxu0 %v612
      %700 = vmatprep.subr.bf16.mxu0 0
      %701 = vmatpush2.bf16.msra.mxu0 %v611
      %702 = vmatprep.subr.bf16.mxu0 0
      %703 = vmatpush2.bf16.msra.mxu0 %v610
      %704 = vmatprep.subr.bf16.mxu0 0
      %705 = vmatpush2.bf16.msra.mxu0 %v609
      %706 = vmatprep.subr.bf16.mxu0 0
      %707 = vmatpush2.bf16.msra.mxu0 %v608
      %708 = vmatprep.subr.bf16.mxu0 0
      %709 = vmatpush2.bf16.msra.mxu0 %v607
      %710 = vmatprep.subr.bf16.mxu0 0
      %711 = vmatpush2.bf16.msra.mxu0 %v606
      %712 = vmatprep.subr.bf16.mxu0 0
      %713 = vmatpush2.bf16.msra.mxu0 %v605
      %714 = vmatprep.mubr.bf16.mxu0 %v446
      %715 = vmatmul.mubr.bf16.gmra.mxu0 %v445
      %v716 = vpop.f32.mrf.mxu0
      %v717 = vadd.f32 %v283, %v716
      %v718 = vpop.f32.mrf.mxu0
      %v719 = vpop.f32.mrf.mxu0
      %v720 = vadd.f32 %v283, %v719
      %v721 = vpop.f32.mrf.mxu0
      %722 = vmatprep.mubr.bf16.mxu0 %v449
      %723 = vmatmul.mubr.bf16.gmra.mxu0 %v448
      %v724 = vpop.f32.mrf.mxu0
      %v725 = vadd.f32 %v283, %v724
      %v726 = vpop.f32.mrf.mxu0
      %v727 = vpop.f32.mrf.mxu0
      %v728 = vadd.f32 %v283, %v727
      %v729 = vpop.f32.mrf.mxu0
      %730 = vmatprep.mubr.bf16.mxu0 %v452
      %731 = vmatmul.mubr.bf16.gmra.mxu0 %v451
      %v732 = vpop.f32.mrf.mxu0
      %v733 = vadd.f32 %v283, %v732
      %v734 = vpop.f32.mrf.mxu0
      %v735 = vpop.f32.mrf.mxu0
      %v736 = vadd.f32 %v283, %v735
      %v737 = vpop.f32.mrf.mxu0
      %738 = vmatprep.mubr.bf16.mxu0 %v455
      %739 = vmatmul.mubr.bf16.gmra.mxu0 %v454
      %v740 = vpop.f32.mrf.mxu0
      %v741 = vadd.f32 %v283, %v740
      %v742 = vpop.f32.mrf.mxu0
      %v743 = vpop.f32.mrf.mxu0
      %v744 = vadd.f32 %v283, %v743
      %v745 = vpop.f32.mrf.mxu0
      %746 = vmatprep.mubr.bf16.mxu0 %v458
      %747 = vmatmul.mubr.bf16.gmra.mxu0 %v457
      %v748 = vpop.f32.mrf.mxu0
      %v749 = vadd.f32 %v283, %v748
      %v750 = vpop.f32.mrf.mxu0
      %v751 = vpop.f32.mrf.mxu0
      %v752 = vadd.f32 %v283, %v751
      %v753 = vpop.f32.mrf.mxu0
      %754 = vmatprep.mubr.bf16.mxu0 %v461
      %755 = vmatmul.mubr.bf16.gmra.mxu0 %v460
      %v756 = vpop.f32.mrf.mxu0
      %v757 = vadd.f32 %v283, %v756
      %v758 = vpop.f32.mrf.mxu0
      %v759 = vpop.f32.mrf.mxu0
      %v760 = vadd.f32 %v283, %v759
      %v761 = vpop.f32.mrf.mxu0
      %762 = vmatprep.mubr.bf16.mxu0 %v464
      %763 = vmatmul.mubr.bf16.gmra.mxu0 %v463
      %v764 = vpop.f32.mrf.mxu0
      %v765 = vadd.f32 %v283, %v764
      %v766 = vpop.f32.mrf.mxu0
      %v767 = vpop.f32.mrf.mxu0
      %v768 = vadd.f32 %v283, %v767
      %v769 = vpop.f32.mrf.mxu0
      %770 = vmatprep.mubr.bf16.mxu0 %v467
      %771 = vmatmul.mubr.bf16.gmra.mxu0 %v466
      %v772 = vpop.f32.mrf.mxu0
      %v773 = vadd.f32 %v283, %v772
      %v774 = vpop.f32.mrf.mxu0
      %v775 = vpop.f32.mrf.mxu0
      %v776 = vadd.f32 %v283, %v775
      %v777 = vpop.f32.mrf.mxu0
      %778 = vmatprep.mubr.bf16.mxu0 %v470
      %779 = vmatmul.mubr.bf16.gmra.mxu0 %v469
      %v780 = vpop.f32.mrf.mxu0
      %v781 = vadd.f32 %v283, %v780
      %v782 = vpop.f32.mrf.mxu0
      %v783 = vpop.f32.mrf.mxu0
      %v784 = vadd.f32 %v283, %v783
      %v785 = vpop.f32.mrf.mxu0
      %786 = vmatprep.mubr.bf16.mxu0 %v473
      %787 = vmatmul.mubr.bf16.gmra.mxu0 %v472
      %v788 = vpop.f32.mrf.mxu0
      %v789 = vadd.f32 %v283, %v788
      %v790 = vpop.f32.mrf.mxu0
      %v791 = vpop.f32.mrf.mxu0
      %v792 = vadd.f32 %v283, %v791
      %v793 = vpop.f32.mrf.mxu0
      %794 = vmatprep.mubr.bf16.mxu0 %v476
      %795 = vmatmul.mubr.bf16.gmra.mxu0 %v475
      %v796 = vpop.f32.mrf.mxu0
      %v797 = vadd.f32 %v283, %v796
      %v798 = vpop.f32.mrf.mxu0
      %v799 = vpop.f32.mrf.mxu0
      %v800 = vadd.f32 %v283, %v799
      %v801 = vpop.f32.mrf.mxu0
      %802 = vmatprep.mubr.bf16.mxu0 %v479
      %803 = vmatmul.mubr.bf16.gmra.mxu0 %v478
      %v804 = vpop.f32.mrf.mxu0
      %v805 = vadd.f32 %v283, %v804
      %v806 = vpop.f32.mrf.mxu0
      %v807 = vpop.f32.mrf.mxu0
      %v808 = vadd.f32 %v283, %v807
      %v809 = vpop.f32.mrf.mxu0
      %810 = vmatprep.mubr.bf16.mxu0 %v482
      %811 = vmatmul.mubr.bf16.gmra.mxu0 %v481
      %v812 = vpop.f32.mrf.mxu0
      %v813 = vadd.f32 %v283, %v812
      %v814 = vpop.f32.mrf.mxu0
      %v815 = vpop.f32.mrf.mxu0
      %v816 = vadd.f32 %v283, %v815
      %v817 = vpop.f32.mrf.mxu0
      %818 = vmatprep.mubr.bf16.mxu0 %v485
      %819 = vmatmul.mubr.bf16.gmra.mxu0 %v484
      %v820 = vpop.f32.mrf.mxu0
      %v821 = vadd.f32 %v283, %v820
      %v822 = vpop.f32.mrf.mxu0
      %v823 = vpop.f32.mrf.mxu0
      %v824 = vadd.f32 %v283, %v823
      %v825 = vpop.f32.mrf.mxu0
      %826 = vmatprep.mubr.bf16.mxu0 %v488
      %827 = vmatmul.mubr.bf16.gmra.mxu0 %v487
      %v828 = vpop.f32.mrf.mxu0
      %v829 = vadd.f32 %v283, %v828
      %v830 = vpop.f32.mrf.mxu0
      %v831 = vpop.f32.mrf.mxu0
      %v832 = vadd.f32 %v283, %v831
      %v833 = vpop.f32.mrf.mxu0
      %834 = vmatprep.mubr.bf16.mxu0 %v491
      %835 = vmatmul.mubr.bf16.gmra.mxu0 %v490
      %v836 = vpop.f32.mrf.mxu0
      %v837 = vadd.f32 %v283, %v836
      %v838 = vpop.f32.mrf.mxu0
      %v839 = vpop.f32.mrf.mxu0
      %v840 = vadd.f32 %v283, %v839
      %v841 = vpop.f32.mrf.mxu0
      %842 = vdwg.mxu0
      %843 = vmatprep.subr.bf16.mxu0 0
      %844 = vmatpush1.bf16.msra.mxu0 0
      %845 = vmatprep.subr.bf16.mxu0 0
      %846 = vmatpush1.bf16.msra.mxu0 0
      %847 = vmatprep.subr.bf16.mxu0 0
      %848 = vmatpush1.bf16.msra.mxu0 0
      %849 = vmatprep.subr.bf16.mxu0 0
      %850 = vmatpush1.bf16.msra.mxu0 0
      %851 = vmatprep.subr.bf16.mxu0 0
      %852 = vmatpush1.bf16.msra.mxu0 0
      %853 = vmatprep.subr.bf16.mxu0 0
      %854 = vmatpush1.bf16.msra.mxu0 0
      %855 = vmatprep.subr.bf16.mxu0 0
      %856 = vmatpush1.bf16.msra.mxu0 %v614
      %857 = vmatprep.subr.bf16.mxu0 0
      %858 = vmatpush1.bf16.msra.mxu0 %v613
      %859 = vmatprep.subr.bf16.mxu0 0
      %860 = vmatpush2.bf16.msra.mxu0 0
      %861 = vmatprep.subr.bf16.mxu0 0
      %862 = vmatpush2.bf16.msra.mxu0 0
      %863 = vmatprep.subr.bf16.mxu0 0
      %864 = vmatpush2.bf16.msra.mxu0 0
      %865 = vmatprep.subr.bf16.mxu0 0
      %866 = vmatpush2.bf16.msra.mxu0 0
      %867 = vmatprep.subr.bf16.mxu0 0
      %868 = vmatpush2.bf16.msra.mxu0 0
      %869 = vmatprep.subr.bf16.mxu0 0
      %870 = vmatpush2.bf16.msra.mxu0 0
      %871 = vmatprep.subr.bf16.mxu0 0
      %872 = vmatpush2.bf16.msra.mxu0 0
      %873 = vmatprep.subr.bf16.mxu0 0
      %874 = vmatpush2.bf16.msra.mxu0 0
      %875 = vmatprep.mubr.bf16.mxu0 0
      %876 = vmatmul.mubr.bf16.gmra.mxu0 %v635
      %v877 = vpop.f32.mrf.mxu0
      %v878 = vadd.f32 %v717, %v877
      %v879 = vpop.f32.mrf.mxu0
      %v880 = vpop.f32.mrf.mxu0
      %v881 = vadd.f32 %v720, %v880
      %v882 = vpop.f32.mrf.mxu0
      %883 = vmatprep.mubr.bf16.mxu0 0
      %884 = vmatmul.mubr.bf16.gmra.mxu0 %v638
      %v885 = vpop.f32.mrf.mxu0
      %v886 = vadd.f32 %v725, %v885
      %v887 = vpop.f32.mrf.mxu0
      %v888 = vpop.f32.mrf.mxu0
      %v889 = vadd.f32 %v728, %v888
      %v890 = vpop.f32.mrf.mxu0
      %891 = vmatprep.mubr.bf16.mxu0 0
      %892 = vmatmul.mubr.bf16.gmra.mxu0 %v641
      %v893 = vpop.f32.mrf.mxu0
      %v894 = vadd.f32 %v733, %v893
      %v895 = vpop.f32.mrf.mxu0
      %v896 = vpop.f32.mrf.mxu0
      %v897 = vadd.f32 %v736, %v896
      %v898 = vpop.f32.mrf.mxu0
      %899 = vmatprep.mubr.bf16.mxu0 0
      %900 = vmatmul.mubr.bf16.gmra.mxu0 %v644
      %v901 = vpop.f32.mrf.mxu0
      %v902 = vadd.f32 %v741, %v901
      %v903 = vpop.f32.mrf.mxu0
      %v904 = vpop.f32.mrf.mxu0
      %v905 = vadd.f32 %v744, %v904
      %v906 = vpop.f32.mrf.mxu0
      %907 = vmatprep.mubr.bf16.mxu0 0
      %908 = vmatmul.mubr.bf16.gmra.mxu0 %v647
      %v909 = vpop.f32.mrf.mxu0
      %v910 = vadd.f32 %v749, %v909
      %v911 = vpop.f32.mrf.mxu0
      %v912 = vpop.f32.mrf.mxu0
      %v913 = vadd.f32 %v752, %v912
      %v914 = vpop.f32.mrf.mxu0
      %915 = vmatprep.mubr.bf16.mxu0 0
      %916 = vmatmul.mubr.bf16.gmra.mxu0 %v650
      %v917 = vpop.f32.mrf.mxu0
      %v918 = vadd.f32 %v757, %v917
      %v919 = vpop.f32.mrf.mxu0
      %v920 = vpop.f32.mrf.mxu0
      %v921 = vadd.f32 %v760, %v920
      %v922 = vpop.f32.mrf.mxu0
      %923 = vmatprep.mubr.bf16.mxu0 0
      %924 = vmatmul.mubr.bf16.gmra.mxu0 %v653
      %v925 = vpop.f32.mrf.mxu0
      %v926 = vadd.f32 %v765, %v925
      %v927 = vpop.f32.mrf.mxu0
      %v928 = vpop.f32.mrf.mxu0
      %v929 = vadd.f32 %v768, %v928
      %v930 = vpop.f32.mrf.mxu0
      %931 = vmatprep.mubr.bf16.mxu0 0
      %932 = vmatmul.mubr.bf16.gmra.mxu0 %v656
      %v933 = vpop.f32.mrf.mxu0
      %v934 = vadd.f32 %v773, %v933
      %v935 = vpop.f32.mrf.mxu0
      %v936 = vpop.f32.mrf.mxu0
      %v937 = vadd.f32 %v776, %v936
      %v938 = vpop.f32.mrf.mxu0
      %939 = vmatprep.mubr.bf16.mxu0 0
      %940 = vmatmul.mubr.bf16.gmra.mxu0 %v659
      %v941 = vpop.f32.mrf.mxu0
      %v942 = vadd.f32 %v781, %v941
      %v943 = vpop.f32.mrf.mxu0
      %v944 = vpop.f32.mrf.mxu0
      %v945 = vadd.f32 %v784, %v944
      %v946 = vpop.f32.mrf.mxu0
      %947 = vmatprep.mubr.bf16.mxu0 0
      %948 = vmatmul.mubr.bf16.gmra.mxu0 %v662
      %v949 = vpop.f32.mrf.mxu0
      %v950 = vadd.f32 %v789, %v949
      %v951 = vpop.f32.mrf.mxu0
      %v952 = vpop.f32.mrf.mxu0
      %v953 = vadd.f32 %v792, %v952
      %v954 = vpop.f32.mrf.mxu0
      %955 = vmatprep.mubr.bf16.mxu0 0
      %956 = vmatmul.mubr.bf16.gmra.mxu0 %v665
      %v957 = vpop.f32.mrf.mxu0
      %v958 = vadd.f32 %v797, %v957
      %v959 = vpop.f32.mrf.mxu0
      %v960 = vpop.f32.mrf.mxu0
      %v961 = vadd.f32 %v800, %v960
      %v962 = vpop.f32.mrf.mxu0
      %963 = vmatprep.mubr.bf16.mxu0 0
      %964 = vmatmul.mubr.bf16.gmra.mxu0 %v668
      %v965 = vpop.f32.mrf.mxu0
      %v966 = vadd.f32 %v805, %v965
      %v967 = vpop.f32.mrf.mxu0
      %v968 = vpop.f32.mrf.mxu0
      %v969 = vadd.f32 %v808, %v968
      %v970 = vpop.f32.mrf.mxu0
      %971 = vmatprep.mubr.bf16.mxu0 0
      %972 = vmatmul.mubr.bf16.gmra.mxu0 %v671
      %v973 = vpop.f32.mrf.mxu0
      %v974 = vadd.f32 %v813, %v973
      %v975 = vpop.f32.mrf.mxu0
      %v976 = vpop.f32.mrf.mxu0
      %v977 = vadd.f32 %v816, %v976
      %v978 = vpop.f32.mrf.mxu0
      %979 = vmatprep.mubr.bf16.mxu0 0
      %980 = vmatmul.mubr.bf16.gmra.mxu0 %v674
      %v981 = vpop.f32.mrf.mxu0
      %v982 = vadd.f32 %v821, %v981
      %v983 = vpop.f32.mrf.mxu0
      %v984 = vpop.f32.mrf.mxu0
      %v985 = vadd.f32 %v824, %v984
      %v986 = vpop.f32.mrf.mxu0
      %987 = vmatprep.mubr.bf16.mxu0 0
      %988 = vmatmul.mubr.bf16.gmra.mxu0 %v677
      %v989 = vpop.f32.mrf.mxu0
      %v990 = vadd.f32 %v829, %v989
      %v991 = vpop.f32.mrf.mxu0
      %v992 = vpop.f32.mrf.mxu0
      %v993 = vadd.f32 %v832, %v992
      %v994 = vpop.f32.mrf.mxu0
      %995 = vmatprep.mubr.bf16.mxu0 0
      %996 = vmatmul.mubr.bf16.gmra.mxu0 %v680
      %v997 = vpop.f32.mrf.mxu0
      %v998 = vadd.f32 %v837, %v997
      %v999 = vpop.f32.mrf.mxu0
      %v1000 = vpop.f32.mrf.mxu0
      %v1001 = vadd.f32 %v840, %v1000
      %v1002 = vpop.f32.mrf.mxu0
      %1003 = vdwg.mxu0
      %vm1004 = vcmask 15360
      %1005 = vst.msk [vmem:[%s175] sm:$0xff] %vm1004, %v878
      %1006 = vst.msk [vmem:[%s175 + $0x8] sm:$0xff] %vm1004, %v881
      %1007 = vst.msk [vmem:[%s175 + $0x10] sm:$0xff] %vm1004, %v886
      %1008 = vst.msk [vmem:[%s175 + $0x18] sm:$0xff] %vm1004, %v889
      %1009 = vst.msk [vmem:[%s175 + $0x20] sm:$0xff] %vm1004, %v894
      %1010 = vst.msk [vmem:[%s175 + $0x28] sm:$0xff] %vm1004, %v897
      %1011 = vst.msk [vmem:[%s175 + $0x30] sm:$0xff] %vm1004, %v902
      %1012 = vst.msk [vmem:[%s175 + $0x38] sm:$0xff] %vm1004, %v905
      %1013 = vst.msk [vmem:[%s175 + $0x40] sm:$0xff] %vm1004, %v910
      %1014 = vst.msk [vmem:[%s175 + $0x48] sm:$0xff] %vm1004, %v913
      %1015 = vst.msk [vmem:[%s175 + $0x50] sm:$0xff] %vm1004, %v918
      %1016 = vst.msk [vmem:[%s175 + $0x58] sm:$0xff] %vm1004, %v921
      %1017 = vst.msk [vmem:[%s175 + $0x60] sm:$0xff] %vm1004, %v926
      %1018 = vst.msk [vmem:[%s175 + $0x68] sm:$0xff] %vm1004, %v929
      %1019 = vst.msk [vmem:[%s175 + $0x70] sm:$0xff] %vm1004, %v934
      %1020 = vst.msk [vmem:[%s175 + $0x78] sm:$0xff] %vm1004, %v937
      %1021 = vst.msk [vmem:[%s175 + $0x80] sm:$0xff] %vm1004, %v942
      %1022 = vst.msk [vmem:[%s175 + $0x88] sm:$0xff] %vm1004, %v945
      %1023 = vst.msk [vmem:[%s175 + $0x90] sm:$0xff] %vm1004, %v950
      %1024 = vst.msk [vmem:[%s175 + $0x98] sm:$0xff] %vm1004, %v953
      %1025 = vst.msk [vmem:[%s175 + $0xa0] sm:$0xff] %vm1004, %v958
      %1026 = vst.msk [vmem:[%s175 + $0xa8] sm:$0xff] %vm1004, %v961
      %1027 = vst.msk [vmem:[%s175 + $0xb0] sm:$0xff] %vm1004, %v966
      %1028 = vst.msk [vmem:[%s175 + $0xb8] sm:$0xff] %vm1004, %v969
      %1029 = vst.msk [vmem:[%s175 + $0xc0] sm:$0xff] %vm1004, %v974
      %1030 = vst.msk [vmem:[%s175 + $0xc8] sm:$0xff] %vm1004, %v977
      %1031 = vst.msk [vmem:[%s175 + $0xd0] sm:$0xff] %vm1004, %v982
      %1032 = vst.msk [vmem:[%s175 + $0xd8] sm:$0xff] %vm1004, %v985
      %1033 = vst.msk [vmem:[%s175 + $0xe0] sm:$0xff] %vm1004, %v990
      %1034 = vst.msk [vmem:[%s175 + $0xe8] sm:$0xff] %vm1004, %v993
      %1035 = vst.msk [vmem:[%s175 + $0xf0] sm:$0xff] %vm1004, %v998
      %1036 = vst.msk [vmem:[%s175 + $0xf8] sm:$0xff] %vm1004, %v1001
      %s1037 = smul.u32 32, %s14
      %p1038 = scmp.lt.s32.totalorder %s1037, 63
      %s1039 = scalar_select %p1038, %s1037, 63
      %s1040 = smul.addr %s1039, 8
      %s1041 = scalar_lea.vmem %s3, %s1040
      // Predicated region
      $region33: #{_lambda_.35} parent=31 // pred_check
        %p1042 = pneg %p100
      $region34: #{_lambda_.35} parent=31 // pred_check_branch
        %1044 = sbr.rel (%p1042) target = $region36
      $region35: #{_lambda_.35} parent=31 // pred_region
        %s1045 = smul.u32 32, %s14
      $region36: #{_lambda_.35} parent=31 // pred_fallthru
        _
    $region32: #{_lambda_.35} parent=5 // pred_fallthru
      _
    %p1046 = scmp.le.s32.totalorder 2, %s9
    // Predicated region
    $region37: #{_lambda_.35} parent=5 // pred_check
      %p1047 = pneg %p1046
    $region38: #{_lambda_.35} parent=5 // pred_check_branch
      %1049 = sbr.rel (%p1047) target = $region40
    $region39: #{_lambda_.35} parent=5 // pred_region
      %s1050 = ssub.s32 %s9, 2
      // Predicated region
      $region41: #{_lambda_.35} parent=39 // pred_check
        %p1051 = pneg %p106
      $region42: #{_lambda_.35} parent=39 // pred_check_branch
        %1053 = sbr.rel (%p1051) target = $region44
      $region43: #{_lambda_.35} parent=39 // pred_region
        %s1054 = smul.u32 32, %s15
        %p1055 = scmp.lt.s32.totalorder %s1054, 63
        %s1056 = scalar_select %p1055, %s1054, 63
        %s1057 = smul.addr %s1056, 8
        %s1058 = scalar_lea.vmem %s3, %s1057
      $region44: #{_lambda_.35} parent=39 // pred_fallthru
        _
    $region40: #{_lambda_.35} parent=5 // pred_fallthru
      _
  $region6: #{_lambda_.35} parent=0 // loop_footer
    %s13 = sadd.s32 1, %s9
  $region7: #{_lambda_.35} parent=0 // loop_footer_branch
    %8 = sbr.rel target = $region3
  $region8: #{_lambda_.35} parent=0 // loop_exit
    _

</llo_original>
